<compile_context>
chip_gen: v5e
topology: v5e:2x2
jax: 0.10.0
libtpu: 0.0.40
codegen_flags: <defaults>
</compile_context>

<pallas_src>
import math

import jax
import jax.numpy as jnp
from jax.experimental import pallas as pl
from jax.experimental.pallas import tpu as pltpu

DSED = 256            # diffusion_step_embed_dim (module default)
HALF = DSED // 2


def _round_up(a, m):
    return ((a + m - 1) // m) * m


def _default_act_dtype():
    """bf16 activations on chips with a bf16 VPU/EUP (v6e, v7x); f32 otherwise."""
    try:
        kind = jax.devices()[0].device_kind.lower()
    except Exception:
        return jnp.float32
    if any(tag in kind for tag in ("v2", "v3", "v4", "v5")):
        return jnp.float32
    return jnp.bfloat16


def make_mlp_kernel(act_dtype):
    def mlp_kernel(t_ref, xc_ref,
                   freqs_ref, w1e_ref, b1e_ref, w2e_ref, b2e_ref,
                   w1g_ref, w1xc_ref, b1_ref, w2_ref, b2_ref, w3_ref, b3_ref,
                   out_ref):
        bf16 = jnp.bfloat16
        f32 = jnp.float32

        # ---- SinusoidalPosEmb(dsed, max_value=action_horizon) ----
        # TODO(synk): exact `max_value` semantics of SinusoidalPosEmb assumed to
        #             be timestep / max_value pre-scaling (done in the wrapper)
        #             before the standard sin/cos embedding.
        t = t_ref[...]                                               # [bb, 1] f32
        ang = t * freqs_ref[...]                                     # [bb, HALF]
        emb = jnp.concatenate([jnp.sin(ang), jnp.cos(ang)],
                              axis=-1).astype(bf16)                  # [bb, DSED]

        # ---- diffusion_step_encoder: Linear -> Mish -> Linear ----
        h = jnp.dot(emb, w1e_ref[...],
                    preferred_element_type=f32) + b1e_ref[...]       # [bb, 4*DSED] f32
        # Mish with a single exp: tanh(softplus(h)) = (s^2-1)/(s^2+1), s = 1+e^h.
        s = 1.0 + jnp.exp(jnp.minimum(h, 20.0))
        s2 = s * s
        h = h * (s2 - 1.0) * pl.reciprocal(s2 + 1.0, approx=True)
        gf = (jnp.dot(h.astype(bf16), w2e_ref[...],
                      preferred_element_type=f32) + b2e_ref[...]).astype(bf16)  # [bb, DSED]

        # ---- blocks.dense1: gf-dot + merged (x, cond)-dot (K padded to 128) ----
        h1 = (jnp.dot(gf, w1g_ref[...], preferred_element_type=f32)
              + jnp.dot(xc_ref[...].astype(bf16), w1xc_ref[...],
                        preferred_element_type=f32)
              + b1_ref[...])
        h1 = jnp.maximum(h1.astype(act_dtype), 0.0)                  # ReLU

        # ---- blocks.dense2 -> ReLU -> output -> Sigmoid ----
        h2 = jnp.dot(h1.astype(bf16), w2_ref[...],
                     preferred_element_type=f32) + b2_ref[...]
        h2 = jnp.maximum(h2.astype(act_dtype), 0.0)
        o = jnp.dot(h2.astype(bf16), w3_ref[...],
                    preferred_element_type=f32) + b3_ref[...]
        out_ref[...] = pl.reciprocal(1.0 + jnp.exp(-o), approx=True)  # Sigmoid (EUP)

    return mlp_kernel


def init_params(key, x_dim, cond_dim, out_channels, dsed=DSED):
    """torch.nn.Linear-style init (uniform +-1/sqrt(fan_in)); weights stored bf16
    in the layout the kernel wants (w1 split into gf / merged-xc pieces, the xc
    piece zero-padded along K to a 128-multiple, w3/b3 padded to 128 lanes)."""
    in_channels = dsed + x_dim + cond_dim

    def linear(k, fan_in, fan_out):
        bound = 1.0 / math.sqrt(fan_in)
        kw, kb = jax.random.split(k)
        w = jax.random.uniform(kw, (fan_in, fan_out), jnp.float32, -bound, bound)
        b = jax.random.uniform(kb, (1, fan_out), jnp.float32, -bound, bound)
        return w, b

    keys = jax.random.split(key, 5)
    w1e, b1e = linear(keys[0], dsed, dsed * 4)
    w2e, b2e = linear(keys[1], dsed * 4, dsed)
    w1, b1 = linear(keys[2], in_channels, 2048)
    w2, b2 = linear(keys[3], 2048, 512)
    w3, b3 = linear(keys[4], 512, out_channels)

    xc_dim = x_dim + cond_dim
    xc_pad = _round_up(xc_dim, 128)
    oc_pad = _round_up(out_channels, 128)

    w1_gf = w1[:dsed]
    w1_xc = jnp.pad(w1[dsed:], ((0, xc_pad - xc_dim), (0, 0)))
    w3_p = jnp.pad(w3, ((0, 0), (0, oc_pad - out_channels)))
    b3_p = jnp.pad(b3, ((0, 0), (0, oc_pad - out_channels)))

    bf = lambda a: a.astype(jnp.bfloat16)
    return dict(
        w1e=bf(w1e), b1e=b1e, w2e=bf(w2e), b2e=b2e,
        w1_gf=bf(w1_gf), w1_xc=bf(w1_xc), b1=b1,
        w2=bf(w2), b2=b2, w3=bf(w3_p), b3=b3_p,
        x_dim=x_dim, cond_dim=cond_dim, out_channels=out_channels)


def mlp_forward(x, cond, timestep, params, action_horizon,
                block_b=256, act_dtype=None):
    """Pallas-backed equivalent of MLP.forward(x, cond, timestep)."""
    B, x_dim = x.shape
    out_channels = params["out_channels"]
    oc_pad = params["w3"].shape[1]
    xc_pad = params["w1_xc"].shape[0]
    if act_dtype is None:
        act_dtype = _default_act_dtype()

    ts = jnp.asarray(timestep)
    if ts.ndim == 0:
        ts = ts[None]
    ts = jnp.broadcast_to(ts, (B,)).astype(jnp.float32)
    t_norm = (ts / float(action_horizon)).reshape(B, 1)  # SinusoidalPosEmb max_value scaling

    # Merge (x, cond) and zero-pad the K dim to a 128-multiple (layout plumbing).
    xc = jnp.concatenate([x.astype(jnp.float32), cond.astype(jnp.float32)], axis=-1)
    xc = jnp.pad(xc, ((0, 0), (0, xc_pad - xc.shape[1])))

    # Batch tiling. For B > 16 force >= 2 grid steps so the "parallel" batch
    # axis can shard across both v7x TensorCores; weights stay VMEM-resident
    # across steps via constant index_maps.
    if B <= 16:
        bb, Bp = B, B
    else:
        bb = min(block_b, _round_up(-(-B // 2), 8))
        Bp = _round_up(B, bb)
    if Bp != B:
        pad = Bp - B
        t_norm = jnp.pad(t_norm, ((0, pad), (0, 0)))
        xc = jnp.pad(xc, ((0, pad), (0, 0)))

    # Constant sinusoidal frequency table, hoisted out of the kernel body.
    k = jnp.arange(HALF, dtype=jnp.float32)[None, :]
    freqs = jnp.exp(k * (-math.log(10000.0) / (HALF - 1)))

    weights = [freqs,
               params["w1e"], params["b1e"], params["w2e"], params["b2e"],
               params["w1_gf"], params["w1_xc"], params["b1"],
               params["w2"], params["b2"], params["w3"], params["b3"]]

    def row_spec(width):
        return pl.BlockSpec((bb, width), lambda i: (i, 0))

    def resident_spec(arr):
        return pl.BlockSpec(arr.shape, lambda i: (0, 0))   # same block every step

    out = pl.pallas_call(
        make_mlp_kernel(act_dtype),
        out_shape=jax.ShapeDtypeStruct((Bp, oc_pad), jnp.float32),
        grid=(Bp // bb,),
        in_specs=([row_spec(1), row_spec(xc_pad)]
                  + [resident_spec(w) for w in weights]),
        out_specs=pl.BlockSpec((bb, oc_pad), lambda i: (i, 0)),
        compiler_params=pltpu.CompilerParams(
            dimension_semantics=("parallel",),
            vmem_limit_bytes=48 * 1024 * 1024,
        ),
    )(t_norm, xc, *weights)
    return out[:B, :out_channels]


def mlp_reference(x, cond, timestep, params, action_horizon):
    """Pure-JAX f32-math reference (same bf16 weights) for validation.
    Note: this checks the kernel implementation, not bf16-weight quantization
    error vs. a hypothetical f32 torch checkpoint (by design)."""
    f32 = lambda a: jnp.asarray(a, jnp.float32)
    B = x.shape[0]
    ts = jnp.broadcast_to(jnp.asarray(timestep), (B,)).astype(jnp.float32)
    t = (ts / float(action_horizon))[:, None]
    k = jnp.arange(HALF, dtype=jnp.float32)[None, :]
    freqs = jnp.exp(k * (-math.log(10000.0) / (HALF - 1)))
    ang = t * freqs
    emb = jnp.concatenate([jnp.sin(ang), jnp.cos(ang)], axis=-1)
    h = emb @ f32(params["w1e"]) + params["b1e"]
    h = h * jnp.tanh(jax.nn.softplus(h))
    gf = h @ f32(params["w2e"]) + params["b2e"]
    xc_dim = params["x_dim"] + params["cond_dim"]
    w1 = jnp.concatenate([f32(params["w1_gf"]), f32(params["w1_xc"])[:xc_dim]], axis=0)
    feat = jnp.concatenate([gf, x, cond], axis=-1)
    h1 = jnp.maximum(feat @ w1 + params["b1"], 0.0)
    h2 = jnp.maximum(h1 @ f32(params["w2"]) + params["b2"], 0.0)
    oc = params["out_channels"]
    o = h2 @ f32(params["w3"])[:, :oc] + params["b3"][:, :oc]
    return jax.nn.sigmoid(o)


if __name__ == "__main__":
    # Small, module-consistent shapes:
    #   x: [B, x_dim], cond: [B, cond_dim]
    #   in_channels = dsed + x_dim + cond_dim (required by blocks.dense1)
    B, x_dim, cond_dim = 2, 32, 16
    out_channels = 8
    action_horizon = 16

    key = jax.random.PRNGKey(0)
    kx, kc, kp = jax.random.split(key, 3)
    x = jax.random.normal(kx, (B, x_dim), jnp.float32)
    cond = jax.random.normal(kc, (B, cond_dim), jnp.float32)
    timestep = 3  # python int, like a torch scalar timestep

    params = init_params(kp, x_dim, cond_dim, out_channels)

    out = jax.block_until_ready(mlp_forward(x, cond, timestep, params, action_horizon))
    ref = mlp_reference(x, cond, timestep, params, action_horizon)

    assert out.shape == (B, out_channels)
    assert bool(jnp.all((out >= -1e-3) & (out <= 1.0 + 1e-3)))      # sigmoid range
    assert bool(jnp.allclose(out, ref, atol=5e-2, rtol=0.0))        # matches f32 reference
    print("KERNEL_OK")
</pallas_src>

<mosaic_0001>
module attributes {stable_mosaic.version = 11 : i64} {
  func.func @mlp_kernel(%arg0: i32, %arg1: memref<2x1xf32, #tpu.memory_space<vmem>>, %arg2: memref<2x128xf32, #tpu.memory_space<vmem>>, %arg3: memref<1x128xf32, #tpu.memory_space<vmem>>, %arg4: memref<256x1024xbf16, #tpu.memory_space<vmem>>, %arg5: memref<1x1024xf32, #tpu.memory_space<vmem>>, %arg6: memref<1024x256xbf16, #tpu.memory_space<vmem>>, %arg7: memref<1x256xf32, #tpu.memory_space<vmem>>, %arg8: memref<256x2048xbf16, #tpu.memory_space<vmem>>, %arg9: memref<128x2048xbf16, #tpu.memory_space<vmem>>, %arg10: memref<1x2048xf32, #tpu.memory_space<vmem>>, %arg11: memref<2048x512xbf16, #tpu.memory_space<vmem>>, %arg12: memref<1x512xf32, #tpu.memory_space<vmem>>, %arg13: memref<512x128xbf16, #tpu.memory_space<vmem>>, %arg14: memref<1x128xf32, #tpu.memory_space<vmem>>, %arg15: memref<2x128xf32, #tpu.memory_space<vmem>>) attributes {dimension_semantics = [#tpu.dimension_semantics<parallel>], iteration_bounds = array<i64: 1>, scalar_prefetch = 0 : i64, scratch_operands = 0 : i64, tpu.core_type = #tpu.core_type<tc>, window_params = [{transform_indices = @transform_0, window_bounds = array<i64: 2, 1>}, {transform_indices = @transform_1, window_bounds = array<i64: 2, 128>}, {pipeline_mode = #tpu.pipeline_mode<synchronous>, transform_indices = @transform_2, window_bounds = array<i64: 1, 128>}, {pipeline_mode = #tpu.pipeline_mode<synchronous>, transform_indices = @transform_3, window_bounds = array<i64: 256, 1024>}, {pipeline_mode = #tpu.pipeline_mode<synchronous>, transform_indices = @transform_4, window_bounds = array<i64: 1, 1024>}, {pipeline_mode = #tpu.pipeline_mode<synchronous>, transform_indices = @transform_5, window_bounds = array<i64: 1024, 256>}, {pipeline_mode = #tpu.pipeline_mode<synchronous>, transform_indices = @transform_6, window_bounds = array<i64: 1, 256>}, {pipeline_mode = #tpu.pipeline_mode<synchronous>, transform_indices = @transform_7, window_bounds = array<i64: 256, 2048>}, {pipeline_mode = #tpu.pipeline_mode<synchronous>, transform_indices = @transform_8, window_bounds = array<i64: 128, 2048>}, {pipeline_mode = #tpu.pipeline_mode<synchronous>, transform_indices = @transform_9, window_bounds = array<i64: 1, 2048>}, {pipeline_mode = #tpu.pipeline_mode<synchronous>, transform_indices = @transform_10, window_bounds = array<i64: 2048, 512>}, {pipeline_mode = #tpu.pipeline_mode<synchronous>, transform_indices = @transform_11, window_bounds = array<i64: 1, 512>}, {pipeline_mode = #tpu.pipeline_mode<synchronous>, transform_indices = @transform_12, window_bounds = array<i64: 512, 128>}, {pipeline_mode = #tpu.pipeline_mode<synchronous>, transform_indices = @transform_13, window_bounds = array<i64: 1, 128>}, {transform_indices = @transform_14, window_bounds = array<i64: 2, 128>}]} {
    %c0 = arith.constant 0 : index
    %c0_0 = arith.constant 0 : index
    %0 = vector.load %arg1[%c0, %c0_0] : memref<2x1xf32, #tpu.memory_space<vmem>>, vector<2x1xf32>
    %c0_1 = arith.constant 0 : index
    %c0_2 = arith.constant 0 : index
    %1 = vector.load %arg3[%c0_1, %c0_2] : memref<1x128xf32, #tpu.memory_space<vmem>>, vector<1x128xf32>
    %2 = vector.broadcast %0 : vector<2x1xf32> to vector<2x128xf32>
    %3 = vector.broadcast %1 : vector<1x128xf32> to vector<2x128xf32>
    %4 = arith.mulf %2, %3 : vector<2x128xf32>
    %5 = math.sin %4 : vector<2x128xf32>
    %6 = math.cos %4 : vector<2x128xf32>
    %7 = tpu.concatenate %5, %6 in 1 : vector<2x128xf32>, vector<2x128xf32> -> vector<2x256xf32>
    %8 = arith.truncf %7 : vector<2x256xf32> to vector<2x256xbf16>
    %c0_3 = arith.constant 0 : index
    %c0_4 = arith.constant 0 : index
    %9 = vector.load %arg4[%c0_3, %c0_4] : memref<256x1024xbf16, #tpu.memory_space<vmem>>, vector<256x1024xbf16>
    %cst = arith.constant dense<0.000000e+00> : vector<2x1024xf32>
    %10 = tpu.matmul %8, %9, %cst {dimension_numbers = #tpu.dot_dimension_numbers<[1], [0], [0], [1], [0, 0, 1, 1], [], []>} : vector<2x256xbf16>, vector<256x1024xbf16>, vector<2x1024xf32> -> vector<2x1024xf32>
    %c0_5 = arith.constant 0 : index
    %c0_6 = arith.constant 0 : index
    %11 = vector.load %arg5[%c0_5, %c0_6] : memref<1x1024xf32, #tpu.memory_space<vmem>>, vector<1x1024xf32>
    %12 = vector.broadcast %11 : vector<1x1024xf32> to vector<2x1024xf32>
    %13 = arith.addf %10, %12 : vector<2x1024xf32>
    %cst_7 = arith.constant 2.000000e+01 : f32
    %14 = vector.broadcast %cst_7 : f32 to vector<2x1024xf32>
    %15 = arith.minimumf %13, %14 : vector<2x1024xf32>
    %16 = math.exp %15 : vector<2x1024xf32>
    %cst_8 = arith.constant 1.000000e+00 : f32
    %17 = vector.broadcast %cst_8 : f32 to vector<2x1024xf32>
    %18 = arith.addf %17, %16 : vector<2x1024xf32>
    %19 = arith.mulf %18, %18 : vector<2x1024xf32>
    %cst_9 = arith.constant 1.000000e+00 : f32
    %20 = vector.broadcast %cst_9 : f32 to vector<2x1024xf32>
    %21 = arith.subf %19, %20 : vector<2x1024xf32>
    %22 = arith.mulf %13, %21 : vector<2x1024xf32>
    %cst_10 = arith.constant 1.000000e+00 : f32
    %23 = vector.broadcast %cst_10 : f32 to vector<2x1024xf32>
    %24 = arith.addf %19, %23 : vector<2x1024xf32>
    %25 = tpu.reciprocal %24 {approx = true} : vector<2x1024xf32> -> vector<2x1024xf32>
    %26 = arith.mulf %22, %25 : vector<2x1024xf32>
    %27 = arith.truncf %26 : vector<2x1024xf32> to vector<2x1024xbf16>
    %c0_11 = arith.constant 0 : index
    %c0_12 = arith.constant 0 : index
    %28 = vector.load %arg6[%c0_11, %c0_12] : memref<1024x256xbf16, #tpu.memory_space<vmem>>, vector<1024x256xbf16>
    %cst_13 = arith.constant dense<0.000000e+00> : vector<2x256xf32>
    %29 = tpu.matmul %27, %28, %cst_13 {dimension_numbers = #tpu.dot_dimension_numbers<[1], [0], [0], [1], [0, 0, 1, 1], [], []>} : vector<2x1024xbf16>, vector<1024x256xbf16>, vector<2x256xf32> -> vector<2x256xf32>
    %c0_14 = arith.constant 0 : index
    %c0_15 = arith.constant 0 : index
    %30 = vector.load %arg7[%c0_14, %c0_15] : memref<1x256xf32, #tpu.memory_space<vmem>>, vector<1x256xf32>
    %31 = vector.broadcast %30 : vector<1x256xf32> to vector<2x256xf32>
    %32 = arith.addf %29, %31 : vector<2x256xf32>
    %33 = arith.truncf %32 : vector<2x256xf32> to vector<2x256xbf16>
    %c0_16 = arith.constant 0 : index
    %c0_17 = arith.constant 0 : index
    %34 = vector.load %arg8[%c0_16, %c0_17] : memref<256x2048xbf16, #tpu.memory_space<vmem>>, vector<256x2048xbf16>
    %cst_18 = arith.constant dense<0.000000e+00> : vector<2x2048xf32>
    %35 = tpu.matmul %33, %34, %cst_18 {dimension_numbers = #tpu.dot_dimension_numbers<[1], [0], [0], [1], [0, 0, 1, 1], [], []>} : vector<2x256xbf16>, vector<256x2048xbf16>, vector<2x2048xf32> -> vector<2x2048xf32>
    %c0_19 = arith.constant 0 : index
    %c0_20 = arith.constant 0 : index
    %36 = vector.load %arg2[%c0_19, %c0_20] : memref<2x128xf32, #tpu.memory_space<vmem>>, vector<2x128xf32>
    %37 = arith.truncf %36 : vector<2x128xf32> to vector<2x128xbf16>
    %c0_21 = arith.constant 0 : index
    %c0_22 = arith.constant 0 : index
    %38 = vector.load %arg9[%c0_21, %c0_22] : memref<128x2048xbf16, #tpu.memory_space<vmem>>, vector<128x2048xbf16>
    %cst_23 = arith.constant dense<0.000000e+00> : vector<2x2048xf32>
    %39 = tpu.matmul %37, %38, %cst_23 {dimension_numbers = #tpu.dot_dimension_numbers<[1], [0], [0], [1], [0, 0, 1, 1], [], []>} : vector<2x128xbf16>, vector<128x2048xbf16>, vector<2x2048xf32> -> vector<2x2048xf32>
    %40 = arith.addf %35, %39 : vector<2x2048xf32>
    %c0_24 = arith.constant 0 : index
    %c0_25 = arith.constant 0 : index
    %41 = vector.load %arg10[%c0_24, %c0_25] : memref<1x2048xf32, #tpu.memory_space<vmem>>, vector<1x2048xf32>
    %42 = vector.broadcast %41 : vector<1x2048xf32> to vector<2x2048xf32>
    %43 = arith.addf %40, %42 : vector<2x2048xf32>
    %44 = arith.truncf %43 : vector<2x2048xf32> to vector<2x2048xbf16>
    %cst_26 = arith.constant 0.000000e+00 : bf16
    %45 = vector.broadcast %cst_26 : bf16 to vector<2x2048xbf16>
    %46 = arith.maximumf %44, %45 : vector<2x2048xbf16>
    %c0_27 = arith.constant 0 : index
    %c0_28 = arith.constant 0 : index
    %47 = vector.load %arg11[%c0_27, %c0_28] : memref<2048x512xbf16, #tpu.memory_space<vmem>>, vector<2048x512xbf16>
    %cst_29 = arith.constant dense<0.000000e+00> : vector<2x512xf32>
    %48 = tpu.matmul %46, %47, %cst_29 {dimension_numbers = #tpu.dot_dimension_numbers<[1], [0], [0], [1], [0, 0, 1, 1], [], []>} : vector<2x2048xbf16>, vector<2048x512xbf16>, vector<2x512xf32> -> vector<2x512xf32>
    %c0_30 = arith.constant 0 : index
    %c0_31 = arith.constant 0 : index
    %49 = vector.load %arg12[%c0_30, %c0_31] : memref<1x512xf32, #tpu.memory_space<vmem>>, vector<1x512xf32>
    %50 = vector.broadcast %49 : vector<1x512xf32> to vector<2x512xf32>
    %51 = arith.addf %48, %50 : vector<2x512xf32>
    %52 = arith.truncf %51 : vector<2x512xf32> to vector<2x512xbf16>
    %cst_32 = arith.constant 0.000000e+00 : bf16
    %53 = vector.broadcast %cst_32 : bf16 to vector<2x512xbf16>
    %54 = arith.maximumf %52, %53 : vector<2x512xbf16>
    %c0_33 = arith.constant 0 : index
    %c0_34 = arith.constant 0 : index
    %55 = vector.load %arg13[%c0_33, %c0_34] : memref<512x128xbf16, #tpu.memory_space<vmem>>, vector<512x128xbf16>
    %cst_35 = arith.constant dense<0.000000e+00> : vector<2x128xf32>
    %56 = tpu.matmul %54, %55, %cst_35 {dimension_numbers = #tpu.dot_dimension_numbers<[1], [0], [0], [1], [0, 0, 1, 1], [], []>} : vector<2x512xbf16>, vector<512x128xbf16>, vector<2x128xf32> -> vector<2x128xf32>
    %c0_36 = arith.constant 0 : index
    %c0_37 = arith.constant 0 : index
    %57 = vector.load %arg14[%c0_36, %c0_37] : memref<1x128xf32, #tpu.memory_space<vmem>>, vector<1x128xf32>
    %58 = vector.broadcast %57 : vector<1x128xf32> to vector<2x128xf32>
    %59 = arith.addf %56, %58 : vector<2x128xf32>
    %cst_38 = arith.constant 0.000000e+00 : f32
    %60 = vector.broadcast %cst_38 : f32 to vector<2x128xf32>
    %61 = arith.subf %60, %59 : vector<2x128xf32>
    %62 = math.exp %61 : vector<2x128xf32>
    %cst_39 = arith.constant 1.000000e+00 : f32
    %63 = vector.broadcast %cst_39 : f32 to vector<2x128xf32>
    %64 = arith.addf %63, %62 : vector<2x128xf32>
    %65 = tpu.reciprocal %64 {approx = true} : vector<2x128xf32> -> vector<2x128xf32>
    %c0_40 = arith.constant 0 : index
    %c0_41 = arith.constant 0 : index
    %66 = vector.load %arg15[%c0_40, %c0_41] : memref<2x128xf32, #tpu.memory_space<vmem>>, vector<2x128xf32>
    tpu.vector_store %arg15[%c0_40, %c0_41], %65 {strides = array<i32>} : memref<2x128xf32, #tpu.memory_space<vmem>>, vector<2x128xf32>,
    return
  }
  func.func @transform_0(%arg0: i32) -> (i32, i32) {
    %c0_i32 = arith.constant 0 : i32
    %c0_i32_0 = arith.constant 0 : i32
    return %arg0, %c0_i32 : i32, i32
  }
  func.func @transform_1(%arg0: i32) -> (i32, i32) {
    %c0_i32 = arith.constant 0 : i32
    %c0_i32_0 = arith.constant 0 : i32
    return %arg0, %c0_i32 : i32, i32
  }
  func.func @transform_2(%arg0: i32) -> (i32, i32) {
    %c0_i32 = arith.constant 0 : i32
    %c0_i32_0 = arith.constant 0 : i32
    %c0_i32_1 = arith.constant 0 : i32
    return %c0_i32, %c0_i32_0 : i32, i32
  }
  func.func @transform_3(%arg0: i32) -> (i32, i32) {
    %c0_i32 = arith.constant 0 : i32
    %c0_i32_0 = arith.constant 0 : i32
    %c0_i32_1 = arith.constant 0 : i32
    return %c0_i32, %c0_i32_0 : i32, i32
  }
  func.func @transform_4(%arg0: i32) -> (i32, i32) {
    %c0_i32 = arith.constant 0 : i32
    %c0_i32_0 = arith.constant 0 : i32
    %c0_i32_1 = arith.constant 0 : i32
    return %c0_i32, %c0_i32_0 : i32, i32
  }
  func.func @transform_5(%arg0: i32) -> (i32, i32) {
    %c0_i32 = arith.constant 0 : i32
    %c0_i32_0 = arith.constant 0 : i32
    %c0_i32_1 = arith.constant 0 : i32
    return %c0_i32, %c0_i32_0 : i32, i32
  }
  func.func @transform_6(%arg0: i32) -> (i32, i32) {
    %c0_i32 = arith.constant 0 : i32
    %c0_i32_0 = arith.constant 0 : i32
    %c0_i32_1 = arith.constant 0 : i32
    return %c0_i32, %c0_i32_0 : i32, i32
  }
  func.func @transform_7(%arg0: i32) -> (i32, i32) {
    %c0_i32 = arith.constant 0 : i32
    %c0_i32_0 = arith.constant 0 : i32
    %c0_i32_1 = arith.constant 0 : i32
    return %c0_i32, %c0_i32_0 : i32, i32
  }
  func.func @transform_8(%arg0: i32) -> (i32, i32) {
    %c0_i32 = arith.constant 0 : i32
    %c0_i32_0 = arith.constant 0 : i32
    %c0_i32_1 = arith.constant 0 : i32
    return %c0_i32, %c0_i32_0 : i32, i32
  }
  func.func @transform_9(%arg0: i32) -> (i32, i32) {
    %c0_i32 = arith.constant 0 : i32
    %c0_i32_0 = arith.constant 0 : i32
    %c0_i32_1 = arith.constant 0 : i32
    return %c0_i32, %c0_i32_0 : i32, i32
  }
  func.func @transform_10(%arg0: i32) -> (i32, i32) {
    %c0_i32 = arith.constant 0 : i32
    %c0_i32_0 = arith.constant 0 : i32
    %c0_i32_1 = arith.constant 0 : i32
    return %c0_i32, %c0_i32_0 : i32, i32
  }
  func.func @transform_11(%arg0: i32) -> (i32, i32) {
    %c0_i32 = arith.constant 0 : i32
    %c0_i32_0 = arith.constant 0 : i32
    %c0_i32_1 = arith.constant 0 : i32
    return %c0_i32, %c0_i32_0 : i32, i32
  }
  func.func @transform_12(%arg0: i32) -> (i32, i32) {
    %c0_i32 = arith.constant 0 : i32
    %c0_i32_0 = arith.constant 0 : i32
    %c0_i32_1 = arith.constant 0 : i32
    return %c0_i32, %c0_i32_0 : i32, i32
  }
  func.func @transform_13(%arg0: i32) -> (i32, i32) {
    %c0_i32 = arith.constant 0 : i32
    %c0_i32_0 = arith.constant 0 : i32
    %c0_i32_1 = arith.constant 0 : i32
    return %c0_i32, %c0_i32_0 : i32, i32
  }
  func.func @transform_14(%arg0: i32) -> (i32, i32) {
    %c0_i32 = arith.constant 0 : i32
    %c0_i32_0 = arith.constant 0 : i32
    return %arg0, %c0_i32 : i32, i32
  }
}

</mosaic_0001>

<llo_original>
// kernel: tpu_custom_call.1
$region0: #{tpu_custom_call.1}
  #allocation0 [shape = 'u32[]', space=smem, size = 0x4, offset = 0x4, fixed_abs, tag = 'smem constant byte address 0x4 - core index']
  #allocation1 [shape = 'u32[72,128]{1,0:T(1,128)}', space=vmem, size = 0x9000, scoped, tag = 'internal scratch']
  %s0 = inlined_call_operand.vmem [shape: f32[2,1], index: 0, kind: input, shape index: {}]
  %s1 = inlined_call_operand.hbm [shape: f32[2,128], index: 1, kind: input, shape index: {}]
  %s2 = inlined_call_operand.hbm [shape: f32[1,128], index: 2, kind: input, shape index: {}]
  %s3 = inlined_call_operand.hbm [shape: bf16[256,1024], index: 3, kind: input, shape index: {}]
  %s4 = inlined_call_operand.hbm [shape: f32[1,1024], index: 4, kind: input, shape index: {}]
  %s5 = inlined_call_operand.hbm [shape: bf16[1024,256], index: 5, kind: input, shape index: {}]
  %s6 = inlined_call_operand.hbm [shape: f32[1,256], index: 6, kind: input, shape index: {}]
  %s7 = inlined_call_operand.hbm [shape: bf16[256,2048], index: 7, kind: input, shape index: {}]
  %s8 = inlined_call_operand.hbm [shape: bf16[128,2048], index: 8, kind: input, shape index: {}]
  %s9 = inlined_call_operand.hbm [shape: f32[1,2048], index: 9, kind: input, shape index: {}]
  %s10 = inlined_call_operand.hbm [shape: bf16[2048,512], index: 10, kind: input, shape index: {}]
  %s11 = inlined_call_operand.hbm [shape: f32[1,512], index: 11, kind: input, shape index: {}]
  %s12 = inlined_call_operand.hbm [shape: bf16[512,128], index: 12, kind: input, shape index: {}]
  %s13 = inlined_call_operand.hbm [shape: f32[1,128], index: 13, kind: input, shape index: {}]
  %s14 = inlined_call_operand.hbm [shape: f32[2,128], index: 14, kind: output, shape index: {}]
  %s15 = sld [smem:[#allocation0]]
  $region118: #{tpu_custom_call.1} parent=0
    _
  %s17 = ssub.s32 1, %s15
  %s18 = scalar_select 0, %s17, %s15
  $region1: #{tpu_custom_call.1} parent=0
    #allocation2 [shape = 'u8[1024]{0}', space=vmem, size = 0x400, scoped, tag = 'input window, operand 1, single buffered']
    #allocation3 [shape = 's32[1]{0}', space=sflag, size = 0x4, scoped, tag = 'scoped memory for tpu_custom_call.1']
    #allocation4 [shape = 's32[1]{0}', space=sflag, size = 0x4, scoped, tag = 'scoped memory for tpu_custom_call.1']
    #allocation5 [shape = 'u8[512]{0}', space=vmem, size = 0x400, scoped, tag = 'input window, operand 2, single buffered']
    #allocation6 [shape = 's32[1]{0}', space=sflag, size = 0x4, scoped, tag = 'scoped memory for tpu_custom_call.1']
    #allocation7 [shape = 'u8[524288]{0}', space=vmem, size = 0x80000, scoped, tag = 'input window, operand 3, single buffered']
    #allocation8 [shape = 'u8[4096]{0}', space=vmem, size = 0x1000, scoped, tag = 'input window, operand 4, single buffered']
    #allocation9 [shape = 's32[1]{0}', space=sflag, size = 0x4, scoped, tag = 'scoped memory for tpu_custom_call.1']
    #allocation10 [shape = 'u8[524288]{0}', space=vmem, size = 0x80000, scoped, tag = 'input window, operand 5, single buffered']
    #allocation11 [shape = 'u8[1024]{0}', space=vmem, size = 0x400, scoped, tag = 'input window, operand 6, single buffered']
    #allocation12 [shape = 's32[1]{0}', space=sflag, size = 0x4, scoped, tag = 'scoped memory for tpu_custom_call.1']
    #allocation13 [shape = 'u8[1048576]{0}', space=vmem, size = 0x100000, scoped, tag = 'input window, operand 7, single buffered']
    #allocation14 [shape = 'u8[524288]{0}', space=vmem, size = 0x80000, scoped, tag = 'input window, operand 8, single buffered']
    #allocation15 [shape = 's32[1]{0}', space=sflag, size = 0x4, scoped, tag = 'scoped memory for tpu_custom_call.1']
    #allocation16 [shape = 'u8[8192]{0}', space=vmem, size = 0x2000, scoped, tag = 'input window, operand 9, single buffered']
    #allocation17 [shape = 'u8[2097152]{0}', space=vmem, size = 0x200000, scoped, tag = 'input window, operand 10, single buffered']
    #allocation18 [shape = 's32[1]{0}', space=sflag, size = 0x4, scoped, tag = 'scoped memory for tpu_custom_call.1']
    #allocation19 [shape = 'u8[2048]{0}', space=vmem, size = 0x800, scoped, tag = 'input window, operand 11, single buffered']
    #allocation20 [shape = 'u8[131072]{0}', space=vmem, size = 0x20000, scoped, tag = 'input window, operand 12, single buffered']
    #allocation21 [shape = 's32[1]{0}', space=sflag, size = 0x4, scoped, tag = 'scoped memory for tpu_custom_call.1']
    #allocation22 [shape = 'u8[512]{0}', space=vmem, size = 0x400, scoped, tag = 'input window, operand 13, single buffered']
    #allocation23 [shape = 'u8[1024]{0}', space=vmem, size = 0x400, scoped, tag = 'output window, operand 0, single buffered']
    %19 = vsyncpa [#allocation3], 0
    %20 = vsyncpa [#allocation6], 0
    %21 = vsyncpa [#allocation9], 0
    %22 = vsyncpa [#allocation12], 0
    %23 = vsyncpa [#allocation15], 0
    %24 = vsyncpa [#allocation18], 0
    %25 = vsyncpa [#allocation21], 0
    %26 = vsyncpa [#allocation4], 0
    // Predicated region
    $region2: #{tpu_custom_call.1} parent=1 // pred_check
      _
    $region3: #{tpu_custom_call.1} parent=1 // pred_check_branch
      %28 = sbr.rel (0) target = $region5
    $region4: #{tpu_custom_call.1} parent=1 // pred_region
      _
    $region5: #{tpu_custom_call.1} parent=1 // pred_fallthru
      _
    // Predicated region
    $region6: #{tpu_custom_call.1} parent=1 // pred_check
      _
    $region7: #{tpu_custom_call.1} parent=1 // pred_check_branch
      %30 = sbr.rel (0) target = $region9
    $region8: #{tpu_custom_call.1} parent=1 // pred_region
      %32 = vsyncadd [#allocation3], 0
      %s34 = sshll.u32 %s1, 4
      %s35 = int_to_ptr.hbm [resolvable:$true] %s34
      %s36 = sshll.u32 [#allocation2], 4
      %s37 = int_to_ptr.vmem [resolvable:$true] %s36
      %39 = dma.hbm_to_vmem [thread:$0]  %s35, 32, %s37, [#allocation3]
    $region9: #{tpu_custom_call.1} parent=1 // pred_fallthru
      _
    // Predicated region
    $region10: #{tpu_custom_call.1} parent=1 // pred_check
      _
    $region11: #{tpu_custom_call.1} parent=1 // pred_check_branch
      %41 = sbr.rel (0) target = $region13
    $region12: #{tpu_custom_call.1} parent=1 // pred_region
      %43 = vsyncadd [#allocation6], 0
      %s45 = sshll.u32 %s2, 4
      %s46 = int_to_ptr.hbm [resolvable:$true] %s45
      %s47 = sshll.u32 [#allocation5], 4
      %s48 = int_to_ptr.vmem [resolvable:$true] %s47
      %50 = dma.hbm_to_vmem [thread:$0]  %s46, 16, %s48, [#allocation6]
    $region13: #{tpu_custom_call.1} parent=1 // pred_fallthru
      _
    // Predicated region
    $region14: #{tpu_custom_call.1} parent=1 // pred_check
      _
    $region15: #{tpu_custom_call.1} parent=1 // pred_check_branch
      %52 = sbr.rel (0) target = $region17
    $region16: #{tpu_custom_call.1} parent=1 // pred_region
      %54 = vsyncadd [#allocation6], 0
      %s55 = sshll.u32 %s3, 4
      %s56 = int_to_ptr.hbm [resolvable:$true] %s55
      %s57 = sshll.u32 [#allocation7], 4
      %s58 = int_to_ptr.vmem [resolvable:$true] %s57
      %63 = dma.hbm_to_vmem [thread:$0]  %s56, 16384, %s58, [#allocation6], 512, 512, 32
    $region17: #{tpu_custom_call.1} parent=1 // pred_fallthru
      _
    // Predicated region
    $region18: #{tpu_custom_call.1} parent=1 // pred_check
      _
    $region19: #{tpu_custom_call.1} parent=1 // pred_check_branch
      %65 = sbr.rel (0) target = $region21
    $region20: #{tpu_custom_call.1} parent=1 // pred_region
      %67 = vsyncadd [#allocation9], 0
      %s69 = sshll.u32 %s4, 4
      %s70 = int_to_ptr.hbm [resolvable:$true] %s69
      %s71 = sshll.u32 [#allocation8], 4
      %s72 = int_to_ptr.vmem [resolvable:$true] %s71
      %74 = dma.hbm_to_vmem [thread:$0]  %s70, 128, %s72, [#allocation9]
    $region21: #{tpu_custom_call.1} parent=1 // pred_fallthru
      _
    // Predicated region
    $region22: #{tpu_custom_call.1} parent=1 // pred_check
      _
    $region23: #{tpu_custom_call.1} parent=1 // pred_check_branch
      %76 = sbr.rel (0) target = $region25
    $region24: #{tpu_custom_call.1} parent=1 // pred_region
      %78 = vsyncadd [#allocation9], 0
      %s79 = sshll.u32 %s5, 4
      %s80 = int_to_ptr.hbm [resolvable:$true] %s79
      %s81 = sshll.u32 [#allocation10], 4
      %s82 = int_to_ptr.vmem [resolvable:$true] %s81
      %87 = dma.hbm_to_vmem [thread:$0]  %s80, 16384, %s82, [#allocation9], 128, 128, 8
    $region25: #{tpu_custom_call.1} parent=1 // pred_fallthru
      _
    // Predicated region
    $region26: #{tpu_custom_call.1} parent=1 // pred_check
      _
    $region27: #{tpu_custom_call.1} parent=1 // pred_check_branch
      %89 = sbr.rel (0) target = $region29
    $region28: #{tpu_custom_call.1} parent=1 // pred_region
      %91 = vsyncadd [#allocation12], 0
      %s93 = sshll.u32 %s6, 4
      %s94 = int_to_ptr.hbm [resolvable:$true] %s93
      %s95 = sshll.u32 [#allocation11], 4
      %s96 = int_to_ptr.vmem [resolvable:$true] %s95
      %98 = dma.hbm_to_vmem [thread:$0]  %s94, 32, %s96, [#allocation12]
    $region29: #{tpu_custom_call.1} parent=1 // pred_fallthru
      _
    // Predicated region
    $region30: #{tpu_custom_call.1} parent=1 // pred_check
      _
    $region31: #{tpu_custom_call.1} parent=1 // pred_check_branch
      %100 = sbr.rel (0) target = $region33
    $region32: #{tpu_custom_call.1} parent=1 // pred_region
      %102 = vsyncadd [#allocation12], 0
      %s103 = sshll.u32 %s7, 4
      %s104 = int_to_ptr.hbm [resolvable:$true] %s103
      %s105 = sshll.u32 [#allocation13], 4
      %s106 = int_to_ptr.vmem [resolvable:$true] %s105
      %111 = dma.hbm_to_vmem [thread:$0]  %s104, 32768, %s106, [#allocation12], 1024, 1024, 64
    $region33: #{tpu_custom_call.1} parent=1 // pred_fallthru
      _
    // Predicated region
    $region34: #{tpu_custom_call.1} parent=1 // pred_check
      _
    $region35: #{tpu_custom_call.1} parent=1 // pred_check_branch
      %113 = sbr.rel (0) target = $region37
    $region36: #{tpu_custom_call.1} parent=1 // pred_region
      %115 = vsyncadd [#allocation15], 0
      %s116 = sshll.u32 %s8, 4
      %s117 = int_to_ptr.hbm [resolvable:$true] %s116
      %s118 = sshll.u32 [#allocation14], 4
      %s119 = int_to_ptr.vmem [resolvable:$true] %s118
      %124 = dma.hbm_to_vmem [thread:$0]  %s117, 16384, %s119, [#allocation15], 1024, 1024, 64
    $region37: #{tpu_custom_call.1} parent=1 // pred_fallthru
      _
    // Predicated region
    $region38: #{tpu_custom_call.1} parent=1 // pred_check
      _
    $region39: #{tpu_custom_call.1} parent=1 // pred_check_branch
      %126 = sbr.rel (0) target = $region41
    $region40: #{tpu_custom_call.1} parent=1 // pred_region
      %128 = vsyncadd [#allocation15], 0
      %s130 = sshll.u32 %s9, 4
      %s131 = int_to_ptr.hbm [resolvable:$true] %s130
      %s132 = sshll.u32 [#allocation16], 4
      %s133 = int_to_ptr.vmem [resolvable:$true] %s132
      %135 = dma.hbm_to_vmem [thread:$0]  %s131, 256, %s133, [#allocation15]
    $region41: #{tpu_custom_call.1} parent=1 // pred_fallthru
      _
    // Predicated region
    $region42: #{tpu_custom_call.1} parent=1 // pred_check
      _
    $region43: #{tpu_custom_call.1} parent=1 // pred_check_branch
      %137 = sbr.rel (0) target = $region45
    $region44: #{tpu_custom_call.1} parent=1 // pred_region
      %139 = vsyncadd [#allocation18], 0
      %s140 = sshll.u32 %s10, 4
      %s141 = int_to_ptr.hbm [resolvable:$true] %s140
      %s142 = sshll.u32 [#allocation17], 4
      %s143 = int_to_ptr.vmem [resolvable:$true] %s142
      %148 = dma.hbm_to_vmem [thread:$0]  %s141, 65536, %s143, [#allocation18], 256, 256, 16
    $region45: #{tpu_custom_call.1} parent=1 // pred_fallthru
      _
    // Predicated region
    $region46: #{tpu_custom_call.1} parent=1 // pred_check
      _
    $region47: #{tpu_custom_call.1} parent=1 // pred_check_branch
      %150 = sbr.rel (0) target = $region49
    $region48: #{tpu_custom_call.1} parent=1 // pred_region
      %152 = vsyncadd [#allocation18], 0
      %s154 = sshll.u32 %s11, 4
      %s155 = int_to_ptr.hbm [resolvable:$true] %s154
      %s156 = sshll.u32 [#allocation19], 4
      %s157 = int_to_ptr.vmem [resolvable:$true] %s156
      %159 = dma.hbm_to_vmem [thread:$0]  %s155, 64, %s157, [#allocation18]
    $region49: #{tpu_custom_call.1} parent=1 // pred_fallthru
      _
    // Predicated region
    $region50: #{tpu_custom_call.1} parent=1 // pred_check
      _
    $region51: #{tpu_custom_call.1} parent=1 // pred_check_branch
      %161 = sbr.rel (0) target = $region53
    $region52: #{tpu_custom_call.1} parent=1 // pred_region
      %163 = vsyncadd [#allocation21], 0
      %s164 = sshll.u32 %s12, 4
      %s165 = int_to_ptr.hbm [resolvable:$true] %s164
      %s166 = sshll.u32 [#allocation20], 4
      %s167 = int_to_ptr.vmem [resolvable:$true] %s166
      %172 = dma.hbm_to_vmem [thread:$0]  %s165, 4096, %s167, [#allocation21], 64, 64, 4
    $region53: #{tpu_custom_call.1} parent=1 // pred_fallthru
      _
    // Predicated region
    $region54: #{tpu_custom_call.1} parent=1 // pred_check
      _
    $region55: #{tpu_custom_call.1} parent=1 // pred_check_branch
      %174 = sbr.rel (0) target = $region57
    $region56: #{tpu_custom_call.1} parent=1 // pred_region
      %176 = vsyncadd [#allocation21], 0
      %s178 = sshll.u32 %s13, 4
      %s179 = int_to_ptr.hbm [resolvable:$true] %s178
      %s180 = sshll.u32 [#allocation22], 4
      %s181 = int_to_ptr.vmem [resolvable:$true] %s180
      %183 = dma.hbm_to_vmem [thread:$0]  %s179, 16, %s181, [#allocation21]
    $region57: #{tpu_custom_call.1} parent=1 // pred_fallthru
      _
    // Predicated region
    $region58: #{tpu_custom_call.1} parent=1 // pred_check
      _
    $region59: #{tpu_custom_call.1} parent=1 // pred_check_branch
      %185 = sbr.rel (0) target = $region61
    $region60: #{tpu_custom_call.1} parent=1 // pred_region
      %187 = dma.done [#allocation3], 32
    $region61: #{tpu_custom_call.1} parent=1 // pred_fallthru
      _
    // Predicated region
    $region62: #{tpu_custom_call.1} parent=1 // pred_check
      _
    $region63: #{tpu_custom_call.1} parent=1 // pred_check_branch
      %189 = sbr.rel (0) target = $region65
    $region64: #{tpu_custom_call.1} parent=1 // pred_region
      %191 = dma.done [#allocation6], 16
    $region65: #{tpu_custom_call.1} parent=1 // pred_fallthru
      _
    // Predicated region
    $region66: #{tpu_custom_call.1} parent=1 // pred_check
      _
    $region67: #{tpu_custom_call.1} parent=1 // pred_check_branch
      %193 = sbr.rel (0) target = $region69
    $region68: #{tpu_custom_call.1} parent=1 // pred_region
      %195 = dma.done [#allocation6], 16384
    $region69: #{tpu_custom_call.1} parent=1 // pred_fallthru
      _
    // Predicated region
    $region70: #{tpu_custom_call.1} parent=1 // pred_check
      _
    $region71: #{tpu_custom_call.1} parent=1 // pred_check_branch
      %197 = sbr.rel (0) target = $region73
    $region72: #{tpu_custom_call.1} parent=1 // pred_region
      %199 = dma.done [#allocation9], 128
    $region73: #{tpu_custom_call.1} parent=1 // pred_fallthru
      _
    // Predicated region
    $region74: #{tpu_custom_call.1} parent=1 // pred_check
      _
    $region75: #{tpu_custom_call.1} parent=1 // pred_check_branch
      %201 = sbr.rel (0) target = $region77
    $region76: #{tpu_custom_call.1} parent=1 // pred_region
      %203 = dma.done [#allocation9], 16384
    $region77: #{tpu_custom_call.1} parent=1 // pred_fallthru
      _
    // Predicated region
    $region78: #{tpu_custom_call.1} parent=1 // pred_check
      _
    $region79: #{tpu_custom_call.1} parent=1 // pred_check_branch
      %205 = sbr.rel (0) target = $region81
    $region80: #{tpu_custom_call.1} parent=1 // pred_region
      %207 = dma.done [#allocation12], 32
    $region81: #{tpu_custom_call.1} parent=1 // pred_fallthru
      _
    // Predicated region
    $region82: #{tpu_custom_call.1} parent=1 // pred_check
      _
    $region83: #{tpu_custom_call.1} parent=1 // pred_check_branch
      %209 = sbr.rel (0) target = $region85
    $region84: #{tpu_custom_call.1} parent=1 // pred_region
      %211 = dma.done [#allocation12], 32768
    $region85: #{tpu_custom_call.1} parent=1 // pred_fallthru
      _
    // Predicated region
    $region86: #{tpu_custom_call.1} parent=1 // pred_check
      _
    $region87: #{tpu_custom_call.1} parent=1 // pred_check_branch
      %213 = sbr.rel (0) target = $region89
    $region88: #{tpu_custom_call.1} parent=1 // pred_region
      %215 = dma.done [#allocation15], 16384
    $region89: #{tpu_custom_call.1} parent=1 // pred_fallthru
      _
    // Predicated region
    $region90: #{tpu_custom_call.1} parent=1 // pred_check
      _
    $region91: #{tpu_custom_call.1} parent=1 // pred_check_branch
      %217 = sbr.rel (0) target = $region93
    $region92: #{tpu_custom_call.1} parent=1 // pred_region
      %219 = dma.done [#allocation15], 256
    $region93: #{tpu_custom_call.1} parent=1 // pred_fallthru
      _
    // Predicated region
    $region94: #{tpu_custom_call.1} parent=1 // pred_check
      _
    $region95: #{tpu_custom_call.1} parent=1 // pred_check_branch
      %221 = sbr.rel (0) target = $region97
    $region96: #{tpu_custom_call.1} parent=1 // pred_region
      %223 = dma.done [#allocation18], 65536
    $region97: #{tpu_custom_call.1} parent=1 // pred_fallthru
      _
    // Predicated region
    $region98: #{tpu_custom_call.1} parent=1 // pred_check
      _
    $region99: #{tpu_custom_call.1} parent=1 // pred_check_branch
      %225 = sbr.rel (0) target = $region101
    $region100: #{tpu_custom_call.1} parent=1 // pred_region
      %227 = dma.done [#allocation18], 64
    $region101: #{tpu_custom_call.1} parent=1 // pred_fallthru
      _
    // Predicated region
    $region102: #{tpu_custom_call.1} parent=1 // pred_check
      _
    $region103: #{tpu_custom_call.1} parent=1 // pred_check_branch
      %229 = sbr.rel (0) target = $region105
    $region104: #{tpu_custom_call.1} parent=1 // pred_region
      %231 = dma.done [#allocation21], 4096
    $region105: #{tpu_custom_call.1} parent=1 // pred_fallthru
      _
    // Predicated region
    $region106: #{tpu_custom_call.1} parent=1 // pred_check
      _
    $region107: #{tpu_custom_call.1} parent=1 // pred_check_branch
      %233 = sbr.rel (0) target = $region109
    $region108: #{tpu_custom_call.1} parent=1 // pred_region
      %235 = dma.done [#allocation21], 16
    $region109: #{tpu_custom_call.1} parent=1 // pred_fallthru
      _
    %v236 = vld [vmem:[%s0] sm:$0x3]
    %v237 = vld [vmem:[#allocation5] sm:$0x1]
    %239 = vset.pattern.permute.xlu0 0
    %240 = vperm.xlu0 %239, %v236
    %v241 = vpop.permute.xlu0 %240
    %v244 = vperm.slane %v237, 0
    %v246 = vmul.f32 %v241, %v244
    %v247 = vand.u32 2147483647, %v246
    %vm248 = vcmp.le.f32.partialorder %v247, 0.7853982
    %vm249 = vcmp.lt.s32.totalorder %v246, 0
    %v250 = vand.u32 %v246, 2139095040
    %v251 = vshrl.u32 %v250, 23
    %v252 = vsub.s32 %v251, 127
    %v253 = vand.u32 2147483647, %v246
    %v254 = vand.u32 %v253, 8388607
    %v255 = vor.u32 %v254, 8388608
    %v256 = vsub.s32 0, %v255
    %v257 = vadd.s32 %v252, 1
    %vm258 = vcmp.gt.s32.totalorder %v257, 0
    %v259 = vsel %vm258, %v257, 0
    %v260 = vshrl.u32 %v259, 5
    %v261 = vand.u32 %v259, 31
    %v262 = vsub.s32 32, %v261
    %v263 = vshrl.u32 683565275, %v262
    %v264 = vshll.u32 683565275, %v261
    %v265 = vshrl.u32 2475754826, %v262
    %v266 = vor.u32 %v264, %v265
    %v267 = vshll.u32 2475754826, %v261
    %v268 = vshrl.u32 2131351028, %v262
    %v269 = vor.u32 %v267, %v268
    %v270 = vshll.u32 2131351028, %v261
    %v271 = vshrl.u32 2102212464, %v262
    %v272 = vor.u32 %v270, %v271
    %v273 = vshll.u32 2102212464, %v261
    %v274 = vshrl.u32 920167782, %v262
    %v275 = vor.u32 %v273, %v274
    %v276 = vshll.u32 920167782, %v261
    %v277 = vshrl.u32 1326507024, %v262
    %v278 = vor.u32 %v276, %v277
    %vm279 = vcmp.lt.s32.totalorder %v260, 1
    %vm280 = vcmp.lt.s32.totalorder %v260, 2
    %vm281 = vcmp.lt.s32.totalorder %v260, 3
    %vm282 = vcmp.lt.s32.totalorder %v260, 4
    %v283 = vsel %vm279, %v263, %v266
    %v284 = vsel %vm282, %v272, 2102212464
    %v285 = vsel %vm281, %v269, %v284
    %v286 = vsel %vm280, %v283, %v285
    %v287 = vsel %vm279, %v266, %v269
    %v288 = vsel %vm282, %v275, 920167782
    %v289 = vsel %vm281, %v272, %v288
    %v290 = vsel %vm280, %v287, %v289
    %v291 = vsel %vm279, %v269, %v272
    %v292 = vsel %vm282, %v278, 1326507024
    %v293 = vsel %vm281, %v275, %v292
    %v294 = vsel %vm280, %v291, %v293
    %v295 = vshll.u32 %v255, 8
    %v296 = vand.u32 %v295, 65535
    %v297 = vshrl.u32 %v295, 16
    %v298 = vand.u32 %v294, 65535
    %v299 = vshrl.u32 %v294, 16
    %v300 = vmul.u32 %v296, %v298
    %v301 = vmul.u32 %v296, %v299
    %v302 = vmul.u32 %v297, %v298
    %v303 = vmul.u32 %v297, %v299
    %v304 = vshll.u32 %v301, 16
    %v305 = vshrl.u32 %v301, 16
    %v306 = vshll.u32 %v302, 16
    %v307 = vshrl.u32 %v302, 16
    %vm308 = vc.u32 %v300, %v304
    %v309 = vsel %vm308, 1, 0
    %v310 = vadd.s32 %v300, %v304
    %v311 = vadd.s32 %v303, %v309
    %vm312 = vc.u32 %v310, %v306
    %v313 = vsel %vm312, 1, 0
    %v314 = vadd.s32 %v310, %v306
    %v315 = vadd.s32 %v311, %v313
    %v316 = vadd.s32 %v315, %v305
    %v317 = vadd.s32 %v316, %v307
    %v318 = vand.u32 %v295, 65535
    %v319 = vshrl.u32 %v295, 16
    %v320 = vand.u32 %v290, 65535
    %v321 = vshrl.u32 %v290, 16
    %v322 = vmul.u32 %v318, %v320
    %v323 = vmul.u32 %v318, %v321
    %v324 = vmul.u32 %v319, %v320
    %v325 = vmul.u32 %v319, %v321
    %v326 = vshll.u32 %v323, 16
    %v327 = vshrl.u32 %v323, 16
    %v328 = vshll.u32 %v324, 16
    %v329 = vshrl.u32 %v324, 16
    %vm330 = vc.u32 %v322, %v326
    %v331 = vsel %vm330, 1, 0
    %v332 = vadd.s32 %v322, %v326
    %v333 = vadd.s32 %v325, %v331
    %vm334 = vc.u32 %v332, %v328
    %v335 = vsel %vm334, 1, 0
    %v336 = vadd.s32 %v332, %v328
    %v337 = vadd.s32 %v333, %v335
    %v338 = vadd.s32 %v337, %v327
    %v339 = vadd.s32 %v338, %v329
    %v340 = vmul.u32 %v295, %v286
    %v341 = vadd.s32 %v317, %v336
    %vm342 = vc.u32 %v317, %v336
    %v343 = vadd.s32 %v339, 1
    %v344 = vsel %vm342, %v343, %v339
    %v345 = vadd.s32 %v340, %v344
    %v346 = vadd.s32 %v345, 536870912
    %v347 = vshrl.u32 %v346, 30
    %v348 = vshll.u32 %v347, 30
    %v349 = vsub.s32 %v345, %v348
    %vm350 = vcmp.lt.s32.totalorder %v349, 0
    %v351 = vsub.s32 0, %v349
    %v352 = vsel %vm350, %v351, %v349
    %v353 = vclz %v352
    %v354 = vsub.s32 %v353, 2
    %vm355 = vcmp.gt.s32.totalorder 0, %v354
    %v356 = vsel %vm355, 0, %v354
    %v357 = vsub.s32 32, %v356
    %v358 = vshll.u32 %v349, %v356
    %v359 = vshrl.u32 %v341, %v357
    %v360 = vor.u32 %v358, %v359
    %v361 = vsub.s32 4294967266, %v356
    %v362 = vadd.s32 %v361, 127
    %v363 = vshll.u32 %v362, 23
    %v364 = vor.u32 4788187, %v363
    %v365 = vand.u32 2147483647, %v364
    %v367 = vcvt.s32.f32 %v360
    %v368 = vmul.f32 %v367, %v365
    %v369 = vxor.u32 %v368, 2147483648
    %v370 = vsel %vm249, %v369, %v368
    %v371 = vsub.s32 4, %v347
    %v372 = vsel %vm249, %v371, %v347
    %v373 = vsel %vm248, %v246, %v370
    %v374 = vsel %vm248, 0, %v372
    %v375 = vmul.f32 %v373, %v373
    %v376 = vmul.f32 %v375, -0.001358992
    %v377 = vadd.f32 %v376, 0.041655596
    %v378 = vmul.f32 %v375, %v377
    %v379 = vadd.f32 %v378, -0.4999988
    %v380 = vmul.f32 %v375, %v379
    %v381 = vadd.f32 1.0, %v380
    %v382 = vmul.f32 %v373, %v373
    %v383 = vmul.f32 %v382, -0.00019511016
    %v384 = vadd.f32 %v383, 0.008332121
    %v385 = vmul.f32 %v382, %v384
    %v386 = vadd.f32 %v385, -0.16666654
    %v387 = vmul.f32 %v382, %v386
    %v388 = vadd.f32 %v387, 1.0
    %v389 = vmul.f32 %v388, %v373
    %vm390 = vweird.f32 %v246
    %v391 = vadd.s32 %v374, 3
    %v392 = vand.u32 %v391, 3
    %vm393 = vcmp.lt.s32.totalorder %v392, 2
    %vm394 = vcmp.eq.s32.totalorder %v392, 0
    %v395 = vxor.u32 %v389, 2147483648
    %v396 = vsel %vm394, %v381, %v395
    %vm397 = vcmp.eq.s32.totalorder %v392, 2
    %v398 = vxor.u32 %v381, 2147483648
    %v399 = vsel %vm397, %v398, %v389
    %v400 = vsel %vm393, %v396, %v399
    %v401 = vsel %vm390, nan, %v400
    %v402 = vand.u32 2147483647, %v246
    %vm403 = vcmp.le.f32.partialorder %v402, 0.7853982
    %vm404 = vcmp.lt.s32.totalorder %v246, 0
    %v405 = vand.u32 %v246, 2139095040
    %v406 = vshrl.u32 %v405, 23
    %v407 = vsub.s32 %v406, 127
    %v408 = vand.u32 2147483647, %v246
    %v409 = vand.u32 %v408, 8388607
    %v410 = vor.u32 %v409, 8388608
    %v411 = vsub.s32 0, %v410
    %v412 = vadd.s32 %v407, 1
    %vm413 = vcmp.gt.s32.totalorder %v412, 0
    %v414 = vsel %vm413, %v412, 0
    %v415 = vshrl.u32 %v414, 5
    %v416 = vand.u32 %v414, 31
    %v417 = vsub.s32 32, %v416
    %v418 = vshrl.u32 683565275, %v417
    %v419 = vshll.u32 683565275, %v416
    %v420 = vshrl.u32 2475754826, %v417
    %v421 = vor.u32 %v419, %v420
    %v422 = vshll.u32 2475754826, %v416
    %v423 = vshrl.u32 2131351028, %v417
    %v424 = vor.u32 %v422, %v423
    %v425 = vshll.u32 2131351028, %v416
    %v426 = vshrl.u32 2102212464, %v417
    %v427 = vor.u32 %v425, %v426
    %v428 = vshll.u32 2102212464, %v416
    %v429 = vshrl.u32 920167782, %v417
    %v430 = vor.u32 %v428, %v429
    %v431 = vshll.u32 920167782, %v416
    %v432 = vshrl.u32 1326507024, %v417
    %v433 = vor.u32 %v431, %v432
    %vm434 = vcmp.lt.s32.totalorder %v415, 1
    %vm435 = vcmp.lt.s32.totalorder %v415, 2
    %vm436 = vcmp.lt.s32.totalorder %v415, 3
    %vm437 = vcmp.lt.s32.totalorder %v415, 4
    %v438 = vsel %vm434, %v418, %v421
    %v439 = vsel %vm437, %v427, 2102212464
    %v440 = vsel %vm436, %v424, %v439
    %v441 = vsel %vm435, %v438, %v440
    %v442 = vsel %vm434, %v421, %v424
    %v443 = vsel %vm437, %v430, 920167782
    %v444 = vsel %vm436, %v427, %v443
    %v445 = vsel %vm435, %v442, %v444
    %v446 = vsel %vm434, %v424, %v427
    %v447 = vsel %vm437, %v433, 1326507024
    %v448 = vsel %vm436, %v430, %v447
    %v449 = vsel %vm435, %v446, %v448
    %v450 = vshll.u32 %v410, 8
    %v451 = vand.u32 %v450, 65535
    %v452 = vshrl.u32 %v450, 16
    %v453 = vand.u32 %v449, 65535
    %v454 = vshrl.u32 %v449, 16
    %v455 = vmul.u32 %v451, %v453
    %v456 = vmul.u32 %v451, %v454
    %v457 = vmul.u32 %v452, %v453
    %v458 = vmul.u32 %v452, %v454
    %v459 = vshll.u32 %v456, 16
    %v460 = vshrl.u32 %v456, 16
    %v461 = vshll.u32 %v457, 16
    %v462 = vshrl.u32 %v457, 16
    %vm463 = vc.u32 %v455, %v459
    %v464 = vsel %vm463, 1, 0
    %v465 = vadd.s32 %v455, %v459
    %v466 = vadd.s32 %v458, %v464
    %vm467 = vc.u32 %v465, %v461
    %v468 = vsel %vm467, 1, 0
    %v469 = vadd.s32 %v465, %v461
    %v470 = vadd.s32 %v466, %v468
    %v471 = vadd.s32 %v470, %v460
    %v472 = vadd.s32 %v471, %v462
    %v473 = vand.u32 %v450, 65535
    %v474 = vshrl.u32 %v450, 16
    %v475 = vand.u32 %v445, 65535
    %v476 = vshrl.u32 %v445, 16
    %v477 = vmul.u32 %v473, %v475
    %v478 = vmul.u32 %v473, %v476
    %v479 = vmul.u32 %v474, %v475
    %v480 = vmul.u32 %v474, %v476
    %v481 = vshll.u32 %v478, 16
    %v482 = vshrl.u32 %v478, 16
    %v483 = vshll.u32 %v479, 16
    %v484 = vshrl.u32 %v479, 16
    %vm485 = vc.u32 %v477, %v481
    %v486 = vsel %vm485, 1, 0
    %v487 = vadd.s32 %v477, %v481
    %v488 = vadd.s32 %v480, %v486
    %vm489 = vc.u32 %v487, %v483
    %v490 = vsel %vm489, 1, 0
    %v491 = vadd.s32 %v487, %v483
    %v492 = vadd.s32 %v488, %v490
    %v493 = vadd.s32 %v492, %v482
    %v494 = vadd.s32 %v493, %v484
    %v495 = vmul.u32 %v450, %v441
    %v496 = vadd.s32 %v472, %v491
    %vm497 = vc.u32 %v472, %v491
    %v498 = vadd.s32 %v494, 1
    %v499 = vsel %vm497, %v498, %v494
    %v500 = vadd.s32 %v495, %v499
    %v501 = vadd.s32 %v500, 536870912
    %v502 = vshrl.u32 %v501, 30
    %v503 = vshll.u32 %v502, 30
    %v504 = vsub.s32 %v500, %v503
    %vm505 = vcmp.lt.s32.totalorder %v504, 0
    %v506 = vsub.s32 0, %v504
    %v507 = vsel %vm505, %v506, %v504
    %v508 = vclz %v507
    %v509 = vsub.s32 %v508, 2
    %vm510 = vcmp.gt.s32.totalorder 0, %v509
    %v511 = vsel %vm510, 0, %v509
    %v512 = vsub.s32 32, %v511
    %v513 = vshll.u32 %v504, %v511
    %v514 = vshrl.u32 %v496, %v512
    %v515 = vor.u32 %v513, %v514
    %v516 = vsub.s32 4294967266, %v511
    %v517 = vadd.s32 %v516, 127
    %v518 = vshll.u32 %v517, 23
    %v519 = vor.u32 4788187, %v518
    %v520 = vand.u32 2147483647, %v519
    %v522 = vcvt.s32.f32 %v515
    %v523 = vmul.f32 %v522, %v520
    %v524 = vxor.u32 %v523, 2147483648
    %v525 = vsel %vm404, %v524, %v523
    %v526 = vsub.s32 4, %v502
    %v527 = vsel %vm404, %v526, %v502
    %v528 = vsel %vm403, %v246, %v525
    %v529 = vsel %vm403, 0, %v527
    %v530 = vmul.f32 %v528, %v528
    %v531 = vmul.f32 %v530, -0.001358992
    %v532 = vadd.f32 %v531, 0.041655596
    %v533 = vmul.f32 %v530, %v532
    %v534 = vadd.f32 %v533, -0.4999988
    %v535 = vmul.f32 %v530, %v534
    %v536 = vadd.f32 1.0, %v535
    %v537 = vmul.f32 %v528, %v528
    %v538 = vmul.f32 %v537, -0.00019511016
    %v539 = vadd.f32 %v538, 0.008332121
    %v540 = vmul.f32 %v537, %v539
    %v541 = vadd.f32 %v540, -0.16666654
    %v542 = vmul.f32 %v537, %v541
    %v543 = vadd.f32 %v542, 1.0
    %v544 = vmul.f32 %v543, %v528
    %vm545 = vweird.f32 %v246
    %v546 = vand.u32 %v529, 3
    %vm547 = vcmp.lt.s32.totalorder %v546, 2
    %vm548 = vcmp.eq.s32.totalorder %v546, 0
    %v549 = vxor.u32 %v544, 2147483648
    %v550 = vsel %vm548, %v536, %v549
    %vm551 = vcmp.eq.s32.totalorder %v546, 2
    %v552 = vxor.u32 %v536, 2147483648
    %v553 = vsel %vm551, %v552, %v544
    %v554 = vsel %vm547, %v550, %v553
    %v555 = vsel %vm545, nan, %v554
    %v556 = vpack.c.bf16 %v401, %v401
    %v557 = vpack.c.bf16 %v555, %v555
    %v558 = vld [vmem:[#allocation7] sm:$0xff]
    %v559 = vld [vmem:[#allocation7 + $0x8] sm:$0xff]
    %v560 = vld [vmem:[#allocation7 + $0x10] sm:$0xff]
    %v561 = vld [vmem:[#allocation7 + $0x18] sm:$0xff]
    %v562 = vld [vmem:[#allocation7 + $0x20] sm:$0xff]
    %v563 = vld [vmem:[#allocation7 + $0x28] sm:$0xff]
    %v564 = vld [vmem:[#allocation7 + $0x30] sm:$0xff]
    %v565 = vld [vmem:[#allocation7 + $0x38] sm:$0xff]
    %v566 = vld [vmem:[#allocation7 + $0x40] sm:$0xff]
    %v567 = vld [vmem:[#allocation7 + $0x48] sm:$0xff]
    %v568 = vld [vmem:[#allocation7 + $0x50] sm:$0xff]
    %v569 = vld [vmem:[#allocation7 + $0x58] sm:$0xff]
    %v570 = vld [vmem:[#allocation7 + $0x60] sm:$0xff]
    %v571 = vld [vmem:[#allocation7 + $0x68] sm:$0xff]
    %v572 = vld [vmem:[#allocation7 + $0x70] sm:$0xff]
    %v573 = vld [vmem:[#allocation7 + $0x78] sm:$0xff]
    %v574 = vld [vmem:[#allocation7 + $0x80] sm:$0xff]
    %v575 = vld [vmem:[#allocation7 + $0x88] sm:$0xff]
    %v576 = vld [vmem:[#allocation7 + $0x90] sm:$0xff]
    %v577 = vld [vmem:[#allocation7 + $0x98] sm:$0xff]
    %v578 = vld [vmem:[#allocation7 + $0xa0] sm:$0xff]
    %v579 = vld [vmem:[#allocation7 + $0xa8] sm:$0xff]
    %v580 = vld [vmem:[#allocation7 + $0xb0] sm:$0xff]
    %v581 = vld [vmem:[#allocation7 + $0xb8] sm:$0xff]
    %v582 = vld [vmem:[#allocation7 + $0xc0] sm:$0xff]
    %v583 = vld [vmem:[#allocation7 + $0xc8] sm:$0xff]
    %v584 = vld [vmem:[#allocation7 + $0xd0] sm:$0xff]
    %v585 = vld [vmem:[#allocation7 + $0xd8] sm:$0xff]
    %v586 = vld [vmem:[#allocation7 + $0xe0] sm:$0xff]
    %v587 = vld [vmem:[#allocation7 + $0xe8] sm:$0xff]
    %v588 = vld [vmem:[#allocation7 + $0xf0] sm:$0xff]
    %v589 = vld [vmem:[#allocation7 + $0xf8] sm:$0xff]
    %v590 = vld [vmem:[#allocation7 + $0x100] sm:$0xff]
    %v591 = vld [vmem:[#allocation7 + $0x108] sm:$0xff]
    %v592 = vld [vmem:[#allocation7 + $0x110] sm:$0xff]
    %v593 = vld [vmem:[#allocation7 + $0x118] sm:$0xff]
    %v594 = vld [vmem:[#allocation7 + $0x120] sm:$0xff]
    %v595 = vld [vmem:[#allocation7 + $0x128] sm:$0xff]
    %v596 = vld [vmem:[#allocation7 + $0x130] sm:$0xff]
    %v597 = vld [vmem:[#allocation7 + $0x138] sm:$0xff]
    %v598 = vld [vmem:[#allocation7 + $0x140] sm:$0xff]
    %v599 = vld [vmem:[#allocation7 + $0x148] sm:$0xff]
    %v600 = vld [vmem:[#allocation7 + $0x150] sm:$0xff]
    %v601 = vld [vmem:[#allocation7 + $0x158] sm:$0xff]
    %v602 = vld [vmem:[#allocation7 + $0x160] sm:$0xff]
    %v603 = vld [vmem:[#allocation7 + $0x168] sm:$0xff]
    %v604 = vld [vmem:[#allocation7 + $0x170] sm:$0xff]
    %v605 = vld [vmem:[#allocation7 + $0x178] sm:$0xff]
    %v606 = vld [vmem:[#allocation7 + $0x180] sm:$0xff]
    %v607 = vld [vmem:[#allocation7 + $0x188] sm:$0xff]
    %v608 = vld [vmem:[#allocation7 + $0x190] sm:$0xff]
    %v609 = vld [vmem:[#allocation7 + $0x198] sm:$0xff]
    %v610 = vld [vmem:[#allocation7 + $0x1a0] sm:$0xff]
    %v611 = vld [vmem:[#allocation7 + $0x1a8] sm:$0xff]
    %v612 = vld [vmem:[#allocation7 + $0x1b0] sm:$0xff]
    %v613 = vld [vmem:[#allocation7 + $0x1b8] sm:$0xff]
    %v614 = vld [vmem:[#allocation7 + $0x1c0] sm:$0xff]
    %v615 = vld [vmem:[#allocation7 + $0x1c8] sm:$0xff]
    %v616 = vld [vmem:[#allocation7 + $0x1d0] sm:$0xff]
    %v617 = vld [vmem:[#allocation7 + $0x1d8] sm:$0xff]
    %v618 = vld [vmem:[#allocation7 + $0x1e0] sm:$0xff]
    %v619 = vld [vmem:[#allocation7 + $0x1e8] sm:$0xff]
    %v620 = vld [vmem:[#allocation7 + $0x1f0] sm:$0xff]
    %v621 = vld [vmem:[#allocation7 + $0x1f8] sm:$0xff]
    %v622 = vld [vmem:[#allocation7 + $0x200] sm:$0xff]
    %v623 = vld [vmem:[#allocation7 + $0x208] sm:$0xff]
    %v624 = vld [vmem:[#allocation7 + $0x210] sm:$0xff]
    %v625 = vld [vmem:[#allocation7 + $0x218] sm:$0xff]
    %v626 = vld [vmem:[#allocation7 + $0x220] sm:$0xff]
    %v627 = vld [vmem:[#allocation7 + $0x228] sm:$0xff]
    %v628 = vld [vmem:[#allocation7 + $0x230] sm:$0xff]
    %v629 = vld [vmem:[#allocation7 + $0x238] sm:$0xff]
    %v630 = vld [vmem:[#allocation7 + $0x240] sm:$0xff]
    %v631 = vld [vmem:[#allocation7 + $0x248] sm:$0xff]
    %v632 = vld [vmem:[#allocation7 + $0x250] sm:$0xff]
    %v633 = vld [vmem:[#allocation7 + $0x258] sm:$0xff]
    %v634 = vld [vmem:[#allocation7 + $0x260] sm:$0xff]
    %v635 = vld [vmem:[#allocation7 + $0x268] sm:$0xff]
    %v636 = vld [vmem:[#allocation7 + $0x270] sm:$0xff]
    %v637 = vld [vmem:[#allocation7 + $0x278] sm:$0xff]
    %v638 = vld [vmem:[#allocation7 + $0x280] sm:$0xff]
    %v639 = vld [vmem:[#allocation7 + $0x288] sm:$0xff]
    %v640 = vld [vmem:[#allocation7 + $0x290] sm:$0xff]
    %v641 = vld [vmem:[#allocation7 + $0x298] sm:$0xff]
    %v642 = vld [vmem:[#allocation7 + $0x2a0] sm:$0xff]
    %v643 = vld [vmem:[#allocation7 + $0x2a8] sm:$0xff]
    %v644 = vld [vmem:[#allocation7 + $0x2b0] sm:$0xff]
    %v645 = vld [vmem:[#allocation7 + $0x2b8] sm:$0xff]
    %v646 = vld [vmem:[#allocation7 + $0x2c0] sm:$0xff]
    %v647 = vld [vmem:[#allocation7 + $0x2c8] sm:$0xff]
    %v648 = vld [vmem:[#allocation7 + $0x2d0] sm:$0xff]
    %v649 = vld [vmem:[#allocation7 + $0x2d8] sm:$0xff]
    %v650 = vld [vmem:[#allocation7 + $0x2e0] sm:$0xff]
    %v651 = vld [vmem:[#allocation7 + $0x2e8] sm:$0xff]
    %v652 = vld [vmem:[#allocation7 + $0x2f0] sm:$0xff]
    %v653 = vld [vmem:[#allocation7 + $0x2f8] sm:$0xff]
    %v654 = vld [vmem:[#allocation7 + $0x300] sm:$0xff]
    %v655 = vld [vmem:[#allocation7 + $0x308] sm:$0xff]
    %v656 = vld [vmem:[#allocation7 + $0x310] sm:$0xff]
    %v657 = vld [vmem:[#allocation7 + $0x318] sm:$0xff]
    %v658 = vld [vmem:[#allocation7 + $0x320] sm:$0xff]
    %v659 = vld [vmem:[#allocation7 + $0x328] sm:$0xff]
    %v660 = vld [vmem:[#allocation7 + $0x330] sm:$0xff]
    %v661 = vld [vmem:[#allocation7 + $0x338] sm:$0xff]
    %v662 = vld [vmem:[#allocation7 + $0x340] sm:$0xff]
    %v663 = vld [vmem:[#allocation7 + $0x348] sm:$0xff]
    %v664 = vld [vmem:[#allocation7 + $0x350] sm:$0xff]
    %v665 = vld [vmem:[#allocation7 + $0x358] sm:$0xff]
    %v666 = vld [vmem:[#allocation7 + $0x360] sm:$0xff]
    %v667 = vld [vmem:[#allocation7 + $0x368] sm:$0xff]
    %v668 = vld [vmem:[#allocation7 + $0x370] sm:$0xff]
    %v669 = vld [vmem:[#allocation7 + $0x378] sm:$0xff]
    %v670 = vld [vmem:[#allocation7 + $0x380] sm:$0xff]
    %v671 = vld [vmem:[#allocation7 + $0x388] sm:$0xff]
    %v672 = vld [vmem:[#allocation7 + $0x390] sm:$0xff]
    %v673 = vld [vmem:[#allocation7 + $0x398] sm:$0xff]
    %v674 = vld [vmem:[#allocation7 + $0x3a0] sm:$0xff]
    %v675 = vld [vmem:[#allocation7 + $0x3a8] sm:$0xff]
    %v676 = vld [vmem:[#allocation7 + $0x3b0] sm:$0xff]
    %v677 = vld [vmem:[#allocation7 + $0x3b8] sm:$0xff]
    %v678 = vld [vmem:[#allocation7 + $0x3c0] sm:$0xff]
    %v679 = vld [vmem:[#allocation7 + $0x3c8] sm:$0xff]
    %v680 = vld [vmem:[#allocation7 + $0x3d0] sm:$0xff]
    %v681 = vld [vmem:[#allocation7 + $0x3d8] sm:$0xff]
    %v682 = vld [vmem:[#allocation7 + $0x3e0] sm:$0xff]
    %v683 = vld [vmem:[#allocation7 + $0x3e8] sm:$0xff]
    %v684 = vld [vmem:[#allocation7 + $0x3f0] sm:$0xff]
    %v685 = vld [vmem:[#allocation7 + $0x3f8] sm:$0xff]
    %v686 = vld [vmem:[#allocation8] sm:$0xff]
    %v688 = vperm.slane %v686, 0
    %v689 = vperm.slane %v686, 1
    %v690 = vperm.slane %v686, 2
    %v691 = vperm.slane %v686, 3
    %v692 = vperm.slane %v686, 4
    %v693 = vperm.slane %v686, 5
    %v694 = vperm.slane %v686, 6
    %v695 = vperm.slane %v686, 7
    %v832 = vunpack.c.l.b16 %v558
    %v833 = vunpack.c.h.b16 %v558
    %v834 = vunpack.c.l.b16 %v559
    %v835 = vunpack.c.h.b16 %v559
    %v836 = vunpack.c.l.b16 %v560
    %v837 = vunpack.c.h.b16 %v560
    %v838 = vunpack.c.l.b16 %v561
    %v839 = vunpack.c.h.b16 %v561
    %v840 = vunpack.c.l.b16 %v562
    %v841 = vunpack.c.h.b16 %v562
    %v842 = vunpack.c.l.b16 %v563
    %v843 = vunpack.c.h.b16 %v563
    %v844 = vunpack.c.l.b16 %v564
    %v845 = vunpack.c.h.b16 %v564
    %v846 = vunpack.c.l.b16 %v565
    %v847 = vunpack.c.h.b16 %v565
    %v848 = vunpack.c.l.b16 %v566
    %v849 = vunpack.c.h.b16 %v566
    %v850 = vunpack.c.l.b16 %v567
    %v851 = vunpack.c.h.b16 %v567
    %v852 = vunpack.c.l.b16 %v568
    %v853 = vunpack.c.h.b16 %v568
    %v854 = vunpack.c.l.b16 %v569
    %v855 = vunpack.c.h.b16 %v569
    %v856 = vunpack.c.l.b16 %v570
    %v857 = vunpack.c.h.b16 %v570
    %v858 = vunpack.c.l.b16 %v571
    %v859 = vunpack.c.h.b16 %v571
    %v860 = vunpack.c.l.b16 %v572
    %v861 = vunpack.c.h.b16 %v572
    %v862 = vunpack.c.l.b16 %v573
    %v863 = vunpack.c.h.b16 %v573
    %v864 = vunpack.c.l.b16 %v574
    %v865 = vunpack.c.h.b16 %v574
    %v866 = vunpack.c.l.b16 %v575
    %v867 = vunpack.c.h.b16 %v575
    %v868 = vunpack.c.l.b16 %v576
    %v869 = vunpack.c.h.b16 %v576
    %v870 = vunpack.c.l.b16 %v577
    %v871 = vunpack.c.h.b16 %v577
    %v872 = vunpack.c.l.b16 %v578
    %v873 = vunpack.c.h.b16 %v578
    %v874 = vunpack.c.l.b16 %v579
    %v875 = vunpack.c.h.b16 %v579
    %v876 = vunpack.c.l.b16 %v580
    %v877 = vunpack.c.h.b16 %v580
    %v878 = vunpack.c.l.b16 %v581
    %v879 = vunpack.c.h.b16 %v581
    %v880 = vunpack.c.l.b16 %v582
    %v881 = vunpack.c.h.b16 %v582
    %v882 = vunpack.c.l.b16 %v583
    %v883 = vunpack.c.h.b16 %v583
    %v884 = vunpack.c.l.b16 %v584
    %v885 = vunpack.c.h.b16 %v584
    %v886 = vunpack.c.l.b16 %v585
    %v887 = vunpack.c.h.b16 %v585
    %v888 = vunpack.c.l.b16 %v586
    %v889 = vunpack.c.h.b16 %v586
    %v890 = vunpack.c.l.b16 %v587
    %v891 = vunpack.c.h.b16 %v587
    %v892 = vunpack.c.l.b16 %v588
    %v893 = vunpack.c.h.b16 %v588
    %v894 = vunpack.c.l.b16 %v589
    %v895 = vunpack.c.h.b16 %v589
    %v896 = vunpack.c.l.b16 %v590
    %v897 = vunpack.c.h.b16 %v590
    %v898 = vunpack.c.l.b16 %v591
    %v899 = vunpack.c.h.b16 %v591
    %v900 = vunpack.c.l.b16 %v592
    %v901 = vunpack.c.h.b16 %v592
    %v902 = vunpack.c.l.b16 %v593
    %v903 = vunpack.c.h.b16 %v593
    %v904 = vunpack.c.l.b16 %v594
    %v905 = vunpack.c.h.b16 %v594
    %v906 = vunpack.c.l.b16 %v595
    %v907 = vunpack.c.h.b16 %v595
    %v908 = vunpack.c.l.b16 %v596
    %v909 = vunpack.c.h.b16 %v596
    %v910 = vunpack.c.l.b16 %v597
    %v911 = vunpack.c.h.b16 %v597
    %v912 = vunpack.c.l.b16 %v598
    %v913 = vunpack.c.h.b16 %v598
    %v914 = vunpack.c.l.b16 %v599
    %v915 = vunpack.c.h.b16 %v599
    %v916 = vunpack.c.l.b16 %v600
    %v917 = vunpack.c.h.b16 %v600
    %v918 = vunpack.c.l.b16 %v601
    %v919 = vunpack.c.h.b16 %v601
    %v920 = vunpack.c.l.b16 %v602
    %v921 = vunpack.c.h.b16 %v602
    %v922 = vunpack.c.l.b16 %v603
    %v923 = vunpack.c.h.b16 %v603
    %v924 = vunpack.c.l.b16 %v604
    %v925 = vunpack.c.h.b16 %v604
    %v926 = vunpack.c.l.b16 %v605
    %v927 = vunpack.c.h.b16 %v605
    %v928 = vunpack.c.l.b16 %v606
    %v929 = vunpack.c.h.b16 %v606
    %v930 = vunpack.c.l.b16 %v607
    %v931 = vunpack.c.h.b16 %v607
    %v932 = vunpack.c.l.b16 %v608
    %v933 = vunpack.c.h.b16 %v608
    %v934 = vunpack.c.l.b16 %v609
    %v935 = vunpack.c.h.b16 %v609
    %v936 = vunpack.c.l.b16 %v610
    %v937 = vunpack.c.h.b16 %v610
    %v938 = vunpack.c.l.b16 %v611
    %v939 = vunpack.c.h.b16 %v611
    %v940 = vunpack.c.l.b16 %v612
    %v941 = vunpack.c.h.b16 %v612
    %v942 = vunpack.c.l.b16 %v613
    %v943 = vunpack.c.h.b16 %v613
    %v944 = vunpack.c.l.b16 %v614
    %v945 = vunpack.c.h.b16 %v614
    %v946 = vunpack.c.l.b16 %v615
    %v947 = vunpack.c.h.b16 %v615
    %v948 = vunpack.c.l.b16 %v616
    %v949 = vunpack.c.h.b16 %v616
    %v950 = vunpack.c.l.b16 %v617
    %v951 = vunpack.c.h.b16 %v617
    %v952 = vunpack.c.l.b16 %v618
    %v953 = vunpack.c.h.b16 %v618
    %v954 = vunpack.c.l.b16 %v619
    %v955 = vunpack.c.h.b16 %v619
    %v956 = vunpack.c.l.b16 %v620
    %v957 = vunpack.c.h.b16 %v620
    %v958 = vunpack.c.l.b16 %v621
    %v959 = vunpack.c.h.b16 %v621
    %v960 = vunpack.c.l.b16 %v622
    %v961 = vunpack.c.h.b16 %v622
    %v962 = vunpack.c.l.b16 %v623
    %v963 = vunpack.c.h.b16 %v623
    %v964 = vunpack.c.l.b16 %v624
    %v965 = vunpack.c.h.b16 %v624
    %v966 = vunpack.c.l.b16 %v625
    %v967 = vunpack.c.h.b16 %v625
    %v968 = vunpack.c.l.b16 %v626
    %v969 = vunpack.c.h.b16 %v626
    %v970 = vunpack.c.l.b16 %v627
    %v971 = vunpack.c.h.b16 %v627
    %v972 = vunpack.c.l.b16 %v628
    %v973 = vunpack.c.h.b16 %v628
    %v974 = vunpack.c.l.b16 %v629
    %v975 = vunpack.c.h.b16 %v629
    %v976 = vunpack.c.l.b16 %v630
    %v977 = vunpack.c.h.b16 %v630
    %v978 = vunpack.c.l.b16 %v631
    %v979 = vunpack.c.h.b16 %v631
    %v980 = vunpack.c.l.b16 %v632
    %v981 = vunpack.c.h.b16 %v632
    %v982 = vunpack.c.l.b16 %v633
    %v983 = vunpack.c.h.b16 %v633
    %v984 = vunpack.c.l.b16 %v634
    %v985 = vunpack.c.h.b16 %v634
    %v986 = vunpack.c.l.b16 %v635
    %v987 = vunpack.c.h.b16 %v635
    %v988 = vunpack.c.l.b16 %v636
    %v989 = vunpack.c.h.b16 %v636
    %v990 = vunpack.c.l.b16 %v637
    %v991 = vunpack.c.h.b16 %v637
    %v992 = vunpack.c.l.b16 %v638
    %v993 = vunpack.c.h.b16 %v638
    %v994 = vunpack.c.l.b16 %v639
    %v995 = vunpack.c.h.b16 %v639
    %v996 = vunpack.c.l.b16 %v640
    %v997 = vunpack.c.h.b16 %v640
    %v998 = vunpack.c.l.b16 %v641
    %v999 = vunpack.c.h.b16 %v641
    %v1000 = vunpack.c.l.b16 %v642
    %v1001 = vunpack.c.h.b16 %v642
    %v1002 = vunpack.c.l.b16 %v643
    %v1003 = vunpack.c.h.b16 %v643
    %v1004 = vunpack.c.l.b16 %v644
    %v1005 = vunpack.c.h.b16 %v644
    %v1006 = vunpack.c.l.b16 %v645
    %v1007 = vunpack.c.h.b16 %v645
    %v1008 = vunpack.c.l.b16 %v646
    %v1009 = vunpack.c.h.b16 %v646
    %v1010 = vunpack.c.l.b16 %v647
    %v1011 = vunpack.c.h.b16 %v647
    %v1012 = vunpack.c.l.b16 %v648
    %v1013 = vunpack.c.h.b16 %v648
    %v1014 = vunpack.c.l.b16 %v649
    %v1015 = vunpack.c.h.b16 %v649
    %v1016 = vunpack.c.l.b16 %v650
    %v1017 = vunpack.c.h.b16 %v650
    %v1018 = vunpack.c.l.b16 %v651
    %v1019 = vunpack.c.h.b16 %v651
    %v1020 = vunpack.c.l.b16 %v652
    %v1021 = vunpack.c.h.b16 %v652
    %v1022 = vunpack.c.l.b16 %v653
    %v1023 = vunpack.c.h.b16 %v653
    %v1024 = vunpack.c.l.b16 %v654
    %v1025 = vunpack.c.h.b16 %v654
    %v1026 = vunpack.c.l.b16 %v655
    %v1027 = vunpack.c.h.b16 %v655
    %v1028 = vunpack.c.l.b16 %v656
    %v1029 = vunpack.c.h.b16 %v656
    %v1030 = vunpack.c.l.b16 %v657
    %v1031 = vunpack.c.h.b16 %v657
    %v1032 = vunpack.c.l.b16 %v658
    %v1033 = vunpack.c.h.b16 %v658
    %v1034 = vunpack.c.l.b16 %v659
    %v1035 = vunpack.c.h.b16 %v659
    %v1036 = vunpack.c.l.b16 %v660
    %v1037 = vunpack.c.h.b16 %v660
    %v1038 = vunpack.c.l.b16 %v661
    %v1039 = vunpack.c.h.b16 %v661
    %v1040 = vunpack.c.l.b16 %v662
    %v1041 = vunpack.c.h.b16 %v662
    %v1042 = vunpack.c.l.b16 %v663
    %v1043 = vunpack.c.h.b16 %v663
    %v1044 = vunpack.c.l.b16 %v664
    %v1045 = vunpack.c.h.b16 %v664
    %v1046 = vunpack.c.l.b16 %v665
    %v1047 = vunpack.c.h.b16 %v665
    %v1048 = vunpack.c.l.b16 %v666
    %v1049 = vunpack.c.h.b16 %v666
    %v1050 = vunpack.c.l.b16 %v667
    %v1051 = vunpack.c.h.b16 %v667
    %v1052 = vunpack.c.l.b16 %v668
    %v1053 = vunpack.c.h.b16 %v668
    %v1054 = vunpack.c.l.b16 %v669
    %v1055 = vunpack.c.h.b16 %v669
    %v1056 = vunpack.c.l.b16 %v670
    %v1057 = vunpack.c.h.b16 %v670
    %v1058 = vunpack.c.l.b16 %v671
    %v1059 = vunpack.c.h.b16 %v671
    %v1060 = vunpack.c.l.b16 %v672
    %v1061 = vunpack.c.h.b16 %v672
    %v1062 = vunpack.c.l.b16 %v673
    %v1063 = vunpack.c.h.b16 %v673
    %v1064 = vunpack.c.l.b16 %v674
    %v1065 = vunpack.c.h.b16 %v674
    %v1066 = vunpack.c.l.b16 %v675
    %v1067 = vunpack.c.h.b16 %v675
    %v1068 = vunpack.c.l.b16 %v676
    %v1069 = vunpack.c.h.b16 %v676
    %v1070 = vunpack.c.l.b16 %v677
    %v1071 = vunpack.c.h.b16 %v677
    %v1072 = vunpack.c.l.b16 %v678
    %v1073 = vunpack.c.h.b16 %v678
    %v1074 = vunpack.c.l.b16 %v679
    %v1075 = vunpack.c.h.b16 %v679
    %v1076 = vunpack.c.l.b16 %v680
    %v1077 = vunpack.c.h.b16 %v680
    %v1078 = vunpack.c.l.b16 %v681
    %v1079 = vunpack.c.h.b16 %v681
    %v1080 = vunpack.c.l.b16 %v682
    %v1081 = vunpack.c.h.b16 %v682
    %v1082 = vunpack.c.l.b16 %v683
    %v1083 = vunpack.c.h.b16 %v683
    %v1084 = vunpack.c.l.b16 %v684
    %v1085 = vunpack.c.h.b16 %v684
    %v1086 = vunpack.c.l.b16 %v685
    %v1087 = vunpack.c.h.b16 %v685
    %v1088 = vpack.c.b16 %v840, %v832
    %v1089 = vpack.c.b16 %v841, %v833
    %v1090 = vpack.c.b16 %v842, %v834
    %v1091 = vpack.c.b16 %v843, %v835
    %v1092 = vpack.c.b16 %v844, %v836
    %v1093 = vpack.c.b16 %v845, %v837
    %v1094 = vpack.c.b16 %v846, %v838
    %v1095 = vpack.c.b16 %v847, %v839
    %v1096 = vpack.c.b16 %v856, %v848
    %v1097 = vpack.c.b16 %v857, %v849
    %v1098 = vpack.c.b16 %v858, %v850
    %v1099 = vpack.c.b16 %v859, %v851
    %v1100 = vpack.c.b16 %v860, %v852
    %v1101 = vpack.c.b16 %v861, %v853
    %v1102 = vpack.c.b16 %v862, %v854
    %v1103 = vpack.c.b16 %v863, %v855
    %v1104 = vpack.c.b16 %v872, %v864
    %v1105 = vpack.c.b16 %v873, %v865
    %v1106 = vpack.c.b16 %v874, %v866
    %v1107 = vpack.c.b16 %v875, %v867
    %v1108 = vpack.c.b16 %v876, %v868
    %v1109 = vpack.c.b16 %v877, %v869
    %v1110 = vpack.c.b16 %v878, %v870
    %v1111 = vpack.c.b16 %v879, %v871
    %v1112 = vpack.c.b16 %v888, %v880
    %v1113 = vpack.c.b16 %v889, %v881
    %v1114 = vpack.c.b16 %v890, %v882
    %v1115 = vpack.c.b16 %v891, %v883
    %v1116 = vpack.c.b16 %v892, %v884
    %v1117 = vpack.c.b16 %v893, %v885
    %v1118 = vpack.c.b16 %v894, %v886
    %v1119 = vpack.c.b16 %v895, %v887
    %v1120 = vpack.c.b16 %v904, %v896
    %v1121 = vpack.c.b16 %v905, %v897
    %v1122 = vpack.c.b16 %v906, %v898
    %v1123 = vpack.c.b16 %v907, %v899
    %v1124 = vpack.c.b16 %v908, %v900
    %v1125 = vpack.c.b16 %v909, %v901
    %v1126 = vpack.c.b16 %v910, %v902
    %v1127 = vpack.c.b16 %v911, %v903
    %v1128 = vpack.c.b16 %v920, %v912
    %v1129 = vpack.c.b16 %v921, %v913
    %v1130 = vpack.c.b16 %v922, %v914
    %v1131 = vpack.c.b16 %v923, %v915
    %v1132 = vpack.c.b16 %v924, %v916
    %v1133 = vpack.c.b16 %v925, %v917
    %v1134 = vpack.c.b16 %v926, %v918
    %v1135 = vpack.c.b16 %v927, %v919
    %v1136 = vpack.c.b16 %v936, %v928
    %v1137 = vpack.c.b16 %v937, %v929
    %v1138 = vpack.c.b16 %v938, %v930
    %v1139 = vpack.c.b16 %v939, %v931
    %v1140 = vpack.c.b16 %v940, %v932
    %v1141 = vpack.c.b16 %v941, %v933
    %v1142 = vpack.c.b16 %v942, %v934
    %v1143 = vpack.c.b16 %v943, %v935
    %v1144 = vpack.c.b16 %v952, %v944
    %v1145 = vpack.c.b16 %v953, %v945
    %v1146 = vpack.c.b16 %v954, %v946
    %v1147 = vpack.c.b16 %v955, %v947
    %v1148 = vpack.c.b16 %v956, %v948
    %v1149 = vpack.c.b16 %v957, %v949
    %v1150 = vpack.c.b16 %v958, %v950
    %v1151 = vpack.c.b16 %v959, %v951
    %v1152 = vpack.c.b16 %v968, %v960
    %v1153 = vpack.c.b16 %v969, %v961
    %v1154 = vpack.c.b16 %v970, %v962
    %v1155 = vpack.c.b16 %v971, %v963
    %v1156 = vpack.c.b16 %v972, %v964
    %v1157 = vpack.c.b16 %v973, %v965
    %v1158 = vpack.c.b16 %v974, %v966
    %v1159 = vpack.c.b16 %v975, %v967
    %v1160 = vpack.c.b16 %v984, %v976
    %v1161 = vpack.c.b16 %v985, %v977
    %v1162 = vpack.c.b16 %v986, %v978
    %v1163 = vpack.c.b16 %v987, %v979
    %v1164 = vpack.c.b16 %v988, %v980
    %v1165 = vpack.c.b16 %v989, %v981
    %v1166 = vpack.c.b16 %v990, %v982
    %v1167 = vpack.c.b16 %v991, %v983
    %v1168 = vpack.c.b16 %v1000, %v992
    %v1169 = vpack.c.b16 %v1001, %v993
    %v1170 = vpack.c.b16 %v1002, %v994
    %v1171 = vpack.c.b16 %v1003, %v995
    %v1172 = vpack.c.b16 %v1004, %v996
    %v1173 = vpack.c.b16 %v1005, %v997
    %v1174 = vpack.c.b16 %v1006, %v998
    %v1175 = vpack.c.b16 %v1007, %v999
    %v1176 = vpack.c.b16 %v1016, %v1008
    %v1177 = vpack.c.b16 %v1017, %v1009
    %v1178 = vpack.c.b16 %v1018, %v1010
    %v1179 = vpack.c.b16 %v1019, %v1011
    %v1180 = vpack.c.b16 %v1020, %v1012
    %v1181 = vpack.c.b16 %v1021, %v1013
    %v1182 = vpack.c.b16 %v1022, %v1014
    %v1183 = vpack.c.b16 %v1023, %v1015
    %v1184 = vpack.c.b16 %v1032, %v1024
    %v1185 = vpack.c.b16 %v1033, %v1025
    %v1186 = vpack.c.b16 %v1034, %v1026
    %v1187 = vpack.c.b16 %v1035, %v1027
    %v1188 = vpack.c.b16 %v1036, %v1028
    %v1189 = vpack.c.b16 %v1037, %v1029
    %v1190 = vpack.c.b16 %v1038, %v1030
    %v1191 = vpack.c.b16 %v1039, %v1031
    %v1192 = vpack.c.b16 %v1048, %v1040
    %v1193 = vpack.c.b16 %v1049, %v1041
    %v1194 = vpack.c.b16 %v1050, %v1042
    %v1195 = vpack.c.b16 %v1051, %v1043
    %v1196 = vpack.c.b16 %v1052, %v1044
    %v1197 = vpack.c.b16 %v1053, %v1045
    %v1198 = vpack.c.b16 %v1054, %v1046
    %v1199 = vpack.c.b16 %v1055, %v1047
    %v1200 = vpack.c.b16 %v1064, %v1056
    %v1201 = vpack.c.b16 %v1065, %v1057
    %v1202 = vpack.c.b16 %v1066, %v1058
    %v1203 = vpack.c.b16 %v1067, %v1059
    %v1204 = vpack.c.b16 %v1068, %v1060
    %v1205 = vpack.c.b16 %v1069, %v1061
    %v1206 = vpack.c.b16 %v1070, %v1062
    %v1207 = vpack.c.b16 %v1071, %v1063
    %v1208 = vpack.c.b16 %v1080, %v1072
    %v1209 = vpack.c.b16 %v1081, %v1073
    %v1210 = vpack.c.b16 %v1082, %v1074
    %v1211 = vpack.c.b16 %v1083, %v1075
    %v1212 = vpack.c.b16 %v1084, %v1076
    %v1213 = vpack.c.b16 %v1085, %v1077
    %v1214 = vpack.c.b16 %v1086, %v1078
    %v1215 = vpack.c.b16 %v1087, %v1079
    %1344 = vmatpush.bf16.msra.mxu0 %v1144
    %1345 = vmatpush.bf16.msra.mxu0 %v1136
    %1346 = vmatpush.bf16.msra.mxu0 %v1128
    %1347 = vmatpush.bf16.msra.mxu0 %v1120
    %1348 = vmatpush.bf16.msra.mxu0 %v1112
    %1349 = vmatpush.bf16.msra.mxu0 %v1104
    %1350 = vmatpush.bf16.msra.mxu0 %v1096
    %1351 = vmatpush.bf16.msra.mxu0 %v1088
    %1352 = vmatmul.bf16.gmra.mxu0 %v556
    %v1353 = vpop.f32.mrf.mxu0
    %v1354 = vadd.f32 %v688, %v1353
    %v1355 = vpop.f32.mrf.mxu0
    %1356 = vdwg.mxu0
    %1357 = vmatpush.bf16.msra.mxu0 %v1208
    %1358 = vmatpush.bf16.msra.mxu0 %v1200
    %1359 = vmatpush.bf16.msra.mxu0 %v1192
    %1360 = vmatpush.bf16.msra.mxu0 %v1184
    %1361 = vmatpush.bf16.msra.mxu0 %v1176
    %1362 = vmatpush.bf16.msra.mxu0 %v1168
    %1363 = vmatpush.bf16.msra.mxu0 %v1160
    %1364 = vmatpush.bf16.msra.mxu0 %v1152
    %1365 = vmatmul.bf16.gmra.mxu0 %v557
    %v1366 = vpop.f32.mrf.mxu0
    %v1367 = vadd.f32 %v1354, %v1366
    %v1368 = vpop.f32.mrf.mxu0
    %1369 = vdwg.mxu0
    %1370 = vmatpush.bf16.msra.mxu0 %v1145
    %1371 = vmatpush.bf16.msra.mxu0 %v1137
    %1372 = vmatpush.bf16.msra.mxu0 %v1129
    %1373 = vmatpush.bf16.msra.mxu0 %v1121
    %1374 = vmatpush.bf16.msra.mxu0 %v1113
    %1375 = vmatpush.bf16.msra.mxu0 %v1105
    %1376 = vmatpush.bf16.msra.mxu0 %v1097
    %1377 = vmatpush.bf16.msra.mxu0 %v1089
    %1378 = vmatmul.bf16.gmra.mxu0 %v556
    %v1379 = vpop.f32.mrf.mxu0
    %v1380 = vadd.f32 %v689, %v1379
    %v1381 = vpop.f32.mrf.mxu0
    %1382 = vdwg.mxu0
    %1383 = vmatpush.bf16.msra.mxu0 %v1209
    %1384 = vmatpush.bf16.msra.mxu0 %v1201
    %1385 = vmatpush.bf16.msra.mxu0 %v1193
    %1386 = vmatpush.bf16.msra.mxu0 %v1185
    %1387 = vmatpush.bf16.msra.mxu0 %v1177
    %1388 = vmatpush.bf16.msra.mxu0 %v1169
    %1389 = vmatpush.bf16.msra.mxu0 %v1161
    %1390 = vmatpush.bf16.msra.mxu0 %v1153
    %1391 = vmatmul.bf16.gmra.mxu0 %v557
    %v1392 = vpop.f32.mrf.mxu0
    %v1393 = vadd.f32 %v1380, %v1392
    %v1394 = vpop.f32.mrf.mxu0
    %1395 = vdwg.mxu0
    %1396 = vmatpush.bf16.msra.mxu0 %v1146
    %1397 = vmatpush.bf16.msra.mxu0 %v1138
    %1398 = vmatpush.bf16.msra.mxu0 %v1130
    %1399 = vmatpush.bf16.msra.mxu0 %v1122
    %1400 = vmatpush.bf16.msra.mxu0 %v1114
    %1401 = vmatpush.bf16.msra.mxu0 %v1106
    %1402 = vmatpush.bf16.msra.mxu0 %v1098
    %1403 = vmatpush.bf16.msra.mxu0 %v1090
    %1404 = vmatmul.bf16.gmra.mxu0 %v556
    %v1405 = vpop.f32.mrf.mxu0
    %v1406 = vadd.f32 %v690, %v1405
    %v1407 = vpop.f32.mrf.mxu0
    %1408 = vdwg.mxu0
    %1409 = vmatpush.bf16.msra.mxu0 %v1210
    %1410 = vmatpush.bf16.msra.mxu0 %v1202
    %1411 = vmatpush.bf16.msra.mxu0 %v1194
    %1412 = vmatpush.bf16.msra.mxu0 %v1186
    %1413 = vmatpush.bf16.msra.mxu0 %v1178
    %1414 = vmatpush.bf16.msra.mxu0 %v1170
    %1415 = vmatpush.bf16.msra.mxu0 %v1162
    %1416 = vmatpush.bf16.msra.mxu0 %v1154
    %1417 = vmatmul.bf16.gmra.mxu0 %v557
    %v1418 = vpop.f32.mrf.mxu0
    %v1419 = vadd.f32 %v1406, %v1418
    %v1420 = vpop.f32.mrf.mxu0
    %1421 = vdwg.mxu0
    %1422 = vmatpush.bf16.msra.mxu0 %v1147
    %1423 = vmatpush.bf16.msra.mxu0 %v1139
    %1424 = vmatpush.bf16.msra.mxu0 %v1131
    %1425 = vmatpush.bf16.msra.mxu0 %v1123
    %1426 = vmatpush.bf16.msra.mxu0 %v1115
    %1427 = vmatpush.bf16.msra.mxu0 %v1107
    %1428 = vmatpush.bf16.msra.mxu0 %v1099
    %1429 = vmatpush.bf16.msra.mxu0 %v1091
    %1430 = vmatmul.bf16.gmra.mxu0 %v556
    %v1431 = vpop.f32.mrf.mxu0
    %v1432 = vadd.f32 %v691, %v1431
    %v1433 = vpop.f32.mrf.mxu0
    %1434 = vdwg.mxu0
    %1435 = vmatpush.bf16.msra.mxu0 %v1211
    %1436 = vmatpush.bf16.msra.mxu0 %v1203
    %1437 = vmatpush.bf16.msra.mxu0 %v1195
    %1438 = vmatpush.bf16.msra.mxu0 %v1187
    %1439 = vmatpush.bf16.msra.mxu0 %v1179
    %1440 = vmatpush.bf16.msra.mxu0 %v1171
    %1441 = vmatpush.bf16.msra.mxu0 %v1163
    %1442 = vmatpush.bf16.msra.mxu0 %v1155
    %1443 = vmatmul.bf16.gmra.mxu0 %v557
    %v1444 = vpop.f32.mrf.mxu0
    %v1445 = vadd.f32 %v1432, %v1444
    %v1446 = vpop.f32.mrf.mxu0
    %1447 = vdwg.mxu0
    %1448 = vmatpush.bf16.msra.mxu0 %v1148
    %1449 = vmatpush.bf16.msra.mxu0 %v1140
    %1450 = vmatpush.bf16.msra.mxu0 %v1132
    %1451 = vmatpush.bf16.msra.mxu0 %v1124
    %1452 = vmatpush.bf16.msra.mxu0 %v1116
    %1453 = vmatpush.bf16.msra.mxu0 %v1108
    %1454 = vmatpush.bf16.msra.mxu0 %v1100
    %1455 = vmatpush.bf16.msra.mxu0 %v1092
    %1456 = vmatmul.bf16.gmra.mxu0 %v556
    %v1457 = vpop.f32.mrf.mxu0
    %v1458 = vadd.f32 %v692, %v1457
    %v1459 = vpop.f32.mrf.mxu0
    %1460 = vdwg.mxu0
    %1461 = vmatpush.bf16.msra.mxu0 %v1212
    %1462 = vmatpush.bf16.msra.mxu0 %v1204
    %1463 = vmatpush.bf16.msra.mxu0 %v1196
    %1464 = vmatpush.bf16.msra.mxu0 %v1188
    %1465 = vmatpush.bf16.msra.mxu0 %v1180
    %1466 = vmatpush.bf16.msra.mxu0 %v1172
    %1467 = vmatpush.bf16.msra.mxu0 %v1164
    %1468 = vmatpush.bf16.msra.mxu0 %v1156
    %1469 = vmatmul.bf16.gmra.mxu0 %v557
    %v1470 = vpop.f32.mrf.mxu0
    %v1471 = vadd.f32 %v1458, %v1470
    %v1472 = vpop.f32.mrf.mxu0
    %1473 = vdwg.mxu0
    %1474 = vmatpush.bf16.msra.mxu0 %v1149
    %1475 = vmatpush.bf16.msra.mxu0 %v1141
    %1476 = vmatpush.bf16.msra.mxu0 %v1133
    %1477 = vmatpush.bf16.msra.mxu0 %v1125
    %1478 = vmatpush.bf16.msra.mxu0 %v1117
    %1479 = vmatpush.bf16.msra.mxu0 %v1109
    %1480 = vmatpush.bf16.msra.mxu0 %v1101
    %1481 = vmatpush.bf16.msra.mxu0 %v1093
    %1482 = vmatmul.bf16.gmra.mxu0 %v556
    %v1483 = vpop.f32.mrf.mxu0
    %v1484 = vadd.f32 %v693, %v1483
    %v1485 = vpop.f32.mrf.mxu0
    %1486 = vdwg.mxu0
    %1487 = vmatpush.bf16.msra.mxu0 %v1213
    %1488 = vmatpush.bf16.msra.mxu0 %v1205
    %1489 = vmatpush.bf16.msra.mxu0 %v1197
    %1490 = vmatpush.bf16.msra.mxu0 %v1189
    %1491 = vmatpush.bf16.msra.mxu0 %v1181
    %1492 = vmatpush.bf16.msra.mxu0 %v1173
    %1493 = vmatpush.bf16.msra.mxu0 %v1165
    %1494 = vmatpush.bf16.msra.mxu0 %v1157
    %1495 = vmatmul.bf16.gmra.mxu0 %v557
    %v1496 = vpop.f32.mrf.mxu0
    %v1497 = vadd.f32 %v1484, %v1496
    %v1498 = vpop.f32.mrf.mxu0
    %1499 = vdwg.mxu0
    %1500 = vmatpush.bf16.msra.mxu0 %v1150
    %1501 = vmatpush.bf16.msra.mxu0 %v1142
    %1502 = vmatpush.bf16.msra.mxu0 %v1134
    %1503 = vmatpush.bf16.msra.mxu0 %v1126
    %1504 = vmatpush.bf16.msra.mxu0 %v1118
    %1505 = vmatpush.bf16.msra.mxu0 %v1110
    %1506 = vmatpush.bf16.msra.mxu0 %v1102
    %1507 = vmatpush.bf16.msra.mxu0 %v1094
    %1508 = vmatmul.bf16.gmra.mxu0 %v556
    %v1509 = vpop.f32.mrf.mxu0
    %v1510 = vadd.f32 %v694, %v1509
    %v1511 = vpop.f32.mrf.mxu0
    %1512 = vdwg.mxu0
    %1513 = vmatpush.bf16.msra.mxu0 %v1214
    %1514 = vmatpush.bf16.msra.mxu0 %v1206
    %1515 = vmatpush.bf16.msra.mxu0 %v1198
    %1516 = vmatpush.bf16.msra.mxu0 %v1190
    %1517 = vmatpush.bf16.msra.mxu0 %v1182
    %1518 = vmatpush.bf16.msra.mxu0 %v1174
    %1519 = vmatpush.bf16.msra.mxu0 %v1166
    %1520 = vmatpush.bf16.msra.mxu0 %v1158
    %1521 = vmatmul.bf16.gmra.mxu0 %v557
    %v1522 = vpop.f32.mrf.mxu0
    %v1523 = vadd.f32 %v1510, %v1522
    %v1524 = vpop.f32.mrf.mxu0
    %1525 = vdwg.mxu0
    %1526 = vmatpush.bf16.msra.mxu0 %v1151
    %1527 = vmatpush.bf16.msra.mxu0 %v1143
    %1528 = vmatpush.bf16.msra.mxu0 %v1135
    %1529 = vmatpush.bf16.msra.mxu0 %v1127
    %1530 = vmatpush.bf16.msra.mxu0 %v1119
    %1531 = vmatpush.bf16.msra.mxu0 %v1111
    %1532 = vmatpush.bf16.msra.mxu0 %v1103
    %1533 = vmatpush.bf16.msra.mxu0 %v1095
    %1534 = vmatmul.bf16.gmra.mxu0 %v556
    %v1535 = vpop.f32.mrf.mxu0
    %v1536 = vadd.f32 %v695, %v1535
    %v1537 = vpop.f32.mrf.mxu0
    %1538 = vdwg.mxu0
    %1539 = vmatpush.bf16.msra.mxu0 %v1215
    %1540 = vmatpush.bf16.msra.mxu0 %v1207
    %1541 = vmatpush.bf16.msra.mxu0 %v1199
    %1542 = vmatpush.bf16.msra.mxu0 %v1191
    %1543 = vmatpush.bf16.msra.mxu0 %v1183
    %1544 = vmatpush.bf16.msra.mxu0 %v1175
    %1545 = vmatpush.bf16.msra.mxu0 %v1167
    %1546 = vmatpush.bf16.msra.mxu0 %v1159
    %1547 = vmatmul.bf16.gmra.mxu0 %v557
    %v1548 = vpop.f32.mrf.mxu0
    %v1549 = vadd.f32 %v1536, %v1548
    %v1550 = vpop.f32.mrf.mxu0
    %1551 = vdwg.mxu0
    %v1552 = vmin.f32 %v1367, 20.0
    %v1553 = vmin.f32 %v1393, 20.0
    %v1554 = vmin.f32 %v1419, 20.0
    %v1555 = vmin.f32 %v1445, 20.0
    %v1556 = vmin.f32 %v1471, 20.0
    %v1557 = vmin.f32 %v1497, 20.0
    %v1558 = vmin.f32 %v1523, 20.0
    %v1559 = vmin.f32 %v1549, 20.0
    %v1560 = vmul.f32 %v1552, 1.442695
    %v1561 = vpow.pop %v1560
    %v1562 = vmul.f32 %v1553, 1.442695
    %v1563 = vpow.pop %v1562
    %v1564 = vmul.f32 %v1554, 1.442695
    %v1565 = vpow.pop %v1564
    %v1566 = vmul.f32 %v1555, 1.442695
    %v1567 = vpow.pop %v1566
    %v1568 = vmul.f32 %v1556, 1.442695
    %v1569 = vpow.pop %v1568
    %v1570 = vmul.f32 %v1557, 1.442695
    %v1571 = vpow.pop %v1570
    %v1572 = vmul.f32 %v1558, 1.442695
    %v1573 = vpow.pop %v1572
    %v1574 = vmul.f32 %v1559, 1.442695
    %v1575 = vpow.pop %v1574
    %v1576 = vadd.f32 %v1561, 1.0
    %v1577 = vadd.f32 %v1563, 1.0
    %v1578 = vadd.f32 %v1565, 1.0
    %v1579 = vadd.f32 %v1567, 1.0
    %v1580 = vadd.f32 %v1569, 1.0
    %v1581 = vadd.f32 %v1571, 1.0
    %v1582 = vadd.f32 %v1573, 1.0
    %v1583 = vadd.f32 %v1575, 1.0
    %v1584 = vmul.f32 %v1576, %v1576
    %v1585 = vmul.f32 %v1577, %v1577
    %v1586 = vmul.f32 %v1578, %v1578
    %v1587 = vmul.f32 %v1579, %v1579
    %v1588 = vmul.f32 %v1580, %v1580
    %v1589 = vmul.f32 %v1581, %v1581
    %v1590 = vmul.f32 %v1582, %v1582
    %v1591 = vmul.f32 %v1583, %v1583
    %v1592 = vsub.f32 %v1584, 1.0
    %v1593 = vsub.f32 %v1585, 1.0
    %v1594 = vsub.f32 %v1586, 1.0
    %v1595 = vsub.f32 %v1587, 1.0
    %v1596 = vsub.f32 %v1588, 1.0
    %v1597 = vsub.f32 %v1589, 1.0
    %v1598 = vsub.f32 %v1590, 1.0
    %v1599 = vsub.f32 %v1591, 1.0
    %v1600 = vmul.f32 %v1367, %v1592
    %v1601 = vmul.f32 %v1393, %v1593
    %v1602 = vmul.f32 %v1419, %v1594
    %v1603 = vmul.f32 %v1445, %v1595
    %v1604 = vmul.f32 %v1471, %v1596
    %v1605 = vmul.f32 %v1497, %v1597
    %v1606 = vmul.f32 %v1523, %v1598
    %v1607 = vmul.f32 %v1549, %v1599
    %v1608 = vadd.f32 %v1584, 1.0
    %v1609 = vadd.f32 %v1585, 1.0
    %v1610 = vadd.f32 %v1586, 1.0
    %v1611 = vadd.f32 %v1587, 1.0
    %v1612 = vadd.f32 %v1588, 1.0
    %v1613 = vadd.f32 %v1589, 1.0
    %v1614 = vadd.f32 %v1590, 1.0
    %v1615 = vadd.f32 %v1591, 1.0
    %v1616 = vrcp.pop %v1608
    %v1617 = vrcp.pop %v1609
    %v1618 = vrcp.pop %v1610
    %v1619 = vrcp.pop %v1611
    %v1620 = vrcp.pop %v1612
    %v1621 = vrcp.pop %v1613
    %v1622 = vrcp.pop %v1614
    %v1623 = vrcp.pop %v1615
    %v1624 = vmul.f32 %v1600, %v1616
    %v1625 = vmul.f32 %v1601, %v1617
    %v1626 = vmul.f32 %v1602, %v1618
    %v1627 = vmul.f32 %v1603, %v1619
    %v1628 = vmul.f32 %v1604, %v1620
    %v1629 = vmul.f32 %v1605, %v1621
    %v1630 = vmul.f32 %v1606, %v1622
    %v1631 = vmul.f32 %v1607, %v1623
    %v1632 = vpack.c.bf16 %v1624, %v1624
    %v1633 = vpack.c.bf16 %v1625, %v1625
    %v1634 = vpack.c.bf16 %v1626, %v1626
    %v1635 = vpack.c.bf16 %v1627, %v1627
    %v1636 = vpack.c.bf16 %v1628, %v1628
    %v1637 = vpack.c.bf16 %v1629, %v1629
    %v1638 = vpack.c.bf16 %v1630, %v1630
    %v1639 = vpack.c.bf16 %v1631, %v1631
    %v1640 = vld [vmem:[#allocation10] sm:$0xff]
    %v1641 = vld [vmem:[#allocation10 + $0x8] sm:$0xff]
    %v1642 = vld [vmem:[#allocation10 + $0x10] sm:$0xff]
    %v1643 = vld [vmem:[#allocation10 + $0x18] sm:$0xff]
    %v1644 = vld [vmem:[#allocation10 + $0x20] sm:$0xff]
    %v1645 = vld [vmem:[#allocation10 + $0x28] sm:$0xff]
    %v1646 = vld [vmem:[#allocation10 + $0x30] sm:$0xff]
    %v1647 = vld [vmem:[#allocation10 + $0x38] sm:$0xff]
    %v1648 = vld [vmem:[#allocation10 + $0x40] sm:$0xff]
    %v1649 = vld [vmem:[#allocation10 + $0x48] sm:$0xff]
    %v1650 = vld [vmem:[#allocation10 + $0x50] sm:$0xff]
    %v1651 = vld [vmem:[#allocation10 + $0x58] sm:$0xff]
    %v1652 = vld [vmem:[#allocation10 + $0x60] sm:$0xff]
    %v1653 = vld [vmem:[#allocation10 + $0x68] sm:$0xff]
    %v1654 = vld [vmem:[#allocation10 + $0x70] sm:$0xff]
    %v1655 = vld [vmem:[#allocation10 + $0x78] sm:$0xff]
    %v1656 = vld [vmem:[#allocation10 + $0x80] sm:$0xff]
    %v1657 = vld [vmem:[#allocation10 + $0x88] sm:$0xff]
    %v1658 = vld [vmem:[#allocation10 + $0x90] sm:$0xff]
    %v1659 = vld [vmem:[#allocation10 + $0x98] sm:$0xff]
    %v1660 = vld [vmem:[#allocation10 + $0xa0] sm:$0xff]
    %v1661 = vld [vmem:[#allocation10 + $0xa8] sm:$0xff]
    %v1662 = vld [vmem:[#allocation10 + $0xb0] sm:$0xff]
    %v1663 = vld [vmem:[#allocation10 + $0xb8] sm:$0xff]
    %v1664 = vld [vmem:[#allocation10 + $0xc0] sm:$0xff]
    %v1665 = vld [vmem:[#allocation10 + $0xc8] sm:$0xff]
    %v1666 = vld [vmem:[#allocation10 + $0xd0] sm:$0xff]
    %v1667 = vld [vmem:[#allocation10 + $0xd8] sm:$0xff]
    %v1668 = vld [vmem:[#allocation10 + $0xe0] sm:$0xff]
    %v1669 = vld [vmem:[#allocation10 + $0xe8] sm:$0xff]
    %v1670 = vld [vmem:[#allocation10 + $0xf0] sm:$0xff]
    %v1671 = vld [vmem:[#allocation10 + $0xf8] sm:$0xff]
    %v1672 = vld [vmem:[#allocation10 + $0x100] sm:$0xff]
    %v1673 = vld [vmem:[#allocation10 + $0x108] sm:$0xff]
    %v1674 = vld [vmem:[#allocation10 + $0x110] sm:$0xff]
    %v1675 = vld [vmem:[#allocation10 + $0x118] sm:$0xff]
    %v1676 = vld [vmem:[#allocation10 + $0x120] sm:$0xff]
    %v1677 = vld [vmem:[#allocation10 + $0x128] sm:$0xff]
    %v1678 = vld [vmem:[#allocation10 + $0x130] sm:$0xff]
    %v1679 = vld [vmem:[#allocation10 + $0x138] sm:$0xff]
    %v1680 = vld [vmem:[#allocation10 + $0x140] sm:$0xff]
    %v1681 = vld [vmem:[#allocation10 + $0x148] sm:$0xff]
    %v1682 = vld [vmem:[#allocation10 + $0x150] sm:$0xff]
    %v1683 = vld [vmem:[#allocation10 + $0x158] sm:$0xff]
    %v1684 = vld [vmem:[#allocation10 + $0x160] sm:$0xff]
    %v1685 = vld [vmem:[#allocation10 + $0x168] sm:$0xff]
    %v1686 = vld [vmem:[#allocation10 + $0x170] sm:$0xff]
    %v1687 = vld [vmem:[#allocation10 + $0x178] sm:$0xff]
    %v1688 = vld [vmem:[#allocation10 + $0x180] sm:$0xff]
    %v1689 = vld [vmem:[#allocation10 + $0x188] sm:$0xff]
    %v1690 = vld [vmem:[#allocation10 + $0x190] sm:$0xff]
    %v1691 = vld [vmem:[#allocation10 + $0x198] sm:$0xff]
    %v1692 = vld [vmem:[#allocation10 + $0x1a0] sm:$0xff]
    %v1693 = vld [vmem:[#allocation10 + $0x1a8] sm:$0xff]
    %v1694 = vld [vmem:[#allocation10 + $0x1b0] sm:$0xff]
    %v1695 = vld [vmem:[#allocation10 + $0x1b8] sm:$0xff]
    %v1696 = vld [vmem:[#allocation10 + $0x1c0] sm:$0xff]
    %v1697 = vld [vmem:[#allocation10 + $0x1c8] sm:$0xff]
    %v1698 = vld [vmem:[#allocation10 + $0x1d0] sm:$0xff]
    %v1699 = vld [vmem:[#allocation10 + $0x1d8] sm:$0xff]
    %v1700 = vld [vmem:[#allocation10 + $0x1e0] sm:$0xff]
    %v1701 = vld [vmem:[#allocation10 + $0x1e8] sm:$0xff]
    %v1702 = vld [vmem:[#allocation10 + $0x1f0] sm:$0xff]
    %v1703 = vld [vmem:[#allocation10 + $0x1f8] sm:$0xff]
    %v1704 = vld [vmem:[#allocation10 + $0x200] sm:$0xff]
    %v1705 = vld [vmem:[#allocation10 + $0x208] sm:$0xff]
    %v1706 = vld [vmem:[#allocation10 + $0x210] sm:$0xff]
    %v1707 = vld [vmem:[#allocation10 + $0x218] sm:$0xff]
    %v1708 = vld [vmem:[#allocation10 + $0x220] sm:$0xff]
    %v1709 = vld [vmem:[#allocation10 + $0x228] sm:$0xff]
    %v1710 = vld [vmem:[#allocation10 + $0x230] sm:$0xff]
    %v1711 = vld [vmem:[#allocation10 + $0x238] sm:$0xff]
    %v1712 = vld [vmem:[#allocation10 + $0x240] sm:$0xff]
    %v1713 = vld [vmem:[#allocation10 + $0x248] sm:$0xff]
    %v1714 = vld [vmem:[#allocation10 + $0x250] sm:$0xff]
    %v1715 = vld [vmem:[#allocation10 + $0x258] sm:$0xff]
    %v1716 = vld [vmem:[#allocation10 + $0x260] sm:$0xff]
    %v1717 = vld [vmem:[#allocation10 + $0x268] sm:$0xff]
    %v1718 = vld [vmem:[#allocation10 + $0x270] sm:$0xff]
    %v1719 = vld [vmem:[#allocation10 + $0x278] sm:$0xff]
    %v1720 = vld [vmem:[#allocation10 + $0x280] sm:$0xff]
    %v1721 = vld [vmem:[#allocation10 + $0x288] sm:$0xff]
    %v1722 = vld [vmem:[#allocation10 + $0x290] sm:$0xff]
    %v1723 = vld [vmem:[#allocation10 + $0x298] sm:$0xff]
    %v1724 = vld [vmem:[#allocation10 + $0x2a0] sm:$0xff]
    %v1725 = vld [vmem:[#allocation10 + $0x2a8] sm:$0xff]
    %v1726 = vld [vmem:[#allocation10 + $0x2b0] sm:$0xff]
    %v1727 = vld [vmem:[#allocation10 + $0x2b8] sm:$0xff]
    %v1728 = vld [vmem:[#allocation10 + $0x2c0] sm:$0xff]
    %v1729 = vld [vmem:[#allocation10 + $0x2c8] sm:$0xff]
    %v1730 = vld [vmem:[#allocation10 + $0x2d0] sm:$0xff]
    %v1731 = vld [vmem:[#allocation10 + $0x2d8] sm:$0xff]
    %v1732 = vld [vmem:[#allocation10 + $0x2e0] sm:$0xff]
    %v1733 = vld [vmem:[#allocation10 + $0x2e8] sm:$0xff]
    %v1734 = vld [vmem:[#allocation10 + $0x2f0] sm:$0xff]
    %v1735 = vld [vmem:[#allocation10 + $0x2f8] sm:$0xff]
    %v1736 = vld [vmem:[#allocation10 + $0x300] sm:$0xff]
    %v1737 = vld [vmem:[#allocation10 + $0x308] sm:$0xff]
    %v1738 = vld [vmem:[#allocation10 + $0x310] sm:$0xff]
    %v1739 = vld [vmem:[#allocation10 + $0x318] sm:$0xff]
    %v1740 = vld [vmem:[#allocation10 + $0x320] sm:$0xff]
    %v1741 = vld [vmem:[#allocation10 + $0x328] sm:$0xff]
    %v1742 = vld [vmem:[#allocation10 + $0x330] sm:$0xff]
    %v1743 = vld [vmem:[#allocation10 + $0x338] sm:$0xff]
    %v1744 = vld [vmem:[#allocation10 + $0x340] sm:$0xff]
    %v1745 = vld [vmem:[#allocation10 + $0x348] sm:$0xff]
    %v1746 = vld [vmem:[#allocation10 + $0x350] sm:$0xff]
    %v1747 = vld [vmem:[#allocation10 + $0x358] sm:$0xff]
    %v1748 = vld [vmem:[#allocation10 + $0x360] sm:$0xff]
    %v1749 = vld [vmem:[#allocation10 + $0x368] sm:$0xff]
    %v1750 = vld [vmem:[#allocation10 + $0x370] sm:$0xff]
    %v1751 = vld [vmem:[#allocation10 + $0x378] sm:$0xff]
    %v1752 = vld [vmem:[#allocation10 + $0x380] sm:$0xff]
    %v1753 = vld [vmem:[#allocation10 + $0x388] sm:$0xff]
    %v1754 = vld [vmem:[#allocation10 + $0x390] sm:$0xff]
    %v1755 = vld [vmem:[#allocation10 + $0x398] sm:$0xff]
    %v1756 = vld [vmem:[#allocation10 + $0x3a0] sm:$0xff]
    %v1757 = vld [vmem:[#allocation10 + $0x3a8] sm:$0xff]
    %v1758 = vld [vmem:[#allocation10 + $0x3b0] sm:$0xff]
    %v1759 = vld [vmem:[#allocation10 + $0x3b8] sm:$0xff]
    %v1760 = vld [vmem:[#allocation10 + $0x3c0] sm:$0xff]
    %v1761 = vld [vmem:[#allocation10 + $0x3c8] sm:$0xff]
    %v1762 = vld [vmem:[#allocation10 + $0x3d0] sm:$0xff]
    %v1763 = vld [vmem:[#allocation10 + $0x3d8] sm:$0xff]
    %v1764 = vld [vmem:[#allocation10 + $0x3e0] sm:$0xff]
    %v1765 = vld [vmem:[#allocation10 + $0x3e8] sm:$0xff]
    %v1766 = vld [vmem:[#allocation10 + $0x3f0] sm:$0xff]
    %v1767 = vld [vmem:[#allocation10 + $0x3f8] sm:$0xff]
    %v1768 = vld [vmem:[#allocation11] sm:$0x3]
    %v1770 = vperm.slane %v1768, 0
    %v1771 = vperm.slane %v1768, 1
    %v1902 = vunpack.c.l.b16 %v1640
    %v1903 = vunpack.c.h.b16 %v1640
    %v1904 = vunpack.c.l.b16 %v1641
    %v1905 = vunpack.c.h.b16 %v1641
    %v1906 = vunpack.c.l.b16 %v1642
    %v1907 = vunpack.c.h.b16 %v1642
    %v1908 = vunpack.c.l.b16 %v1643
    %v1909 = vunpack.c.h.b16 %v1643
    %v1910 = vunpack.c.l.b16 %v1644
    %v1911 = vunpack.c.h.b16 %v1644
    %v1912 = vunpack.c.l.b16 %v1645
    %v1913 = vunpack.c.h.b16 %v1645
    %v1914 = vunpack.c.l.b16 %v1646
    %v1915 = vunpack.c.h.b16 %v1646
    %v1916 = vunpack.c.l.b16 %v1647
    %v1917 = vunpack.c.h.b16 %v1647
    %v1918 = vunpack.c.l.b16 %v1648
    %v1919 = vunpack.c.h.b16 %v1648
    %v1920 = vunpack.c.l.b16 %v1649
    %v1921 = vunpack.c.h.b16 %v1649
    %v1922 = vunpack.c.l.b16 %v1650
    %v1923 = vunpack.c.h.b16 %v1650
    %v1924 = vunpack.c.l.b16 %v1651
    %v1925 = vunpack.c.h.b16 %v1651
    %v1926 = vunpack.c.l.b16 %v1652
    %v1927 = vunpack.c.h.b16 %v1652
    %v1928 = vunpack.c.l.b16 %v1653
    %v1929 = vunpack.c.h.b16 %v1653
    %v1930 = vunpack.c.l.b16 %v1654
    %v1931 = vunpack.c.h.b16 %v1654
    %v1932 = vunpack.c.l.b16 %v1655
    %v1933 = vunpack.c.h.b16 %v1655
    %v1934 = vunpack.c.l.b16 %v1656
    %v1935 = vunpack.c.h.b16 %v1656
    %v1936 = vunpack.c.l.b16 %v1657
    %v1937 = vunpack.c.h.b16 %v1657
    %v1938 = vunpack.c.l.b16 %v1658
    %v1939 = vunpack.c.h.b16 %v1658
    %v1940 = vunpack.c.l.b16 %v1659
    %v1941 = vunpack.c.h.b16 %v1659
    %v1942 = vunpack.c.l.b16 %v1660
    %v1943 = vunpack.c.h.b16 %v1660
    %v1944 = vunpack.c.l.b16 %v1661
    %v1945 = vunpack.c.h.b16 %v1661
    %v1946 = vunpack.c.l.b16 %v1662
    %v1947 = vunpack.c.h.b16 %v1662
    %v1948 = vunpack.c.l.b16 %v1663
    %v1949 = vunpack.c.h.b16 %v1663
    %v1950 = vunpack.c.l.b16 %v1664
    %v1951 = vunpack.c.h.b16 %v1664
    %v1952 = vunpack.c.l.b16 %v1665
    %v1953 = vunpack.c.h.b16 %v1665
    %v1954 = vunpack.c.l.b16 %v1666
    %v1955 = vunpack.c.h.b16 %v1666
    %v1956 = vunpack.c.l.b16 %v1667
    %v1957 = vunpack.c.h.b16 %v1667
    %v1958 = vunpack.c.l.b16 %v1668
    %v1959 = vunpack.c.h.b16 %v1668
    %v1960 = vunpack.c.l.b16 %v1669
    %v1961 = vunpack.c.h.b16 %v1669
    %v1962 = vunpack.c.l.b16 %v1670
    %v1963 = vunpack.c.h.b16 %v1670
    %v1964 = vunpack.c.l.b16 %v1671
    %v1965 = vunpack.c.h.b16 %v1671
    %v1966 = vunpack.c.l.b16 %v1672
    %v1967 = vunpack.c.h.b16 %v1672
    %v1968 = vunpack.c.l.b16 %v1673
    %v1969 = vunpack.c.h.b16 %v1673
    %v1970 = vunpack.c.l.b16 %v1674
    %v1971 = vunpack.c.h.b16 %v1674
    %v1972 = vunpack.c.l.b16 %v1675
    %v1973 = vunpack.c.h.b16 %v1675
    %v1974 = vunpack.c.l.b16 %v1676
    %v1975 = vunpack.c.h.b16 %v1676
    %v1976 = vunpack.c.l.b16 %v1677
    %v1977 = vunpack.c.h.b16 %v1677
    %v1978 = vunpack.c.l.b16 %v1678
    %v1979 = vunpack.c.h.b16 %v1678
    %v1980 = vunpack.c.l.b16 %v1679
    %v1981 = vunpack.c.h.b16 %v1679
    %v1982 = vunpack.c.l.b16 %v1680
    %v1983 = vunpack.c.h.b16 %v1680
    %v1984 = vunpack.c.l.b16 %v1681
    %v1985 = vunpack.c.h.b16 %v1681
    %v1986 = vunpack.c.l.b16 %v1682
    %v1987 = vunpack.c.h.b16 %v1682
    %v1988 = vunpack.c.l.b16 %v1683
    %v1989 = vunpack.c.h.b16 %v1683
    %v1990 = vunpack.c.l.b16 %v1684
    %v1991 = vunpack.c.h.b16 %v1684
    %v1992 = vunpack.c.l.b16 %v1685
    %v1993 = vunpack.c.h.b16 %v1685
    %v1994 = vunpack.c.l.b16 %v1686
    %v1995 = vunpack.c.h.b16 %v1686
    %v1996 = vunpack.c.l.b16 %v1687
    %v1997 = vunpack.c.h.b16 %v1687
    %v1998 = vunpack.c.l.b16 %v1688
    %v1999 = vunpack.c.h.b16 %v1688
    %v2000 = vunpack.c.l.b16 %v1689
    %v2001 = vunpack.c.h.b16 %v1689
    %v2002 = vunpack.c.l.b16 %v1690
    %v2003 = vunpack.c.h.b16 %v1690
    %v2004 = vunpack.c.l.b16 %v1691
    %v2005 = vunpack.c.h.b16 %v1691
    %v2006 = vunpack.c.l.b16 %v1692
    %v2007 = vunpack.c.h.b16 %v1692
    %v2008 = vunpack.c.l.b16 %v1693
    %v2009 = vunpack.c.h.b16 %v1693
    %v2010 = vunpack.c.l.b16 %v1694
    %v2011 = vunpack.c.h.b16 %v1694
    %v2012 = vunpack.c.l.b16 %v1695
    %v2013 = vunpack.c.h.b16 %v1695
    %v2014 = vunpack.c.l.b16 %v1696
    %v2015 = vunpack.c.h.b16 %v1696
    %v2016 = vunpack.c.l.b16 %v1697
    %v2017 = vunpack.c.h.b16 %v1697
    %v2018 = vunpack.c.l.b16 %v1698
    %v2019 = vunpack.c.h.b16 %v1698
    %v2020 = vunpack.c.l.b16 %v1699
    %v2021 = vunpack.c.h.b16 %v1699
    %v2022 = vunpack.c.l.b16 %v1700
    %v2023 = vunpack.c.h.b16 %v1700
    %v2024 = vunpack.c.l.b16 %v1701
    %v2025 = vunpack.c.h.b16 %v1701
    %v2026 = vunpack.c.l.b16 %v1702
    %v2027 = vunpack.c.h.b16 %v1702
    %v2028 = vunpack.c.l.b16 %v1703
    %v2029 = vunpack.c.h.b16 %v1703
    %v2030 = vunpack.c.l.b16 %v1704
    %v2031 = vunpack.c.h.b16 %v1704
    %v2032 = vunpack.c.l.b16 %v1705
    %v2033 = vunpack.c.h.b16 %v1705
    %v2034 = vunpack.c.l.b16 %v1706
    %v2035 = vunpack.c.h.b16 %v1706
    %v2036 = vunpack.c.l.b16 %v1707
    %v2037 = vunpack.c.h.b16 %v1707
    %v2038 = vunpack.c.l.b16 %v1708
    %v2039 = vunpack.c.h.b16 %v1708
    %v2040 = vunpack.c.l.b16 %v1709
    %v2041 = vunpack.c.h.b16 %v1709
    %v2042 = vunpack.c.l.b16 %v1710
    %v2043 = vunpack.c.h.b16 %v1710
    %v2044 = vunpack.c.l.b16 %v1711
    %v2045 = vunpack.c.h.b16 %v1711
    %v2046 = vunpack.c.l.b16 %v1712
    %v2047 = vunpack.c.h.b16 %v1712
    %v2048 = vunpack.c.l.b16 %v1713
    %v2049 = vunpack.c.h.b16 %v1713
    %v2050 = vunpack.c.l.b16 %v1714
    %v2051 = vunpack.c.h.b16 %v1714
    %v2052 = vunpack.c.l.b16 %v1715
    %v2053 = vunpack.c.h.b16 %v1715
    %v2054 = vunpack.c.l.b16 %v1716
    %v2055 = vunpack.c.h.b16 %v1716
    %v2056 = vunpack.c.l.b16 %v1717
    %v2057 = vunpack.c.h.b16 %v1717
    %v2058 = vunpack.c.l.b16 %v1718
    %v2059 = vunpack.c.h.b16 %v1718
    %v2060 = vunpack.c.l.b16 %v1719
    %v2061 = vunpack.c.h.b16 %v1719
    %v2062 = vunpack.c.l.b16 %v1720
    %v2063 = vunpack.c.h.b16 %v1720
    %v2064 = vunpack.c.l.b16 %v1721
    %v2065 = vunpack.c.h.b16 %v1721
    %v2066 = vunpack.c.l.b16 %v1722
    %v2067 = vunpack.c.h.b16 %v1722
    %v2068 = vunpack.c.l.b16 %v1723
    %v2069 = vunpack.c.h.b16 %v1723
    %v2070 = vunpack.c.l.b16 %v1724
    %v2071 = vunpack.c.h.b16 %v1724
    %v2072 = vunpack.c.l.b16 %v1725
    %v2073 = vunpack.c.h.b16 %v1725
    %v2074 = vunpack.c.l.b16 %v1726
    %v2075 = vunpack.c.h.b16 %v1726
    %v2076 = vunpack.c.l.b16 %v1727
    %v2077 = vunpack.c.h.b16 %v1727
    %v2078 = vunpack.c.l.b16 %v1728
    %v2079 = vunpack.c.h.b16 %v1728
    %v2080 = vunpack.c.l.b16 %v1729
    %v2081 = vunpack.c.h.b16 %v1729
    %v2082 = vunpack.c.l.b16 %v1730
    %v2083 = vunpack.c.h.b16 %v1730
    %v2084 = vunpack.c.l.b16 %v1731
    %v2085 = vunpack.c.h.b16 %v1731
    %v2086 = vunpack.c.l.b16 %v1732
    %v2087 = vunpack.c.h.b16 %v1732
    %v2088 = vunpack.c.l.b16 %v1733
    %v2089 = vunpack.c.h.b16 %v1733
    %v2090 = vunpack.c.l.b16 %v1734
    %v2091 = vunpack.c.h.b16 %v1734
    %v2092 = vunpack.c.l.b16 %v1735
    %v2093 = vunpack.c.h.b16 %v1735
    %v2094 = vunpack.c.l.b16 %v1736
    %v2095 = vunpack.c.h.b16 %v1736
    %v2096 = vunpack.c.l.b16 %v1737
    %v2097 = vunpack.c.h.b16 %v1737
    %v2098 = vunpack.c.l.b16 %v1738
    %v2099 = vunpack.c.h.b16 %v1738
    %v2100 = vunpack.c.l.b16 %v1739
    %v2101 = vunpack.c.h.b16 %v1739
    %v2102 = vunpack.c.l.b16 %v1740
    %v2103 = vunpack.c.h.b16 %v1740
    %v2104 = vunpack.c.l.b16 %v1741
    %v2105 = vunpack.c.h.b16 %v1741
    %v2106 = vunpack.c.l.b16 %v1742
    %v2107 = vunpack.c.h.b16 %v1742
    %v2108 = vunpack.c.l.b16 %v1743
    %v2109 = vunpack.c.h.b16 %v1743
    %v2110 = vunpack.c.l.b16 %v1744
    %v2111 = vunpack.c.h.b16 %v1744
    %v2112 = vunpack.c.l.b16 %v1745
    %v2113 = vunpack.c.h.b16 %v1745
    %v2114 = vunpack.c.l.b16 %v1746
    %v2115 = vunpack.c.h.b16 %v1746
    %v2116 = vunpack.c.l.b16 %v1747
    %v2117 = vunpack.c.h.b16 %v1747
    %v2118 = vunpack.c.l.b16 %v1748
    %v2119 = vunpack.c.h.b16 %v1748
    %v2120 = vunpack.c.l.b16 %v1749
    %v2121 = vunpack.c.h.b16 %v1749
    %v2122 = vunpack.c.l.b16 %v1750
    %v2123 = vunpack.c.h.b16 %v1750
    %v2124 = vunpack.c.l.b16 %v1751
    %v2125 = vunpack.c.h.b16 %v1751
    %v2126 = vunpack.c.l.b16 %v1752
    %v2127 = vunpack.c.h.b16 %v1752
    %v2128 = vunpack.c.l.b16 %v1753
    %v2129 = vunpack.c.h.b16 %v1753
    %v2130 = vunpack.c.l.b16 %v1754
    %v2131 = vunpack.c.h.b16 %v1754
    %v2132 = vunpack.c.l.b16 %v1755
    %v2133 = vunpack.c.h.b16 %v1755
    %v2134 = vunpack.c.l.b16 %v1756
    %v2135 = vunpack.c.h.b16 %v1756
    %v2136 = vunpack.c.l.b16 %v1757
    %v2137 = vunpack.c.h.b16 %v1757
    %v2138 = vunpack.c.l.b16 %v1758
    %v2139 = vunpack.c.h.b16 %v1758
    %v2140 = vunpack.c.l.b16 %v1759
    %v2141 = vunpack.c.h.b16 %v1759
    %v2142 = vunpack.c.l.b16 %v1760
    %v2143 = vunpack.c.h.b16 %v1760
    %v2144 = vunpack.c.l.b16 %v1761
    %v2145 = vunpack.c.h.b16 %v1761
    %v2146 = vunpack.c.l.b16 %v1762
    %v2147 = vunpack.c.h.b16 %v1762
    %v2148 = vunpack.c.l.b16 %v1763
    %v2149 = vunpack.c.h.b16 %v1763
    %v2150 = vunpack.c.l.b16 %v1764
    %v2151 = vunpack.c.h.b16 %v1764
    %v2152 = vunpack.c.l.b16 %v1765
    %v2153 = vunpack.c.h.b16 %v1765
    %v2154 = vunpack.c.l.b16 %v1766
    %v2155 = vunpack.c.h.b16 %v1766
    %v2156 = vunpack.c.l.b16 %v1767
    %v2157 = vunpack.c.h.b16 %v1767
    %v2158 = vpack.c.b16 %v1904, %v1902
    %v2159 = vpack.c.b16 %v1905, %v1903
    %v2160 = vpack.c.b16 %v1908, %v1906
    %v2161 = vpack.c.b16 %v1909, %v1907
    %v2162 = vpack.c.b16 %v1912, %v1910
    %v2163 = vpack.c.b16 %v1913, %v1911
    %v2164 = vpack.c.b16 %v1916, %v1914
    %v2165 = vpack.c.b16 %v1917, %v1915
    %v2166 = vpack.c.b16 %v1920, %v1918
    %v2167 = vpack.c.b16 %v1921, %v1919
    %v2168 = vpack.c.b16 %v1924, %v1922
    %v2169 = vpack.c.b16 %v1925, %v1923
    %v2170 = vpack.c.b16 %v1928, %v1926
    %v2171 = vpack.c.b16 %v1929, %v1927
    %v2172 = vpack.c.b16 %v1932, %v1930
    %v2173 = vpack.c.b16 %v1933, %v1931
    %v2174 = vpack.c.b16 %v1936, %v1934
    %v2175 = vpack.c.b16 %v1937, %v1935
    %v2176 = vpack.c.b16 %v1940, %v1938
    %v2177 = vpack.c.b16 %v1941, %v1939
    %v2178 = vpack.c.b16 %v1944, %v1942
    %v2179 = vpack.c.b16 %v1945, %v1943
    %v2180 = vpack.c.b16 %v1948, %v1946
    %v2181 = vpack.c.b16 %v1949, %v1947
    %v2182 = vpack.c.b16 %v1952, %v1950
    %v2183 = vpack.c.b16 %v1953, %v1951
    %v2184 = vpack.c.b16 %v1956, %v1954
    %v2185 = vpack.c.b16 %v1957, %v1955
    %v2186 = vpack.c.b16 %v1960, %v1958
    %v2187 = vpack.c.b16 %v1961, %v1959
    %v2188 = vpack.c.b16 %v1964, %v1962
    %v2189 = vpack.c.b16 %v1965, %v1963
    %v2190 = vpack.c.b16 %v1968, %v1966
    %v2191 = vpack.c.b16 %v1969, %v1967
    %v2192 = vpack.c.b16 %v1972, %v1970
    %v2193 = vpack.c.b16 %v1973, %v1971
    %v2194 = vpack.c.b16 %v1976, %v1974
    %v2195 = vpack.c.b16 %v1977, %v1975
    %v2196 = vpack.c.b16 %v1980, %v1978
    %v2197 = vpack.c.b16 %v1981, %v1979
    %v2198 = vpack.c.b16 %v1984, %v1982
    %v2199 = vpack.c.b16 %v1985, %v1983
    %v2200 = vpack.c.b16 %v1988, %v1986
    %v2201 = vpack.c.b16 %v1989, %v1987
    %v2202 = vpack.c.b16 %v1992, %v1990
    %v2203 = vpack.c.b16 %v1993, %v1991
    %v2204 = vpack.c.b16 %v1996, %v1994
    %v2205 = vpack.c.b16 %v1997, %v1995
    %v2206 = vpack.c.b16 %v2000, %v1998
    %v2207 = vpack.c.b16 %v2001, %v1999
    %v2208 = vpack.c.b16 %v2004, %v2002
    %v2209 = vpack.c.b16 %v2005, %v2003
    %v2210 = vpack.c.b16 %v2008, %v2006
    %v2211 = vpack.c.b16 %v2009, %v2007
    %v2212 = vpack.c.b16 %v2012, %v2010
    %v2213 = vpack.c.b16 %v2013, %v2011
    %v2214 = vpack.c.b16 %v2016, %v2014
    %v2215 = vpack.c.b16 %v2017, %v2015
    %v2216 = vpack.c.b16 %v2020, %v2018
    %v2217 = vpack.c.b16 %v2021, %v2019
    %v2218 = vpack.c.b16 %v2024, %v2022
    %v2219 = vpack.c.b16 %v2025, %v2023
    %v2220 = vpack.c.b16 %v2028, %v2026
    %v2221 = vpack.c.b16 %v2029, %v2027
    %v2222 = vpack.c.b16 %v2032, %v2030
    %v2223 = vpack.c.b16 %v2033, %v2031
    %v2224 = vpack.c.b16 %v2036, %v2034
    %v2225 = vpack.c.b16 %v2037, %v2035
    %v2226 = vpack.c.b16 %v2040, %v2038
    %v2227 = vpack.c.b16 %v2041, %v2039
    %v2228 = vpack.c.b16 %v2044, %v2042
    %v2229 = vpack.c.b16 %v2045, %v2043
    %v2230 = vpack.c.b16 %v2048, %v2046
    %v2231 = vpack.c.b16 %v2049, %v2047
    %v2232 = vpack.c.b16 %v2052, %v2050
    %v2233 = vpack.c.b16 %v2053, %v2051
    %v2234 = vpack.c.b16 %v2056, %v2054
    %v2235 = vpack.c.b16 %v2057, %v2055
    %v2236 = vpack.c.b16 %v2060, %v2058
    %v2237 = vpack.c.b16 %v2061, %v2059
    %v2238 = vpack.c.b16 %v2064, %v2062
    %v2239 = vpack.c.b16 %v2065, %v2063
    %v2240 = vpack.c.b16 %v2068, %v2066
    %v2241 = vpack.c.b16 %v2069, %v2067
    %v2242 = vpack.c.b16 %v2072, %v2070
    %v2243 = vpack.c.b16 %v2073, %v2071
    %v2244 = vpack.c.b16 %v2076, %v2074
    %v2245 = vpack.c.b16 %v2077, %v2075
    %v2246 = vpack.c.b16 %v2080, %v2078
    %v2247 = vpack.c.b16 %v2081, %v2079
    %v2248 = vpack.c.b16 %v2084, %v2082
    %v2249 = vpack.c.b16 %v2085, %v2083
    %v2250 = vpack.c.b16 %v2088, %v2086
    %v2251 = vpack.c.b16 %v2089, %v2087
    %v2252 = vpack.c.b16 %v2092, %v2090
    %v2253 = vpack.c.b16 %v2093, %v2091
    %v2254 = vpack.c.b16 %v2096, %v2094
    %v2255 = vpack.c.b16 %v2097, %v2095
    %v2256 = vpack.c.b16 %v2100, %v2098
    %v2257 = vpack.c.b16 %v2101, %v2099
    %v2258 = vpack.c.b16 %v2104, %v2102
    %v2259 = vpack.c.b16 %v2105, %v2103
    %v2260 = vpack.c.b16 %v2108, %v2106
    %v2261 = vpack.c.b16 %v2109, %v2107
    %v2262 = vpack.c.b16 %v2112, %v2110
    %v2263 = vpack.c.b16 %v2113, %v2111
    %v2264 = vpack.c.b16 %v2116, %v2114
    %v2265 = vpack.c.b16 %v2117, %v2115
    %v2266 = vpack.c.b16 %v2120, %v2118
    %v2267 = vpack.c.b16 %v2121, %v2119
    %v2268 = vpack.c.b16 %v2124, %v2122
    %v2269 = vpack.c.b16 %v2125, %v2123
    %v2270 = vpack.c.b16 %v2128, %v2126
    %v2271 = vpack.c.b16 %v2129, %v2127
    %v2272 = vpack.c.b16 %v2132, %v2130
    %v2273 = vpack.c.b16 %v2133, %v2131
    %v2274 = vpack.c.b16 %v2136, %v2134
    %v2275 = vpack.c.b16 %v2137, %v2135
    %v2276 = vpack.c.b16 %v2140, %v2138
    %v2277 = vpack.c.b16 %v2141, %v2139
    %v2278 = vpack.c.b16 %v2144, %v2142
    %v2279 = vpack.c.b16 %v2145, %v2143
    %v2280 = vpack.c.b16 %v2148, %v2146
    %v2281 = vpack.c.b16 %v2149, %v2147
    %v2282 = vpack.c.b16 %v2152, %v2150
    %v2283 = vpack.c.b16 %v2153, %v2151
    %v2284 = vpack.c.b16 %v2156, %v2154
    %v2285 = vpack.c.b16 %v2157, %v2155
    %2414 = vmatpush.bf16.msra.mxu0 %v2172
    %2415 = vmatpush.bf16.msra.mxu0 %v2170
    %2416 = vmatpush.bf16.msra.mxu0 %v2168
    %2417 = vmatpush.bf16.msra.mxu0 %v2166
    %2418 = vmatpush.bf16.msra.mxu0 %v2164
    %2419 = vmatpush.bf16.msra.mxu0 %v2162
    %2420 = vmatpush.bf16.msra.mxu0 %v2160
    %2421 = vmatpush.bf16.msra.mxu0 %v2158
    %2422 = vmatmul.bf16.gmra.mxu0 %v1632
    %v2423 = vpop.f32.mrf.mxu0
    %v2424 = vadd.f32 %v1770, %v2423
    %v2425 = vpop.f32.mrf.mxu0
    %2426 = vdwg.mxu0
    %2427 = vmatpush.bf16.msra.mxu0 %v2188
    %2428 = vmatpush.bf16.msra.mxu0 %v2186
    %2429 = vmatpush.bf16.msra.mxu0 %v2184
    %2430 = vmatpush.bf16.msra.mxu0 %v2182
    %2431 = vmatpush.bf16.msra.mxu0 %v2180
    %2432 = vmatpush.bf16.msra.mxu0 %v2178
    %2433 = vmatpush.bf16.msra.mxu0 %v2176
    %2434 = vmatpush.bf16.msra.mxu0 %v2174
    %2435 = vmatmul.bf16.gmra.mxu0 %v1633
    %v2436 = vpop.f32.mrf.mxu0
    %v2437 = vadd.f32 %v2424, %v2436
    %v2438 = vpop.f32.mrf.mxu0
    %2439 = vdwg.mxu0
    %2440 = vmatpush.bf16.msra.mxu0 %v2204
    %2441 = vmatpush.bf16.msra.mxu0 %v2202
    %2442 = vmatpush.bf16.msra.mxu0 %v2200
    %2443 = vmatpush.bf16.msra.mxu0 %v2198
    %2444 = vmatpush.bf16.msra.mxu0 %v2196
    %2445 = vmatpush.bf16.msra.mxu0 %v2194
    %2446 = vmatpush.bf16.msra.mxu0 %v2192
    %2447 = vmatpush.bf16.msra.mxu0 %v2190
    %2448 = vmatmul.bf16.gmra.mxu0 %v1634
    %v2449 = vpop.f32.mrf.mxu0
    %v2450 = vadd.f32 %v2437, %v2449
    %v2451 = vpop.f32.mrf.mxu0
    %2452 = vdwg.mxu0
    %2453 = vmatpush.bf16.msra.mxu0 %v2220
    %2454 = vmatpush.bf16.msra.mxu0 %v2218
    %2455 = vmatpush.bf16.msra.mxu0 %v2216
    %2456 = vmatpush.bf16.msra.mxu0 %v2214
    %2457 = vmatpush.bf16.msra.mxu0 %v2212
    %2458 = vmatpush.bf16.msra.mxu0 %v2210
    %2459 = vmatpush.bf16.msra.mxu0 %v2208
    %2460 = vmatpush.bf16.msra.mxu0 %v2206
    %2461 = vmatmul.bf16.gmra.mxu0 %v1635
    %v2462 = vpop.f32.mrf.mxu0
    %v2463 = vadd.f32 %v2450, %v2462
    %v2464 = vpop.f32.mrf.mxu0
    %2465 = vdwg.mxu0
    %2466 = vmatpush.bf16.msra.mxu0 %v2236
    %2467 = vmatpush.bf16.msra.mxu0 %v2234
    %2468 = vmatpush.bf16.msra.mxu0 %v2232
    %2469 = vmatpush.bf16.msra.mxu0 %v2230
    %2470 = vmatpush.bf16.msra.mxu0 %v2228
    %2471 = vmatpush.bf16.msra.mxu0 %v2226
    %2472 = vmatpush.bf16.msra.mxu0 %v2224
    %2473 = vmatpush.bf16.msra.mxu0 %v2222
    %2474 = vmatmul.bf16.gmra.mxu0 %v1636
    %v2475 = vpop.f32.mrf.mxu0
    %v2476 = vadd.f32 %v2463, %v2475
    %v2477 = vpop.f32.mrf.mxu0
    %2478 = vdwg.mxu0
    %2479 = vmatpush.bf16.msra.mxu0 %v2252
    %2480 = vmatpush.bf16.msra.mxu0 %v2250
    %2481 = vmatpush.bf16.msra.mxu0 %v2248
    %2482 = vmatpush.bf16.msra.mxu0 %v2246
    %2483 = vmatpush.bf16.msra.mxu0 %v2244
    %2484 = vmatpush.bf16.msra.mxu0 %v2242
    %2485 = vmatpush.bf16.msra.mxu0 %v2240
    %2486 = vmatpush.bf16.msra.mxu0 %v2238
    %2487 = vmatmul.bf16.gmra.mxu0 %v1637
    %v2488 = vpop.f32.mrf.mxu0
    %v2489 = vadd.f32 %v2476, %v2488
    %v2490 = vpop.f32.mrf.mxu0
    %2491 = vdwg.mxu0
    %2492 = vmatpush.bf16.msra.mxu0 %v2268
    %2493 = vmatpush.bf16.msra.mxu0 %v2266
    %2494 = vmatpush.bf16.msra.mxu0 %v2264
    %2495 = vmatpush.bf16.msra.mxu0 %v2262
    %2496 = vmatpush.bf16.msra.mxu0 %v2260
    %2497 = vmatpush.bf16.msra.mxu0 %v2258
    %2498 = vmatpush.bf16.msra.mxu0 %v2256
    %2499 = vmatpush.bf16.msra.mxu0 %v2254
    %2500 = vmatmul.bf16.gmra.mxu0 %v1638
    %v2501 = vpop.f32.mrf.mxu0
    %v2502 = vadd.f32 %v2489, %v2501
    %v2503 = vpop.f32.mrf.mxu0
    %2504 = vdwg.mxu0
    %2505 = vmatpush.bf16.msra.mxu0 %v2284
    %2506 = vmatpush.bf16.msra.mxu0 %v2282
    %2507 = vmatpush.bf16.msra.mxu0 %v2280
    %2508 = vmatpush.bf16.msra.mxu0 %v2278
    %2509 = vmatpush.bf16.msra.mxu0 %v2276
    %2510 = vmatpush.bf16.msra.mxu0 %v2274
    %2511 = vmatpush.bf16.msra.mxu0 %v2272
    %2512 = vmatpush.bf16.msra.mxu0 %v2270
    %2513 = vmatmul.bf16.gmra.mxu0 %v1639
    %v2514 = vpop.f32.mrf.mxu0
    %v2515 = vadd.f32 %v2502, %v2514
    %v2516 = vpop.f32.mrf.mxu0
    %2517 = vdwg.mxu0
    %2518 = vmatpush.bf16.msra.mxu0 %v2173
    %2519 = vmatpush.bf16.msra.mxu0 %v2171
    %2520 = vmatpush.bf16.msra.mxu0 %v2169
    %2521 = vmatpush.bf16.msra.mxu0 %v2167
    %2522 = vmatpush.bf16.msra.mxu0 %v2165
    %2523 = vmatpush.bf16.msra.mxu0 %v2163
    %2524 = vmatpush.bf16.msra.mxu0 %v2161
    %2525 = vmatpush.bf16.msra.mxu0 %v2159
    %2526 = vmatmul.bf16.gmra.mxu0 %v1632
    %v2527 = vpop.f32.mrf.mxu0
    %v2528 = vadd.f32 %v1771, %v2527
    %v2529 = vpop.f32.mrf.mxu0
    %2530 = vdwg.mxu0
    %2531 = vmatpush.bf16.msra.mxu0 %v2189
    %2532 = vmatpush.bf16.msra.mxu0 %v2187
    %2533 = vmatpush.bf16.msra.mxu0 %v2185
    %2534 = vmatpush.bf16.msra.mxu0 %v2183
    %2535 = vmatpush.bf16.msra.mxu0 %v2181
    %2536 = vmatpush.bf16.msra.mxu0 %v2179
    %2537 = vmatpush.bf16.msra.mxu0 %v2177
    %2538 = vmatpush.bf16.msra.mxu0 %v2175
    %2539 = vmatmul.bf16.gmra.mxu0 %v1633
    %v2540 = vpop.f32.mrf.mxu0
    %v2541 = vadd.f32 %v2528, %v2540
    %v2542 = vpop.f32.mrf.mxu0
    %2543 = vdwg.mxu0
    %2544 = vmatpush.bf16.msra.mxu0 %v2205
    %2545 = vmatpush.bf16.msra.mxu0 %v2203
    %2546 = vmatpush.bf16.msra.mxu0 %v2201
    %2547 = vmatpush.bf16.msra.mxu0 %v2199
    %2548 = vmatpush.bf16.msra.mxu0 %v2197
    %2549 = vmatpush.bf16.msra.mxu0 %v2195
    %2550 = vmatpush.bf16.msra.mxu0 %v2193
    %2551 = vmatpush.bf16.msra.mxu0 %v2191
    %2552 = vmatmul.bf16.gmra.mxu0 %v1634
    %v2553 = vpop.f32.mrf.mxu0
    %v2554 = vadd.f32 %v2541, %v2553
    %v2555 = vpop.f32.mrf.mxu0
    %2556 = vdwg.mxu0
    %2557 = vmatpush.bf16.msra.mxu0 %v2221
    %2558 = vmatpush.bf16.msra.mxu0 %v2219
    %2559 = vmatpush.bf16.msra.mxu0 %v2217
    %2560 = vmatpush.bf16.msra.mxu0 %v2215
    %2561 = vmatpush.bf16.msra.mxu0 %v2213
    %2562 = vmatpush.bf16.msra.mxu0 %v2211
    %2563 = vmatpush.bf16.msra.mxu0 %v2209
    %2564 = vmatpush.bf16.msra.mxu0 %v2207
    %2565 = vmatmul.bf16.gmra.mxu0 %v1635
    %v2566 = vpop.f32.mrf.mxu0
    %v2567 = vadd.f32 %v2554, %v2566
    %v2568 = vpop.f32.mrf.mxu0
    %2569 = vdwg.mxu0
    %2570 = vmatpush.bf16.msra.mxu0 %v2237
    %2571 = vmatpush.bf16.msra.mxu0 %v2235
    %2572 = vmatpush.bf16.msra.mxu0 %v2233
    %2573 = vmatpush.bf16.msra.mxu0 %v2231
    %2574 = vmatpush.bf16.msra.mxu0 %v2229
    %2575 = vmatpush.bf16.msra.mxu0 %v2227
    %2576 = vmatpush.bf16.msra.mxu0 %v2225
    %2577 = vmatpush.bf16.msra.mxu0 %v2223
    %2578 = vmatmul.bf16.gmra.mxu0 %v1636
    %v2579 = vpop.f32.mrf.mxu0
    %v2580 = vadd.f32 %v2567, %v2579
    %v2581 = vpop.f32.mrf.mxu0
    %2582 = vdwg.mxu0
    %2583 = vmatpush.bf16.msra.mxu0 %v2253
    %2584 = vmatpush.bf16.msra.mxu0 %v2251
    %2585 = vmatpush.bf16.msra.mxu0 %v2249
    %2586 = vmatpush.bf16.msra.mxu0 %v2247
    %2587 = vmatpush.bf16.msra.mxu0 %v2245
    %2588 = vmatpush.bf16.msra.mxu0 %v2243
    %2589 = vmatpush.bf16.msra.mxu0 %v2241
    %2590 = vmatpush.bf16.msra.mxu0 %v2239
    %2591 = vmatmul.bf16.gmra.mxu0 %v1637
    %v2592 = vpop.f32.mrf.mxu0
    %v2593 = vadd.f32 %v2580, %v2592
    %v2594 = vpop.f32.mrf.mxu0
    %2595 = vdwg.mxu0
    %2596 = vmatpush.bf16.msra.mxu0 %v2269
    %2597 = vmatpush.bf16.msra.mxu0 %v2267
    %2598 = vmatpush.bf16.msra.mxu0 %v2265
    %2599 = vmatpush.bf16.msra.mxu0 %v2263
    %2600 = vmatpush.bf16.msra.mxu0 %v2261
    %2601 = vmatpush.bf16.msra.mxu0 %v2259
    %2602 = vmatpush.bf16.msra.mxu0 %v2257
    %2603 = vmatpush.bf16.msra.mxu0 %v2255
    %2604 = vmatmul.bf16.gmra.mxu0 %v1638
    %v2605 = vpop.f32.mrf.mxu0
    %v2606 = vadd.f32 %v2593, %v2605
    %v2607 = vpop.f32.mrf.mxu0
    %2608 = vdwg.mxu0
    %2609 = vmatpush.bf16.msra.mxu0 %v2285
    %2610 = vmatpush.bf16.msra.mxu0 %v2283
    %2611 = vmatpush.bf16.msra.mxu0 %v2281
    %2612 = vmatpush.bf16.msra.mxu0 %v2279
    %2613 = vmatpush.bf16.msra.mxu0 %v2277
    %2614 = vmatpush.bf16.msra.mxu0 %v2275
    %2615 = vmatpush.bf16.msra.mxu0 %v2273
    %2616 = vmatpush.bf16.msra.mxu0 %v2271
    %2617 = vmatmul.bf16.gmra.mxu0 %v1639
    %v2618 = vpop.f32.mrf.mxu0
    %v2619 = vadd.f32 %v2606, %v2618
    %v2620 = vpop.f32.mrf.mxu0
    %2621 = vdwg.mxu0
    %v2622 = vpack.c.bf16 %v2515, %v2515
    %v2623 = vpack.c.bf16 %v2619, %v2619
    %v2624 = vld [vmem:[#allocation13] sm:$0xff]
    %v2625 = vld [vmem:[#allocation13 + $0x8] sm:$0xff]
    %v2626 = vld [vmem:[#allocation13 + $0x10] sm:$0xff]
    %v2627 = vld [vmem:[#allocation13 + $0x18] sm:$0xff]
    %v2628 = vld [vmem:[#allocation13 + $0x20] sm:$0xff]
    %v2629 = vld [vmem:[#allocation13 + $0x28] sm:$0xff]
    %v2630 = vld [vmem:[#allocation13 + $0x30] sm:$0xff]
    %v2631 = vld [vmem:[#allocation13 + $0x38] sm:$0xff]
    %v2632 = vld [vmem:[#allocation13 + $0x40] sm:$0xff]
    %v2633 = vld [vmem:[#allocation13 + $0x48] sm:$0xff]
    %v2634 = vld [vmem:[#allocation13 + $0x50] sm:$0xff]
    %v2635 = vld [vmem:[#allocation13 + $0x58] sm:$0xff]
    %v2636 = vld [vmem:[#allocation13 + $0x60] sm:$0xff]
    %v2637 = vld [vmem:[#allocation13 + $0x68] sm:$0xff]
    %v2638 = vld [vmem:[#allocation13 + $0x70] sm:$0xff]
    %v2639 = vld [vmem:[#allocation13 + $0x78] sm:$0xff]
    %v2640 = vld [vmem:[#allocation13 + $0x80] sm:$0xff]
    %v2641 = vld [vmem:[#allocation13 + $0x88] sm:$0xff]
    %v2642 = vld [vmem:[#allocation13 + $0x90] sm:$0xff]
    %v2643 = vld [vmem:[#allocation13 + $0x98] sm:$0xff]
    %v2644 = vld [vmem:[#allocation13 + $0xa0] sm:$0xff]
    %v2645 = vld [vmem:[#allocation13 + $0xa8] sm:$0xff]
    %v2646 = vld [vmem:[#allocation13 + $0xb0] sm:$0xff]
    %v2647 = vld [vmem:[#allocation13 + $0xb8] sm:$0xff]
    %v2648 = vld [vmem:[#allocation13 + $0xc0] sm:$0xff]
    %v2649 = vld [vmem:[#allocation13 + $0xc8] sm:$0xff]
    %v2650 = vld [vmem:[#allocation13 + $0xd0] sm:$0xff]
    %v2651 = vld [vmem:[#allocation13 + $0xd8] sm:$0xff]
    %v2652 = vld [vmem:[#allocation13 + $0xe0] sm:$0xff]
    %v2653 = vld [vmem:[#allocation13 + $0xe8] sm:$0xff]
    %v2654 = vld [vmem:[#allocation13 + $0xf0] sm:$0xff]
    %v2655 = vld [vmem:[#allocation13 + $0xf8] sm:$0xff]
    %v2656 = vld [vmem:[#allocation13 + $0x100] sm:$0xff]
    %v2657 = vld [vmem:[#allocation13 + $0x108] sm:$0xff]
    %v2658 = vld [vmem:[#allocation13 + $0x110] sm:$0xff]
    %v2659 = vld [vmem:[#allocation13 + $0x118] sm:$0xff]
    %v2660 = vld [vmem:[#allocation13 + $0x120] sm:$0xff]
    %v2661 = vld [vmem:[#allocation13 + $0x128] sm:$0xff]
    %v2662 = vld [vmem:[#allocation13 + $0x130] sm:$0xff]
    %v2663 = vld [vmem:[#allocation13 + $0x138] sm:$0xff]
    %v2664 = vld [vmem:[#allocation13 + $0x140] sm:$0xff]
    %v2665 = vld [vmem:[#allocation13 + $0x148] sm:$0xff]
    %v2666 = vld [vmem:[#allocation13 + $0x150] sm:$0xff]
    %v2667 = vld [vmem:[#allocation13 + $0x158] sm:$0xff]
    %v2668 = vld [vmem:[#allocation13 + $0x160] sm:$0xff]
    %v2669 = vld [vmem:[#allocation13 + $0x168] sm:$0xff]
    %v2670 = vld [vmem:[#allocation13 + $0x170] sm:$0xff]
    %v2671 = vld [vmem:[#allocation13 + $0x178] sm:$0xff]
    %v2672 = vld [vmem:[#allocation13 + $0x180] sm:$0xff]
    %v2673 = vld [vmem:[#allocation13 + $0x188] sm:$0xff]
    %v2674 = vld [vmem:[#allocation13 + $0x190] sm:$0xff]
    %v2675 = vld [vmem:[#allocation13 + $0x198] sm:$0xff]
    %v2676 = vld [vmem:[#allocation13 + $0x1a0] sm:$0xff]
    %v2677 = vld [vmem:[#allocation13 + $0x1a8] sm:$0xff]
    %v2678 = vld [vmem:[#allocation13 + $0x1b0] sm:$0xff]
    %v2679 = vld [vmem:[#allocation13 + $0x1b8] sm:$0xff]
    %v2680 = vld [vmem:[#allocation13 + $0x1c0] sm:$0xff]
    %v2681 = vld [vmem:[#allocation13 + $0x1c8] sm:$0xff]
    %v2682 = vld [vmem:[#allocation13 + $0x1d0] sm:$0xff]
    %v2683 = vld [vmem:[#allocation13 + $0x1d8] sm:$0xff]
    %v2684 = vld [vmem:[#allocation13 + $0x1e0] sm:$0xff]
    %v2685 = vld [vmem:[#allocation13 + $0x1e8] sm:$0xff]
    %v2686 = vld [vmem:[#allocation13 + $0x1f0] sm:$0xff]
    %v2687 = vld [vmem:[#allocation13 + $0x1f8] sm:$0xff]
    %v2688 = vld [vmem:[#allocation13 + $0x200] sm:$0xff]
    %v2689 = vld [vmem:[#allocation13 + $0x208] sm:$0xff]
    %v2690 = vld [vmem:[#allocation13 + $0x210] sm:$0xff]
    %v2691 = vld [vmem:[#allocation13 + $0x218] sm:$0xff]
    %v2692 = vld [vmem:[#allocation13 + $0x220] sm:$0xff]
    %v2693 = vld [vmem:[#allocation13 + $0x228] sm:$0xff]
    %v2694 = vld [vmem:[#allocation13 + $0x230] sm:$0xff]
    %v2695 = vld [vmem:[#allocation13 + $0x238] sm:$0xff]
    %v2696 = vld [vmem:[#allocation13 + $0x240] sm:$0xff]
    %v2697 = vld [vmem:[#allocation13 + $0x248] sm:$0xff]
    %v2698 = vld [vmem:[#allocation13 + $0x250] sm:$0xff]
    %v2699 = vld [vmem:[#allocation13 + $0x258] sm:$0xff]
    %v2700 = vld [vmem:[#allocation13 + $0x260] sm:$0xff]
    %v2701 = vld [vmem:[#allocation13 + $0x268] sm:$0xff]
    %v2702 = vld [vmem:[#allocation13 + $0x270] sm:$0xff]
    %v2703 = vld [vmem:[#allocation13 + $0x278] sm:$0xff]
    %v2704 = vld [vmem:[#allocation13 + $0x280] sm:$0xff]
    %v2705 = vld [vmem:[#allocation13 + $0x288] sm:$0xff]
    %v2706 = vld [vmem:[#allocation13 + $0x290] sm:$0xff]
    %v2707 = vld [vmem:[#allocation13 + $0x298] sm:$0xff]
    %v2708 = vld [vmem:[#allocation13 + $0x2a0] sm:$0xff]
    %v2709 = vld [vmem:[#allocation13 + $0x2a8] sm:$0xff]
    %v2710 = vld [vmem:[#allocation13 + $0x2b0] sm:$0xff]
    %v2711 = vld [vmem:[#allocation13 + $0x2b8] sm:$0xff]
    %v2712 = vld [vmem:[#allocation13 + $0x2c0] sm:$0xff]
    %v2713 = vld [vmem:[#allocation13 + $0x2c8] sm:$0xff]
    %v2714 = vld [vmem:[#allocation13 + $0x2d0] sm:$0xff]
    %v2715 = vld [vmem:[#allocation13 + $0x2d8] sm:$0xff]
    %v2716 = vld [vmem:[#allocation13 + $0x2e0] sm:$0xff]
    %v2717 = vld [vmem:[#allocation13 + $0x2e8] sm:$0xff]
    %v2718 = vld [vmem:[#allocation13 + $0x2f0] sm:$0xff]
    %v2719 = vld [vmem:[#allocation13 + $0x2f8] sm:$0xff]
    %v2720 = vld [vmem:[#allocation13 + $0x300] sm:$0xff]
    %v2721 = vld [vmem:[#allocation13 + $0x308] sm:$0xff]
    %v2722 = vld [vmem:[#allocation13 + $0x310] sm:$0xff]
    %v2723 = vld [vmem:[#allocation13 + $0x318] sm:$0xff]
    %v2724 = vld [vmem:[#allocation13 + $0x320] sm:$0xff]
    %v2725 = vld [vmem:[#allocation13 + $0x328] sm:$0xff]
    %v2726 = vld [vmem:[#allocation13 + $0x330] sm:$0xff]
    %v2727 = vld [vmem:[#allocation13 + $0x338] sm:$0xff]
    %v2728 = vld [vmem:[#allocation13 + $0x340] sm:$0xff]
    %v2729 = vld [vmem:[#allocation13 + $0x348] sm:$0xff]
    %v2730 = vld [vmem:[#allocation13 + $0x350] sm:$0xff]
    %v2731 = vld [vmem:[#allocation13 + $0x358] sm:$0xff]
    %v2732 = vld [vmem:[#allocation13 + $0x360] sm:$0xff]
    %v2733 = vld [vmem:[#allocation13 + $0x368] sm:$0xff]
    %v2734 = vld [vmem:[#allocation13 + $0x370] sm:$0xff]
    %v2735 = vld [vmem:[#allocation13 + $0x378] sm:$0xff]
    %v2736 = vld [vmem:[#allocation13 + $0x380] sm:$0xff]
    %v2737 = vld [vmem:[#allocation13 + $0x388] sm:$0xff]
    %v2738 = vld [vmem:[#allocation13 + $0x390] sm:$0xff]
    %v2739 = vld [vmem:[#allocation13 + $0x398] sm:$0xff]
    %v2740 = vld [vmem:[#allocation13 + $0x3a0] sm:$0xff]
    %v2741 = vld [vmem:[#allocation13 + $0x3a8] sm:$0xff]
    %v2742 = vld [vmem:[#allocation13 + $0x3b0] sm:$0xff]
    %v2743 = vld [vmem:[#allocation13 + $0x3b8] sm:$0xff]
    %v2744 = vld [vmem:[#allocation13 + $0x3c0] sm:$0xff]
    %v2745 = vld [vmem:[#allocation13 + $0x3c8] sm:$0xff]
    %v2746 = vld [vmem:[#allocation13 + $0x3d0] sm:$0xff]
    %v2747 = vld [vmem:[#allocation13 + $0x3d8] sm:$0xff]
    %v2748 = vld [vmem:[#allocation13 + $0x3e0] sm:$0xff]
    %v2749 = vld [vmem:[#allocation13 + $0x3e8] sm:$0xff]
    %v2750 = vld [vmem:[#allocation13 + $0x3f0] sm:$0xff]
    %v2751 = vld [vmem:[#allocation13 + $0x3f8] sm:$0xff]
    %v2752 = vld [vmem:[#allocation13 + $0x400] sm:$0xff]
    %v2753 = vld [vmem:[#allocation13 + $0x408] sm:$0xff]
    %v2754 = vld [vmem:[#allocation13 + $0x410] sm:$0xff]
    %v2755 = vld [vmem:[#allocation13 + $0x418] sm:$0xff]
    %v2756 = vld [vmem:[#allocation13 + $0x420] sm:$0xff]
    %v2757 = vld [vmem:[#allocation13 + $0x428] sm:$0xff]
    %v2758 = vld [vmem:[#allocation13 + $0x430] sm:$0xff]
    %v2759 = vld [vmem:[#allocation13 + $0x438] sm:$0xff]
    %v2760 = vld [vmem:[#allocation13 + $0x440] sm:$0xff]
    %v2761 = vld [vmem:[#allocation13 + $0x448] sm:$0xff]
    %v2762 = vld [vmem:[#allocation13 + $0x450] sm:$0xff]
    %v2763 = vld [vmem:[#allocation13 + $0x458] sm:$0xff]
    %v2764 = vld [vmem:[#allocation13 + $0x460] sm:$0xff]
    %v2765 = vld [vmem:[#allocation13 + $0x468] sm:$0xff]
    %v2766 = vld [vmem:[#allocation13 + $0x470] sm:$0xff]
    %v2767 = vld [vmem:[#allocation13 + $0x478] sm:$0xff]
    %v2768 = vld [vmem:[#allocation13 + $0x480] sm:$0xff]
    %v2769 = vld [vmem:[#allocation13 + $0x488] sm:$0xff]
    %v2770 = vld [vmem:[#allocation13 + $0x490] sm:$0xff]
    %v2771 = vld [vmem:[#allocation13 + $0x498] sm:$0xff]
    %v2772 = vld [vmem:[#allocation13 + $0x4a0] sm:$0xff]
    %v2773 = vld [vmem:[#allocation13 + $0x4a8] sm:$0xff]
    %v2774 = vld [vmem:[#allocation13 + $0x4b0] sm:$0xff]
    %v2775 = vld [vmem:[#allocation13 + $0x4b8] sm:$0xff]
    %v2776 = vld [vmem:[#allocation13 + $0x4c0] sm:$0xff]
    %v2777 = vld [vmem:[#allocation13 + $0x4c8] sm:$0xff]
    %v2778 = vld [vmem:[#allocation13 + $0x4d0] sm:$0xff]
    %v2779 = vld [vmem:[#allocation13 + $0x4d8] sm:$0xff]
    %v2780 = vld [vmem:[#allocation13 + $0x4e0] sm:$0xff]
    %v2781 = vld [vmem:[#allocation13 + $0x4e8] sm:$0xff]
    %v2782 = vld [vmem:[#allocation13 + $0x4f0] sm:$0xff]
    %v2783 = vld [vmem:[#allocation13 + $0x4f8] sm:$0xff]
    %v2784 = vld [vmem:[#allocation13 + $0x500] sm:$0xff]
    %v2785 = vld [vmem:[#allocation13 + $0x508] sm:$0xff]
    %v2786 = vld [vmem:[#allocation13 + $0x510] sm:$0xff]
    %v2787 = vld [vmem:[#allocation13 + $0x518] sm:$0xff]
    %v2788 = vld [vmem:[#allocation13 + $0x520] sm:$0xff]
    %v2789 = vld [vmem:[#allocation13 + $0x528] sm:$0xff]
    %v2790 = vld [vmem:[#allocation13 + $0x530] sm:$0xff]
    %v2791 = vld [vmem:[#allocation13 + $0x538] sm:$0xff]
    %v2792 = vld [vmem:[#allocation13 + $0x540] sm:$0xff]
    %v2793 = vld [vmem:[#allocation13 + $0x548] sm:$0xff]
    %v2794 = vld [vmem:[#allocation13 + $0x550] sm:$0xff]
    %v2795 = vld [vmem:[#allocation13 + $0x558] sm:$0xff]
    %v2796 = vld [vmem:[#allocation13 + $0x560] sm:$0xff]
    %v2797 = vld [vmem:[#allocation13 + $0x568] sm:$0xff]
    %v2798 = vld [vmem:[#allocation13 + $0x570] sm:$0xff]
    %v2799 = vld [vmem:[#allocation13 + $0x578] sm:$0xff]
    %v2800 = vld [vmem:[#allocation13 + $0x580] sm:$0xff]
    %v2801 = vld [vmem:[#allocation13 + $0x588] sm:$0xff]
    %v2802 = vld [vmem:[#allocation13 + $0x590] sm:$0xff]
    %v2803 = vld [vmem:[#allocation13 + $0x598] sm:$0xff]
    %v2804 = vld [vmem:[#allocation13 + $0x5a0] sm:$0xff]
    %v2805 = vld [vmem:[#allocation13 + $0x5a8] sm:$0xff]
    %v2806 = vld [vmem:[#allocation13 + $0x5b0] sm:$0xff]
    %v2807 = vld [vmem:[#allocation13 + $0x5b8] sm:$0xff]
    %v2808 = vld [vmem:[#allocation13 + $0x5c0] sm:$0xff]
    %v2809 = vld [vmem:[#allocation13 + $0x5c8] sm:$0xff]
    %v2810 = vld [vmem:[#allocation13 + $0x5d0] sm:$0xff]
    %v2811 = vld [vmem:[#allocation13 + $0x5d8] sm:$0xff]
    %v2812 = vld [vmem:[#allocation13 + $0x5e0] sm:$0xff]
    %v2813 = vld [vmem:[#allocation13 + $0x5e8] sm:$0xff]
    %v2814 = vld [vmem:[#allocation13 + $0x5f0] sm:$0xff]
    %v2815 = vld [vmem:[#allocation13 + $0x5f8] sm:$0xff]
    %v2816 = vld [vmem:[#allocation13 + $0x600] sm:$0xff]
    %v2817 = vld [vmem:[#allocation13 + $0x608] sm:$0xff]
    %v2818 = vld [vmem:[#allocation13 + $0x610] sm:$0xff]
    %v2819 = vld [vmem:[#allocation13 + $0x618] sm:$0xff]
    %v2820 = vld [vmem:[#allocation13 + $0x620] sm:$0xff]
    %v2821 = vld [vmem:[#allocation13 + $0x628] sm:$0xff]
    %v2822 = vld [vmem:[#allocation13 + $0x630] sm:$0xff]
    %v2823 = vld [vmem:[#allocation13 + $0x638] sm:$0xff]
    %v2824 = vld [vmem:[#allocation13 + $0x640] sm:$0xff]
    %v2825 = vld [vmem:[#allocation13 + $0x648] sm:$0xff]
    %v2826 = vld [vmem:[#allocation13 + $0x650] sm:$0xff]
    %v2827 = vld [vmem:[#allocation13 + $0x658] sm:$0xff]
    %v2828 = vld [vmem:[#allocation13 + $0x660] sm:$0xff]
    %v2829 = vld [vmem:[#allocation13 + $0x668] sm:$0xff]
    %v2830 = vld [vmem:[#allocation13 + $0x670] sm:$0xff]
    %v2831 = vld [vmem:[#allocation13 + $0x678] sm:$0xff]
    %v2832 = vld [vmem:[#allocation13 + $0x680] sm:$0xff]
    %v2833 = vld [vmem:[#allocation13 + $0x688] sm:$0xff]
    %v2834 = vld [vmem:[#allocation13 + $0x690] sm:$0xff]
    %v2835 = vld [vmem:[#allocation13 + $0x698] sm:$0xff]
    %v2836 = vld [vmem:[#allocation13 + $0x6a0] sm:$0xff]
    %v2837 = vld [vmem:[#allocation13 + $0x6a8] sm:$0xff]
    %v2838 = vld [vmem:[#allocation13 + $0x6b0] sm:$0xff]
    %v2839 = vld [vmem:[#allocation13 + $0x6b8] sm:$0xff]
    %v2840 = vld [vmem:[#allocation13 + $0x6c0] sm:$0xff]
    %v2841 = vld [vmem:[#allocation13 + $0x6c8] sm:$0xff]
    %v2842 = vld [vmem:[#allocation13 + $0x6d0] sm:$0xff]
    %v2843 = vld [vmem:[#allocation13 + $0x6d8] sm:$0xff]
    %v2844 = vld [vmem:[#allocation13 + $0x6e0] sm:$0xff]
    %v2845 = vld [vmem:[#allocation13 + $0x6e8] sm:$0xff]
    %v2846 = vld [vmem:[#allocation13 + $0x6f0] sm:$0xff]
    %v2847 = vld [vmem:[#allocation13 + $0x6f8] sm:$0xff]
    %v2848 = vld [vmem:[#allocation13 + $0x700] sm:$0xff]
    %v2849 = vld [vmem:[#allocation13 + $0x708] sm:$0xff]
    %v2850 = vld [vmem:[#allocation13 + $0x710] sm:$0xff]
    %v2851 = vld [vmem:[#allocation13 + $0x718] sm:$0xff]
    %v2852 = vld [vmem:[#allocation13 + $0x720] sm:$0xff]
    %v2853 = vld [vmem:[#allocation13 + $0x728] sm:$0xff]
    %v2854 = vld [vmem:[#allocation13 + $0x730] sm:$0xff]
    %v2855 = vld [vmem:[#allocation13 + $0x738] sm:$0xff]
    %v2856 = vld [vmem:[#allocation13 + $0x740] sm:$0xff]
    %v2857 = vld [vmem:[#allocation13 + $0x748] sm:$0xff]
    %v2858 = vld [vmem:[#allocation13 + $0x750] sm:$0xff]
    %v2859 = vld [vmem:[#allocation13 + $0x758] sm:$0xff]
    %v2860 = vld [vmem:[#allocation13 + $0x760] sm:$0xff]
    %v2861 = vld [vmem:[#allocation13 + $0x768] sm:$0xff]
    %v2862 = vld [vmem:[#allocation13 + $0x770] sm:$0xff]
    %v2863 = vld [vmem:[#allocation13 + $0x778] sm:$0xff]
    %v2864 = vld [vmem:[#allocation13 + $0x780] sm:$0xff]
    %v2865 = vld [vmem:[#allocation13 + $0x788] sm:$0xff]
    %v2866 = vld [vmem:[#allocation13 + $0x790] sm:$0xff]
    %v2867 = vld [vmem:[#allocation13 + $0x798] sm:$0xff]
    %v2868 = vld [vmem:[#allocation13 + $0x7a0] sm:$0xff]
    %v2869 = vld [vmem:[#allocation13 + $0x7a8] sm:$0xff]
    %v2870 = vld [vmem:[#allocation13 + $0x7b0] sm:$0xff]
    %v2871 = vld [vmem:[#allocation13 + $0x7b8] sm:$0xff]
    %v2872 = vld [vmem:[#allocation13 + $0x7c0] sm:$0xff]
    %v2873 = vld [vmem:[#allocation13 + $0x7c8] sm:$0xff]
    %v2874 = vld [vmem:[#allocation13 + $0x7d0] sm:$0xff]
    %v2875 = vld [vmem:[#allocation13 + $0x7d8] sm:$0xff]
    %v2876 = vld [vmem:[#allocation13 + $0x7e0] sm:$0xff]
    %v2877 = vld [vmem:[#allocation13 + $0x7e8] sm:$0xff]
    %v2878 = vld [vmem:[#allocation13 + $0x7f0] sm:$0xff]
    %v2879 = vld [vmem:[#allocation13 + $0x7f8] sm:$0xff]
    %v2880 = vld [vmem:[#allocation2] sm:$0x3]
    %v2881 = vpack.c.bf16 %v2880, %v2880
    %v2882 = vld [vmem:[#allocation14] sm:$0xff]
    %v2883 = vld [vmem:[#allocation14 + $0x8] sm:$0xff]
    %v2884 = vld [vmem:[#allocation14 + $0x10] sm:$0xff]
    %v2885 = vld [vmem:[#allocation14 + $0x18] sm:$0xff]
    %v2886 = vld [vmem:[#allocation14 + $0x20] sm:$0xff]
    %v2887 = vld [vmem:[#allocation14 + $0x28] sm:$0xff]
    %v2888 = vld [vmem:[#allocation14 + $0x30] sm:$0xff]
    %v2889 = vld [vmem:[#allocation14 + $0x38] sm:$0xff]
    %v2890 = vld [vmem:[#allocation14 + $0x40] sm:$0xff]
    %v2891 = vld [vmem:[#allocation14 + $0x48] sm:$0xff]
    %v2892 = vld [vmem:[#allocation14 + $0x50] sm:$0xff]
    %v2893 = vld [vmem:[#allocation14 + $0x58] sm:$0xff]
    %v2894 = vld [vmem:[#allocation14 + $0x60] sm:$0xff]
    %v2895 = vld [vmem:[#allocation14 + $0x68] sm:$0xff]
    %v2896 = vld [vmem:[#allocation14 + $0x70] sm:$0xff]
    %v2897 = vld [vmem:[#allocation14 + $0x78] sm:$0xff]
    %v2898 = vld [vmem:[#allocation14 + $0x80] sm:$0xff]
    %v2899 = vld [vmem:[#allocation14 + $0x88] sm:$0xff]
    %v2900 = vld [vmem:[#allocation14 + $0x90] sm:$0xff]
    %v2901 = vld [vmem:[#allocation14 + $0x98] sm:$0xff]
    %v2902 = vld [vmem:[#allocation14 + $0xa0] sm:$0xff]
    %v2903 = vld [vmem:[#allocation14 + $0xa8] sm:$0xff]
    %v2904 = vld [vmem:[#allocation14 + $0xb0] sm:$0xff]
    %v2905 = vld [vmem:[#allocation14 + $0xb8] sm:$0xff]
    %v2906 = vld [vmem:[#allocation14 + $0xc0] sm:$0xff]
    %v2907 = vld [vmem:[#allocation14 + $0xc8] sm:$0xff]
    %v2908 = vld [vmem:[#allocation14 + $0xd0] sm:$0xff]
    %v2909 = vld [vmem:[#allocation14 + $0xd8] sm:$0xff]
    %v2910 = vld [vmem:[#allocation14 + $0xe0] sm:$0xff]
    %v2911 = vld [vmem:[#allocation14 + $0xe8] sm:$0xff]
    %v2912 = vld [vmem:[#allocation14 + $0xf0] sm:$0xff]
    %v2913 = vld [vmem:[#allocation14 + $0xf8] sm:$0xff]
    %v2914 = vld [vmem:[#allocation14 + $0x100] sm:$0xff]
    %v2915 = vld [vmem:[#allocation14 + $0x108] sm:$0xff]
    %v2916 = vld [vmem:[#allocation14 + $0x110] sm:$0xff]
    %v2917 = vld [vmem:[#allocation14 + $0x118] sm:$0xff]
    %v2918 = vld [vmem:[#allocation14 + $0x120] sm:$0xff]
    %v2919 = vld [vmem:[#allocation14 + $0x128] sm:$0xff]
    %v2920 = vld [vmem:[#allocation14 + $0x130] sm:$0xff]
    %v2921 = vld [vmem:[#allocation14 + $0x138] sm:$0xff]
    %v2922 = vld [vmem:[#allocation14 + $0x140] sm:$0xff]
    %v2923 = vld [vmem:[#allocation14 + $0x148] sm:$0xff]
    %v2924 = vld [vmem:[#allocation14 + $0x150] sm:$0xff]
    %v2925 = vld [vmem:[#allocation14 + $0x158] sm:$0xff]
    %v2926 = vld [vmem:[#allocation14 + $0x160] sm:$0xff]
    %v2927 = vld [vmem:[#allocation14 + $0x168] sm:$0xff]
    %v2928 = vld [vmem:[#allocation14 + $0x170] sm:$0xff]
    %v2929 = vld [vmem:[#allocation14 + $0x178] sm:$0xff]
    %v2930 = vld [vmem:[#allocation14 + $0x180] sm:$0xff]
    %v2931 = vld [vmem:[#allocation14 + $0x188] sm:$0xff]
    %v2932 = vld [vmem:[#allocation14 + $0x190] sm:$0xff]
    %v2933 = vld [vmem:[#allocation14 + $0x198] sm:$0xff]
    %v2934 = vld [vmem:[#allocation14 + $0x1a0] sm:$0xff]
    %v2935 = vld [vmem:[#allocation14 + $0x1a8] sm:$0xff]
    %v2936 = vld [vmem:[#allocation14 + $0x1b0] sm:$0xff]
    %v2937 = vld [vmem:[#allocation14 + $0x1b8] sm:$0xff]
    %v2938 = vld [vmem:[#allocation14 + $0x1c0] sm:$0xff]
    %v2939 = vld [vmem:[#allocation14 + $0x1c8] sm:$0xff]
    %v2940 = vld [vmem:[#allocation14 + $0x1d0] sm:$0xff]
    %v2941 = vld [vmem:[#allocation14 + $0x1d8] sm:$0xff]
    %v2942 = vld [vmem:[#allocation14 + $0x1e0] sm:$0xff]
    %v2943 = vld [vmem:[#allocation14 + $0x1e8] sm:$0xff]
    %v2944 = vld [vmem:[#allocation14 + $0x1f0] sm:$0xff]
    %v2945 = vld [vmem:[#allocation14 + $0x1f8] sm:$0xff]
    %v2946 = vld [vmem:[#allocation14 + $0x200] sm:$0xff]
    %v2947 = vld [vmem:[#allocation14 + $0x208] sm:$0xff]
    %v2948 = vld [vmem:[#allocation14 + $0x210] sm:$0xff]
    %v2949 = vld [vmem:[#allocation14 + $0x218] sm:$0xff]
    %v2950 = vld [vmem:[#allocation14 + $0x220] sm:$0xff]
    %v2951 = vld [vmem:[#allocation14 + $0x228] sm:$0xff]
    %v2952 = vld [vmem:[#allocation14 + $0x230] sm:$0xff]
    %v2953 = vld [vmem:[#allocation14 + $0x238] sm:$0xff]
    %v2954 = vld [vmem:[#allocation14 + $0x240] sm:$0xff]
    %v2955 = vld [vmem:[#allocation14 + $0x248] sm:$0xff]
    %v2956 = vld [vmem:[#allocation14 + $0x250] sm:$0xff]
    %v2957 = vld [vmem:[#allocation14 + $0x258] sm:$0xff]
    %v2958 = vld [vmem:[#allocation14 + $0x260] sm:$0xff]
    %v2959 = vld [vmem:[#allocation14 + $0x268] sm:$0xff]
    %v2960 = vld [vmem:[#allocation14 + $0x270] sm:$0xff]
    %v2961 = vld [vmem:[#allocation14 + $0x278] sm:$0xff]
    %v2962 = vld [vmem:[#allocation14 + $0x280] sm:$0xff]
    %v2963 = vld [vmem:[#allocation14 + $0x288] sm:$0xff]
    %v2964 = vld [vmem:[#allocation14 + $0x290] sm:$0xff]
    %v2965 = vld [vmem:[#allocation14 + $0x298] sm:$0xff]
    %v2966 = vld [vmem:[#allocation14 + $0x2a0] sm:$0xff]
    %v2967 = vld [vmem:[#allocation14 + $0x2a8] sm:$0xff]
    %v2968 = vld [vmem:[#allocation14 + $0x2b0] sm:$0xff]
    %v2969 = vld [vmem:[#allocation14 + $0x2b8] sm:$0xff]
    %v2970 = vld [vmem:[#allocation14 + $0x2c0] sm:$0xff]
    %v2971 = vld [vmem:[#allocation14 + $0x2c8] sm:$0xff]
    %v2972 = vld [vmem:[#allocation14 + $0x2d0] sm:$0xff]
    %v2973 = vld [vmem:[#allocation14 + $0x2d8] sm:$0xff]
    %v2974 = vld [vmem:[#allocation14 + $0x2e0] sm:$0xff]
    %v2975 = vld [vmem:[#allocation14 + $0x2e8] sm:$0xff]
    %v2976 = vld [vmem:[#allocation14 + $0x2f0] sm:$0xff]
    %v2977 = vld [vmem:[#allocation14 + $0x2f8] sm:$0xff]
    %v2978 = vld [vmem:[#allocation14 + $0x300] sm:$0xff]
    %v2979 = vld [vmem:[#allocation14 + $0x308] sm:$0xff]
    %v2980 = vld [vmem:[#allocation14 + $0x310] sm:$0xff]
    %v2981 = vld [vmem:[#allocation14 + $0x318] sm:$0xff]
    %v2982 = vld [vmem:[#allocation14 + $0x320] sm:$0xff]
    %v2983 = vld [vmem:[#allocation14 + $0x328] sm:$0xff]
    %v2984 = vld [vmem:[#allocation14 + $0x330] sm:$0xff]
    %v2985 = vld [vmem:[#allocation14 + $0x338] sm:$0xff]
    %v2986 = vld [vmem:[#allocation14 + $0x340] sm:$0xff]
    %v2987 = vld [vmem:[#allocation14 + $0x348] sm:$0xff]
    %v2988 = vld [vmem:[#allocation14 + $0x350] sm:$0xff]
    %v2989 = vld [vmem:[#allocation14 + $0x358] sm:$0xff]
    %v2990 = vld [vmem:[#allocation14 + $0x360] sm:$0xff]
    %v2991 = vld [vmem:[#allocation14 + $0x368] sm:$0xff]
    %v2992 = vld [vmem:[#allocation14 + $0x370] sm:$0xff]
    %v2993 = vld [vmem:[#allocation14 + $0x378] sm:$0xff]
    %v2994 = vld [vmem:[#allocation14 + $0x380] sm:$0xff]
    %v2995 = vld [vmem:[#allocation14 + $0x388] sm:$0xff]
    %v2996 = vld [vmem:[#allocation14 + $0x390] sm:$0xff]
    %v2997 = vld [vmem:[#allocation14 + $0x398] sm:$0xff]
    %v2998 = vld [vmem:[#allocation14 + $0x3a0] sm:$0xff]
    %v2999 = vld [vmem:[#allocation14 + $0x3a8] sm:$0xff]
    %v3000 = vld [vmem:[#allocation14 + $0x3b0] sm:$0xff]
    %v3001 = vld [vmem:[#allocation14 + $0x3b8] sm:$0xff]
    %v3002 = vld [vmem:[#allocation14 + $0x3c0] sm:$0xff]
    %v3003 = vld [vmem:[#allocation14 + $0x3c8] sm:$0xff]
    %v3004 = vld [vmem:[#allocation14 + $0x3d0] sm:$0xff]
    %v3005 = vld [vmem:[#allocation14 + $0x3d8] sm:$0xff]
    %v3006 = vld [vmem:[#allocation14 + $0x3e0] sm:$0xff]
    %v3007 = vld [vmem:[#allocation14 + $0x3e8] sm:$0xff]
    %v3008 = vld [vmem:[#allocation14 + $0x3f0] sm:$0xff]
    %v3009 = vld [vmem:[#allocation14 + $0x3f8] sm:$0xff]
    %v3138 = vunpack.c.l.b16 %v2882
    %v3139 = vunpack.c.h.b16 %v2882
    %v3140 = vunpack.c.l.b16 %v2883
    %v3141 = vunpack.c.h.b16 %v2883
    %v3142 = vunpack.c.l.b16 %v2884
    %v3143 = vunpack.c.h.b16 %v2884
    %v3144 = vunpack.c.l.b16 %v2885
    %v3145 = vunpack.c.h.b16 %v2885
    %v3146 = vunpack.c.l.b16 %v2886
    %v3147 = vunpack.c.h.b16 %v2886
    %v3148 = vunpack.c.l.b16 %v2887
    %v3149 = vunpack.c.h.b16 %v2887
    %v3150 = vunpack.c.l.b16 %v2888
    %v3151 = vunpack.c.h.b16 %v2888
    %v3152 = vunpack.c.l.b16 %v2889
    %v3153 = vunpack.c.h.b16 %v2889
    %v3154 = vunpack.c.l.b16 %v2890
    %v3155 = vunpack.c.h.b16 %v2890
    %v3156 = vunpack.c.l.b16 %v2891
    %v3157 = vunpack.c.h.b16 %v2891
    %v3158 = vunpack.c.l.b16 %v2892
    %v3159 = vunpack.c.h.b16 %v2892
    %v3160 = vunpack.c.l.b16 %v2893
    %v3161 = vunpack.c.h.b16 %v2893
    %v3162 = vunpack.c.l.b16 %v2894
    %v3163 = vunpack.c.h.b16 %v2894
    %v3164 = vunpack.c.l.b16 %v2895
    %v3165 = vunpack.c.h.b16 %v2895
    %v3166 = vunpack.c.l.b16 %v2896
    %v3167 = vunpack.c.h.b16 %v2896
    %v3168 = vunpack.c.l.b16 %v2897
    %v3169 = vunpack.c.h.b16 %v2897
    %v3170 = vunpack.c.l.b16 %v2898
    %v3171 = vunpack.c.h.b16 %v2898
    %v3172 = vunpack.c.l.b16 %v2899
    %v3173 = vunpack.c.h.b16 %v2899
    %v3174 = vunpack.c.l.b16 %v2900
    %v3175 = vunpack.c.h.b16 %v2900
    %v3176 = vunpack.c.l.b16 %v2901
    %v3177 = vunpack.c.h.b16 %v2901
    %v3178 = vunpack.c.l.b16 %v2902
    %v3179 = vunpack.c.h.b16 %v2902
    %v3180 = vunpack.c.l.b16 %v2903
    %v3181 = vunpack.c.h.b16 %v2903
    %v3182 = vunpack.c.l.b16 %v2904
    %v3183 = vunpack.c.h.b16 %v2904
    %v3184 = vunpack.c.l.b16 %v2905
    %v3185 = vunpack.c.h.b16 %v2905
    %v3186 = vunpack.c.l.b16 %v2906
    %v3187 = vunpack.c.h.b16 %v2906
    %v3188 = vunpack.c.l.b16 %v2907
    %v3189 = vunpack.c.h.b16 %v2907
    %v3190 = vunpack.c.l.b16 %v2908
    %v3191 = vunpack.c.h.b16 %v2908
    %v3192 = vunpack.c.l.b16 %v2909
    %v3193 = vunpack.c.h.b16 %v2909
    %v3194 = vunpack.c.l.b16 %v2910
    %v3195 = vunpack.c.h.b16 %v2910
    %v3196 = vunpack.c.l.b16 %v2911
    %v3197 = vunpack.c.h.b16 %v2911
    %v3198 = vunpack.c.l.b16 %v2912
    %v3199 = vunpack.c.h.b16 %v2912
    %v3200 = vunpack.c.l.b16 %v2913
    %v3201 = vunpack.c.h.b16 %v2913
    %v3202 = vunpack.c.l.b16 %v2914
    %v3203 = vunpack.c.h.b16 %v2914
    %v3204 = vunpack.c.l.b16 %v2915
    %v3205 = vunpack.c.h.b16 %v2915
    %v3206 = vunpack.c.l.b16 %v2916
    %v3207 = vunpack.c.h.b16 %v2916
    %v3208 = vunpack.c.l.b16 %v2917
    %v3209 = vunpack.c.h.b16 %v2917
    %v3210 = vunpack.c.l.b16 %v2918
    %v3211 = vunpack.c.h.b16 %v2918
    %v3212 = vunpack.c.l.b16 %v2919
    %v3213 = vunpack.c.h.b16 %v2919
    %v3214 = vunpack.c.l.b16 %v2920
    %v3215 = vunpack.c.h.b16 %v2920
    %v3216 = vunpack.c.l.b16 %v2921
    %v3217 = vunpack.c.h.b16 %v2921
    %v3218 = vunpack.c.l.b16 %v2922
    %v3219 = vunpack.c.h.b16 %v2922
    %v3220 = vunpack.c.l.b16 %v2923
    %v3221 = vunpack.c.h.b16 %v2923
    %v3222 = vunpack.c.l.b16 %v2924
    %v3223 = vunpack.c.h.b16 %v2924
    %v3224 = vunpack.c.l.b16 %v2925
    %v3225 = vunpack.c.h.b16 %v2925
    %v3226 = vunpack.c.l.b16 %v2926
    %v3227 = vunpack.c.h.b16 %v2926
    %v3228 = vunpack.c.l.b16 %v2927
    %v3229 = vunpack.c.h.b16 %v2927
    %v3230 = vunpack.c.l.b16 %v2928
    %v3231 = vunpack.c.h.b16 %v2928
    %v3232 = vunpack.c.l.b16 %v2929
    %v3233 = vunpack.c.h.b16 %v2929
    %v3234 = vunpack.c.l.b16 %v2930
    %v3235 = vunpack.c.h.b16 %v2930
    %v3236 = vunpack.c.l.b16 %v2931
    %v3237 = vunpack.c.h.b16 %v2931
    %v3238 = vunpack.c.l.b16 %v2932
    %v3239 = vunpack.c.h.b16 %v2932
    %v3240 = vunpack.c.l.b16 %v2933
    %v3241 = vunpack.c.h.b16 %v2933
    %v3242 = vunpack.c.l.b16 %v2934
    %v3243 = vunpack.c.h.b16 %v2934
    %v3244 = vunpack.c.l.b16 %v2935
    %v3245 = vunpack.c.h.b16 %v2935
    %v3246 = vunpack.c.l.b16 %v2936
    %v3247 = vunpack.c.h.b16 %v2936
    %v3248 = vunpack.c.l.b16 %v2937
    %v3249 = vunpack.c.h.b16 %v2937
    %v3250 = vunpack.c.l.b16 %v2938
    %v3251 = vunpack.c.h.b16 %v2938
    %v3252 = vunpack.c.l.b16 %v2939
    %v3253 = vunpack.c.h.b16 %v2939
    %v3254 = vunpack.c.l.b16 %v2940
    %v3255 = vunpack.c.h.b16 %v2940
    %v3256 = vunpack.c.l.b16 %v2941
    %v3257 = vunpack.c.h.b16 %v2941
    %v3258 = vunpack.c.l.b16 %v2942
    %v3259 = vunpack.c.h.b16 %v2942
    %v3260 = vunpack.c.l.b16 %v2943
    %v3261 = vunpack.c.h.b16 %v2943
    %v3262 = vunpack.c.l.b16 %v2944
    %v3263 = vunpack.c.h.b16 %v2944
    %v3264 = vunpack.c.l.b16 %v2945
    %v3265 = vunpack.c.h.b16 %v2945
    %v3266 = vunpack.c.l.b16 %v2946
    %v3267 = vunpack.c.h.b16 %v2946
    %v3268 = vunpack.c.l.b16 %v2947
    %v3269 = vunpack.c.h.b16 %v2947
    %v3270 = vunpack.c.l.b16 %v2948
    %v3271 = vunpack.c.h.b16 %v2948
    %v3272 = vunpack.c.l.b16 %v2949
    %v3273 = vunpack.c.h.b16 %v2949
    %v3274 = vunpack.c.l.b16 %v2950
    %v3275 = vunpack.c.h.b16 %v2950
    %v3276 = vunpack.c.l.b16 %v2951
    %v3277 = vunpack.c.h.b16 %v2951
    %v3278 = vunpack.c.l.b16 %v2952
    %v3279 = vunpack.c.h.b16 %v2952
    %v3280 = vunpack.c.l.b16 %v2953
    %v3281 = vunpack.c.h.b16 %v2953
    %v3282 = vunpack.c.l.b16 %v2954
    %v3283 = vunpack.c.h.b16 %v2954
    %v3284 = vunpack.c.l.b16 %v2955
    %v3285 = vunpack.c.h.b16 %v2955
    %v3286 = vunpack.c.l.b16 %v2956
    %v3287 = vunpack.c.h.b16 %v2956
    %v3288 = vunpack.c.l.b16 %v2957
    %v3289 = vunpack.c.h.b16 %v2957
    %v3290 = vunpack.c.l.b16 %v2958
    %v3291 = vunpack.c.h.b16 %v2958
    %v3292 = vunpack.c.l.b16 %v2959
    %v3293 = vunpack.c.h.b16 %v2959
    %v3294 = vunpack.c.l.b16 %v2960
    %v3295 = vunpack.c.h.b16 %v2960
    %v3296 = vunpack.c.l.b16 %v2961
    %v3297 = vunpack.c.h.b16 %v2961
    %v3298 = vunpack.c.l.b16 %v2962
    %v3299 = vunpack.c.h.b16 %v2962
    %v3300 = vunpack.c.l.b16 %v2963
    %v3301 = vunpack.c.h.b16 %v2963
    %v3302 = vunpack.c.l.b16 %v2964
    %v3303 = vunpack.c.h.b16 %v2964
    %v3304 = vunpack.c.l.b16 %v2965
    %v3305 = vunpack.c.h.b16 %v2965
    %v3306 = vunpack.c.l.b16 %v2966
    %v3307 = vunpack.c.h.b16 %v2966
    %v3308 = vunpack.c.l.b16 %v2967
    %v3309 = vunpack.c.h.b16 %v2967
    %v3310 = vunpack.c.l.b16 %v2968
    %v3311 = vunpack.c.h.b16 %v2968
    %v3312 = vunpack.c.l.b16 %v2969
    %v3313 = vunpack.c.h.b16 %v2969
    %v3314 = vunpack.c.l.b16 %v2970
    %v3315 = vunpack.c.h.b16 %v2970
    %v3316 = vunpack.c.l.b16 %v2971
    %v3317 = vunpack.c.h.b16 %v2971
    %v3318 = vunpack.c.l.b16 %v2972
    %v3319 = vunpack.c.h.b16 %v2972
    %v3320 = vunpack.c.l.b16 %v2973
    %v3321 = vunpack.c.h.b16 %v2973
    %v3322 = vunpack.c.l.b16 %v2974
    %v3323 = vunpack.c.h.b16 %v2974
    %v3324 = vunpack.c.l.b16 %v2975
    %v3325 = vunpack.c.h.b16 %v2975
    %v3326 = vunpack.c.l.b16 %v2976
    %v3327 = vunpack.c.h.b16 %v2976
    %v3328 = vunpack.c.l.b16 %v2977
    %v3329 = vunpack.c.h.b16 %v2977
    %v3330 = vunpack.c.l.b16 %v2978
    %v3331 = vunpack.c.h.b16 %v2978
    %v3332 = vunpack.c.l.b16 %v2979
    %v3333 = vunpack.c.h.b16 %v2979
    %v3334 = vunpack.c.l.b16 %v2980
    %v3335 = vunpack.c.h.b16 %v2980
    %v3336 = vunpack.c.l.b16 %v2981
    %v3337 = vunpack.c.h.b16 %v2981
    %v3338 = vunpack.c.l.b16 %v2982
    %v3339 = vunpack.c.h.b16 %v2982
    %v3340 = vunpack.c.l.b16 %v2983
    %v3341 = vunpack.c.h.b16 %v2983
    %v3342 = vunpack.c.l.b16 %v2984
    %v3343 = vunpack.c.h.b16 %v2984
    %v3344 = vunpack.c.l.b16 %v2985
    %v3345 = vunpack.c.h.b16 %v2985
    %v3346 = vunpack.c.l.b16 %v2986
    %v3347 = vunpack.c.h.b16 %v2986
    %v3348 = vunpack.c.l.b16 %v2987
    %v3349 = vunpack.c.h.b16 %v2987
    %v3350 = vunpack.c.l.b16 %v2988
    %v3351 = vunpack.c.h.b16 %v2988
    %v3352 = vunpack.c.l.b16 %v2989
    %v3353 = vunpack.c.h.b16 %v2989
    %v3354 = vunpack.c.l.b16 %v2990
    %v3355 = vunpack.c.h.b16 %v2990
    %v3356 = vunpack.c.l.b16 %v2991
    %v3357 = vunpack.c.h.b16 %v2991
    %v3358 = vunpack.c.l.b16 %v2992
    %v3359 = vunpack.c.h.b16 %v2992
    %v3360 = vunpack.c.l.b16 %v2993
    %v3361 = vunpack.c.h.b16 %v2993
    %v3362 = vunpack.c.l.b16 %v2994
    %v3363 = vunpack.c.h.b16 %v2994
    %v3364 = vunpack.c.l.b16 %v2995
    %v3365 = vunpack.c.h.b16 %v2995
    %v3366 = vunpack.c.l.b16 %v2996
    %v3367 = vunpack.c.h.b16 %v2996
    %v3368 = vunpack.c.l.b16 %v2997
    %v3369 = vunpack.c.h.b16 %v2997
    %v3370 = vunpack.c.l.b16 %v2998
    %v3371 = vunpack.c.h.b16 %v2998
    %v3372 = vunpack.c.l.b16 %v2999
    %v3373 = vunpack.c.h.b16 %v2999
    %v3374 = vunpack.c.l.b16 %v3000
    %v3375 = vunpack.c.h.b16 %v3000
    %v3376 = vunpack.c.l.b16 %v3001
    %v3377 = vunpack.c.h.b16 %v3001
    %v3378 = vunpack.c.l.b16 %v3002
    %v3379 = vunpack.c.h.b16 %v3002
    %v3380 = vunpack.c.l.b16 %v3003
    %v3381 = vunpack.c.h.b16 %v3003
    %v3382 = vunpack.c.l.b16 %v3004
    %v3383 = vunpack.c.h.b16 %v3004
    %v3384 = vunpack.c.l.b16 %v3005
    %v3385 = vunpack.c.h.b16 %v3005
    %v3386 = vunpack.c.l.b16 %v3006
    %v3387 = vunpack.c.h.b16 %v3006
    %v3388 = vunpack.c.l.b16 %v3007
    %v3389 = vunpack.c.h.b16 %v3007
    %v3390 = vunpack.c.l.b16 %v3008
    %v3391 = vunpack.c.h.b16 %v3008
    %v3392 = vunpack.c.l.b16 %v3009
    %v3393 = vunpack.c.h.b16 %v3009
    %v3394 = vpack.c.b16 %v3154, %v3138
    %v3395 = vpack.c.b16 %v3155, %v3139
    %v3396 = vpack.c.b16 %v3156, %v3140
    %v3397 = vpack.c.b16 %v3157, %v3141
    %v3398 = vpack.c.b16 %v3158, %v3142
    %v3399 = vpack.c.b16 %v3159, %v3143
    %v3400 = vpack.c.b16 %v3160, %v3144
    %v3401 = vpack.c.b16 %v3161, %v3145
    %v3402 = vpack.c.b16 %v3162, %v3146
    %v3403 = vpack.c.b16 %v3163, %v3147
    %v3404 = vpack.c.b16 %v3164, %v3148
    %v3405 = vpack.c.b16 %v3165, %v3149
    %v3406 = vpack.c.b16 %v3166, %v3150
    %v3407 = vpack.c.b16 %v3167, %v3151
    %v3408 = vpack.c.b16 %v3168, %v3152
    %v3409 = vpack.c.b16 %v3169, %v3153
    %v3410 = vpack.c.b16 %v3186, %v3170
    %v3411 = vpack.c.b16 %v3187, %v3171
    %v3412 = vpack.c.b16 %v3188, %v3172
    %v3413 = vpack.c.b16 %v3189, %v3173
    %v3414 = vpack.c.b16 %v3190, %v3174
    %v3415 = vpack.c.b16 %v3191, %v3175
    %v3416 = vpack.c.b16 %v3192, %v3176
    %v3417 = vpack.c.b16 %v3193, %v3177
    %v3418 = vpack.c.b16 %v3194, %v3178
    %v3419 = vpack.c.b16 %v3195, %v3179
    %v3420 = vpack.c.b16 %v3196, %v3180
    %v3421 = vpack.c.b16 %v3197, %v3181
    %v3422 = vpack.c.b16 %v3198, %v3182
    %v3423 = vpack.c.b16 %v3199, %v3183
    %v3424 = vpack.c.b16 %v3200, %v3184
    %v3425 = vpack.c.b16 %v3201, %v3185
    %v3426 = vpack.c.b16 %v3218, %v3202
    %v3427 = vpack.c.b16 %v3219, %v3203
    %v3428 = vpack.c.b16 %v3220, %v3204
    %v3429 = vpack.c.b16 %v3221, %v3205
    %v3430 = vpack.c.b16 %v3222, %v3206
    %v3431 = vpack.c.b16 %v3223, %v3207
    %v3432 = vpack.c.b16 %v3224, %v3208
    %v3433 = vpack.c.b16 %v3225, %v3209
    %v3434 = vpack.c.b16 %v3226, %v3210
    %v3435 = vpack.c.b16 %v3227, %v3211
    %v3436 = vpack.c.b16 %v3228, %v3212
    %v3437 = vpack.c.b16 %v3229, %v3213
    %v3438 = vpack.c.b16 %v3230, %v3214
    %v3439 = vpack.c.b16 %v3231, %v3215
    %v3440 = vpack.c.b16 %v3232, %v3216
    %v3441 = vpack.c.b16 %v3233, %v3217
    %v3442 = vpack.c.b16 %v3250, %v3234
    %v3443 = vpack.c.b16 %v3251, %v3235
    %v3444 = vpack.c.b16 %v3252, %v3236
    %v3445 = vpack.c.b16 %v3253, %v3237
    %v3446 = vpack.c.b16 %v3254, %v3238
    %v3447 = vpack.c.b16 %v3255, %v3239
    %v3448 = vpack.c.b16 %v3256, %v3240
    %v3449 = vpack.c.b16 %v3257, %v3241
    %v3450 = vpack.c.b16 %v3258, %v3242
    %v3451 = vpack.c.b16 %v3259, %v3243
    %v3452 = vpack.c.b16 %v3260, %v3244
    %v3453 = vpack.c.b16 %v3261, %v3245
    %v3454 = vpack.c.b16 %v3262, %v3246
    %v3455 = vpack.c.b16 %v3263, %v3247
    %v3456 = vpack.c.b16 %v3264, %v3248
    %v3457 = vpack.c.b16 %v3265, %v3249
    %v3458 = vpack.c.b16 %v3282, %v3266
    %v3459 = vpack.c.b16 %v3283, %v3267
    %v3460 = vpack.c.b16 %v3284, %v3268
    %v3461 = vpack.c.b16 %v3285, %v3269
    %v3462 = vpack.c.b16 %v3286, %v3270
    %v3463 = vpack.c.b16 %v3287, %v3271
    %v3464 = vpack.c.b16 %v3288, %v3272
    %v3465 = vpack.c.b16 %v3289, %v3273
    %v3466 = vpack.c.b16 %v3290, %v3274
    %v3467 = vpack.c.b16 %v3291, %v3275
    %v3468 = vpack.c.b16 %v3292, %v3276
    %v3469 = vpack.c.b16 %v3293, %v3277
    %v3470 = vpack.c.b16 %v3294, %v3278
    %v3471 = vpack.c.b16 %v3295, %v3279
    %v3472 = vpack.c.b16 %v3296, %v3280
    %v3473 = vpack.c.b16 %v3297, %v3281
    %v3474 = vpack.c.b16 %v3314, %v3298
    %v3475 = vpack.c.b16 %v3315, %v3299
    %v3476 = vpack.c.b16 %v3316, %v3300
    %v3477 = vpack.c.b16 %v3317, %v3301
    %v3478 = vpack.c.b16 %v3318, %v3302
    %v3479 = vpack.c.b16 %v3319, %v3303
    %v3480 = vpack.c.b16 %v3320, %v3304
    %v3481 = vpack.c.b16 %v3321, %v3305
    %v3482 = vpack.c.b16 %v3322, %v3306
    %v3483 = vpack.c.b16 %v3323, %v3307
    %v3484 = vpack.c.b16 %v3324, %v3308
    %v3485 = vpack.c.b16 %v3325, %v3309
    %v3486 = vpack.c.b16 %v3326, %v3310
    %v3487 = vpack.c.b16 %v3327, %v3311
    %v3488 = vpack.c.b16 %v3328, %v3312
    %v3489 = vpack.c.b16 %v3329, %v3313
    %v3490 = vpack.c.b16 %v3346, %v3330
    %v3491 = vpack.c.b16 %v3347, %v3331
    %v3492 = vpack.c.b16 %v3348, %v3332
    %v3493 = vpack.c.b16 %v3349, %v3333
    %v3494 = vpack.c.b16 %v3350, %v3334
    %v3495 = vpack.c.b16 %v3351, %v3335
    %v3496 = vpack.c.b16 %v3352, %v3336
    %v3497 = vpack.c.b16 %v3353, %v3337
    %v3498 = vpack.c.b16 %v3354, %v3338
    %v3499 = vpack.c.b16 %v3355, %v3339
    %v3500 = vpack.c.b16 %v3356, %v3340
    %v3501 = vpack.c.b16 %v3357, %v3341
    %v3502 = vpack.c.b16 %v3358, %v3342
    %v3503 = vpack.c.b16 %v3359, %v3343
    %v3504 = vpack.c.b16 %v3360, %v3344
    %v3505 = vpack.c.b16 %v3361, %v3345
    %v3506 = vpack.c.b16 %v3378, %v3362
    %v3507 = vpack.c.b16 %v3379, %v3363
    %v3508 = vpack.c.b16 %v3380, %v3364
    %v3509 = vpack.c.b16 %v3381, %v3365
    %v3510 = vpack.c.b16 %v3382, %v3366
    %v3511 = vpack.c.b16 %v3383, %v3367
    %v3512 = vpack.c.b16 %v3384, %v3368
    %v3513 = vpack.c.b16 %v3385, %v3369
    %v3514 = vpack.c.b16 %v3386, %v3370
    %v3515 = vpack.c.b16 %v3387, %v3371
    %v3516 = vpack.c.b16 %v3388, %v3372
    %v3517 = vpack.c.b16 %v3389, %v3373
    %v3518 = vpack.c.b16 %v3390, %v3374
    %v3519 = vpack.c.b16 %v3391, %v3375
    %v3520 = vpack.c.b16 %v3392, %v3376
    %v3521 = vpack.c.b16 %v3393, %v3377
    %3650 = vmatpush.bf16.msra.mxu0 %v3506
    %3651 = vmatpush.bf16.msra.mxu0 %v3490
    %3652 = vmatpush.bf16.msra.mxu0 %v3474
    %3653 = vmatpush.bf16.msra.mxu0 %v3458
    %3654 = vmatpush.bf16.msra.mxu0 %v3442
    %3655 = vmatpush.bf16.msra.mxu0 %v3426
    %3656 = vmatpush.bf16.msra.mxu0 %v3410
    %3657 = vmatpush.bf16.msra.mxu0 %v3394
    %3658 = vmatmul.bf16.gmra.mxu0 %v2881
    %v3659 = vpop.f32.mrf.mxu0
    %v3660 = vadd.f32 0.0, %v3659
    %v3661 = vpop.f32.mrf.mxu0
    %3662 = vdwg.mxu0
    %3663 = vmatpush.bf16.msra.mxu0 %v3507
    %3664 = vmatpush.bf16.msra.mxu0 %v3491
    %3665 = vmatpush.bf16.msra.mxu0 %v3475
    %3666 = vmatpush.bf16.msra.mxu0 %v3459
    %3667 = vmatpush.bf16.msra.mxu0 %v3443
    %3668 = vmatpush.bf16.msra.mxu0 %v3427
    %3669 = vmatpush.bf16.msra.mxu0 %v3411
    %3670 = vmatpush.bf16.msra.mxu0 %v3395
    %3671 = vmatmul.bf16.gmra.mxu0 %v2881
    %v3672 = vpop.f32.mrf.mxu0
    %v3673 = vadd.f32 0.0, %v3672
    %v3674 = vpop.f32.mrf.mxu0
    %3675 = vdwg.mxu0
    %3676 = vmatpush.bf16.msra.mxu0 %v3508
    %3677 = vmatpush.bf16.msra.mxu0 %v3492
    %3678 = vmatpush.bf16.msra.mxu0 %v3476
    %3679 = vmatpush.bf16.msra.mxu0 %v3460
    %3680 = vmatpush.bf16.msra.mxu0 %v3444
    %3681 = vmatpush.bf16.msra.mxu0 %v3428
    %3682 = vmatpush.bf16.msra.mxu0 %v3412
    %3683 = vmatpush.bf16.msra.mxu0 %v3396
    %3684 = vmatmul.bf16.gmra.mxu0 %v2881
    %v3685 = vpop.f32.mrf.mxu0
    %v3686 = vadd.f32 0.0, %v3685
    %v3687 = vpop.f32.mrf.mxu0
    %3688 = vdwg.mxu0
    %3689 = vmatpush.bf16.msra.mxu0 %v3509
    %3690 = vmatpush.bf16.msra.mxu0 %v3493
    %3691 = vmatpush.bf16.msra.mxu0 %v3477
    %3692 = vmatpush.bf16.msra.mxu0 %v3461
    %3693 = vmatpush.bf16.msra.mxu0 %v3445
    %3694 = vmatpush.bf16.msra.mxu0 %v3429
    %3695 = vmatpush.bf16.msra.mxu0 %v3413
    %3696 = vmatpush.bf16.msra.mxu0 %v3397
    %3697 = vmatmul.bf16.gmra.mxu0 %v2881
    %v3698 = vpop.f32.mrf.mxu0
    %v3699 = vadd.f32 0.0, %v3698
    %v3700 = vpop.f32.mrf.mxu0
    %3701 = vdwg.mxu0
    %3702 = vmatpush.bf16.msra.mxu0 %v3510
    %3703 = vmatpush.bf16.msra.mxu0 %v3494
    %3704 = vmatpush.bf16.msra.mxu0 %v3478
    %3705 = vmatpush.bf16.msra.mxu0 %v3462
    %3706 = vmatpush.bf16.msra.mxu0 %v3446
    %3707 = vmatpush.bf16.msra.mxu0 %v3430
    %3708 = vmatpush.bf16.msra.mxu0 %v3414
    %3709 = vmatpush.bf16.msra.mxu0 %v3398
    %3710 = vmatmul.bf16.gmra.mxu0 %v2881
    %v3711 = vpop.f32.mrf.mxu0
    %v3712 = vadd.f32 0.0, %v3711
    %v3713 = vpop.f32.mrf.mxu0
    %3714 = vdwg.mxu0
    %3715 = vmatpush.bf16.msra.mxu0 %v3511
    %3716 = vmatpush.bf16.msra.mxu0 %v3495
    %3717 = vmatpush.bf16.msra.mxu0 %v3479
    %3718 = vmatpush.bf16.msra.mxu0 %v3463
    %3719 = vmatpush.bf16.msra.mxu0 %v3447
    %3720 = vmatpush.bf16.msra.mxu0 %v3431
    %3721 = vmatpush.bf16.msra.mxu0 %v3415
    %3722 = vmatpush.bf16.msra.mxu0 %v3399
    %3723 = vmatmul.bf16.gmra.mxu0 %v2881
    %v3724 = vpop.f32.mrf.mxu0
    %v3725 = vadd.f32 0.0, %v3724
    %v3726 = vpop.f32.mrf.mxu0
    %3727 = vdwg.mxu0
    %3728 = vmatpush.bf16.msra.mxu0 %v3512
    %3729 = vmatpush.bf16.msra.mxu0 %v3496
    %3730 = vmatpush.bf16.msra.mxu0 %v3480
    %3731 = vmatpush.bf16.msra.mxu0 %v3464
    %3732 = vmatpush.bf16.msra.mxu0 %v3448
    %3733 = vmatpush.bf16.msra.mxu0 %v3432
    %3734 = vmatpush.bf16.msra.mxu0 %v3416
    %3735 = vmatpush.bf16.msra.mxu0 %v3400
    %3736 = vmatmul.bf16.gmra.mxu0 %v2881
    %v3737 = vpop.f32.mrf.mxu0
    %v3738 = vadd.f32 0.0, %v3737
    %v3739 = vpop.f32.mrf.mxu0
    %3740 = vdwg.mxu0
    %3741 = vmatpush.bf16.msra.mxu0 %v3513
    %3742 = vmatpush.bf16.msra.mxu0 %v3497
    %3743 = vmatpush.bf16.msra.mxu0 %v3481
    %3744 = vmatpush.bf16.msra.mxu0 %v3465
    %3745 = vmatpush.bf16.msra.mxu0 %v3449
    %3746 = vmatpush.bf16.msra.mxu0 %v3433
    %3747 = vmatpush.bf16.msra.mxu0 %v3417
    %3748 = vmatpush.bf16.msra.mxu0 %v3401
    %3749 = vmatmul.bf16.gmra.mxu0 %v2881
    %v3750 = vpop.f32.mrf.mxu0
    %v3751 = vadd.f32 0.0, %v3750
    %v3752 = vpop.f32.mrf.mxu0
    %3753 = vdwg.mxu0
    %3754 = vmatpush.bf16.msra.mxu0 %v3514
    %3755 = vmatpush.bf16.msra.mxu0 %v3498
    %3756 = vmatpush.bf16.msra.mxu0 %v3482
    %3757 = vmatpush.bf16.msra.mxu0 %v3466
    %3758 = vmatpush.bf16.msra.mxu0 %v3450
    %3759 = vmatpush.bf16.msra.mxu0 %v3434
    %3760 = vmatpush.bf16.msra.mxu0 %v3418
    %3761 = vmatpush.bf16.msra.mxu0 %v3402
    %3762 = vmatmul.bf16.gmra.mxu0 %v2881
    %v3763 = vpop.f32.mrf.mxu0
    %v3764 = vadd.f32 0.0, %v3763
    %v3765 = vpop.f32.mrf.mxu0
    %3766 = vdwg.mxu0
    %3767 = vmatpush.bf16.msra.mxu0 %v3515
    %3768 = vmatpush.bf16.msra.mxu0 %v3499
    %3769 = vmatpush.bf16.msra.mxu0 %v3483
    %3770 = vmatpush.bf16.msra.mxu0 %v3467
    %3771 = vmatpush.bf16.msra.mxu0 %v3451
    %3772 = vmatpush.bf16.msra.mxu0 %v3435
    %3773 = vmatpush.bf16.msra.mxu0 %v3419
    %3774 = vmatpush.bf16.msra.mxu0 %v3403
    %3775 = vmatmul.bf16.gmra.mxu0 %v2881
    %v3776 = vpop.f32.mrf.mxu0
    %v3777 = vadd.f32 0.0, %v3776
    %v3778 = vpop.f32.mrf.mxu0
    %3779 = vdwg.mxu0
    %3780 = vmatpush.bf16.msra.mxu0 %v3516
    %3781 = vmatpush.bf16.msra.mxu0 %v3500
    %3782 = vmatpush.bf16.msra.mxu0 %v3484
    %3783 = vmatpush.bf16.msra.mxu0 %v3468
    %3784 = vmatpush.bf16.msra.mxu0 %v3452
    %3785 = vmatpush.bf16.msra.mxu0 %v3436
    %3786 = vmatpush.bf16.msra.mxu0 %v3420
    %3787 = vmatpush.bf16.msra.mxu0 %v3404
    %3788 = vmatmul.bf16.gmra.mxu0 %v2881
    %v3789 = vpop.f32.mrf.mxu0
    %v3790 = vadd.f32 0.0, %v3789
    %v3791 = vpop.f32.mrf.mxu0
    %3792 = vdwg.mxu0
    %3793 = vmatpush.bf16.msra.mxu0 %v3517
    %3794 = vmatpush.bf16.msra.mxu0 %v3501
    %3795 = vmatpush.bf16.msra.mxu0 %v3485
    %3796 = vmatpush.bf16.msra.mxu0 %v3469
    %3797 = vmatpush.bf16.msra.mxu0 %v3453
    %3798 = vmatpush.bf16.msra.mxu0 %v3437
    %3799 = vmatpush.bf16.msra.mxu0 %v3421
    %3800 = vmatpush.bf16.msra.mxu0 %v3405
    %3801 = vmatmul.bf16.gmra.mxu0 %v2881
    %v3802 = vpop.f32.mrf.mxu0
    %v3803 = vadd.f32 0.0, %v3802
    %v3804 = vpop.f32.mrf.mxu0
    %3805 = vdwg.mxu0
    %3806 = vmatpush.bf16.msra.mxu0 %v3518
    %3807 = vmatpush.bf16.msra.mxu0 %v3502
    %3808 = vmatpush.bf16.msra.mxu0 %v3486
    %3809 = vmatpush.bf16.msra.mxu0 %v3470
    %3810 = vmatpush.bf16.msra.mxu0 %v3454
    %3811 = vmatpush.bf16.msra.mxu0 %v3438
    %3812 = vmatpush.bf16.msra.mxu0 %v3422
    %3813 = vmatpush.bf16.msra.mxu0 %v3406
    %3814 = vmatmul.bf16.gmra.mxu0 %v2881
    %v3815 = vpop.f32.mrf.mxu0
    %v3816 = vadd.f32 0.0, %v3815
    %v3817 = vpop.f32.mrf.mxu0
    %3818 = vdwg.mxu0
    %3819 = vmatpush.bf16.msra.mxu0 %v3519
    %3820 = vmatpush.bf16.msra.mxu0 %v3503
    %3821 = vmatpush.bf16.msra.mxu0 %v3487
    %3822 = vmatpush.bf16.msra.mxu0 %v3471
    %3823 = vmatpush.bf16.msra.mxu0 %v3455
    %3824 = vmatpush.bf16.msra.mxu0 %v3439
    %3825 = vmatpush.bf16.msra.mxu0 %v3423
    %3826 = vmatpush.bf16.msra.mxu0 %v3407
    %3827 = vmatmul.bf16.gmra.mxu0 %v2881
    %v3828 = vpop.f32.mrf.mxu0
    %v3829 = vadd.f32 0.0, %v3828
    %v3830 = vpop.f32.mrf.mxu0
    %3831 = vdwg.mxu0
    %3832 = vmatpush.bf16.msra.mxu0 %v3520
    %3833 = vmatpush.bf16.msra.mxu0 %v3504
    %3834 = vmatpush.bf16.msra.mxu0 %v3488
    %3835 = vmatpush.bf16.msra.mxu0 %v3472
    %3836 = vmatpush.bf16.msra.mxu0 %v3456
    %3837 = vmatpush.bf16.msra.mxu0 %v3440
    %3838 = vmatpush.bf16.msra.mxu0 %v3424
    %3839 = vmatpush.bf16.msra.mxu0 %v3408
    %3840 = vmatmul.bf16.gmra.mxu0 %v2881
    %v3841 = vpop.f32.mrf.mxu0
    %v3842 = vadd.f32 0.0, %v3841
    %v3843 = vpop.f32.mrf.mxu0
    %3844 = vdwg.mxu0
    %3845 = vmatpush.bf16.msra.mxu0 %v3521
    %3846 = vmatpush.bf16.msra.mxu0 %v3505
    %3847 = vmatpush.bf16.msra.mxu0 %v3489
    %3848 = vmatpush.bf16.msra.mxu0 %v3473
    %3849 = vmatpush.bf16.msra.mxu0 %v3457
    %3850 = vmatpush.bf16.msra.mxu0 %v3441
    %3851 = vmatpush.bf16.msra.mxu0 %v3425
    %3852 = vmatpush.bf16.msra.mxu0 %v3409
    %3853 = vmatmul.bf16.gmra.mxu0 %v2881
    %v3854 = vpop.f32.mrf.mxu0
    %v3855 = vadd.f32 0.0, %v3854
    %v3856 = vpop.f32.mrf.mxu0
    %3857 = vdwg.mxu0
    %v4114 = vunpack.c.l.b16 %v2624
    %v4115 = vunpack.c.h.b16 %v2624
    %v4116 = vunpack.c.l.b16 %v2625
    %v4117 = vunpack.c.h.b16 %v2625
    %v4118 = vunpack.c.l.b16 %v2626
    %v4119 = vunpack.c.h.b16 %v2626
    %v4120 = vunpack.c.l.b16 %v2627
    %v4121 = vunpack.c.h.b16 %v2627
    %v4122 = vunpack.c.l.b16 %v2628
    %v4123 = vunpack.c.h.b16 %v2628
    %v4124 = vunpack.c.l.b16 %v2629
    %v4125 = vunpack.c.h.b16 %v2629
    %v4126 = vunpack.c.l.b16 %v2630
    %v4127 = vunpack.c.h.b16 %v2630
    %v4128 = vunpack.c.l.b16 %v2631
    %v4129 = vunpack.c.h.b16 %v2631
    %v4130 = vunpack.c.l.b16 %v2632
    %v4131 = vunpack.c.h.b16 %v2632
    %v4132 = vunpack.c.l.b16 %v2633
    %v4133 = vunpack.c.h.b16 %v2633
    %v4134 = vunpack.c.l.b16 %v2634
    %v4135 = vunpack.c.h.b16 %v2634
    %v4136 = vunpack.c.l.b16 %v2635
    %v4137 = vunpack.c.h.b16 %v2635
    %v4138 = vunpack.c.l.b16 %v2636
    %v4139 = vunpack.c.h.b16 %v2636
    %v4140 = vunpack.c.l.b16 %v2637
    %v4141 = vunpack.c.h.b16 %v2637
    %v4142 = vunpack.c.l.b16 %v2638
    %v4143 = vunpack.c.h.b16 %v2638
    %v4144 = vunpack.c.l.b16 %v2639
    %v4145 = vunpack.c.h.b16 %v2639
    %v4146 = vunpack.c.l.b16 %v2640
    %v4147 = vunpack.c.h.b16 %v2640
    %v4148 = vunpack.c.l.b16 %v2641
    %v4149 = vunpack.c.h.b16 %v2641
    %v4150 = vunpack.c.l.b16 %v2642
    %v4151 = vunpack.c.h.b16 %v2642
    %v4152 = vunpack.c.l.b16 %v2643
    %v4153 = vunpack.c.h.b16 %v2643
    %v4154 = vunpack.c.l.b16 %v2644
    %v4155 = vunpack.c.h.b16 %v2644
    %v4156 = vunpack.c.l.b16 %v2645
    %v4157 = vunpack.c.h.b16 %v2645
    %v4158 = vunpack.c.l.b16 %v2646
    %v4159 = vunpack.c.h.b16 %v2646
    %v4160 = vunpack.c.l.b16 %v2647
    %v4161 = vunpack.c.h.b16 %v2647
    %v4162 = vunpack.c.l.b16 %v2648
    %v4163 = vunpack.c.h.b16 %v2648
    %v4164 = vunpack.c.l.b16 %v2649
    %v4165 = vunpack.c.h.b16 %v2649
    %v4166 = vunpack.c.l.b16 %v2650
    %v4167 = vunpack.c.h.b16 %v2650
    %v4168 = vunpack.c.l.b16 %v2651
    %v4169 = vunpack.c.h.b16 %v2651
    %v4170 = vunpack.c.l.b16 %v2652
    %v4171 = vunpack.c.h.b16 %v2652
    %v4172 = vunpack.c.l.b16 %v2653
    %v4173 = vunpack.c.h.b16 %v2653
    %v4174 = vunpack.c.l.b16 %v2654
    %v4175 = vunpack.c.h.b16 %v2654
    %v4176 = vunpack.c.l.b16 %v2655
    %v4177 = vunpack.c.h.b16 %v2655
    %v4178 = vunpack.c.l.b16 %v2656
    %v4179 = vunpack.c.h.b16 %v2656
    %v4180 = vunpack.c.l.b16 %v2657
    %v4181 = vunpack.c.h.b16 %v2657
    %v4182 = vunpack.c.l.b16 %v2658
    %v4183 = vunpack.c.h.b16 %v2658
    %v4184 = vunpack.c.l.b16 %v2659
    %v4185 = vunpack.c.h.b16 %v2659
    %v4186 = vunpack.c.l.b16 %v2660
    %v4187 = vunpack.c.h.b16 %v2660
    %v4188 = vunpack.c.l.b16 %v2661
    %v4189 = vunpack.c.h.b16 %v2661
    %v4190 = vunpack.c.l.b16 %v2662
    %v4191 = vunpack.c.h.b16 %v2662
    %v4192 = vunpack.c.l.b16 %v2663
    %v4193 = vunpack.c.h.b16 %v2663
    %v4194 = vunpack.c.l.b16 %v2664
    %v4195 = vunpack.c.h.b16 %v2664
    %v4196 = vunpack.c.l.b16 %v2665
    %v4197 = vunpack.c.h.b16 %v2665
    %v4198 = vunpack.c.l.b16 %v2666
    %v4199 = vunpack.c.h.b16 %v2666
    %v4200 = vunpack.c.l.b16 %v2667
    %v4201 = vunpack.c.h.b16 %v2667
    %v4202 = vunpack.c.l.b16 %v2668
    %v4203 = vunpack.c.h.b16 %v2668
    %v4204 = vunpack.c.l.b16 %v2669
    %v4205 = vunpack.c.h.b16 %v2669
    %v4206 = vunpack.c.l.b16 %v2670
    %v4207 = vunpack.c.h.b16 %v2670
    %v4208 = vunpack.c.l.b16 %v2671
    %v4209 = vunpack.c.h.b16 %v2671
    %v4210 = vunpack.c.l.b16 %v2672
    %v4211 = vunpack.c.h.b16 %v2672
    %v4212 = vunpack.c.l.b16 %v2673
    %v4213 = vunpack.c.h.b16 %v2673
    %v4214 = vunpack.c.l.b16 %v2674
    %v4215 = vunpack.c.h.b16 %v2674
    %v4216 = vunpack.c.l.b16 %v2675
    %v4217 = vunpack.c.h.b16 %v2675
    %v4218 = vunpack.c.l.b16 %v2676
    %v4219 = vunpack.c.h.b16 %v2676
    %v4220 = vunpack.c.l.b16 %v2677
    %v4221 = vunpack.c.h.b16 %v2677
    %v4222 = vunpack.c.l.b16 %v2678
    %v4223 = vunpack.c.h.b16 %v2678
    %v4224 = vunpack.c.l.b16 %v2679
    %v4225 = vunpack.c.h.b16 %v2679
    %v4226 = vunpack.c.l.b16 %v2680
    %v4227 = vunpack.c.h.b16 %v2680
    %v4228 = vunpack.c.l.b16 %v2681
    %v4229 = vunpack.c.h.b16 %v2681
    %v4230 = vunpack.c.l.b16 %v2682
    %v4231 = vunpack.c.h.b16 %v2682
    %v4232 = vunpack.c.l.b16 %v2683
    %v4233 = vunpack.c.h.b16 %v2683
    %v4234 = vunpack.c.l.b16 %v2684
    %v4235 = vunpack.c.h.b16 %v2684
    %v4236 = vunpack.c.l.b16 %v2685
    %v4237 = vunpack.c.h.b16 %v2685
    %v4238 = vunpack.c.l.b16 %v2686
    %v4239 = vunpack.c.h.b16 %v2686
    %v4240 = vunpack.c.l.b16 %v2687
    %v4241 = vunpack.c.h.b16 %v2687
    %v4242 = vunpack.c.l.b16 %v2688
    %v4243 = vunpack.c.h.b16 %v2688
    %v4244 = vunpack.c.l.b16 %v2689
    %v4245 = vunpack.c.h.b16 %v2689
    %v4246 = vunpack.c.l.b16 %v2690
    %v4247 = vunpack.c.h.b16 %v2690
    %v4248 = vunpack.c.l.b16 %v2691
    %v4249 = vunpack.c.h.b16 %v2691
    %v4250 = vunpack.c.l.b16 %v2692
    %v4251 = vunpack.c.h.b16 %v2692
    %v4252 = vunpack.c.l.b16 %v2693
    %v4253 = vunpack.c.h.b16 %v2693
    %v4254 = vunpack.c.l.b16 %v2694
    %v4255 = vunpack.c.h.b16 %v2694
    %v4256 = vunpack.c.l.b16 %v2695
    %v4257 = vunpack.c.h.b16 %v2695
    %v4258 = vunpack.c.l.b16 %v2696
    %v4259 = vunpack.c.h.b16 %v2696
    %v4260 = vunpack.c.l.b16 %v2697
    %v4261 = vunpack.c.h.b16 %v2697
    %v4262 = vunpack.c.l.b16 %v2698
    %v4263 = vunpack.c.h.b16 %v2698
    %v4264 = vunpack.c.l.b16 %v2699
    %v4265 = vunpack.c.h.b16 %v2699
    %v4266 = vunpack.c.l.b16 %v2700
    %v4267 = vunpack.c.h.b16 %v2700
    %v4268 = vunpack.c.l.b16 %v2701
    %v4269 = vunpack.c.h.b16 %v2701
    %v4270 = vunpack.c.l.b16 %v2702
    %v4271 = vunpack.c.h.b16 %v2702
    %v4272 = vunpack.c.l.b16 %v2703
    %v4273 = vunpack.c.h.b16 %v2703
    %v4274 = vunpack.c.l.b16 %v2704
    %v4275 = vunpack.c.h.b16 %v2704
    %v4276 = vunpack.c.l.b16 %v2705
    %v4277 = vunpack.c.h.b16 %v2705
    %v4278 = vunpack.c.l.b16 %v2706
    %v4279 = vunpack.c.h.b16 %v2706
    %v4280 = vunpack.c.l.b16 %v2707
    %v4281 = vunpack.c.h.b16 %v2707
    %v4282 = vunpack.c.l.b16 %v2708
    %v4283 = vunpack.c.h.b16 %v2708
    %v4284 = vunpack.c.l.b16 %v2709
    %v4285 = vunpack.c.h.b16 %v2709
    %v4286 = vunpack.c.l.b16 %v2710
    %v4287 = vunpack.c.h.b16 %v2710
    %v4288 = vunpack.c.l.b16 %v2711
    %v4289 = vunpack.c.h.b16 %v2711
    %v4290 = vunpack.c.l.b16 %v2712
    %v4291 = vunpack.c.h.b16 %v2712
    %v4292 = vunpack.c.l.b16 %v2713
    %v4293 = vunpack.c.h.b16 %v2713
    %v4294 = vunpack.c.l.b16 %v2714
    %v4295 = vunpack.c.h.b16 %v2714
    %v4296 = vunpack.c.l.b16 %v2715
    %v4297 = vunpack.c.h.b16 %v2715
    %v4298 = vunpack.c.l.b16 %v2716
    %v4299 = vunpack.c.h.b16 %v2716
    %v4300 = vunpack.c.l.b16 %v2717
    %v4301 = vunpack.c.h.b16 %v2717
    %v4302 = vunpack.c.l.b16 %v2718
    %v4303 = vunpack.c.h.b16 %v2718
    %v4304 = vunpack.c.l.b16 %v2719
    %v4305 = vunpack.c.h.b16 %v2719
    %v4306 = vunpack.c.l.b16 %v2720
    %v4307 = vunpack.c.h.b16 %v2720
    %v4308 = vunpack.c.l.b16 %v2721
    %v4309 = vunpack.c.h.b16 %v2721
    %v4310 = vunpack.c.l.b16 %v2722
    %v4311 = vunpack.c.h.b16 %v2722
    %v4312 = vunpack.c.l.b16 %v2723
    %v4313 = vunpack.c.h.b16 %v2723
    %v4314 = vunpack.c.l.b16 %v2724
    %v4315 = vunpack.c.h.b16 %v2724
    %v4316 = vunpack.c.l.b16 %v2725
    %v4317 = vunpack.c.h.b16 %v2725
    %v4318 = vunpack.c.l.b16 %v2726
    %v4319 = vunpack.c.h.b16 %v2726
    %v4320 = vunpack.c.l.b16 %v2727
    %v4321 = vunpack.c.h.b16 %v2727
    %v4322 = vunpack.c.l.b16 %v2728
    %v4323 = vunpack.c.h.b16 %v2728
    %v4324 = vunpack.c.l.b16 %v2729
    %v4325 = vunpack.c.h.b16 %v2729
    %v4326 = vunpack.c.l.b16 %v2730
    %v4327 = vunpack.c.h.b16 %v2730
    %v4328 = vunpack.c.l.b16 %v2731
    %v4329 = vunpack.c.h.b16 %v2731
    %v4330 = vunpack.c.l.b16 %v2732
    %v4331 = vunpack.c.h.b16 %v2732
    %v4332 = vunpack.c.l.b16 %v2733
    %v4333 = vunpack.c.h.b16 %v2733
    %v4334 = vunpack.c.l.b16 %v2734
    %v4335 = vunpack.c.h.b16 %v2734
    %v4336 = vunpack.c.l.b16 %v2735
    %v4337 = vunpack.c.h.b16 %v2735
    %v4338 = vunpack.c.l.b16 %v2736
    %v4339 = vunpack.c.h.b16 %v2736
    %v4340 = vunpack.c.l.b16 %v2737
    %v4341 = vunpack.c.h.b16 %v2737
    %v4342 = vunpack.c.l.b16 %v2738
    %v4343 = vunpack.c.h.b16 %v2738
    %v4344 = vunpack.c.l.b16 %v2739
    %v4345 = vunpack.c.h.b16 %v2739
    %v4346 = vunpack.c.l.b16 %v2740
    %v4347 = vunpack.c.h.b16 %v2740
    %v4348 = vunpack.c.l.b16 %v2741
    %v4349 = vunpack.c.h.b16 %v2741
    %v4350 = vunpack.c.l.b16 %v2742
    %v4351 = vunpack.c.h.b16 %v2742
    %v4352 = vunpack.c.l.b16 %v2743
    %v4353 = vunpack.c.h.b16 %v2743
    %v4354 = vunpack.c.l.b16 %v2744
    %v4355 = vunpack.c.h.b16 %v2744
    %v4356 = vunpack.c.l.b16 %v2745
    %v4357 = vunpack.c.h.b16 %v2745
    %v4358 = vunpack.c.l.b16 %v2746
    %v4359 = vunpack.c.h.b16 %v2746
    %v4360 = vunpack.c.l.b16 %v2747
    %v4361 = vunpack.c.h.b16 %v2747
    %v4362 = vunpack.c.l.b16 %v2748
    %v4363 = vunpack.c.h.b16 %v2748
    %v4364 = vunpack.c.l.b16 %v2749
    %v4365 = vunpack.c.h.b16 %v2749
    %v4366 = vunpack.c.l.b16 %v2750
    %v4367 = vunpack.c.h.b16 %v2750
    %v4368 = vunpack.c.l.b16 %v2751
    %v4369 = vunpack.c.h.b16 %v2751
    %v4370 = vunpack.c.l.b16 %v2752
    %v4371 = vunpack.c.h.b16 %v2752
    %v4372 = vunpack.c.l.b16 %v2753
    %v4373 = vunpack.c.h.b16 %v2753
    %v4374 = vunpack.c.l.b16 %v2754
    %v4375 = vunpack.c.h.b16 %v2754
    %v4376 = vunpack.c.l.b16 %v2755
    %v4377 = vunpack.c.h.b16 %v2755
    %v4378 = vunpack.c.l.b16 %v2756
    %v4379 = vunpack.c.h.b16 %v2756
    %v4380 = vunpack.c.l.b16 %v2757
    %v4381 = vunpack.c.h.b16 %v2757
    %v4382 = vunpack.c.l.b16 %v2758
    %v4383 = vunpack.c.h.b16 %v2758
    %v4384 = vunpack.c.l.b16 %v2759
    %v4385 = vunpack.c.h.b16 %v2759
    %v4386 = vunpack.c.l.b16 %v2760
    %v4387 = vunpack.c.h.b16 %v2760
    %v4388 = vunpack.c.l.b16 %v2761
    %v4389 = vunpack.c.h.b16 %v2761
    %v4390 = vunpack.c.l.b16 %v2762
    %v4391 = vunpack.c.h.b16 %v2762
    %v4392 = vunpack.c.l.b16 %v2763
    %v4393 = vunpack.c.h.b16 %v2763
    %v4394 = vunpack.c.l.b16 %v2764
    %v4395 = vunpack.c.h.b16 %v2764
    %v4396 = vunpack.c.l.b16 %v2765
    %v4397 = vunpack.c.h.b16 %v2765
    %v4398 = vunpack.c.l.b16 %v2766
    %v4399 = vunpack.c.h.b16 %v2766
    %v4400 = vunpack.c.l.b16 %v2767
    %v4401 = vunpack.c.h.b16 %v2767
    %v4402 = vunpack.c.l.b16 %v2768
    %v4403 = vunpack.c.h.b16 %v2768
    %v4404 = vunpack.c.l.b16 %v2769
    %v4405 = vunpack.c.h.b16 %v2769
    %v4406 = vunpack.c.l.b16 %v2770
    %v4407 = vunpack.c.h.b16 %v2770
    %v4408 = vunpack.c.l.b16 %v2771
    %v4409 = vunpack.c.h.b16 %v2771
    %v4410 = vunpack.c.l.b16 %v2772
    %v4411 = vunpack.c.h.b16 %v2772
    %v4412 = vunpack.c.l.b16 %v2773
    %v4413 = vunpack.c.h.b16 %v2773
    %v4414 = vunpack.c.l.b16 %v2774
    %v4415 = vunpack.c.h.b16 %v2774
    %v4416 = vunpack.c.l.b16 %v2775
    %v4417 = vunpack.c.h.b16 %v2775
    %v4418 = vunpack.c.l.b16 %v2776
    %v4419 = vunpack.c.h.b16 %v2776
    %v4420 = vunpack.c.l.b16 %v2777
    %v4421 = vunpack.c.h.b16 %v2777
    %v4422 = vunpack.c.l.b16 %v2778
    %v4423 = vunpack.c.h.b16 %v2778
    %v4424 = vunpack.c.l.b16 %v2779
    %v4425 = vunpack.c.h.b16 %v2779
    %v4426 = vunpack.c.l.b16 %v2780
    %v4427 = vunpack.c.h.b16 %v2780
    %v4428 = vunpack.c.l.b16 %v2781
    %v4429 = vunpack.c.h.b16 %v2781
    %v4430 = vunpack.c.l.b16 %v2782
    %v4431 = vunpack.c.h.b16 %v2782
    %v4432 = vunpack.c.l.b16 %v2783
    %v4433 = vunpack.c.h.b16 %v2783
    %v4434 = vunpack.c.l.b16 %v2784
    %v4435 = vunpack.c.h.b16 %v2784
    %v4436 = vunpack.c.l.b16 %v2785
    %v4437 = vunpack.c.h.b16 %v2785
    %v4438 = vunpack.c.l.b16 %v2786
    %v4439 = vunpack.c.h.b16 %v2786
    %v4440 = vunpack.c.l.b16 %v2787
    %v4441 = vunpack.c.h.b16 %v2787
    %v4442 = vunpack.c.l.b16 %v2788
    %v4443 = vunpack.c.h.b16 %v2788
    %v4444 = vunpack.c.l.b16 %v2789
    %v4445 = vunpack.c.h.b16 %v2789
    %v4446 = vunpack.c.l.b16 %v2790
    %v4447 = vunpack.c.h.b16 %v2790
    %v4448 = vunpack.c.l.b16 %v2791
    %v4449 = vunpack.c.h.b16 %v2791
    %v4450 = vunpack.c.l.b16 %v2792
    %v4451 = vunpack.c.h.b16 %v2792
    %v4452 = vunpack.c.l.b16 %v2793
    %v4453 = vunpack.c.h.b16 %v2793
    %v4454 = vunpack.c.l.b16 %v2794
    %v4455 = vunpack.c.h.b16 %v2794
    %v4456 = vunpack.c.l.b16 %v2795
    %v4457 = vunpack.c.h.b16 %v2795
    %v4458 = vunpack.c.l.b16 %v2796
    %v4459 = vunpack.c.h.b16 %v2796
    %v4460 = vunpack.c.l.b16 %v2797
    %v4461 = vunpack.c.h.b16 %v2797
    %v4462 = vunpack.c.l.b16 %v2798
    %v4463 = vunpack.c.h.b16 %v2798
    %v4464 = vunpack.c.l.b16 %v2799
    %v4465 = vunpack.c.h.b16 %v2799
    %v4466 = vunpack.c.l.b16 %v2800
    %v4467 = vunpack.c.h.b16 %v2800
    %v4468 = vunpack.c.l.b16 %v2801
    %v4469 = vunpack.c.h.b16 %v2801
    %v4470 = vunpack.c.l.b16 %v2802
    %v4471 = vunpack.c.h.b16 %v2802
    %v4472 = vunpack.c.l.b16 %v2803
    %v4473 = vunpack.c.h.b16 %v2803
    %v4474 = vunpack.c.l.b16 %v2804
    %v4475 = vunpack.c.h.b16 %v2804
    %v4476 = vunpack.c.l.b16 %v2805
    %v4477 = vunpack.c.h.b16 %v2805
    %v4478 = vunpack.c.l.b16 %v2806
    %v4479 = vunpack.c.h.b16 %v2806
    %v4480 = vunpack.c.l.b16 %v2807
    %v4481 = vunpack.c.h.b16 %v2807
    %v4482 = vunpack.c.l.b16 %v2808
    %v4483 = vunpack.c.h.b16 %v2808
    %v4484 = vunpack.c.l.b16 %v2809
    %v4485 = vunpack.c.h.b16 %v2809
    %v4486 = vunpack.c.l.b16 %v2810
    %v4487 = vunpack.c.h.b16 %v2810
    %v4488 = vunpack.c.l.b16 %v2811
    %v4489 = vunpack.c.h.b16 %v2811
    %v4490 = vunpack.c.l.b16 %v2812
    %v4491 = vunpack.c.h.b16 %v2812
    %v4492 = vunpack.c.l.b16 %v2813
    %v4493 = vunpack.c.h.b16 %v2813
    %v4494 = vunpack.c.l.b16 %v2814
    %v4495 = vunpack.c.h.b16 %v2814
    %v4496 = vunpack.c.l.b16 %v2815
    %v4497 = vunpack.c.h.b16 %v2815
    %v4498 = vunpack.c.l.b16 %v2816
    %v4499 = vunpack.c.h.b16 %v2816
    %v4500 = vunpack.c.l.b16 %v2817
    %v4501 = vunpack.c.h.b16 %v2817
    %v4502 = vunpack.c.l.b16 %v2818
    %v4503 = vunpack.c.h.b16 %v2818
    %v4504 = vunpack.c.l.b16 %v2819
    %v4505 = vunpack.c.h.b16 %v2819
    %v4506 = vunpack.c.l.b16 %v2820
    %v4507 = vunpack.c.h.b16 %v2820
    %v4508 = vunpack.c.l.b16 %v2821
    %v4509 = vunpack.c.h.b16 %v2821
    %v4510 = vunpack.c.l.b16 %v2822
    %v4511 = vunpack.c.h.b16 %v2822
    %v4512 = vunpack.c.l.b16 %v2823
    %v4513 = vunpack.c.h.b16 %v2823
    %v4514 = vunpack.c.l.b16 %v2824
    %v4515 = vunpack.c.h.b16 %v2824
    %v4516 = vunpack.c.l.b16 %v2825
    %v4517 = vunpack.c.h.b16 %v2825
    %v4518 = vunpack.c.l.b16 %v2826
    %v4519 = vunpack.c.h.b16 %v2826
    %v4520 = vunpack.c.l.b16 %v2827
    %v4521 = vunpack.c.h.b16 %v2827
    %v4522 = vunpack.c.l.b16 %v2828
    %v4523 = vunpack.c.h.b16 %v2828
    %v4524 = vunpack.c.l.b16 %v2829
    %v4525 = vunpack.c.h.b16 %v2829
    %v4526 = vunpack.c.l.b16 %v2830
    %v4527 = vunpack.c.h.b16 %v2830
    %v4528 = vunpack.c.l.b16 %v2831
    %v4529 = vunpack.c.h.b16 %v2831
    %v4530 = vunpack.c.l.b16 %v2832
    %v4531 = vunpack.c.h.b16 %v2832
    %v4532 = vunpack.c.l.b16 %v2833
    %v4533 = vunpack.c.h.b16 %v2833
    %v4534 = vunpack.c.l.b16 %v2834
    %v4535 = vunpack.c.h.b16 %v2834
    %v4536 = vunpack.c.l.b16 %v2835
    %v4537 = vunpack.c.h.b16 %v2835
    %v4538 = vunpack.c.l.b16 %v2836
    %v4539 = vunpack.c.h.b16 %v2836
    %v4540 = vunpack.c.l.b16 %v2837
    %v4541 = vunpack.c.h.b16 %v2837
    %v4542 = vunpack.c.l.b16 %v2838
    %v4543 = vunpack.c.h.b16 %v2838
    %v4544 = vunpack.c.l.b16 %v2839
    %v4545 = vunpack.c.h.b16 %v2839
    %v4546 = vunpack.c.l.b16 %v2840
    %v4547 = vunpack.c.h.b16 %v2840
    %v4548 = vunpack.c.l.b16 %v2841
    %v4549 = vunpack.c.h.b16 %v2841
    %v4550 = vunpack.c.l.b16 %v2842
    %v4551 = vunpack.c.h.b16 %v2842
    %v4552 = vunpack.c.l.b16 %v2843
    %v4553 = vunpack.c.h.b16 %v2843
    %v4554 = vunpack.c.l.b16 %v2844
    %v4555 = vunpack.c.h.b16 %v2844
    %v4556 = vunpack.c.l.b16 %v2845
    %v4557 = vunpack.c.h.b16 %v2845
    %v4558 = vunpack.c.l.b16 %v2846
    %v4559 = vunpack.c.h.b16 %v2846
    %v4560 = vunpack.c.l.b16 %v2847
    %v4561 = vunpack.c.h.b16 %v2847
    %v4562 = vunpack.c.l.b16 %v2848
    %v4563 = vunpack.c.h.b16 %v2848
    %v4564 = vunpack.c.l.b16 %v2849
    %v4565 = vunpack.c.h.b16 %v2849
    %v4566 = vunpack.c.l.b16 %v2850
    %v4567 = vunpack.c.h.b16 %v2850
    %v4568 = vunpack.c.l.b16 %v2851
    %v4569 = vunpack.c.h.b16 %v2851
    %v4570 = vunpack.c.l.b16 %v2852
    %v4571 = vunpack.c.h.b16 %v2852
    %v4572 = vunpack.c.l.b16 %v2853
    %v4573 = vunpack.c.h.b16 %v2853
    %v4574 = vunpack.c.l.b16 %v2854
    %v4575 = vunpack.c.h.b16 %v2854
    %v4576 = vunpack.c.l.b16 %v2855
    %v4577 = vunpack.c.h.b16 %v2855
    %v4578 = vunpack.c.l.b16 %v2856
    %v4579 = vunpack.c.h.b16 %v2856
    %v4580 = vunpack.c.l.b16 %v2857
    %v4581 = vunpack.c.h.b16 %v2857
    %v4582 = vunpack.c.l.b16 %v2858
    %v4583 = vunpack.c.h.b16 %v2858
    %v4584 = vunpack.c.l.b16 %v2859
    %v4585 = vunpack.c.h.b16 %v2859
    %v4586 = vunpack.c.l.b16 %v2860
    %v4587 = vunpack.c.h.b16 %v2860
    %v4588 = vunpack.c.l.b16 %v2861
    %v4589 = vunpack.c.h.b16 %v2861
    %v4590 = vunpack.c.l.b16 %v2862
    %v4591 = vunpack.c.h.b16 %v2862
    %v4592 = vunpack.c.l.b16 %v2863
    %v4593 = vunpack.c.h.b16 %v2863
    %v4594 = vunpack.c.l.b16 %v2864
    %v4595 = vunpack.c.h.b16 %v2864
    %v4596 = vunpack.c.l.b16 %v2865
    %v4597 = vunpack.c.h.b16 %v2865
    %v4598 = vunpack.c.l.b16 %v2866
    %v4599 = vunpack.c.h.b16 %v2866
    %v4600 = vunpack.c.l.b16 %v2867
    %v4601 = vunpack.c.h.b16 %v2867
    %v4602 = vunpack.c.l.b16 %v2868
    %v4603 = vunpack.c.h.b16 %v2868
    %v4604 = vunpack.c.l.b16 %v2869
    %v4605 = vunpack.c.h.b16 %v2869
    %v4606 = vunpack.c.l.b16 %v2870
    %v4607 = vunpack.c.h.b16 %v2870
    %v4608 = vunpack.c.l.b16 %v2871
    %v4609 = vunpack.c.h.b16 %v2871
    %v4610 = vunpack.c.l.b16 %v2872
    %v4611 = vunpack.c.h.b16 %v2872
    %v4612 = vunpack.c.l.b16 %v2873
    %v4613 = vunpack.c.h.b16 %v2873
    %v4614 = vunpack.c.l.b16 %v2874
    %v4615 = vunpack.c.h.b16 %v2874
    %v4616 = vunpack.c.l.b16 %v2875
    %v4617 = vunpack.c.h.b16 %v2875
    %v4618 = vunpack.c.l.b16 %v2876
    %v4619 = vunpack.c.h.b16 %v2876
    %v4620 = vunpack.c.l.b16 %v2877
    %v4621 = vunpack.c.h.b16 %v2877
    %v4622 = vunpack.c.l.b16 %v2878
    %v4623 = vunpack.c.h.b16 %v2878
    %v4624 = vunpack.c.l.b16 %v2879
    %v4625 = vunpack.c.h.b16 %v2879
    %v4626 = vpack.c.b16 %v4130, %v4114
    %v4627 = vpack.c.b16 %v4131, %v4115
    %v4628 = vpack.c.b16 %v4132, %v4116
    %v4629 = vpack.c.b16 %v4133, %v4117
    %v4630 = vpack.c.b16 %v4134, %v4118
    %v4631 = vpack.c.b16 %v4135, %v4119
    %v4632 = vpack.c.b16 %v4136, %v4120
    %v4633 = vpack.c.b16 %v4137, %v4121
    %v4634 = vpack.c.b16 %v4138, %v4122
    %v4635 = vpack.c.b16 %v4139, %v4123
    %v4636 = vpack.c.b16 %v4140, %v4124
    %v4637 = vpack.c.b16 %v4141, %v4125
    %v4638 = vpack.c.b16 %v4142, %v4126
    %v4639 = vpack.c.b16 %v4143, %v4127
    %v4640 = vpack.c.b16 %v4144, %v4128
    %v4641 = vpack.c.b16 %v4145, %v4129
    %v4642 = vpack.c.b16 %v4162, %v4146
    %v4643 = vpack.c.b16 %v4163, %v4147
    %v4644 = vpack.c.b16 %v4164, %v4148
    %v4645 = vpack.c.b16 %v4165, %v4149
    %v4646 = vpack.c.b16 %v4166, %v4150
    %v4647 = vpack.c.b16 %v4167, %v4151
    %v4648 = vpack.c.b16 %v4168, %v4152
    %v4649 = vpack.c.b16 %v4169, %v4153
    %v4650 = vpack.c.b16 %v4170, %v4154
    %v4651 = vpack.c.b16 %v4171, %v4155
    %v4652 = vpack.c.b16 %v4172, %v4156
    %v4653 = vpack.c.b16 %v4173, %v4157
    %v4654 = vpack.c.b16 %v4174, %v4158
    %v4655 = vpack.c.b16 %v4175, %v4159
    %v4656 = vpack.c.b16 %v4176, %v4160
    %v4657 = vpack.c.b16 %v4177, %v4161
    %v4658 = vpack.c.b16 %v4194, %v4178
    %v4659 = vpack.c.b16 %v4195, %v4179
    %v4660 = vpack.c.b16 %v4196, %v4180
    %v4661 = vpack.c.b16 %v4197, %v4181
    %v4662 = vpack.c.b16 %v4198, %v4182
    %v4663 = vpack.c.b16 %v4199, %v4183
    %v4664 = vpack.c.b16 %v4200, %v4184
    %v4665 = vpack.c.b16 %v4201, %v4185
    %v4666 = vpack.c.b16 %v4202, %v4186
    %v4667 = vpack.c.b16 %v4203, %v4187
    %v4668 = vpack.c.b16 %v4204, %v4188
    %v4669 = vpack.c.b16 %v4205, %v4189
    %v4670 = vpack.c.b16 %v4206, %v4190
    %v4671 = vpack.c.b16 %v4207, %v4191
    %v4672 = vpack.c.b16 %v4208, %v4192
    %v4673 = vpack.c.b16 %v4209, %v4193
    %v4674 = vpack.c.b16 %v4226, %v4210
    %v4675 = vpack.c.b16 %v4227, %v4211
    %v4676 = vpack.c.b16 %v4228, %v4212
    %v4677 = vpack.c.b16 %v4229, %v4213
    %v4678 = vpack.c.b16 %v4230, %v4214
    %v4679 = vpack.c.b16 %v4231, %v4215
    %v4680 = vpack.c.b16 %v4232, %v4216
    %v4681 = vpack.c.b16 %v4233, %v4217
    %v4682 = vpack.c.b16 %v4234, %v4218
    %v4683 = vpack.c.b16 %v4235, %v4219
    %v4684 = vpack.c.b16 %v4236, %v4220
    %v4685 = vpack.c.b16 %v4237, %v4221
    %v4686 = vpack.c.b16 %v4238, %v4222
    %v4687 = vpack.c.b16 %v4239, %v4223
    %v4688 = vpack.c.b16 %v4240, %v4224
    %v4689 = vpack.c.b16 %v4241, %v4225
    %v4690 = vpack.c.b16 %v4258, %v4242
    %v4691 = vpack.c.b16 %v4259, %v4243
    %v4692 = vpack.c.b16 %v4260, %v4244
    %v4693 = vpack.c.b16 %v4261, %v4245
    %v4694 = vpack.c.b16 %v4262, %v4246
    %v4695 = vpack.c.b16 %v4263, %v4247
    %v4696 = vpack.c.b16 %v4264, %v4248
    %v4697 = vpack.c.b16 %v4265, %v4249
    %v4698 = vpack.c.b16 %v4266, %v4250
    %v4699 = vpack.c.b16 %v4267, %v4251
    %v4700 = vpack.c.b16 %v4268, %v4252
    %v4701 = vpack.c.b16 %v4269, %v4253
    %v4702 = vpack.c.b16 %v4270, %v4254
    %v4703 = vpack.c.b16 %v4271, %v4255
    %v4704 = vpack.c.b16 %v4272, %v4256
    %v4705 = vpack.c.b16 %v4273, %v4257
    %v4706 = vpack.c.b16 %v4290, %v4274
    %v4707 = vpack.c.b16 %v4291, %v4275
    %v4708 = vpack.c.b16 %v4292, %v4276
    %v4709 = vpack.c.b16 %v4293, %v4277
    %v4710 = vpack.c.b16 %v4294, %v4278
    %v4711 = vpack.c.b16 %v4295, %v4279
    %v4712 = vpack.c.b16 %v4296, %v4280
    %v4713 = vpack.c.b16 %v4297, %v4281
    %v4714 = vpack.c.b16 %v4298, %v4282
    %v4715 = vpack.c.b16 %v4299, %v4283
    %v4716 = vpack.c.b16 %v4300, %v4284
    %v4717 = vpack.c.b16 %v4301, %v4285
    %v4718 = vpack.c.b16 %v4302, %v4286
    %v4719 = vpack.c.b16 %v4303, %v4287
    %v4720 = vpack.c.b16 %v4304, %v4288
    %v4721 = vpack.c.b16 %v4305, %v4289
    %v4722 = vpack.c.b16 %v4322, %v4306
    %v4723 = vpack.c.b16 %v4323, %v4307
    %v4724 = vpack.c.b16 %v4324, %v4308
    %v4725 = vpack.c.b16 %v4325, %v4309
    %v4726 = vpack.c.b16 %v4326, %v4310
    %v4727 = vpack.c.b16 %v4327, %v4311
    %v4728 = vpack.c.b16 %v4328, %v4312
    %v4729 = vpack.c.b16 %v4329, %v4313
    %v4730 = vpack.c.b16 %v4330, %v4314
    %v4731 = vpack.c.b16 %v4331, %v4315
    %v4732 = vpack.c.b16 %v4332, %v4316
    %v4733 = vpack.c.b16 %v4333, %v4317
    %v4734 = vpack.c.b16 %v4334, %v4318
    %v4735 = vpack.c.b16 %v4335, %v4319
    %v4736 = vpack.c.b16 %v4336, %v4320
    %v4737 = vpack.c.b16 %v4337, %v4321
    %v4738 = vpack.c.b16 %v4354, %v4338
    %v4739 = vpack.c.b16 %v4355, %v4339
    %v4740 = vpack.c.b16 %v4356, %v4340
    %v4741 = vpack.c.b16 %v4357, %v4341
    %v4742 = vpack.c.b16 %v4358, %v4342
    %v4743 = vpack.c.b16 %v4359, %v4343
    %v4744 = vpack.c.b16 %v4360, %v4344
    %v4745 = vpack.c.b16 %v4361, %v4345
    %v4746 = vpack.c.b16 %v4362, %v4346
    %v4747 = vpack.c.b16 %v4363, %v4347
    %v4748 = vpack.c.b16 %v4364, %v4348
    %v4749 = vpack.c.b16 %v4365, %v4349
    %v4750 = vpack.c.b16 %v4366, %v4350
    %v4751 = vpack.c.b16 %v4367, %v4351
    %v4752 = vpack.c.b16 %v4368, %v4352
    %v4753 = vpack.c.b16 %v4369, %v4353
    %v4754 = vpack.c.b16 %v4386, %v4370
    %v4755 = vpack.c.b16 %v4387, %v4371
    %v4756 = vpack.c.b16 %v4388, %v4372
    %v4757 = vpack.c.b16 %v4389, %v4373
    %v4758 = vpack.c.b16 %v4390, %v4374
    %v4759 = vpack.c.b16 %v4391, %v4375
    %v4760 = vpack.c.b16 %v4392, %v4376
    %v4761 = vpack.c.b16 %v4393, %v4377
    %v4762 = vpack.c.b16 %v4394, %v4378
    %v4763 = vpack.c.b16 %v4395, %v4379
    %v4764 = vpack.c.b16 %v4396, %v4380
    %v4765 = vpack.c.b16 %v4397, %v4381
    %v4766 = vpack.c.b16 %v4398, %v4382
    %v4767 = vpack.c.b16 %v4399, %v4383
    %v4768 = vpack.c.b16 %v4400, %v4384
    %v4769 = vpack.c.b16 %v4401, %v4385
    %v4770 = vpack.c.b16 %v4418, %v4402
    %v4771 = vpack.c.b16 %v4419, %v4403
    %v4772 = vpack.c.b16 %v4420, %v4404
    %v4773 = vpack.c.b16 %v4421, %v4405
    %v4774 = vpack.c.b16 %v4422, %v4406
    %v4775 = vpack.c.b16 %v4423, %v4407
    %v4776 = vpack.c.b16 %v4424, %v4408
    %v4777 = vpack.c.b16 %v4425, %v4409
    %v4778 = vpack.c.b16 %v4426, %v4410
    %v4779 = vpack.c.b16 %v4427, %v4411
    %v4780 = vpack.c.b16 %v4428, %v4412
    %v4781 = vpack.c.b16 %v4429, %v4413
    %v4782 = vpack.c.b16 %v4430, %v4414
    %v4783 = vpack.c.b16 %v4431, %v4415
    %v4784 = vpack.c.b16 %v4432, %v4416
    %v4785 = vpack.c.b16 %v4433, %v4417
    %v4786 = vpack.c.b16 %v4450, %v4434
    %v4787 = vpack.c.b16 %v4451, %v4435
    %v4788 = vpack.c.b16 %v4452, %v4436
    %v4789 = vpack.c.b16 %v4453, %v4437
    %v4790 = vpack.c.b16 %v4454, %v4438
    %v4791 = vpack.c.b16 %v4455, %v4439
    %v4792 = vpack.c.b16 %v4456, %v4440
    %v4793 = vpack.c.b16 %v4457, %v4441
    %v4794 = vpack.c.b16 %v4458, %v4442
    %v4795 = vpack.c.b16 %v4459, %v4443
    %v4796 = vpack.c.b16 %v4460, %v4444
    %v4797 = vpack.c.b16 %v4461, %v4445
    %v4798 = vpack.c.b16 %v4462, %v4446
    %v4799 = vpack.c.b16 %v4463, %v4447
    %v4800 = vpack.c.b16 %v4464, %v4448
    %v4801 = vpack.c.b16 %v4465, %v4449
    %v4802 = vpack.c.b16 %v4482, %v4466
    %v4803 = vpack.c.b16 %v4483, %v4467
    %v4804 = vpack.c.b16 %v4484, %v4468
    %v4805 = vpack.c.b16 %v4485, %v4469
    %v4806 = vpack.c.b16 %v4486, %v4470
    %v4807 = vpack.c.b16 %v4487, %v4471
    %v4808 = vpack.c.b16 %v4488, %v4472
    %v4809 = vpack.c.b16 %v4489, %v4473
    %v4810 = vpack.c.b16 %v4490, %v4474
    %v4811 = vpack.c.b16 %v4491, %v4475
    %v4812 = vpack.c.b16 %v4492, %v4476
    %v4813 = vpack.c.b16 %v4493, %v4477
    %v4814 = vpack.c.b16 %v4494, %v4478
    %v4815 = vpack.c.b16 %v4495, %v4479
    %v4816 = vpack.c.b16 %v4496, %v4480
    %v4817 = vpack.c.b16 %v4497, %v4481
    %v4818 = vpack.c.b16 %v4514, %v4498
    %v4819 = vpack.c.b16 %v4515, %v4499
    %v4820 = vpack.c.b16 %v4516, %v4500
    %v4821 = vpack.c.b16 %v4517, %v4501
    %v4822 = vpack.c.b16 %v4518, %v4502
    %v4823 = vpack.c.b16 %v4519, %v4503
    %v4824 = vpack.c.b16 %v4520, %v4504
    %v4825 = vpack.c.b16 %v4521, %v4505
    %v4826 = vpack.c.b16 %v4522, %v4506
    %v4827 = vpack.c.b16 %v4523, %v4507
    %v4828 = vpack.c.b16 %v4524, %v4508
    %v4829 = vpack.c.b16 %v4525, %v4509
    %v4830 = vpack.c.b16 %v4526, %v4510
    %v4831 = vpack.c.b16 %v4527, %v4511
    %v4832 = vpack.c.b16 %v4528, %v4512
    %v4833 = vpack.c.b16 %v4529, %v4513
    %v4834 = vpack.c.b16 %v4546, %v4530
    %v4835 = vpack.c.b16 %v4547, %v4531
    %v4836 = vpack.c.b16 %v4548, %v4532
    %v4837 = vpack.c.b16 %v4549, %v4533
    %v4838 = vpack.c.b16 %v4550, %v4534
    %v4839 = vpack.c.b16 %v4551, %v4535
    %v4840 = vpack.c.b16 %v4552, %v4536
    %v4841 = vpack.c.b16 %v4553, %v4537
    %v4842 = vpack.c.b16 %v4554, %v4538
    %v4843 = vpack.c.b16 %v4555, %v4539
    %v4844 = vpack.c.b16 %v4556, %v4540
    %v4845 = vpack.c.b16 %v4557, %v4541
    %v4846 = vpack.c.b16 %v4558, %v4542
    %v4847 = vpack.c.b16 %v4559, %v4543
    %v4848 = vpack.c.b16 %v4560, %v4544
    %v4849 = vpack.c.b16 %v4561, %v4545
    %v4850 = vpack.c.b16 %v4578, %v4562
    %v4851 = vpack.c.b16 %v4579, %v4563
    %v4852 = vpack.c.b16 %v4580, %v4564
    %v4853 = vpack.c.b16 %v4581, %v4565
    %v4854 = vpack.c.b16 %v4582, %v4566
    %v4855 = vpack.c.b16 %v4583, %v4567
    %v4856 = vpack.c.b16 %v4584, %v4568
    %v4857 = vpack.c.b16 %v4585, %v4569
    %v4858 = vpack.c.b16 %v4586, %v4570
    %v4859 = vpack.c.b16 %v4587, %v4571
    %v4860 = vpack.c.b16 %v4588, %v4572
    %v4861 = vpack.c.b16 %v4589, %v4573
    %v4862 = vpack.c.b16 %v4590, %v4574
    %v4863 = vpack.c.b16 %v4591, %v4575
    %v4864 = vpack.c.b16 %v4592, %v4576
    %v4865 = vpack.c.b16 %v4593, %v4577
    %v4866 = vpack.c.b16 %v4610, %v4594
    %v4867 = vpack.c.b16 %v4611, %v4595
    %v4868 = vpack.c.b16 %v4612, %v4596
    %v4869 = vpack.c.b16 %v4613, %v4597
    %v4870 = vpack.c.b16 %v4614, %v4598
    %v4871 = vpack.c.b16 %v4615, %v4599
    %v4872 = vpack.c.b16 %v4616, %v4600
    %v4873 = vpack.c.b16 %v4617, %v4601
    %v4874 = vpack.c.b16 %v4618, %v4602
    %v4875 = vpack.c.b16 %v4619, %v4603
    %v4876 = vpack.c.b16 %v4620, %v4604
    %v4877 = vpack.c.b16 %v4621, %v4605
    %v4878 = vpack.c.b16 %v4622, %v4606
    %v4879 = vpack.c.b16 %v4623, %v4607
    %v4880 = vpack.c.b16 %v4624, %v4608
    %v4881 = vpack.c.b16 %v4625, %v4609
    %5138 = vmatpush.bf16.msra.mxu0 %v4738
    %5139 = vmatpush.bf16.msra.mxu0 %v4722
    %5140 = vmatpush.bf16.msra.mxu0 %v4706
    %5141 = vmatpush.bf16.msra.mxu0 %v4690
    %5142 = vmatpush.bf16.msra.mxu0 %v4674
    %5143 = vmatpush.bf16.msra.mxu0 %v4658
    %5144 = vmatpush.bf16.msra.mxu0 %v4642
    %5145 = vmatpush.bf16.msra.mxu0 %v4626
    %5146 = vmatmul.bf16.gmra.mxu0 %v2622
    %v5147 = vpop.f32.mrf.mxu0
    %v5148 = vadd.f32 %v3660, %v5147
    %v5149 = vpop.f32.mrf.mxu0
    %5150 = vdwg.mxu0
    %5151 = vmatpush.bf16.msra.mxu0 %v4866
    %5152 = vmatpush.bf16.msra.mxu0 %v4850
    %5153 = vmatpush.bf16.msra.mxu0 %v4834
    %5154 = vmatpush.bf16.msra.mxu0 %v4818
    %5155 = vmatpush.bf16.msra.mxu0 %v4802
    %5156 = vmatpush.bf16.msra.mxu0 %v4786
    %5157 = vmatpush.bf16.msra.mxu0 %v4770
    %5158 = vmatpush.bf16.msra.mxu0 %v4754
    %5159 = vmatmul.bf16.gmra.mxu0 %v2623
    %v5160 = vpop.f32.mrf.mxu0
    %v5161 = vadd.f32 %v5148, %v5160
    %v5162 = vpop.f32.mrf.mxu0
    %5163 = vdwg.mxu0
    %5164 = vmatpush.bf16.msra.mxu0 %v4739
    %5165 = vmatpush.bf16.msra.mxu0 %v4723
    %5166 = vmatpush.bf16.msra.mxu0 %v4707
    %5167 = vmatpush.bf16.msra.mxu0 %v4691
    %5168 = vmatpush.bf16.msra.mxu0 %v4675
    %5169 = vmatpush.bf16.msra.mxu0 %v4659
    %5170 = vmatpush.bf16.msra.mxu0 %v4643
    %5171 = vmatpush.bf16.msra.mxu0 %v4627
    %5172 = vmatmul.bf16.gmra.mxu0 %v2622
    %v5173 = vpop.f32.mrf.mxu0
    %v5174 = vadd.f32 %v3673, %v5173
    %v5175 = vpop.f32.mrf.mxu0
    %5176 = vdwg.mxu0
    %5177 = vmatpush.bf16.msra.mxu0 %v4867
    %5178 = vmatpush.bf16.msra.mxu0 %v4851
    %5179 = vmatpush.bf16.msra.mxu0 %v4835
    %5180 = vmatpush.bf16.msra.mxu0 %v4819
    %5181 = vmatpush.bf16.msra.mxu0 %v4803
    %5182 = vmatpush.bf16.msra.mxu0 %v4787
    %5183 = vmatpush.bf16.msra.mxu0 %v4771
    %5184 = vmatpush.bf16.msra.mxu0 %v4755
    %5185 = vmatmul.bf16.gmra.mxu0 %v2623
    %v5186 = vpop.f32.mrf.mxu0
    %v5187 = vadd.f32 %v5174, %v5186
    %v5188 = vpop.f32.mrf.mxu0
    %5189 = vdwg.mxu0
    %5190 = vmatpush.bf16.msra.mxu0 %v4740
    %5191 = vmatpush.bf16.msra.mxu0 %v4724
    %5192 = vmatpush.bf16.msra.mxu0 %v4708
    %5193 = vmatpush.bf16.msra.mxu0 %v4692
    %5194 = vmatpush.bf16.msra.mxu0 %v4676
    %5195 = vmatpush.bf16.msra.mxu0 %v4660
    %5196 = vmatpush.bf16.msra.mxu0 %v4644
    %5197 = vmatpush.bf16.msra.mxu0 %v4628
    %5198 = vmatmul.bf16.gmra.mxu0 %v2622
    %v5199 = vpop.f32.mrf.mxu0
    %v5200 = vadd.f32 %v3686, %v5199
    %v5201 = vpop.f32.mrf.mxu0
    %5202 = vdwg.mxu0
    %5203 = vmatpush.bf16.msra.mxu0 %v4868
    %5204 = vmatpush.bf16.msra.mxu0 %v4852
    %5205 = vmatpush.bf16.msra.mxu0 %v4836
    %5206 = vmatpush.bf16.msra.mxu0 %v4820
    %5207 = vmatpush.bf16.msra.mxu0 %v4804
    %5208 = vmatpush.bf16.msra.mxu0 %v4788
    %5209 = vmatpush.bf16.msra.mxu0 %v4772
    %5210 = vmatpush.bf16.msra.mxu0 %v4756
    %5211 = vmatmul.bf16.gmra.mxu0 %v2623
    %v5212 = vpop.f32.mrf.mxu0
    %v5213 = vadd.f32 %v5200, %v5212
    %v5214 = vpop.f32.mrf.mxu0
    %5215 = vdwg.mxu0
    %5216 = vmatpush.bf16.msra.mxu0 %v4741
    %5217 = vmatpush.bf16.msra.mxu0 %v4725
    %5218 = vmatpush.bf16.msra.mxu0 %v4709
    %5219 = vmatpush.bf16.msra.mxu0 %v4693
    %5220 = vmatpush.bf16.msra.mxu0 %v4677
    %5221 = vmatpush.bf16.msra.mxu0 %v4661
    %5222 = vmatpush.bf16.msra.mxu0 %v4645
    %5223 = vmatpush.bf16.msra.mxu0 %v4629
    %5224 = vmatmul.bf16.gmra.mxu0 %v2622
    %v5225 = vpop.f32.mrf.mxu0
    %v5226 = vadd.f32 %v3699, %v5225
    %v5227 = vpop.f32.mrf.mxu0
    %5228 = vdwg.mxu0
    %5229 = vmatpush.bf16.msra.mxu0 %v4869
    %5230 = vmatpush.bf16.msra.mxu0 %v4853
    %5231 = vmatpush.bf16.msra.mxu0 %v4837
    %5232 = vmatpush.bf16.msra.mxu0 %v4821
    %5233 = vmatpush.bf16.msra.mxu0 %v4805
    %5234 = vmatpush.bf16.msra.mxu0 %v4789
    %5235 = vmatpush.bf16.msra.mxu0 %v4773
    %5236 = vmatpush.bf16.msra.mxu0 %v4757
    %5237 = vmatmul.bf16.gmra.mxu0 %v2623
    %v5238 = vpop.f32.mrf.mxu0
    %v5239 = vadd.f32 %v5226, %v5238
    %v5240 = vpop.f32.mrf.mxu0
    %5241 = vdwg.mxu0
    %5242 = vmatpush.bf16.msra.mxu0 %v4742
    %5243 = vmatpush.bf16.msra.mxu0 %v4726
    %5244 = vmatpush.bf16.msra.mxu0 %v4710
    %5245 = vmatpush.bf16.msra.mxu0 %v4694
    %5246 = vmatpush.bf16.msra.mxu0 %v4678
    %5247 = vmatpush.bf16.msra.mxu0 %v4662
    %5248 = vmatpush.bf16.msra.mxu0 %v4646
    %5249 = vmatpush.bf16.msra.mxu0 %v4630
    %5250 = vmatmul.bf16.gmra.mxu0 %v2622
    %v5251 = vpop.f32.mrf.mxu0
    %v5252 = vadd.f32 %v3712, %v5251
    %v5253 = vpop.f32.mrf.mxu0
    %5254 = vdwg.mxu0
    %5255 = vmatpush.bf16.msra.mxu0 %v4870
    %5256 = vmatpush.bf16.msra.mxu0 %v4854
    %5257 = vmatpush.bf16.msra.mxu0 %v4838
    %5258 = vmatpush.bf16.msra.mxu0 %v4822
    %5259 = vmatpush.bf16.msra.mxu0 %v4806
    %5260 = vmatpush.bf16.msra.mxu0 %v4790
    %5261 = vmatpush.bf16.msra.mxu0 %v4774
    %5262 = vmatpush.bf16.msra.mxu0 %v4758
    %5263 = vmatmul.bf16.gmra.mxu0 %v2623
    %v5264 = vpop.f32.mrf.mxu0
    %v5265 = vadd.f32 %v5252, %v5264
    %v5266 = vpop.f32.mrf.mxu0
    %5267 = vdwg.mxu0
    %5268 = vmatpush.bf16.msra.mxu0 %v4743
    %5269 = vmatpush.bf16.msra.mxu0 %v4727
    %5270 = vmatpush.bf16.msra.mxu0 %v4711
    %5271 = vmatpush.bf16.msra.mxu0 %v4695
    %5272 = vmatpush.bf16.msra.mxu0 %v4679
    %5273 = vmatpush.bf16.msra.mxu0 %v4663
    %5274 = vmatpush.bf16.msra.mxu0 %v4647
    %5275 = vmatpush.bf16.msra.mxu0 %v4631
    %5276 = vmatmul.bf16.gmra.mxu0 %v2622
    %v5277 = vpop.f32.mrf.mxu0
    %v5278 = vadd.f32 %v3725, %v5277
    %v5279 = vpop.f32.mrf.mxu0
    %5280 = vdwg.mxu0
    %5281 = vmatpush.bf16.msra.mxu0 %v4871
    %5282 = vmatpush.bf16.msra.mxu0 %v4855
    %5283 = vmatpush.bf16.msra.mxu0 %v4839
    %5284 = vmatpush.bf16.msra.mxu0 %v4823
    %5285 = vmatpush.bf16.msra.mxu0 %v4807
    %5286 = vmatpush.bf16.msra.mxu0 %v4791
    %5287 = vmatpush.bf16.msra.mxu0 %v4775
    %5288 = vmatpush.bf16.msra.mxu0 %v4759
    %5289 = vmatmul.bf16.gmra.mxu0 %v2623
    %v5290 = vpop.f32.mrf.mxu0
    %v5291 = vadd.f32 %v5278, %v5290
    %v5292 = vpop.f32.mrf.mxu0
    %5293 = vdwg.mxu0
    %5294 = vmatpush.bf16.msra.mxu0 %v4744
    %5295 = vmatpush.bf16.msra.mxu0 %v4728
    %5296 = vmatpush.bf16.msra.mxu0 %v4712
    %5297 = vmatpush.bf16.msra.mxu0 %v4696
    %5298 = vmatpush.bf16.msra.mxu0 %v4680
    %5299 = vmatpush.bf16.msra.mxu0 %v4664
    %5300 = vmatpush.bf16.msra.mxu0 %v4648
    %5301 = vmatpush.bf16.msra.mxu0 %v4632
    %5302 = vmatmul.bf16.gmra.mxu0 %v2622
    %v5303 = vpop.f32.mrf.mxu0
    %v5304 = vadd.f32 %v3738, %v5303
    %v5305 = vpop.f32.mrf.mxu0
    %5306 = vdwg.mxu0
    %5307 = vmatpush.bf16.msra.mxu0 %v4872
    %5308 = vmatpush.bf16.msra.mxu0 %v4856
    %5309 = vmatpush.bf16.msra.mxu0 %v4840
    %5310 = vmatpush.bf16.msra.mxu0 %v4824
    %5311 = vmatpush.bf16.msra.mxu0 %v4808
    %5312 = vmatpush.bf16.msra.mxu0 %v4792
    %5313 = vmatpush.bf16.msra.mxu0 %v4776
    %5314 = vmatpush.bf16.msra.mxu0 %v4760
    %5315 = vmatmul.bf16.gmra.mxu0 %v2623
    %v5316 = vpop.f32.mrf.mxu0
    %v5317 = vadd.f32 %v5304, %v5316
    %v5318 = vpop.f32.mrf.mxu0
    %5319 = vdwg.mxu0
    %5320 = vmatpush.bf16.msra.mxu0 %v4745
    %5321 = vmatpush.bf16.msra.mxu0 %v4729
    %5322 = vmatpush.bf16.msra.mxu0 %v4713
    %5323 = vmatpush.bf16.msra.mxu0 %v4697
    %5324 = vmatpush.bf16.msra.mxu0 %v4681
    %5325 = vmatpush.bf16.msra.mxu0 %v4665
    %5326 = vmatpush.bf16.msra.mxu0 %v4649
    %5327 = vmatpush.bf16.msra.mxu0 %v4633
    %5328 = vmatmul.bf16.gmra.mxu0 %v2622
    %v5329 = vpop.f32.mrf.mxu0
    %v5330 = vadd.f32 %v3751, %v5329
    %v5331 = vpop.f32.mrf.mxu0
    %5332 = vdwg.mxu0
    %5333 = vmatpush.bf16.msra.mxu0 %v4873
    %5334 = vmatpush.bf16.msra.mxu0 %v4857
    %5335 = vmatpush.bf16.msra.mxu0 %v4841
    %5336 = vmatpush.bf16.msra.mxu0 %v4825
    %5337 = vmatpush.bf16.msra.mxu0 %v4809
    %5338 = vmatpush.bf16.msra.mxu0 %v4793
    %5339 = vmatpush.bf16.msra.mxu0 %v4777
    %5340 = vmatpush.bf16.msra.mxu0 %v4761
    %5341 = vmatmul.bf16.gmra.mxu0 %v2623
    %v5342 = vpop.f32.mrf.mxu0
    %v5343 = vadd.f32 %v5330, %v5342
    %v5344 = vpop.f32.mrf.mxu0
    %5345 = vdwg.mxu0
    %5346 = vmatpush.bf16.msra.mxu0 %v4746
    %5347 = vmatpush.bf16.msra.mxu0 %v4730
    %5348 = vmatpush.bf16.msra.mxu0 %v4714
    %5349 = vmatpush.bf16.msra.mxu0 %v4698
    %5350 = vmatpush.bf16.msra.mxu0 %v4682
    %5351 = vmatpush.bf16.msra.mxu0 %v4666
    %5352 = vmatpush.bf16.msra.mxu0 %v4650
    %5353 = vmatpush.bf16.msra.mxu0 %v4634
    %5354 = vmatmul.bf16.gmra.mxu0 %v2622
    %v5355 = vpop.f32.mrf.mxu0
    %v5356 = vadd.f32 %v3764, %v5355
    %v5357 = vpop.f32.mrf.mxu0
    %5358 = vdwg.mxu0
    %5359 = vmatpush.bf16.msra.mxu0 %v4874
    %5360 = vmatpush.bf16.msra.mxu0 %v4858
    %5361 = vmatpush.bf16.msra.mxu0 %v4842
    %5362 = vmatpush.bf16.msra.mxu0 %v4826
    %5363 = vmatpush.bf16.msra.mxu0 %v4810
    %5364 = vmatpush.bf16.msra.mxu0 %v4794
    %5365 = vmatpush.bf16.msra.mxu0 %v4778
    %5366 = vmatpush.bf16.msra.mxu0 %v4762
    %5367 = vmatmul.bf16.gmra.mxu0 %v2623
    %v5368 = vpop.f32.mrf.mxu0
    %v5369 = vadd.f32 %v5356, %v5368
    %v5370 = vpop.f32.mrf.mxu0
    %5371 = vdwg.mxu0
    %5372 = vmatpush.bf16.msra.mxu0 %v4747
    %5373 = vmatpush.bf16.msra.mxu0 %v4731
    %5374 = vmatpush.bf16.msra.mxu0 %v4715
    %5375 = vmatpush.bf16.msra.mxu0 %v4699
    %5376 = vmatpush.bf16.msra.mxu0 %v4683
    %5377 = vmatpush.bf16.msra.mxu0 %v4667
    %5378 = vmatpush.bf16.msra.mxu0 %v4651
    %5379 = vmatpush.bf16.msra.mxu0 %v4635
    %5380 = vmatmul.bf16.gmra.mxu0 %v2622
    %v5381 = vpop.f32.mrf.mxu0
    %v5382 = vadd.f32 %v3777, %v5381
    %v5383 = vpop.f32.mrf.mxu0
    %5384 = vdwg.mxu0
    %5385 = vmatpush.bf16.msra.mxu0 %v4875
    %5386 = vmatpush.bf16.msra.mxu0 %v4859
    %5387 = vmatpush.bf16.msra.mxu0 %v4843
    %5388 = vmatpush.bf16.msra.mxu0 %v4827
    %5389 = vmatpush.bf16.msra.mxu0 %v4811
    %5390 = vmatpush.bf16.msra.mxu0 %v4795
    %5391 = vmatpush.bf16.msra.mxu0 %v4779
    %5392 = vmatpush.bf16.msra.mxu0 %v4763
    %5393 = vmatmul.bf16.gmra.mxu0 %v2623
    %v5394 = vpop.f32.mrf.mxu0
    %v5395 = vadd.f32 %v5382, %v5394
    %v5396 = vpop.f32.mrf.mxu0
    %5397 = vdwg.mxu0
    %5398 = vmatpush.bf16.msra.mxu0 %v4748
    %5399 = vmatpush.bf16.msra.mxu0 %v4732
    %5400 = vmatpush.bf16.msra.mxu0 %v4716
    %5401 = vmatpush.bf16.msra.mxu0 %v4700
    %5402 = vmatpush.bf16.msra.mxu0 %v4684
    %5403 = vmatpush.bf16.msra.mxu0 %v4668
    %5404 = vmatpush.bf16.msra.mxu0 %v4652
    %5405 = vmatpush.bf16.msra.mxu0 %v4636
    %5406 = vmatmul.bf16.gmra.mxu0 %v2622
    %v5407 = vpop.f32.mrf.mxu0
    %v5408 = vadd.f32 %v3790, %v5407
    %v5409 = vpop.f32.mrf.mxu0
    %5410 = vdwg.mxu0
    %5411 = vmatpush.bf16.msra.mxu0 %v4876
    %5412 = vmatpush.bf16.msra.mxu0 %v4860
    %5413 = vmatpush.bf16.msra.mxu0 %v4844
    %5414 = vmatpush.bf16.msra.mxu0 %v4828
    %5415 = vmatpush.bf16.msra.mxu0 %v4812
    %5416 = vmatpush.bf16.msra.mxu0 %v4796
    %5417 = vmatpush.bf16.msra.mxu0 %v4780
    %5418 = vmatpush.bf16.msra.mxu0 %v4764
    %5419 = vmatmul.bf16.gmra.mxu0 %v2623
    %v5420 = vpop.f32.mrf.mxu0
    %v5421 = vadd.f32 %v5408, %v5420
    %v5422 = vpop.f32.mrf.mxu0
    %5423 = vdwg.mxu0
    %5424 = vmatpush.bf16.msra.mxu0 %v4749
    %5425 = vmatpush.bf16.msra.mxu0 %v4733
    %5426 = vmatpush.bf16.msra.mxu0 %v4717
    %5427 = vmatpush.bf16.msra.mxu0 %v4701
    %5428 = vmatpush.bf16.msra.mxu0 %v4685
    %5429 = vmatpush.bf16.msra.mxu0 %v4669
    %5430 = vmatpush.bf16.msra.mxu0 %v4653
    %5431 = vmatpush.bf16.msra.mxu0 %v4637
    %5432 = vmatmul.bf16.gmra.mxu0 %v2622
    %v5433 = vpop.f32.mrf.mxu0
    %v5434 = vadd.f32 %v3803, %v5433
    %v5435 = vpop.f32.mrf.mxu0
    %5436 = vdwg.mxu0
    %5437 = vmatpush.bf16.msra.mxu0 %v4877
    %5438 = vmatpush.bf16.msra.mxu0 %v4861
    %5439 = vmatpush.bf16.msra.mxu0 %v4845
    %5440 = vmatpush.bf16.msra.mxu0 %v4829
    %5441 = vmatpush.bf16.msra.mxu0 %v4813
    %5442 = vmatpush.bf16.msra.mxu0 %v4797
    %5443 = vmatpush.bf16.msra.mxu0 %v4781
    %5444 = vmatpush.bf16.msra.mxu0 %v4765
    %5445 = vmatmul.bf16.gmra.mxu0 %v2623
    %v5446 = vpop.f32.mrf.mxu0
    %v5447 = vadd.f32 %v5434, %v5446
    %v5448 = vpop.f32.mrf.mxu0
    %5449 = vdwg.mxu0
    %5450 = vmatpush.bf16.msra.mxu0 %v4750
    %5451 = vmatpush.bf16.msra.mxu0 %v4734
    %5452 = vmatpush.bf16.msra.mxu0 %v4718
    %5453 = vmatpush.bf16.msra.mxu0 %v4702
    %5454 = vmatpush.bf16.msra.mxu0 %v4686
    %5455 = vmatpush.bf16.msra.mxu0 %v4670
    %5456 = vmatpush.bf16.msra.mxu0 %v4654
    %5457 = vmatpush.bf16.msra.mxu0 %v4638
    %5458 = vmatmul.bf16.gmra.mxu0 %v2622
    %v5459 = vpop.f32.mrf.mxu0
    %v5460 = vadd.f32 %v3816, %v5459
    %v5461 = vpop.f32.mrf.mxu0
    %5462 = vdwg.mxu0
    %5463 = vmatpush.bf16.msra.mxu0 %v4878
    %5464 = vmatpush.bf16.msra.mxu0 %v4862
    %5465 = vmatpush.bf16.msra.mxu0 %v4846
    %5466 = vmatpush.bf16.msra.mxu0 %v4830
    %5467 = vmatpush.bf16.msra.mxu0 %v4814
    %5468 = vmatpush.bf16.msra.mxu0 %v4798
    %5469 = vmatpush.bf16.msra.mxu0 %v4782
    %5470 = vmatpush.bf16.msra.mxu0 %v4766
    %5471 = vmatmul.bf16.gmra.mxu0 %v2623
    %v5472 = vpop.f32.mrf.mxu0
    %v5473 = vadd.f32 %v5460, %v5472
    %v5474 = vpop.f32.mrf.mxu0
    %5475 = vdwg.mxu0
    %5476 = vmatpush.bf16.msra.mxu0 %v4751
    %5477 = vmatpush.bf16.msra.mxu0 %v4735
    %5478 = vmatpush.bf16.msra.mxu0 %v4719
    %5479 = vmatpush.bf16.msra.mxu0 %v4703
    %5480 = vmatpush.bf16.msra.mxu0 %v4687
    %5481 = vmatpush.bf16.msra.mxu0 %v4671
    %5482 = vmatpush.bf16.msra.mxu0 %v4655
    %5483 = vmatpush.bf16.msra.mxu0 %v4639
    %5484 = vmatmul.bf16.gmra.mxu0 %v2622
    %v5485 = vpop.f32.mrf.mxu0
    %v5486 = vadd.f32 %v3829, %v5485
    %v5487 = vpop.f32.mrf.mxu0
    %5488 = vdwg.mxu0
    %5489 = vmatpush.bf16.msra.mxu0 %v4879
    %5490 = vmatpush.bf16.msra.mxu0 %v4863
    %5491 = vmatpush.bf16.msra.mxu0 %v4847
    %5492 = vmatpush.bf16.msra.mxu0 %v4831
    %5493 = vmatpush.bf16.msra.mxu0 %v4815
    %5494 = vmatpush.bf16.msra.mxu0 %v4799
    %5495 = vmatpush.bf16.msra.mxu0 %v4783
    %5496 = vmatpush.bf16.msra.mxu0 %v4767
    %5497 = vmatmul.bf16.gmra.mxu0 %v2623
    %v5498 = vpop.f32.mrf.mxu0
    %v5499 = vadd.f32 %v5486, %v5498
    %v5500 = vpop.f32.mrf.mxu0
    %5501 = vdwg.mxu0
    %5502 = vmatpush.bf16.msra.mxu0 %v4752
    %5503 = vmatpush.bf16.msra.mxu0 %v4736
    %5504 = vmatpush.bf16.msra.mxu0 %v4720
    %5505 = vmatpush.bf16.msra.mxu0 %v4704
    %5506 = vmatpush.bf16.msra.mxu0 %v4688
    %5507 = vmatpush.bf16.msra.mxu0 %v4672
    %5508 = vmatpush.bf16.msra.mxu0 %v4656
    %5509 = vmatpush.bf16.msra.mxu0 %v4640
    %5510 = vmatmul.bf16.gmra.mxu0 %v2622
    %v5511 = vpop.f32.mrf.mxu0
    %v5512 = vadd.f32 %v3842, %v5511
    %v5513 = vpop.f32.mrf.mxu0
    %5514 = vdwg.mxu0
    %5515 = vmatpush.bf16.msra.mxu0 %v4880
    %5516 = vmatpush.bf16.msra.mxu0 %v4864
    %5517 = vmatpush.bf16.msra.mxu0 %v4848
    %5518 = vmatpush.bf16.msra.mxu0 %v4832
    %5519 = vmatpush.bf16.msra.mxu0 %v4816
    %5520 = vmatpush.bf16.msra.mxu0 %v4800
    %5521 = vmatpush.bf16.msra.mxu0 %v4784
    %5522 = vmatpush.bf16.msra.mxu0 %v4768
    %5523 = vmatmul.bf16.gmra.mxu0 %v2623
    %v5524 = vpop.f32.mrf.mxu0
    %v5525 = vadd.f32 %v5512, %v5524
    %v5526 = vpop.f32.mrf.mxu0
    %5527 = vdwg.mxu0
    %5528 = vmatpush.bf16.msra.mxu0 %v4753
    %5529 = vmatpush.bf16.msra.mxu0 %v4737
    %5530 = vmatpush.bf16.msra.mxu0 %v4721
    %5531 = vmatpush.bf16.msra.mxu0 %v4705
    %5532 = vmatpush.bf16.msra.mxu0 %v4689
    %5533 = vmatpush.bf16.msra.mxu0 %v4673
    %5534 = vmatpush.bf16.msra.mxu0 %v4657
    %5535 = vmatpush.bf16.msra.mxu0 %v4641
    %5536 = vmatmul.bf16.gmra.mxu0 %v2622
    %v5537 = vpop.f32.mrf.mxu0
    %v5538 = vadd.f32 %v3855, %v5537
    %v5539 = vpop.f32.mrf.mxu0
    %5540 = vdwg.mxu0
    %5541 = vmatpush.bf16.msra.mxu0 %v4881
    %5542 = vmatpush.bf16.msra.mxu0 %v4865
    %5543 = vmatpush.bf16.msra.mxu0 %v4849
    %5544 = vmatpush.bf16.msra.mxu0 %v4833
    %5545 = vmatpush.bf16.msra.mxu0 %v4817
    %5546 = vmatpush.bf16.msra.mxu0 %v4801
    %5547 = vmatpush.bf16.msra.mxu0 %v4785
    %5548 = vmatpush.bf16.msra.mxu0 %v4769
    %5549 = vmatmul.bf16.gmra.mxu0 %v2623
    %v5550 = vpop.f32.mrf.mxu0
    %v5551 = vadd.f32 %v5538, %v5550
    %v5552 = vpop.f32.mrf.mxu0
    %5553 = vdwg.mxu0
    %v5554 = vld [vmem:[#allocation16] sm:$0xff]
    %v5555 = vld [vmem:[#allocation16 + $0x8] sm:$0xff]
    %v5558 = vperm.slane %v5554, 0
    %v5559 = vperm.slane %v5554, 1
    %v5560 = vperm.slane %v5554, 2
    %v5561 = vperm.slane %v5554, 3
    %v5562 = vperm.slane %v5554, 4
    %v5563 = vperm.slane %v5554, 5
    %v5564 = vperm.slane %v5554, 6
    %v5565 = vperm.slane %v5554, 7
    %v5566 = vperm.slane %v5555, 0
    %v5567 = vperm.slane %v5555, 1
    %v5568 = vperm.slane %v5555, 2
    %v5569 = vperm.slane %v5555, 3
    %v5570 = vperm.slane %v5555, 4
    %v5571 = vperm.slane %v5555, 5
    %v5572 = vperm.slane %v5555, 6
    %v5573 = vperm.slane %v5555, 7
    %v5590 = vadd.f32 %v5161, %v5558
    %v5591 = vadd.f32 %v5187, %v5559
    %v5592 = vadd.f32 %v5213, %v5560
    %v5593 = vadd.f32 %v5239, %v5561
    %v5594 = vadd.f32 %v5265, %v5562
    %v5595 = vadd.f32 %v5291, %v5563
    %v5596 = vadd.f32 %v5317, %v5564
    %v5597 = vadd.f32 %v5343, %v5565
    %v5598 = vadd.f32 %v5369, %v5566
    %v5599 = vadd.f32 %v5395, %v5567
    %v5600 = vadd.f32 %v5421, %v5568
    %v5601 = vadd.f32 %v5447, %v5569
    %v5602 = vadd.f32 %v5473, %v5570
    %v5603 = vadd.f32 %v5499, %v5571
    %v5604 = vadd.f32 %v5525, %v5572
    %v5605 = vadd.f32 %v5551, %v5573
    %v5606 = vpack.c.bf16 %v5591, %v5590
    %v5607 = vpack.c.bf16 %v5593, %v5592
    %v5608 = vpack.c.bf16 %v5595, %v5594
    %v5609 = vpack.c.bf16 %v5597, %v5596
    %v5610 = vpack.c.bf16 %v5599, %v5598
    %v5611 = vpack.c.bf16 %v5601, %v5600
    %v5612 = vpack.c.bf16 %v5603, %v5602
    %v5613 = vpack.c.bf16 %v5605, %v5604
    %v5614 = vunpack.c.l.bf16 %v5606
    %v5615 = vunpack.c.h.bf16 %v5606
    %v5616 = vunpack.c.l.bf16 %v5607
    %v5617 = vunpack.c.h.bf16 %v5607
    %v5618 = vunpack.c.l.bf16 %v5608
    %v5619 = vunpack.c.h.bf16 %v5608
    %v5620 = vunpack.c.l.bf16 %v5609
    %v5621 = vunpack.c.h.bf16 %v5609
    %v5622 = vunpack.c.l.bf16 %v5610
    %v5623 = vunpack.c.h.bf16 %v5610
    %v5624 = vunpack.c.l.bf16 %v5611
    %v5625 = vunpack.c.h.bf16 %v5611
    %v5626 = vunpack.c.l.bf16 %v5612
    %v5627 = vunpack.c.h.bf16 %v5612
    %v5628 = vunpack.c.l.bf16 %v5613
    %v5629 = vunpack.c.h.bf16 %v5613
    %v5630 = vmax.f32 %v5614, 0.0
    %v5631 = vmax.f32 %v5615, 0.0
    %v5632 = vmax.f32 %v5616, 0.0
    %v5633 = vmax.f32 %v5617, 0.0
    %v5634 = vmax.f32 %v5618, 0.0
    %v5635 = vmax.f32 %v5619, 0.0
    %v5636 = vmax.f32 %v5620, 0.0
    %v5637 = vmax.f32 %v5621, 0.0
    %v5638 = vmax.f32 %v5622, 0.0
    %v5639 = vmax.f32 %v5623, 0.0
    %v5640 = vmax.f32 %v5624, 0.0
    %v5641 = vmax.f32 %v5625, 0.0
    %v5642 = vmax.f32 %v5626, 0.0
    %v5643 = vmax.f32 %v5627, 0.0
    %v5644 = vmax.f32 %v5628, 0.0
    %v5645 = vmax.f32 %v5629, 0.0
    %v5646 = vpack.c.bf16 %v5630, %v5630
    %v5647 = vpack.c.bf16 %v5631, %v5631
    %v5648 = vpack.c.bf16 %v5632, %v5632
    %v5649 = vpack.c.bf16 %v5633, %v5633
    %v5650 = vpack.c.bf16 %v5634, %v5634
    %v5651 = vpack.c.bf16 %v5635, %v5635
    %v5652 = vpack.c.bf16 %v5636, %v5636
    %v5653 = vpack.c.bf16 %v5637, %v5637
    %v5654 = vpack.c.bf16 %v5638, %v5638
    %v5655 = vpack.c.bf16 %v5639, %v5639
    %v5656 = vpack.c.bf16 %v5640, %v5640
    %v5657 = vpack.c.bf16 %v5641, %v5641
    %v5658 = vpack.c.bf16 %v5642, %v5642
    %v5659 = vpack.c.bf16 %v5643, %v5643
    %v5660 = vpack.c.bf16 %v5644, %v5644
    %v5661 = vpack.c.bf16 %v5645, %v5645
    %v5662 = vld [vmem:[#allocation17] sm:$0xff]
    %v5663 = vld [vmem:[#allocation17 + $0x8] sm:$0xff]
    %v5664 = vld [vmem:[#allocation17 + $0x10] sm:$0xff]
    %v5665 = vld [vmem:[#allocation17 + $0x18] sm:$0xff]
    %v5666 = vld [vmem:[#allocation17 + $0x20] sm:$0xff]
    %v5667 = vld [vmem:[#allocation17 + $0x28] sm:$0xff]
    %v5668 = vld [vmem:[#allocation17 + $0x30] sm:$0xff]
    %v5669 = vld [vmem:[#allocation17 + $0x38] sm:$0xff]
    %v5670 = vld [vmem:[#allocation17 + $0x40] sm:$0xff]
    %v5671 = vld [vmem:[#allocation17 + $0x48] sm:$0xff]
    %v5672 = vld [vmem:[#allocation17 + $0x50] sm:$0xff]
    %v5673 = vld [vmem:[#allocation17 + $0x58] sm:$0xff]
    %v5674 = vld [vmem:[#allocation17 + $0x60] sm:$0xff]
    %v5675 = vld [vmem:[#allocation17 + $0x68] sm:$0xff]
    %v5676 = vld [vmem:[#allocation17 + $0x70] sm:$0xff]
    %v5677 = vld [vmem:[#allocation17 + $0x78] sm:$0xff]
    %v5678 = vld [vmem:[#allocation17 + $0x80] sm:$0xff]
    %v5679 = vld [vmem:[#allocation17 + $0x88] sm:$0xff]
    %v5680 = vld [vmem:[#allocation17 + $0x90] sm:$0xff]
    %v5681 = vld [vmem:[#allocation17 + $0x98] sm:$0xff]
    %v5682 = vld [vmem:[#allocation17 + $0xa0] sm:$0xff]
    %v5683 = vld [vmem:[#allocation17 + $0xa8] sm:$0xff]
    %v5684 = vld [vmem:[#allocation17 + $0xb0] sm:$0xff]
    %v5685 = vld [vmem:[#allocation17 + $0xb8] sm:$0xff]
    %v5686 = vld [vmem:[#allocation17 + $0xc0] sm:$0xff]
    %v5687 = vld [vmem:[#allocation17 + $0xc8] sm:$0xff]
    %v5688 = vld [vmem:[#allocation17 + $0xd0] sm:$0xff]
    %v5689 = vld [vmem:[#allocation17 + $0xd8] sm:$0xff]
    %v5690 = vld [vmem:[#allocation17 + $0xe0] sm:$0xff]
    %v5691 = vld [vmem:[#allocation17 + $0xe8] sm:$0xff]
    %v5692 = vld [vmem:[#allocation17 + $0xf0] sm:$0xff]
    %v5693 = vld [vmem:[#allocation17 + $0xf8] sm:$0xff]
    %v5694 = vld [vmem:[#allocation17 + $0x100] sm:$0xff]
    %v5695 = vld [vmem:[#allocation17 + $0x108] sm:$0xff]
    %v5696 = vld [vmem:[#allocation17 + $0x110] sm:$0xff]
    %v5697 = vld [vmem:[#allocation17 + $0x118] sm:$0xff]
    %v5698 = vld [vmem:[#allocation17 + $0x120] sm:$0xff]
    %v5699 = vld [vmem:[#allocation17 + $0x128] sm:$0xff]
    %v5700 = vld [vmem:[#allocation17 + $0x130] sm:$0xff]
    %v5701 = vld [vmem:[#allocation17 + $0x138] sm:$0xff]
    %v5702 = vld [vmem:[#allocation17 + $0x140] sm:$0xff]
    %v5703 = vld [vmem:[#allocation17 + $0x148] sm:$0xff]
    %v5704 = vld [vmem:[#allocation17 + $0x150] sm:$0xff]
    %v5705 = vld [vmem:[#allocation17 + $0x158] sm:$0xff]
    %v5706 = vld [vmem:[#allocation17 + $0x160] sm:$0xff]
    %v5707 = vld [vmem:[#allocation17 + $0x168] sm:$0xff]
    %v5708 = vld [vmem:[#allocation17 + $0x170] sm:$0xff]
    %v5709 = vld [vmem:[#allocation17 + $0x178] sm:$0xff]
    %v5710 = vld [vmem:[#allocation17 + $0x180] sm:$0xff]
    %v5711 = vld [vmem:[#allocation17 + $0x188] sm:$0xff]
    %v5712 = vld [vmem:[#allocation17 + $0x190] sm:$0xff]
    %v5713 = vld [vmem:[#allocation17 + $0x198] sm:$0xff]
    %v5714 = vld [vmem:[#allocation17 + $0x1a0] sm:$0xff]
    %v5715 = vld [vmem:[#allocation17 + $0x1a8] sm:$0xff]
    %v5716 = vld [vmem:[#allocation17 + $0x1b0] sm:$0xff]
    %v5717 = vld [vmem:[#allocation17 + $0x1b8] sm:$0xff]
    %v5718 = vld [vmem:[#allocation17 + $0x1c0] sm:$0xff]
    %v5719 = vld [vmem:[#allocation17 + $0x1c8] sm:$0xff]
    %v5720 = vld [vmem:[#allocation17 + $0x1d0] sm:$0xff]
    %v5721 = vld [vmem:[#allocation17 + $0x1d8] sm:$0xff]
    %v5722 = vld [vmem:[#allocation17 + $0x1e0] sm:$0xff]
    %v5723 = vld [vmem:[#allocation17 + $0x1e8] sm:$0xff]
    %v5724 = vld [vmem:[#allocation17 + $0x1f0] sm:$0xff]
    %v5725 = vld [vmem:[#allocation17 + $0x1f8] sm:$0xff]
    %v5726 = vld [vmem:[#allocation17 + $0x200] sm:$0xff]
    %v5727 = vld [vmem:[#allocation17 + $0x208] sm:$0xff]
    %v5728 = vld [vmem:[#allocation17 + $0x210] sm:$0xff]
    %v5729 = vld [vmem:[#allocation17 + $0x218] sm:$0xff]
    %v5730 = vld [vmem:[#allocation17 + $0x220] sm:$0xff]
    %v5731 = vld [vmem:[#allocation17 + $0x228] sm:$0xff]
    %v5732 = vld [vmem:[#allocation17 + $0x230] sm:$0xff]
    %v5733 = vld [vmem:[#allocation17 + $0x238] sm:$0xff]
    %v5734 = vld [vmem:[#allocation17 + $0x240] sm:$0xff]
    %v5735 = vld [vmem:[#allocation17 + $0x248] sm:$0xff]
    %v5736 = vld [vmem:[#allocation17 + $0x250] sm:$0xff]
    %v5737 = vld [vmem:[#allocation17 + $0x258] sm:$0xff]
    %v5738 = vld [vmem:[#allocation17 + $0x260] sm:$0xff]
    %v5739 = vld [vmem:[#allocation17 + $0x268] sm:$0xff]
    %v5740 = vld [vmem:[#allocation17 + $0x270] sm:$0xff]
    %v5741 = vld [vmem:[#allocation17 + $0x278] sm:$0xff]
    %v5742 = vld [vmem:[#allocation17 + $0x280] sm:$0xff]
    %v5743 = vld [vmem:[#allocation17 + $0x288] sm:$0xff]
    %v5744 = vld [vmem:[#allocation17 + $0x290] sm:$0xff]
    %v5745 = vld [vmem:[#allocation17 + $0x298] sm:$0xff]
    %v5746 = vld [vmem:[#allocation17 + $0x2a0] sm:$0xff]
    %v5747 = vld [vmem:[#allocation17 + $0x2a8] sm:$0xff]
    %v5748 = vld [vmem:[#allocation17 + $0x2b0] sm:$0xff]
    %v5749 = vld [vmem:[#allocation17 + $0x2b8] sm:$0xff]
    %v5750 = vld [vmem:[#allocation17 + $0x2c0] sm:$0xff]
    %v5751 = vld [vmem:[#allocation17 + $0x2c8] sm:$0xff]
    %v5752 = vld [vmem:[#allocation17 + $0x2d0] sm:$0xff]
    %v5753 = vld [vmem:[#allocation17 + $0x2d8] sm:$0xff]
    %v5754 = vld [vmem:[#allocation17 + $0x2e0] sm:$0xff]
    %v5755 = vld [vmem:[#allocation17 + $0x2e8] sm:$0xff]
    %v5756 = vld [vmem:[#allocation17 + $0x2f0] sm:$0xff]
    %v5757 = vld [vmem:[#allocation17 + $0x2f8] sm:$0xff]
    %v5758 = vld [vmem:[#allocation17 + $0x300] sm:$0xff]
    %v5759 = vld [vmem:[#allocation17 + $0x308] sm:$0xff]
    %v5760 = vld [vmem:[#allocation17 + $0x310] sm:$0xff]
    %v5761 = vld [vmem:[#allocation17 + $0x318] sm:$0xff]
    %v5762 = vld [vmem:[#allocation17 + $0x320] sm:$0xff]
    %v5763 = vld [vmem:[#allocation17 + $0x328] sm:$0xff]
    %v5764 = vld [vmem:[#allocation17 + $0x330] sm:$0xff]
    %v5765 = vld [vmem:[#allocation17 + $0x338] sm:$0xff]
    %v5766 = vld [vmem:[#allocation17 + $0x340] sm:$0xff]
    %v5767 = vld [vmem:[#allocation17 + $0x348] sm:$0xff]
    %v5768 = vld [vmem:[#allocation17 + $0x350] sm:$0xff]
    %v5769 = vld [vmem:[#allocation17 + $0x358] sm:$0xff]
    %v5770 = vld [vmem:[#allocation17 + $0x360] sm:$0xff]
    %v5771 = vld [vmem:[#allocation17 + $0x368] sm:$0xff]
    %v5772 = vld [vmem:[#allocation17 + $0x370] sm:$0xff]
    %v5773 = vld [vmem:[#allocation17 + $0x378] sm:$0xff]
    %v5774 = vld [vmem:[#allocation17 + $0x380] sm:$0xff]
    %v5775 = vld [vmem:[#allocation17 + $0x388] sm:$0xff]
    %v5776 = vld [vmem:[#allocation17 + $0x390] sm:$0xff]
    %v5777 = vld [vmem:[#allocation17 + $0x398] sm:$0xff]
    %v5778 = vld [vmem:[#allocation17 + $0x3a0] sm:$0xff]
    %v5779 = vld [vmem:[#allocation17 + $0x3a8] sm:$0xff]
    %v5780 = vld [vmem:[#allocation17 + $0x3b0] sm:$0xff]
    %v5781 = vld [vmem:[#allocation17 + $0x3b8] sm:$0xff]
    %v5782 = vld [vmem:[#allocation17 + $0x3c0] sm:$0xff]
    %v5783 = vld [vmem:[#allocation17 + $0x3c8] sm:$0xff]
    %v5784 = vld [vmem:[#allocation17 + $0x3d0] sm:$0xff]
    %v5785 = vld [vmem:[#allocation17 + $0x3d8] sm:$0xff]
    %v5786 = vld [vmem:[#allocation17 + $0x3e0] sm:$0xff]
    %v5787 = vld [vmem:[#allocation17 + $0x3e8] sm:$0xff]
    %v5788 = vld [vmem:[#allocation17 + $0x3f0] sm:$0xff]
    %v5789 = vld [vmem:[#allocation17 + $0x3f8] sm:$0xff]
    %v5790 = vld [vmem:[#allocation17 + $0x400] sm:$0xff]
    %v5791 = vld [vmem:[#allocation17 + $0x408] sm:$0xff]
    %v5792 = vld [vmem:[#allocation17 + $0x410] sm:$0xff]
    %v5793 = vld [vmem:[#allocation17 + $0x418] sm:$0xff]
    %v5794 = vld [vmem:[#allocation17 + $0x420] sm:$0xff]
    %v5795 = vld [vmem:[#allocation17 + $0x428] sm:$0xff]
    %v5796 = vld [vmem:[#allocation17 + $0x430] sm:$0xff]
    %v5797 = vld [vmem:[#allocation17 + $0x438] sm:$0xff]
    %v5798 = vld [vmem:[#allocation17 + $0x440] sm:$0xff]
    %v5799 = vld [vmem:[#allocation17 + $0x448] sm:$0xff]
    %v5800 = vld [vmem:[#allocation17 + $0x450] sm:$0xff]
    %v5801 = vld [vmem:[#allocation17 + $0x458] sm:$0xff]
    %v5802 = vld [vmem:[#allocation17 + $0x460] sm:$0xff]
    %v5803 = vld [vmem:[#allocation17 + $0x468] sm:$0xff]
    %v5804 = vld [vmem:[#allocation17 + $0x470] sm:$0xff]
    %v5805 = vld [vmem:[#allocation17 + $0x478] sm:$0xff]
    %v5806 = vld [vmem:[#allocation17 + $0x480] sm:$0xff]
    %v5807 = vld [vmem:[#allocation17 + $0x488] sm:$0xff]
    %v5808 = vld [vmem:[#allocation17 + $0x490] sm:$0xff]
    %v5809 = vld [vmem:[#allocation17 + $0x498] sm:$0xff]
    %v5810 = vld [vmem:[#allocation17 + $0x4a0] sm:$0xff]
    %v5811 = vld [vmem:[#allocation17 + $0x4a8] sm:$0xff]
    %v5812 = vld [vmem:[#allocation17 + $0x4b0] sm:$0xff]
    %v5813 = vld [vmem:[#allocation17 + $0x4b8] sm:$0xff]
    %v5814 = vld [vmem:[#allocation17 + $0x4c0] sm:$0xff]
    %v5815 = vld [vmem:[#allocation17 + $0x4c8] sm:$0xff]
    %v5816 = vld [vmem:[#allocation17 + $0x4d0] sm:$0xff]
    %v5817 = vld [vmem:[#allocation17 + $0x4d8] sm:$0xff]
    %v5818 = vld [vmem:[#allocation17 + $0x4e0] sm:$0xff]
    %v5819 = vld [vmem:[#allocation17 + $0x4e8] sm:$0xff]
    %v5820 = vld [vmem:[#allocation17 + $0x4f0] sm:$0xff]
    %v5821 = vld [vmem:[#allocation17 + $0x4f8] sm:$0xff]
    %v5822 = vld [vmem:[#allocation17 + $0x500] sm:$0xff]
    %v5823 = vld [vmem:[#allocation17 + $0x508] sm:$0xff]
    %v5824 = vld [vmem:[#allocation17 + $0x510] sm:$0xff]
    %v5825 = vld [vmem:[#allocation17 + $0x518] sm:$0xff]
    %v5826 = vld [vmem:[#allocation17 + $0x520] sm:$0xff]
    %v5827 = vld [vmem:[#allocation17 + $0x528] sm:$0xff]
    %v5828 = vld [vmem:[#allocation17 + $0x530] sm:$0xff]
    %v5829 = vld [vmem:[#allocation17 + $0x538] sm:$0xff]
    %v5830 = vld [vmem:[#allocation17 + $0x540] sm:$0xff]
    %v5831 = vld [vmem:[#allocation17 + $0x548] sm:$0xff]
    %v5832 = vld [vmem:[#allocation17 + $0x550] sm:$0xff]
    %v5833 = vld [vmem:[#allocation17 + $0x558] sm:$0xff]
    %v5834 = vld [vmem:[#allocation17 + $0x560] sm:$0xff]
    %v5835 = vld [vmem:[#allocation17 + $0x568] sm:$0xff]
    %v5836 = vld [vmem:[#allocation17 + $0x570] sm:$0xff]
    %v5837 = vld [vmem:[#allocation17 + $0x578] sm:$0xff]
    %v5838 = vld [vmem:[#allocation17 + $0x580] sm:$0xff]
    %v5839 = vld [vmem:[#allocation17 + $0x588] sm:$0xff]
    %v5840 = vld [vmem:[#allocation17 + $0x590] sm:$0xff]
    %v5841 = vld [vmem:[#allocation17 + $0x598] sm:$0xff]
    %v5842 = vld [vmem:[#allocation17 + $0x5a0] sm:$0xff]
    %v5843 = vld [vmem:[#allocation17 + $0x5a8] sm:$0xff]
    %v5844 = vld [vmem:[#allocation17 + $0x5b0] sm:$0xff]
    %v5845 = vld [vmem:[#allocation17 + $0x5b8] sm:$0xff]
    %v5846 = vld [vmem:[#allocation17 + $0x5c0] sm:$0xff]
    %v5847 = vld [vmem:[#allocation17 + $0x5c8] sm:$0xff]
    %v5848 = vld [vmem:[#allocation17 + $0x5d0] sm:$0xff]
    %v5849 = vld [vmem:[#allocation17 + $0x5d8] sm:$0xff]
    %v5850 = vld [vmem:[#allocation17 + $0x5e0] sm:$0xff]
    %v5851 = vld [vmem:[#allocation17 + $0x5e8] sm:$0xff]
    %v5852 = vld [vmem:[#allocation17 + $0x5f0] sm:$0xff]
    %v5853 = vld [vmem:[#allocation17 + $0x5f8] sm:$0xff]
    %v5854 = vld [vmem:[#allocation17 + $0x600] sm:$0xff]
    %v5855 = vld [vmem:[#allocation17 + $0x608] sm:$0xff]
    %v5856 = vld [vmem:[#allocation17 + $0x610] sm:$0xff]
    %v5857 = vld [vmem:[#allocation17 + $0x618] sm:$0xff]
    %v5858 = vld [vmem:[#allocation17 + $0x620] sm:$0xff]
    %v5859 = vld [vmem:[#allocation17 + $0x628] sm:$0xff]
    %v5860 = vld [vmem:[#allocation17 + $0x630] sm:$0xff]
    %v5861 = vld [vmem:[#allocation17 + $0x638] sm:$0xff]
    %v5862 = vld [vmem:[#allocation17 + $0x640] sm:$0xff]
    %v5863 = vld [vmem:[#allocation17 + $0x648] sm:$0xff]
    %v5864 = vld [vmem:[#allocation17 + $0x650] sm:$0xff]
    %v5865 = vld [vmem:[#allocation17 + $0x658] sm:$0xff]
    %v5866 = vld [vmem:[#allocation17 + $0x660] sm:$0xff]
    %v5867 = vld [vmem:[#allocation17 + $0x668] sm:$0xff]
    %v5868 = vld [vmem:[#allocation17 + $0x670] sm:$0xff]
    %v5869 = vld [vmem:[#allocation17 + $0x678] sm:$0xff]
    %v5870 = vld [vmem:[#allocation17 + $0x680] sm:$0xff]
    %v5871 = vld [vmem:[#allocation17 + $0x688] sm:$0xff]
    %v5872 = vld [vmem:[#allocation17 + $0x690] sm:$0xff]
    %v5873 = vld [vmem:[#allocation17 + $0x698] sm:$0xff]
    %v5874 = vld [vmem:[#allocation17 + $0x6a0] sm:$0xff]
    %v5875 = vld [vmem:[#allocation17 + $0x6a8] sm:$0xff]
    %v5876 = vld [vmem:[#allocation17 + $0x6b0] sm:$0xff]
    %v5877 = vld [vmem:[#allocation17 + $0x6b8] sm:$0xff]
    %v5878 = vld [vmem:[#allocation17 + $0x6c0] sm:$0xff]
    %v5879 = vld [vmem:[#allocation17 + $0x6c8] sm:$0xff]
    %v5880 = vld [vmem:[#allocation17 + $0x6d0] sm:$0xff]
    %v5881 = vld [vmem:[#allocation17 + $0x6d8] sm:$0xff]
    %v5882 = vld [vmem:[#allocation17 + $0x6e0] sm:$0xff]
    %v5883 = vld [vmem:[#allocation17 + $0x6e8] sm:$0xff]
    %v5884 = vld [vmem:[#allocation17 + $0x6f0] sm:$0xff]
    %v5885 = vld [vmem:[#allocation17 + $0x6f8] sm:$0xff]
    %v5886 = vld [vmem:[#allocation17 + $0x700] sm:$0xff]
    %v5887 = vld [vmem:[#allocation17 + $0x708] sm:$0xff]
    %v5888 = vld [vmem:[#allocation17 + $0x710] sm:$0xff]
    %v5889 = vld [vmem:[#allocation17 + $0x718] sm:$0xff]
    %v5890 = vld [vmem:[#allocation17 + $0x720] sm:$0xff]
    %v5891 = vld [vmem:[#allocation17 + $0x728] sm:$0xff]
    %v5892 = vld [vmem:[#allocation17 + $0x730] sm:$0xff]
    %v5893 = vld [vmem:[#allocation17 + $0x738] sm:$0xff]
    %v5894 = vld [vmem:[#allocation17 + $0x740] sm:$0xff]
    %v5895 = vld [vmem:[#allocation17 + $0x748] sm:$0xff]
    %v5896 = vld [vmem:[#allocation17 + $0x750] sm:$0xff]
    %v5897 = vld [vmem:[#allocation17 + $0x758] sm:$0xff]
    %v5898 = vld [vmem:[#allocation17 + $0x760] sm:$0xff]
    %v5899 = vld [vmem:[#allocation17 + $0x768] sm:$0xff]
    %v5900 = vld [vmem:[#allocation17 + $0x770] sm:$0xff]
    %v5901 = vld [vmem:[#allocation17 + $0x778] sm:$0xff]
    %v5902 = vld [vmem:[#allocation17 + $0x780] sm:$0xff]
    %v5903 = vld [vmem:[#allocation17 + $0x788] sm:$0xff]
    %v5904 = vld [vmem:[#allocation17 + $0x790] sm:$0xff]
    %v5905 = vld [vmem:[#allocation17 + $0x798] sm:$0xff]
    %v5906 = vld [vmem:[#allocation17 + $0x7a0] sm:$0xff]
    %v5907 = vld [vmem:[#allocation17 + $0x7a8] sm:$0xff]
    %v5908 = vld [vmem:[#allocation17 + $0x7b0] sm:$0xff]
    %v5909 = vld [vmem:[#allocation17 + $0x7b8] sm:$0xff]
    %v5910 = vld [vmem:[#allocation17 + $0x7c0] sm:$0xff]
    %v5911 = vld [vmem:[#allocation17 + $0x7c8] sm:$0xff]
    %v5912 = vld [vmem:[#allocation17 + $0x7d0] sm:$0xff]
    %v5913 = vld [vmem:[#allocation17 + $0x7d8] sm:$0xff]
    %v5914 = vld [vmem:[#allocation17 + $0x7e0] sm:$0xff]
    %v5915 = vld [vmem:[#allocation17 + $0x7e8] sm:$0xff]
    %v5916 = vld [vmem:[#allocation17 + $0x7f0] sm:$0xff]
    %v5917 = vld [vmem:[#allocation17 + $0x7f8] sm:$0xff]
    %v5918 = vld [vmem:[#allocation17 + $0x800] sm:$0xff]
    %v5919 = vld [vmem:[#allocation17 + $0x808] sm:$0xff]
    %v5920 = vld [vmem:[#allocation17 + $0x810] sm:$0xff]
    %v5921 = vld [vmem:[#allocation17 + $0x818] sm:$0xff]
    %v5922 = vld [vmem:[#allocation17 + $0x820] sm:$0xff]
    %v5923 = vld [vmem:[#allocation17 + $0x828] sm:$0xff]
    %v5924 = vld [vmem:[#allocation17 + $0x830] sm:$0xff]
    %v5925 = vld [vmem:[#allocation17 + $0x838] sm:$0xff]
    %v5926 = vld [vmem:[#allocation17 + $0x840] sm:$0xff]
    %v5927 = vld [vmem:[#allocation17 + $0x848] sm:$0xff]
    %v5928 = vld [vmem:[#allocation17 + $0x850] sm:$0xff]
    %v5929 = vld [vmem:[#allocation17 + $0x858] sm:$0xff]
    %v5930 = vld [vmem:[#allocation17 + $0x860] sm:$0xff]
    %v5931 = vld [vmem:[#allocation17 + $0x868] sm:$0xff]
    %v5932 = vld [vmem:[#allocation17 + $0x870] sm:$0xff]
    %v5933 = vld [vmem:[#allocation17 + $0x878] sm:$0xff]
    %v5934 = vld [vmem:[#allocation17 + $0x880] sm:$0xff]
    %v5935 = vld [vmem:[#allocation17 + $0x888] sm:$0xff]
    %v5936 = vld [vmem:[#allocation17 + $0x890] sm:$0xff]
    %v5937 = vld [vmem:[#allocation17 + $0x898] sm:$0xff]
    %v5938 = vld [vmem:[#allocation17 + $0x8a0] sm:$0xff]
    %v5939 = vld [vmem:[#allocation17 + $0x8a8] sm:$0xff]
    %v5940 = vld [vmem:[#allocation17 + $0x8b0] sm:$0xff]
    %v5941 = vld [vmem:[#allocation17 + $0x8b8] sm:$0xff]
    %v5942 = vld [vmem:[#allocation17 + $0x8c0] sm:$0xff]
    %v5943 = vld [vmem:[#allocation17 + $0x8c8] sm:$0xff]
    %v5944 = vld [vmem:[#allocation17 + $0x8d0] sm:$0xff]
    %v5945 = vld [vmem:[#allocation17 + $0x8d8] sm:$0xff]
    %v5946 = vld [vmem:[#allocation17 + $0x8e0] sm:$0xff]
    %v5947 = vld [vmem:[#allocation17 + $0x8e8] sm:$0xff]
    %v5948 = vld [vmem:[#allocation17 + $0x8f0] sm:$0xff]
    %v5949 = vld [vmem:[#allocation17 + $0x8f8] sm:$0xff]
    %v5950 = vld [vmem:[#allocation17 + $0x900] sm:$0xff]
    %v5951 = vld [vmem:[#allocation17 + $0x908] sm:$0xff]
    %v5952 = vld [vmem:[#allocation17 + $0x910] sm:$0xff]
    %v5953 = vld [vmem:[#allocation17 + $0x918] sm:$0xff]
    %v5954 = vld [vmem:[#allocation17 + $0x920] sm:$0xff]
    %v5955 = vld [vmem:[#allocation17 + $0x928] sm:$0xff]
    %v5956 = vld [vmem:[#allocation17 + $0x930] sm:$0xff]
    %v5957 = vld [vmem:[#allocation17 + $0x938] sm:$0xff]
    %v5958 = vld [vmem:[#allocation17 + $0x940] sm:$0xff]
    %v5959 = vld [vmem:[#allocation17 + $0x948] sm:$0xff]
    %v5960 = vld [vmem:[#allocation17 + $0x950] sm:$0xff]
    %v5961 = vld [vmem:[#allocation17 + $0x958] sm:$0xff]
    %v5962 = vld [vmem:[#allocation17 + $0x960] sm:$0xff]
    %v5963 = vld [vmem:[#allocation17 + $0x968] sm:$0xff]
    %v5964 = vld [vmem:[#allocation17 + $0x970] sm:$0xff]
    %v5965 = vld [vmem:[#allocation17 + $0x978] sm:$0xff]
    %v5966 = vld [vmem:[#allocation17 + $0x980] sm:$0xff]
    %v5967 = vld [vmem:[#allocation17 + $0x988] sm:$0xff]
    %v5968 = vld [vmem:[#allocation17 + $0x990] sm:$0xff]
    %v5969 = vld [vmem:[#allocation17 + $0x998] sm:$0xff]
    %v5970 = vld [vmem:[#allocation17 + $0x9a0] sm:$0xff]
    %v5971 = vld [vmem:[#allocation17 + $0x9a8] sm:$0xff]
    %v5972 = vld [vmem:[#allocation17 + $0x9b0] sm:$0xff]
    %v5973 = vld [vmem:[#allocation17 + $0x9b8] sm:$0xff]
    %v5974 = vld [vmem:[#allocation17 + $0x9c0] sm:$0xff]
    %v5975 = vld [vmem:[#allocation17 + $0x9c8] sm:$0xff]
    %v5976 = vld [vmem:[#allocation17 + $0x9d0] sm:$0xff]
    %v5977 = vld [vmem:[#allocation17 + $0x9d8] sm:$0xff]
    %v5978 = vld [vmem:[#allocation17 + $0x9e0] sm:$0xff]
    %v5979 = vld [vmem:[#allocation17 + $0x9e8] sm:$0xff]
    %v5980 = vld [vmem:[#allocation17 + $0x9f0] sm:$0xff]
    %v5981 = vld [vmem:[#allocation17 + $0x9f8] sm:$0xff]
    %v5982 = vld [vmem:[#allocation17 + $0xa00] sm:$0xff]
    %v5983 = vld [vmem:[#allocation17 + $0xa08] sm:$0xff]
    %v5984 = vld [vmem:[#allocation17 + $0xa10] sm:$0xff]
    %v5985 = vld [vmem:[#allocation17 + $0xa18] sm:$0xff]
    %v5986 = vld [vmem:[#allocation17 + $0xa20] sm:$0xff]
    %v5987 = vld [vmem:[#allocation17 + $0xa28] sm:$0xff]
    %v5988 = vld [vmem:[#allocation17 + $0xa30] sm:$0xff]
    %v5989 = vld [vmem:[#allocation17 + $0xa38] sm:$0xff]
    %v5990 = vld [vmem:[#allocation17 + $0xa40] sm:$0xff]
    %v5991 = vld [vmem:[#allocation17 + $0xa48] sm:$0xff]
    %v5992 = vld [vmem:[#allocation17 + $0xa50] sm:$0xff]
    %v5993 = vld [vmem:[#allocation17 + $0xa58] sm:$0xff]
    %v5994 = vld [vmem:[#allocation17 + $0xa60] sm:$0xff]
    %v5995 = vld [vmem:[#allocation17 + $0xa68] sm:$0xff]
    %v5996 = vld [vmem:[#allocation17 + $0xa70] sm:$0xff]
    %v5997 = vld [vmem:[#allocation17 + $0xa78] sm:$0xff]
    %v5998 = vld [vmem:[#allocation17 + $0xa80] sm:$0xff]
    %v5999 = vld [vmem:[#allocation17 + $0xa88] sm:$0xff]
    %v6000 = vld [vmem:[#allocation17 + $0xa90] sm:$0xff]
    %v6001 = vld [vmem:[#allocation17 + $0xa98] sm:$0xff]
    %v6002 = vld [vmem:[#allocation17 + $0xaa0] sm:$0xff]
    %v6003 = vld [vmem:[#allocation17 + $0xaa8] sm:$0xff]
    %v6004 = vld [vmem:[#allocation17 + $0xab0] sm:$0xff]
    %v6005 = vld [vmem:[#allocation17 + $0xab8] sm:$0xff]
    %v6006 = vld [vmem:[#allocation17 + $0xac0] sm:$0xff]
    %v6007 = vld [vmem:[#allocation17 + $0xac8] sm:$0xff]
    %v6008 = vld [vmem:[#allocation17 + $0xad0] sm:$0xff]
    %v6009 = vld [vmem:[#allocation17 + $0xad8] sm:$0xff]
    %v6010 = vld [vmem:[#allocation17 + $0xae0] sm:$0xff]
    %v6011 = vld [vmem:[#allocation17 + $0xae8] sm:$0xff]
    %v6012 = vld [vmem:[#allocation17 + $0xaf0] sm:$0xff]
    %v6013 = vld [vmem:[#allocation17 + $0xaf8] sm:$0xff]
    %v6014 = vld [vmem:[#allocation17 + $0xb00] sm:$0xff]
    %v6015 = vld [vmem:[#allocation17 + $0xb08] sm:$0xff]
    %v6016 = vld [vmem:[#allocation17 + $0xb10] sm:$0xff]
    %v6017 = vld [vmem:[#allocation17 + $0xb18] sm:$0xff]
    %v6018 = vld [vmem:[#allocation17 + $0xb20] sm:$0xff]
    %v6019 = vld [vmem:[#allocation17 + $0xb28] sm:$0xff]
    %v6020 = vld [vmem:[#allocation17 + $0xb30] sm:$0xff]
    %v6021 = vld [vmem:[#allocation17 + $0xb38] sm:$0xff]
    %v6022 = vld [vmem:[#allocation17 + $0xb40] sm:$0xff]
    %v6023 = vld [vmem:[#allocation17 + $0xb48] sm:$0xff]
    %v6024 = vld [vmem:[#allocation17 + $0xb50] sm:$0xff]
    %v6025 = vld [vmem:[#allocation17 + $0xb58] sm:$0xff]
    %v6026 = vld [vmem:[#allocation17 + $0xb60] sm:$0xff]
    %v6027 = vld [vmem:[#allocation17 + $0xb68] sm:$0xff]
    %v6028 = vld [vmem:[#allocation17 + $0xb70] sm:$0xff]
    %v6029 = vld [vmem:[#allocation17 + $0xb78] sm:$0xff]
    %v6030 = vld [vmem:[#allocation17 + $0xb80] sm:$0xff]
    %v6031 = vld [vmem:[#allocation17 + $0xb88] sm:$0xff]
    %v6032 = vld [vmem:[#allocation17 + $0xb90] sm:$0xff]
    %v6033 = vld [vmem:[#allocation17 + $0xb98] sm:$0xff]
    %v6034 = vld [vmem:[#allocation17 + $0xba0] sm:$0xff]
    %v6035 = vld [vmem:[#allocation17 + $0xba8] sm:$0xff]
    %v6036 = vld [vmem:[#allocation17 + $0xbb0] sm:$0xff]
    %v6037 = vld [vmem:[#allocation17 + $0xbb8] sm:$0xff]
    %v6038 = vld [vmem:[#allocation17 + $0xbc0] sm:$0xff]
    %v6039 = vld [vmem:[#allocation17 + $0xbc8] sm:$0xff]
    %v6040 = vld [vmem:[#allocation17 + $0xbd0] sm:$0xff]
    %v6041 = vld [vmem:[#allocation17 + $0xbd8] sm:$0xff]
    %v6042 = vld [vmem:[#allocation17 + $0xbe0] sm:$0xff]
    %v6043 = vld [vmem:[#allocation17 + $0xbe8] sm:$0xff]
    %v6044 = vld [vmem:[#allocation17 + $0xbf0] sm:$0xff]
    %v6045 = vld [vmem:[#allocation17 + $0xbf8] sm:$0xff]
    %v6046 = vld [vmem:[#allocation17 + $0xc00] sm:$0xff]
    %v6047 = vld [vmem:[#allocation17 + $0xc08] sm:$0xff]
    %v6048 = vld [vmem:[#allocation17 + $0xc10] sm:$0xff]
    %v6049 = vld [vmem:[#allocation17 + $0xc18] sm:$0xff]
    %v6050 = vld [vmem:[#allocation17 + $0xc20] sm:$0xff]
    %v6051 = vld [vmem:[#allocation17 + $0xc28] sm:$0xff]
    %v6052 = vld [vmem:[#allocation17 + $0xc30] sm:$0xff]
    %v6053 = vld [vmem:[#allocation17 + $0xc38] sm:$0xff]
    %v6054 = vld [vmem:[#allocation17 + $0xc40] sm:$0xff]
    %v6055 = vld [vmem:[#allocation17 + $0xc48] sm:$0xff]
    %v6056 = vld [vmem:[#allocation17 + $0xc50] sm:$0xff]
    %v6057 = vld [vmem:[#allocation17 + $0xc58] sm:$0xff]
    %v6058 = vld [vmem:[#allocation17 + $0xc60] sm:$0xff]
    %v6059 = vld [vmem:[#allocation17 + $0xc68] sm:$0xff]
    %v6060 = vld [vmem:[#allocation17 + $0xc70] sm:$0xff]
    %v6061 = vld [vmem:[#allocation17 + $0xc78] sm:$0xff]
    %v6062 = vld [vmem:[#allocation17 + $0xc80] sm:$0xff]
    %v6063 = vld [vmem:[#allocation17 + $0xc88] sm:$0xff]
    %v6064 = vld [vmem:[#allocation17 + $0xc90] sm:$0xff]
    %v6065 = vld [vmem:[#allocation17 + $0xc98] sm:$0xff]
    %v6066 = vld [vmem:[#allocation17 + $0xca0] sm:$0xff]
    %v6067 = vld [vmem:[#allocation17 + $0xca8] sm:$0xff]
    %v6068 = vld [vmem:[#allocation17 + $0xcb0] sm:$0xff]
    %v6069 = vld [vmem:[#allocation17 + $0xcb8] sm:$0xff]
    %v6070 = vld [vmem:[#allocation17 + $0xcc0] sm:$0xff]
    %v6071 = vld [vmem:[#allocation17 + $0xcc8] sm:$0xff]
    %v6072 = vld [vmem:[#allocation17 + $0xcd0] sm:$0xff]
    %v6073 = vld [vmem:[#allocation17 + $0xcd8] sm:$0xff]
    %v6074 = vld [vmem:[#allocation17 + $0xce0] sm:$0xff]
    %v6075 = vld [vmem:[#allocation17 + $0xce8] sm:$0xff]
    %v6076 = vld [vmem:[#allocation17 + $0xcf0] sm:$0xff]
    %v6077 = vld [vmem:[#allocation17 + $0xcf8] sm:$0xff]
    %v6078 = vld [vmem:[#allocation17 + $0xd00] sm:$0xff]
    %v6079 = vld [vmem:[#allocation17 + $0xd08] sm:$0xff]
    %v6080 = vld [vmem:[#allocation17 + $0xd10] sm:$0xff]
    %v6081 = vld [vmem:[#allocation17 + $0xd18] sm:$0xff]
    %v6082 = vld [vmem:[#allocation17 + $0xd20] sm:$0xff]
    %v6083 = vld [vmem:[#allocation17 + $0xd28] sm:$0xff]
    %v6084 = vld [vmem:[#allocation17 + $0xd30] sm:$0xff]
    %v6085 = vld [vmem:[#allocation17 + $0xd38] sm:$0xff]
    %v6086 = vld [vmem:[#allocation17 + $0xd40] sm:$0xff]
    %v6087 = vld [vmem:[#allocation17 + $0xd48] sm:$0xff]
    %v6088 = vld [vmem:[#allocation17 + $0xd50] sm:$0xff]
    %v6089 = vld [vmem:[#allocation17 + $0xd58] sm:$0xff]
    %v6090 = vld [vmem:[#allocation17 + $0xd60] sm:$0xff]
    %v6091 = vld [vmem:[#allocation17 + $0xd68] sm:$0xff]
    %v6092 = vld [vmem:[#allocation17 + $0xd70] sm:$0xff]
    %v6093 = vld [vmem:[#allocation17 + $0xd78] sm:$0xff]
    %v6094 = vld [vmem:[#allocation17 + $0xd80] sm:$0xff]
    %v6095 = vld [vmem:[#allocation17 + $0xd88] sm:$0xff]
    %v6096 = vld [vmem:[#allocation17 + $0xd90] sm:$0xff]
    %v6097 = vld [vmem:[#allocation17 + $0xd98] sm:$0xff]
    %v6098 = vld [vmem:[#allocation17 + $0xda0] sm:$0xff]
    %v6099 = vld [vmem:[#allocation17 + $0xda8] sm:$0xff]
    %v6100 = vld [vmem:[#allocation17 + $0xdb0] sm:$0xff]
    %v6101 = vld [vmem:[#allocation17 + $0xdb8] sm:$0xff]
    %v6102 = vld [vmem:[#allocation17 + $0xdc0] sm:$0xff]
    %v6103 = vld [vmem:[#allocation17 + $0xdc8] sm:$0xff]
    %v6104 = vld [vmem:[#allocation17 + $0xdd0] sm:$0xff]
    %v6105 = vld [vmem:[#allocation17 + $0xdd8] sm:$0xff]
    %v6106 = vld [vmem:[#allocation17 + $0xde0] sm:$0xff]
    %v6107 = vld [vmem:[#allocation17 + $0xde8] sm:$0xff]
    %v6108 = vld [vmem:[#allocation17 + $0xdf0] sm:$0xff]
    %v6109 = vld [vmem:[#allocation17 + $0xdf8] sm:$0xff]
    %v6110 = vld [vmem:[#allocation17 + $0xe00] sm:$0xff]
    %v6111 = vld [vmem:[#allocation17 + $0xe08] sm:$0xff]
    %v6112 = vld [vmem:[#allocation17 + $0xe10] sm:$0xff]
    %v6113 = vld [vmem:[#allocation17 + $0xe18] sm:$0xff]
    %v6114 = vld [vmem:[#allocation17 + $0xe20] sm:$0xff]
    %v6115 = vld [vmem:[#allocation17 + $0xe28] sm:$0xff]
    %v6116 = vld [vmem:[#allocation17 + $0xe30] sm:$0xff]
    %v6117 = vld [vmem:[#allocation17 + $0xe38] sm:$0xff]
    %v6118 = vld [vmem:[#allocation17 + $0xe40] sm:$0xff]
    %v6119 = vld [vmem:[#allocation17 + $0xe48] sm:$0xff]
    %v6120 = vld [vmem:[#allocation17 + $0xe50] sm:$0xff]
    %v6121 = vld [vmem:[#allocation17 + $0xe58] sm:$0xff]
    %v6122 = vld [vmem:[#allocation17 + $0xe60] sm:$0xff]
    %v6123 = vld [vmem:[#allocation17 + $0xe68] sm:$0xff]
    %v6124 = vld [vmem:[#allocation17 + $0xe70] sm:$0xff]
    %v6125 = vld [vmem:[#allocation17 + $0xe78] sm:$0xff]
    %v6126 = vld [vmem:[#allocation17 + $0xe80] sm:$0xff]
    %v6127 = vld [vmem:[#allocation17 + $0xe88] sm:$0xff]
    %v6128 = vld [vmem:[#allocation17 + $0xe90] sm:$0xff]
    %v6129 = vld [vmem:[#allocation17 + $0xe98] sm:$0xff]
    %v6130 = vld [vmem:[#allocation17 + $0xea0] sm:$0xff]
    %v6131 = vld [vmem:[#allocation17 + $0xea8] sm:$0xff]
    %v6132 = vld [vmem:[#allocation17 + $0xeb0] sm:$0xff]
    %v6133 = vld [vmem:[#allocation17 + $0xeb8] sm:$0xff]
    %v6134 = vld [vmem:[#allocation17 + $0xec0] sm:$0xff]
    %v6135 = vld [vmem:[#allocation17 + $0xec8] sm:$0xff]
    %v6136 = vld [vmem:[#allocation17 + $0xed0] sm:$0xff]
    %v6137 = vld [vmem:[#allocation17 + $0xed8] sm:$0xff]
    %v6138 = vld [vmem:[#allocation17 + $0xee0] sm:$0xff]
    %v6139 = vld [vmem:[#allocation17 + $0xee8] sm:$0xff]
    %v6140 = vld [vmem:[#allocation17 + $0xef0] sm:$0xff]
    %v6141 = vld [vmem:[#allocation17 + $0xef8] sm:$0xff]
    %v6142 = vld [vmem:[#allocation17 + $0xf00] sm:$0xff]
    %v6143 = vld [vmem:[#allocation17 + $0xf08] sm:$0xff]
    %v6144 = vld [vmem:[#allocation17 + $0xf10] sm:$0xff]
    %v6145 = vld [vmem:[#allocation17 + $0xf18] sm:$0xff]
    %v6146 = vld [vmem:[#allocation17 + $0xf20] sm:$0xff]
    %v6147 = vld [vmem:[#allocation17 + $0xf28] sm:$0xff]
    %v6148 = vld [vmem:[#allocation17 + $0xf30] sm:$0xff]
    %v6149 = vld [vmem:[#allocation17 + $0xf38] sm:$0xff]
    %v6150 = vld [vmem:[#allocation17 + $0xf40] sm:$0xff]
    %v6151 = vld [vmem:[#allocation17 + $0xf48] sm:$0xff]
    %v6152 = vld [vmem:[#allocation17 + $0xf50] sm:$0xff]
    %v6153 = vld [vmem:[#allocation17 + $0xf58] sm:$0xff]
    %v6154 = vld [vmem:[#allocation17 + $0xf60] sm:$0xff]
    %v6155 = vld [vmem:[#allocation17 + $0xf68] sm:$0xff]
    %v6156 = vld [vmem:[#allocation17 + $0xf70] sm:$0xff]
    %v6157 = vld [vmem:[#allocation17 + $0xf78] sm:$0xff]
    %v6158 = vld [vmem:[#allocation17 + $0xf80] sm:$0xff]
    %v6159 = vld [vmem:[#allocation17 + $0xf88] sm:$0xff]
    %v6160 = vld [vmem:[#allocation17 + $0xf90] sm:$0xff]
    %v6161 = vld [vmem:[#allocation17 + $0xf98] sm:$0xff]
    %v6162 = vld [vmem:[#allocation17 + $0xfa0] sm:$0xff]
    %v6163 = vld [vmem:[#allocation17 + $0xfa8] sm:$0xff]
    %v6164 = vld [vmem:[#allocation17 + $0xfb0] sm:$0xff]
    %v6165 = vld [vmem:[#allocation17 + $0xfb8] sm:$0xff]
    %v6166 = vld [vmem:[#allocation17 + $0xfc0] sm:$0xff]
    %v6167 = vld [vmem:[#allocation17 + $0xfc8] sm:$0xff]
    %v6168 = vld [vmem:[#allocation17 + $0xfd0] sm:$0xff]
    %v6169 = vld [vmem:[#allocation17 + $0xfd8] sm:$0xff]
    %v6170 = vld [vmem:[#allocation17 + $0xfe0] sm:$0xff]
    %v6171 = vld [vmem:[#allocation17 + $0xfe8] sm:$0xff]
    %v6172 = vld [vmem:[#allocation17 + $0xff0] sm:$0xff]
    %v6173 = vld [vmem:[#allocation17 + $0xff8] sm:$0xff]
    %v6174 = vld [vmem:[#allocation19] sm:$0xf]
    %v6176 = vperm.slane %v6174, 0
    %v6177 = vperm.slane %v6174, 1
    %v6178 = vperm.slane %v6174, 2
    %v6179 = vperm.slane %v6174, 3
    %v6696 = vunpack.c.l.b16 %v5662
    %v6697 = vunpack.c.h.b16 %v5662
    %v6698 = vunpack.c.l.b16 %v5663
    %v6699 = vunpack.c.h.b16 %v5663
    %v6700 = vunpack.c.l.b16 %v5664
    %v6701 = vunpack.c.h.b16 %v5664
    %v6702 = vunpack.c.l.b16 %v5665
    %v6703 = vunpack.c.h.b16 %v5665
    %v6704 = vunpack.c.l.b16 %v5666
    %v6705 = vunpack.c.h.b16 %v5666
    %v6706 = vunpack.c.l.b16 %v5667
    %v6707 = vunpack.c.h.b16 %v5667
    %v6708 = vunpack.c.l.b16 %v5668
    %v6709 = vunpack.c.h.b16 %v5668
    %v6710 = vunpack.c.l.b16 %v5669
    %v6711 = vunpack.c.h.b16 %v5669
    %v6712 = vunpack.c.l.b16 %v5670
    %v6713 = vunpack.c.h.b16 %v5670
    %v6714 = vunpack.c.l.b16 %v5671
    %v6715 = vunpack.c.h.b16 %v5671
    %v6716 = vunpack.c.l.b16 %v5672
    %v6717 = vunpack.c.h.b16 %v5672
    %v6718 = vunpack.c.l.b16 %v5673
    %v6719 = vunpack.c.h.b16 %v5673
    %v6720 = vunpack.c.l.b16 %v5674
    %v6721 = vunpack.c.h.b16 %v5674
    %v6722 = vunpack.c.l.b16 %v5675
    %v6723 = vunpack.c.h.b16 %v5675
    %v6724 = vunpack.c.l.b16 %v5676
    %v6725 = vunpack.c.h.b16 %v5676
    %v6726 = vunpack.c.l.b16 %v5677
    %v6727 = vunpack.c.h.b16 %v5677
    %v6728 = vunpack.c.l.b16 %v5678
    %v6729 = vunpack.c.h.b16 %v5678
    %v6730 = vunpack.c.l.b16 %v5679
    %v6731 = vunpack.c.h.b16 %v5679
    %v6732 = vunpack.c.l.b16 %v5680
    %v6733 = vunpack.c.h.b16 %v5680
    %v6734 = vunpack.c.l.b16 %v5681
    %v6735 = vunpack.c.h.b16 %v5681
    %v6736 = vunpack.c.l.b16 %v5682
    %v6737 = vunpack.c.h.b16 %v5682
    %v6738 = vunpack.c.l.b16 %v5683
    %v6739 = vunpack.c.h.b16 %v5683
    %v6740 = vunpack.c.l.b16 %v5684
    %v6741 = vunpack.c.h.b16 %v5684
    %v6742 = vunpack.c.l.b16 %v5685
    %v6743 = vunpack.c.h.b16 %v5685
    %v6744 = vunpack.c.l.b16 %v5686
    %v6745 = vunpack.c.h.b16 %v5686
    %v6746 = vunpack.c.l.b16 %v5687
    %v6747 = vunpack.c.h.b16 %v5687
    %v6748 = vunpack.c.l.b16 %v5688
    %v6749 = vunpack.c.h.b16 %v5688
    %v6750 = vunpack.c.l.b16 %v5689
    %v6751 = vunpack.c.h.b16 %v5689
    %v6752 = vunpack.c.l.b16 %v5690
    %v6753 = vunpack.c.h.b16 %v5690
    %v6754 = vunpack.c.l.b16 %v5691
    %v6755 = vunpack.c.h.b16 %v5691
    %v6756 = vunpack.c.l.b16 %v5692
    %v6757 = vunpack.c.h.b16 %v5692
    %v6758 = vunpack.c.l.b16 %v5693
    %v6759 = vunpack.c.h.b16 %v5693
    %v6760 = vunpack.c.l.b16 %v5694
    %v6761 = vunpack.c.h.b16 %v5694
    %v6762 = vunpack.c.l.b16 %v5695
    %v6763 = vunpack.c.h.b16 %v5695
    %v6764 = vunpack.c.l.b16 %v5696
    %v6765 = vunpack.c.h.b16 %v5696
    %v6766 = vunpack.c.l.b16 %v5697
    %v6767 = vunpack.c.h.b16 %v5697
    %v6768 = vunpack.c.l.b16 %v5698
    %v6769 = vunpack.c.h.b16 %v5698
    %v6770 = vunpack.c.l.b16 %v5699
    %v6771 = vunpack.c.h.b16 %v5699
    %v6772 = vunpack.c.l.b16 %v5700
    %v6773 = vunpack.c.h.b16 %v5700
    %v6774 = vunpack.c.l.b16 %v5701
    %v6775 = vunpack.c.h.b16 %v5701
    %v6776 = vunpack.c.l.b16 %v5702
    %v6777 = vunpack.c.h.b16 %v5702
    %v6778 = vunpack.c.l.b16 %v5703
    %v6779 = vunpack.c.h.b16 %v5703
    %v6780 = vunpack.c.l.b16 %v5704
    %v6781 = vunpack.c.h.b16 %v5704
    %v6782 = vunpack.c.l.b16 %v5705
    %v6783 = vunpack.c.h.b16 %v5705
    %v6784 = vunpack.c.l.b16 %v5706
    %v6785 = vunpack.c.h.b16 %v5706
    %v6786 = vunpack.c.l.b16 %v5707
    %v6787 = vunpack.c.h.b16 %v5707
    %v6788 = vunpack.c.l.b16 %v5708
    %v6789 = vunpack.c.h.b16 %v5708
    %v6790 = vunpack.c.l.b16 %v5709
    %v6791 = vunpack.c.h.b16 %v5709
    %v6792 = vunpack.c.l.b16 %v5710
    %v6793 = vunpack.c.h.b16 %v5710
    %v6794 = vunpack.c.l.b16 %v5711
    %v6795 = vunpack.c.h.b16 %v5711
    %v6796 = vunpack.c.l.b16 %v5712
    %v6797 = vunpack.c.h.b16 %v5712
    %v6798 = vunpack.c.l.b16 %v5713
    %v6799 = vunpack.c.h.b16 %v5713
    %v6800 = vunpack.c.l.b16 %v5714
    %v6801 = vunpack.c.h.b16 %v5714
    %v6802 = vunpack.c.l.b16 %v5715
    %v6803 = vunpack.c.h.b16 %v5715
    %v6804 = vunpack.c.l.b16 %v5716
    %v6805 = vunpack.c.h.b16 %v5716
    %v6806 = vunpack.c.l.b16 %v5717
    %v6807 = vunpack.c.h.b16 %v5717
    %v6808 = vunpack.c.l.b16 %v5718
    %v6809 = vunpack.c.h.b16 %v5718
    %v6810 = vunpack.c.l.b16 %v5719
    %v6811 = vunpack.c.h.b16 %v5719
    %v6812 = vunpack.c.l.b16 %v5720
    %v6813 = vunpack.c.h.b16 %v5720
    %v6814 = vunpack.c.l.b16 %v5721
    %v6815 = vunpack.c.h.b16 %v5721
    %v6816 = vunpack.c.l.b16 %v5722
    %v6817 = vunpack.c.h.b16 %v5722
    %v6818 = vunpack.c.l.b16 %v5723
    %v6819 = vunpack.c.h.b16 %v5723
    %v6820 = vunpack.c.l.b16 %v5724
    %v6821 = vunpack.c.h.b16 %v5724
    %v6822 = vunpack.c.l.b16 %v5725
    %v6823 = vunpack.c.h.b16 %v5725
    %v6824 = vunpack.c.l.b16 %v5726
    %v6825 = vunpack.c.h.b16 %v5726
    %v6826 = vunpack.c.l.b16 %v5727
    %v6827 = vunpack.c.h.b16 %v5727
    %v6828 = vunpack.c.l.b16 %v5728
    %v6829 = vunpack.c.h.b16 %v5728
    %v6830 = vunpack.c.l.b16 %v5729
    %v6831 = vunpack.c.h.b16 %v5729
    %v6832 = vunpack.c.l.b16 %v5730
    %v6833 = vunpack.c.h.b16 %v5730
    %v6834 = vunpack.c.l.b16 %v5731
    %v6835 = vunpack.c.h.b16 %v5731
    %v6836 = vunpack.c.l.b16 %v5732
    %v6837 = vunpack.c.h.b16 %v5732
    %v6838 = vunpack.c.l.b16 %v5733
    %v6839 = vunpack.c.h.b16 %v5733
    %v6840 = vunpack.c.l.b16 %v5734
    %v6841 = vunpack.c.h.b16 %v5734
    %v6842 = vunpack.c.l.b16 %v5735
    %v6843 = vunpack.c.h.b16 %v5735
    %v6844 = vunpack.c.l.b16 %v5736
    %v6845 = vunpack.c.h.b16 %v5736
    %v6846 = vunpack.c.l.b16 %v5737
    %v6847 = vunpack.c.h.b16 %v5737
    %v6848 = vunpack.c.l.b16 %v5738
    %v6849 = vunpack.c.h.b16 %v5738
    %v6850 = vunpack.c.l.b16 %v5739
    %v6851 = vunpack.c.h.b16 %v5739
    %v6852 = vunpack.c.l.b16 %v5740
    %v6853 = vunpack.c.h.b16 %v5740
    %v6854 = vunpack.c.l.b16 %v5741
    %v6855 = vunpack.c.h.b16 %v5741
    %v6856 = vunpack.c.l.b16 %v5742
    %v6857 = vunpack.c.h.b16 %v5742
    %v6858 = vunpack.c.l.b16 %v5743
    %v6859 = vunpack.c.h.b16 %v5743
    %v6860 = vunpack.c.l.b16 %v5744
    %v6861 = vunpack.c.h.b16 %v5744
    %v6862 = vunpack.c.l.b16 %v5745
    %v6863 = vunpack.c.h.b16 %v5745
    %v6864 = vunpack.c.l.b16 %v5746
    %v6865 = vunpack.c.h.b16 %v5746
    %v6866 = vunpack.c.l.b16 %v5747
    %v6867 = vunpack.c.h.b16 %v5747
    %v6868 = vunpack.c.l.b16 %v5748
    %v6869 = vunpack.c.h.b16 %v5748
    %v6870 = vunpack.c.l.b16 %v5749
    %v6871 = vunpack.c.h.b16 %v5749
    %v6872 = vunpack.c.l.b16 %v5750
    %v6873 = vunpack.c.h.b16 %v5750
    %v6874 = vunpack.c.l.b16 %v5751
    %v6875 = vunpack.c.h.b16 %v5751
    %v6876 = vunpack.c.l.b16 %v5752
    %v6877 = vunpack.c.h.b16 %v5752
    %v6878 = vunpack.c.l.b16 %v5753
    %v6879 = vunpack.c.h.b16 %v5753
    %v6880 = vunpack.c.l.b16 %v5754
    %v6881 = vunpack.c.h.b16 %v5754
    %v6882 = vunpack.c.l.b16 %v5755
    %v6883 = vunpack.c.h.b16 %v5755
    %v6884 = vunpack.c.l.b16 %v5756
    %v6885 = vunpack.c.h.b16 %v5756
    %v6886 = vunpack.c.l.b16 %v5757
    %v6887 = vunpack.c.h.b16 %v5757
    %v6888 = vunpack.c.l.b16 %v5758
    %v6889 = vunpack.c.h.b16 %v5758
    %v6890 = vunpack.c.l.b16 %v5759
    %v6891 = vunpack.c.h.b16 %v5759
    %v6892 = vunpack.c.l.b16 %v5760
    %v6893 = vunpack.c.h.b16 %v5760
    %v6894 = vunpack.c.l.b16 %v5761
    %v6895 = vunpack.c.h.b16 %v5761
    %v6896 = vunpack.c.l.b16 %v5762
    %v6897 = vunpack.c.h.b16 %v5762
    %v6898 = vunpack.c.l.b16 %v5763
    %v6899 = vunpack.c.h.b16 %v5763
    %v6900 = vunpack.c.l.b16 %v5764
    %v6901 = vunpack.c.h.b16 %v5764
    %v6902 = vunpack.c.l.b16 %v5765
    %v6903 = vunpack.c.h.b16 %v5765
    %v6904 = vunpack.c.l.b16 %v5766
    %v6905 = vunpack.c.h.b16 %v5766
    %v6906 = vunpack.c.l.b16 %v5767
    %v6907 = vunpack.c.h.b16 %v5767
    %v6908 = vunpack.c.l.b16 %v5768
    %v6909 = vunpack.c.h.b16 %v5768
    %v6910 = vunpack.c.l.b16 %v5769
    %v6911 = vunpack.c.h.b16 %v5769
    %v6912 = vunpack.c.l.b16 %v5770
    %v6913 = vunpack.c.h.b16 %v5770
    %v6914 = vunpack.c.l.b16 %v5771
    %v6915 = vunpack.c.h.b16 %v5771
    %v6916 = vunpack.c.l.b16 %v5772
    %v6917 = vunpack.c.h.b16 %v5772
    %v6918 = vunpack.c.l.b16 %v5773
    %v6919 = vunpack.c.h.b16 %v5773
    %v6920 = vunpack.c.l.b16 %v5774
    %v6921 = vunpack.c.h.b16 %v5774
    %v6922 = vunpack.c.l.b16 %v5775
    %v6923 = vunpack.c.h.b16 %v5775
    %v6924 = vunpack.c.l.b16 %v5776
    %v6925 = vunpack.c.h.b16 %v5776
    %v6926 = vunpack.c.l.b16 %v5777
    %v6927 = vunpack.c.h.b16 %v5777
    %v6928 = vunpack.c.l.b16 %v5778
    %v6929 = vunpack.c.h.b16 %v5778
    %v6930 = vunpack.c.l.b16 %v5779
    %v6931 = vunpack.c.h.b16 %v5779
    %v6932 = vunpack.c.l.b16 %v5780
    %v6933 = vunpack.c.h.b16 %v5780
    %v6934 = vunpack.c.l.b16 %v5781
    %v6935 = vunpack.c.h.b16 %v5781
    %v6936 = vunpack.c.l.b16 %v5782
    %v6937 = vunpack.c.h.b16 %v5782
    %v6938 = vunpack.c.l.b16 %v5783
    %v6939 = vunpack.c.h.b16 %v5783
    %v6940 = vunpack.c.l.b16 %v5784
    %v6941 = vunpack.c.h.b16 %v5784
    %v6942 = vunpack.c.l.b16 %v5785
    %v6943 = vunpack.c.h.b16 %v5785
    %v6944 = vunpack.c.l.b16 %v5786
    %v6945 = vunpack.c.h.b16 %v5786
    %v6946 = vunpack.c.l.b16 %v5787
    %v6947 = vunpack.c.h.b16 %v5787
    %v6948 = vunpack.c.l.b16 %v5788
    %v6949 = vunpack.c.h.b16 %v5788
    %v6950 = vunpack.c.l.b16 %v5789
    %v6951 = vunpack.c.h.b16 %v5789
    %v6952 = vunpack.c.l.b16 %v5790
    %v6953 = vunpack.c.h.b16 %v5790
    %v6954 = vunpack.c.l.b16 %v5791
    %v6955 = vunpack.c.h.b16 %v5791
    %v6956 = vunpack.c.l.b16 %v5792
    %v6957 = vunpack.c.h.b16 %v5792
    %v6958 = vunpack.c.l.b16 %v5793
    %v6959 = vunpack.c.h.b16 %v5793
    %v6960 = vunpack.c.l.b16 %v5794
    %v6961 = vunpack.c.h.b16 %v5794
    %v6962 = vunpack.c.l.b16 %v5795
    %v6963 = vunpack.c.h.b16 %v5795
    %v6964 = vunpack.c.l.b16 %v5796
    %v6965 = vunpack.c.h.b16 %v5796
    %v6966 = vunpack.c.l.b16 %v5797
    %v6967 = vunpack.c.h.b16 %v5797
    %v6968 = vunpack.c.l.b16 %v5798
    %v6969 = vunpack.c.h.b16 %v5798
    %v6970 = vunpack.c.l.b16 %v5799
    %v6971 = vunpack.c.h.b16 %v5799
    %v6972 = vunpack.c.l.b16 %v5800
    %v6973 = vunpack.c.h.b16 %v5800
    %v6974 = vunpack.c.l.b16 %v5801
    %v6975 = vunpack.c.h.b16 %v5801
    %v6976 = vunpack.c.l.b16 %v5802
    %v6977 = vunpack.c.h.b16 %v5802
    %v6978 = vunpack.c.l.b16 %v5803
    %v6979 = vunpack.c.h.b16 %v5803
    %v6980 = vunpack.c.l.b16 %v5804
    %v6981 = vunpack.c.h.b16 %v5804
    %v6982 = vunpack.c.l.b16 %v5805
    %v6983 = vunpack.c.h.b16 %v5805
    %v6984 = vunpack.c.l.b16 %v5806
    %v6985 = vunpack.c.h.b16 %v5806
    %v6986 = vunpack.c.l.b16 %v5807
    %v6987 = vunpack.c.h.b16 %v5807
    %v6988 = vunpack.c.l.b16 %v5808
    %v6989 = vunpack.c.h.b16 %v5808
    %v6990 = vunpack.c.l.b16 %v5809
    %v6991 = vunpack.c.h.b16 %v5809
    %v6992 = vunpack.c.l.b16 %v5810
    %v6993 = vunpack.c.h.b16 %v5810
    %v6994 = vunpack.c.l.b16 %v5811
    %v6995 = vunpack.c.h.b16 %v5811
    %v6996 = vunpack.c.l.b16 %v5812
    %v6997 = vunpack.c.h.b16 %v5812
    %v6998 = vunpack.c.l.b16 %v5813
    %v6999 = vunpack.c.h.b16 %v5813
    %v7000 = vunpack.c.l.b16 %v5814
    %v7001 = vunpack.c.h.b16 %v5814
    %v7002 = vunpack.c.l.b16 %v5815
    %v7003 = vunpack.c.h.b16 %v5815
    %v7004 = vunpack.c.l.b16 %v5816
    %v7005 = vunpack.c.h.b16 %v5816
    %v7006 = vunpack.c.l.b16 %v5817
    %v7007 = vunpack.c.h.b16 %v5817
    %v7008 = vunpack.c.l.b16 %v5818
    %v7009 = vunpack.c.h.b16 %v5818
    %v7010 = vunpack.c.l.b16 %v5819
    %v7011 = vunpack.c.h.b16 %v5819
    %v7012 = vunpack.c.l.b16 %v5820
    %v7013 = vunpack.c.h.b16 %v5820
    %v7014 = vunpack.c.l.b16 %v5821
    %v7015 = vunpack.c.h.b16 %v5821
    %v7016 = vunpack.c.l.b16 %v5822
    %v7017 = vunpack.c.h.b16 %v5822
    %v7018 = vunpack.c.l.b16 %v5823
    %v7019 = vunpack.c.h.b16 %v5823
    %v7020 = vunpack.c.l.b16 %v5824
    %v7021 = vunpack.c.h.b16 %v5824
    %v7022 = vunpack.c.l.b16 %v5825
    %v7023 = vunpack.c.h.b16 %v5825
    %v7024 = vunpack.c.l.b16 %v5826
    %v7025 = vunpack.c.h.b16 %v5826
    %v7026 = vunpack.c.l.b16 %v5827
    %v7027 = vunpack.c.h.b16 %v5827
    %v7028 = vunpack.c.l.b16 %v5828
    %v7029 = vunpack.c.h.b16 %v5828
    %v7030 = vunpack.c.l.b16 %v5829
    %v7031 = vunpack.c.h.b16 %v5829
    %v7032 = vunpack.c.l.b16 %v5830
    %v7033 = vunpack.c.h.b16 %v5830
    %v7034 = vunpack.c.l.b16 %v5831
    %v7035 = vunpack.c.h.b16 %v5831
    %v7036 = vunpack.c.l.b16 %v5832
    %v7037 = vunpack.c.h.b16 %v5832
    %v7038 = vunpack.c.l.b16 %v5833
    %v7039 = vunpack.c.h.b16 %v5833
    %v7040 = vunpack.c.l.b16 %v5834
    %v7041 = vunpack.c.h.b16 %v5834
    %v7042 = vunpack.c.l.b16 %v5835
    %v7043 = vunpack.c.h.b16 %v5835
    %v7044 = vunpack.c.l.b16 %v5836
    %v7045 = vunpack.c.h.b16 %v5836
    %v7046 = vunpack.c.l.b16 %v5837
    %v7047 = vunpack.c.h.b16 %v5837
    %v7048 = vunpack.c.l.b16 %v5838
    %v7049 = vunpack.c.h.b16 %v5838
    %v7050 = vunpack.c.l.b16 %v5839
    %v7051 = vunpack.c.h.b16 %v5839
    %v7052 = vunpack.c.l.b16 %v5840
    %v7053 = vunpack.c.h.b16 %v5840
    %v7054 = vunpack.c.l.b16 %v5841
    %v7055 = vunpack.c.h.b16 %v5841
    %v7056 = vunpack.c.l.b16 %v5842
    %v7057 = vunpack.c.h.b16 %v5842
    %v7058 = vunpack.c.l.b16 %v5843
    %v7059 = vunpack.c.h.b16 %v5843
    %v7060 = vunpack.c.l.b16 %v5844
    %v7061 = vunpack.c.h.b16 %v5844
    %v7062 = vunpack.c.l.b16 %v5845
    %v7063 = vunpack.c.h.b16 %v5845
    %v7064 = vunpack.c.l.b16 %v5846
    %v7065 = vunpack.c.h.b16 %v5846
    %v7066 = vunpack.c.l.b16 %v5847
    %v7067 = vunpack.c.h.b16 %v5847
    %v7068 = vunpack.c.l.b16 %v5848
    %v7069 = vunpack.c.h.b16 %v5848
    %v7070 = vunpack.c.l.b16 %v5849
    %v7071 = vunpack.c.h.b16 %v5849
    %v7072 = vunpack.c.l.b16 %v5850
    %v7073 = vunpack.c.h.b16 %v5850
    %v7074 = vunpack.c.l.b16 %v5851
    %v7075 = vunpack.c.h.b16 %v5851
    %v7076 = vunpack.c.l.b16 %v5852
    %v7077 = vunpack.c.h.b16 %v5852
    %v7078 = vunpack.c.l.b16 %v5853
    %v7079 = vunpack.c.h.b16 %v5853
    %v7080 = vunpack.c.l.b16 %v5854
    %v7081 = vunpack.c.h.b16 %v5854
    %v7082 = vunpack.c.l.b16 %v5855
    %v7083 = vunpack.c.h.b16 %v5855
    %v7084 = vunpack.c.l.b16 %v5856
    %v7085 = vunpack.c.h.b16 %v5856
    %v7086 = vunpack.c.l.b16 %v5857
    %v7087 = vunpack.c.h.b16 %v5857
    %v7088 = vunpack.c.l.b16 %v5858
    %v7089 = vunpack.c.h.b16 %v5858
    %v7090 = vunpack.c.l.b16 %v5859
    %v7091 = vunpack.c.h.b16 %v5859
    %v7092 = vunpack.c.l.b16 %v5860
    %v7093 = vunpack.c.h.b16 %v5860
    %v7094 = vunpack.c.l.b16 %v5861
    %v7095 = vunpack.c.h.b16 %v5861
    %v7096 = vunpack.c.l.b16 %v5862
    %v7097 = vunpack.c.h.b16 %v5862
    %v7098 = vunpack.c.l.b16 %v5863
    %v7099 = vunpack.c.h.b16 %v5863
    %v7100 = vunpack.c.l.b16 %v5864
    %v7101 = vunpack.c.h.b16 %v5864
    %v7102 = vunpack.c.l.b16 %v5865
    %v7103 = vunpack.c.h.b16 %v5865
    %v7104 = vunpack.c.l.b16 %v5866
    %v7105 = vunpack.c.h.b16 %v5866
    %v7106 = vunpack.c.l.b16 %v5867
    %v7107 = vunpack.c.h.b16 %v5867
    %v7108 = vunpack.c.l.b16 %v5868
    %v7109 = vunpack.c.h.b16 %v5868
    %v7110 = vunpack.c.l.b16 %v5869
    %v7111 = vunpack.c.h.b16 %v5869
    %v7112 = vunpack.c.l.b16 %v5870
    %v7113 = vunpack.c.h.b16 %v5870
    %v7114 = vunpack.c.l.b16 %v5871
    %v7115 = vunpack.c.h.b16 %v5871
    %v7116 = vunpack.c.l.b16 %v5872
    %v7117 = vunpack.c.h.b16 %v5872
    %v7118 = vunpack.c.l.b16 %v5873
    %v7119 = vunpack.c.h.b16 %v5873
    %v7120 = vunpack.c.l.b16 %v5874
    %v7121 = vunpack.c.h.b16 %v5874
    %v7122 = vunpack.c.l.b16 %v5875
    %v7123 = vunpack.c.h.b16 %v5875
    %v7124 = vunpack.c.l.b16 %v5876
    %v7125 = vunpack.c.h.b16 %v5876
    %v7126 = vunpack.c.l.b16 %v5877
    %v7127 = vunpack.c.h.b16 %v5877
    %v7128 = vunpack.c.l.b16 %v5878
    %v7129 = vunpack.c.h.b16 %v5878
    %v7130 = vunpack.c.l.b16 %v5879
    %v7131 = vunpack.c.h.b16 %v5879
    %v7132 = vunpack.c.l.b16 %v5880
    %v7133 = vunpack.c.h.b16 %v5880
    %v7134 = vunpack.c.l.b16 %v5881
    %v7135 = vunpack.c.h.b16 %v5881
    %v7136 = vunpack.c.l.b16 %v5882
    %v7137 = vunpack.c.h.b16 %v5882
    %v7138 = vunpack.c.l.b16 %v5883
    %v7139 = vunpack.c.h.b16 %v5883
    %v7140 = vunpack.c.l.b16 %v5884
    %v7141 = vunpack.c.h.b16 %v5884
    %v7142 = vunpack.c.l.b16 %v5885
    %v7143 = vunpack.c.h.b16 %v5885
    %v7144 = vunpack.c.l.b16 %v5886
    %v7145 = vunpack.c.h.b16 %v5886
    %v7146 = vunpack.c.l.b16 %v5887
    %v7147 = vunpack.c.h.b16 %v5887
    %v7148 = vunpack.c.l.b16 %v5888
    %v7149 = vunpack.c.h.b16 %v5888
    %v7150 = vunpack.c.l.b16 %v5889
    %v7151 = vunpack.c.h.b16 %v5889
    %v7152 = vunpack.c.l.b16 %v5890
    %v7153 = vunpack.c.h.b16 %v5890
    %v7154 = vunpack.c.l.b16 %v5891
    %v7155 = vunpack.c.h.b16 %v5891
    %v7156 = vunpack.c.l.b16 %v5892
    %v7157 = vunpack.c.h.b16 %v5892
    %v7158 = vunpack.c.l.b16 %v5893
    %v7159 = vunpack.c.h.b16 %v5893
    %v7160 = vunpack.c.l.b16 %v5894
    %v7161 = vunpack.c.h.b16 %v5894
    %v7162 = vunpack.c.l.b16 %v5895
    %v7163 = vunpack.c.h.b16 %v5895
    %v7164 = vunpack.c.l.b16 %v5896
    %v7165 = vunpack.c.h.b16 %v5896
    %v7166 = vunpack.c.l.b16 %v5897
    %v7167 = vunpack.c.h.b16 %v5897
    %v7168 = vunpack.c.l.b16 %v5898
    %v7169 = vunpack.c.h.b16 %v5898
    %v7170 = vunpack.c.l.b16 %v5899
    %v7171 = vunpack.c.h.b16 %v5899
    %v7172 = vunpack.c.l.b16 %v5900
    %v7173 = vunpack.c.h.b16 %v5900
    %v7174 = vunpack.c.l.b16 %v5901
    %v7175 = vunpack.c.h.b16 %v5901
    %v7176 = vunpack.c.l.b16 %v5902
    %v7177 = vunpack.c.h.b16 %v5902
    %v7178 = vunpack.c.l.b16 %v5903
    %v7179 = vunpack.c.h.b16 %v5903
    %v7180 = vunpack.c.l.b16 %v5904
    %v7181 = vunpack.c.h.b16 %v5904
    %v7182 = vunpack.c.l.b16 %v5905
    %v7183 = vunpack.c.h.b16 %v5905
    %v7184 = vunpack.c.l.b16 %v5906
    %v7185 = vunpack.c.h.b16 %v5906
    %v7186 = vunpack.c.l.b16 %v5907
    %v7187 = vunpack.c.h.b16 %v5907
    %v7188 = vunpack.c.l.b16 %v5908
    %v7189 = vunpack.c.h.b16 %v5908
    %v7190 = vunpack.c.l.b16 %v5909
    %v7191 = vunpack.c.h.b16 %v5909
    %v7192 = vunpack.c.l.b16 %v5910
    %v7193 = vunpack.c.h.b16 %v5910
    %v7194 = vunpack.c.l.b16 %v5911
    %v7195 = vunpack.c.h.b16 %v5911
    %v7196 = vunpack.c.l.b16 %v5912
    %v7197 = vunpack.c.h.b16 %v5912
    %v7198 = vunpack.c.l.b16 %v5913
    %v7199 = vunpack.c.h.b16 %v5913
    %v7200 = vunpack.c.l.b16 %v5914
    %v7201 = vunpack.c.h.b16 %v5914
    %v7202 = vunpack.c.l.b16 %v5915
    %v7203 = vunpack.c.h.b16 %v5915
    %v7204 = vunpack.c.l.b16 %v5916
    %v7205 = vunpack.c.h.b16 %v5916
    %v7206 = vunpack.c.l.b16 %v5917
    %v7207 = vunpack.c.h.b16 %v5917
    %v7208 = vunpack.c.l.b16 %v5918
    %v7209 = vunpack.c.h.b16 %v5918
    %v7210 = vunpack.c.l.b16 %v5919
    %v7211 = vunpack.c.h.b16 %v5919
    %v7212 = vunpack.c.l.b16 %v5920
    %v7213 = vunpack.c.h.b16 %v5920
    %v7214 = vunpack.c.l.b16 %v5921
    %v7215 = vunpack.c.h.b16 %v5921
    %v7216 = vunpack.c.l.b16 %v5922
    %v7217 = vunpack.c.h.b16 %v5922
    %v7218 = vunpack.c.l.b16 %v5923
    %v7219 = vunpack.c.h.b16 %v5923
    %v7220 = vunpack.c.l.b16 %v5924
    %v7221 = vunpack.c.h.b16 %v5924
    %v7222 = vunpack.c.l.b16 %v5925
    %v7223 = vunpack.c.h.b16 %v5925
    %v7224 = vunpack.c.l.b16 %v5926
    %v7225 = vunpack.c.h.b16 %v5926
    %v7226 = vunpack.c.l.b16 %v5927
    %v7227 = vunpack.c.h.b16 %v5927
    %v7228 = vunpack.c.l.b16 %v5928
    %v7229 = vunpack.c.h.b16 %v5928
    %v7230 = vunpack.c.l.b16 %v5929
    %v7231 = vunpack.c.h.b16 %v5929
    %v7232 = vunpack.c.l.b16 %v5930
    %v7233 = vunpack.c.h.b16 %v5930
    %v7234 = vunpack.c.l.b16 %v5931
    %v7235 = vunpack.c.h.b16 %v5931
    %v7236 = vunpack.c.l.b16 %v5932
    %v7237 = vunpack.c.h.b16 %v5932
    %v7238 = vunpack.c.l.b16 %v5933
    %v7239 = vunpack.c.h.b16 %v5933
    %v7240 = vunpack.c.l.b16 %v5934
    %v7241 = vunpack.c.h.b16 %v5934
    %v7242 = vunpack.c.l.b16 %v5935
    %v7243 = vunpack.c.h.b16 %v5935
    %v7244 = vunpack.c.l.b16 %v5936
    %v7245 = vunpack.c.h.b16 %v5936
    %v7246 = vunpack.c.l.b16 %v5937
    %v7247 = vunpack.c.h.b16 %v5937
    %v7248 = vunpack.c.l.b16 %v5938
    %v7249 = vunpack.c.h.b16 %v5938
    %v7250 = vunpack.c.l.b16 %v5939
    %v7251 = vunpack.c.h.b16 %v5939
    %v7252 = vunpack.c.l.b16 %v5940
    %v7253 = vunpack.c.h.b16 %v5940
    %v7254 = vunpack.c.l.b16 %v5941
    %v7255 = vunpack.c.h.b16 %v5941
    %v7256 = vunpack.c.l.b16 %v5942
    %v7257 = vunpack.c.h.b16 %v5942
    %v7258 = vunpack.c.l.b16 %v5943
    %v7259 = vunpack.c.h.b16 %v5943
    %v7260 = vunpack.c.l.b16 %v5944
    %v7261 = vunpack.c.h.b16 %v5944
    %v7262 = vunpack.c.l.b16 %v5945
    %v7263 = vunpack.c.h.b16 %v5945
    %v7264 = vunpack.c.l.b16 %v5946
    %v7265 = vunpack.c.h.b16 %v5946
    %v7266 = vunpack.c.l.b16 %v5947
    %v7267 = vunpack.c.h.b16 %v5947
    %v7268 = vunpack.c.l.b16 %v5948
    %v7269 = vunpack.c.h.b16 %v5948
    %v7270 = vunpack.c.l.b16 %v5949
    %v7271 = vunpack.c.h.b16 %v5949
    %v7272 = vunpack.c.l.b16 %v5950
    %v7273 = vunpack.c.h.b16 %v5950
    %v7274 = vunpack.c.l.b16 %v5951
    %v7275 = vunpack.c.h.b16 %v5951
    %v7276 = vunpack.c.l.b16 %v5952
    %v7277 = vunpack.c.h.b16 %v5952
    %v7278 = vunpack.c.l.b16 %v5953
    %v7279 = vunpack.c.h.b16 %v5953
    %v7280 = vunpack.c.l.b16 %v5954
    %v7281 = vunpack.c.h.b16 %v5954
    %v7282 = vunpack.c.l.b16 %v5955
    %v7283 = vunpack.c.h.b16 %v5955
    %v7284 = vunpack.c.l.b16 %v5956
    %v7285 = vunpack.c.h.b16 %v5956
    %v7286 = vunpack.c.l.b16 %v5957
    %v7287 = vunpack.c.h.b16 %v5957
    %v7288 = vunpack.c.l.b16 %v5958
    %v7289 = vunpack.c.h.b16 %v5958
    %v7290 = vunpack.c.l.b16 %v5959
    %v7291 = vunpack.c.h.b16 %v5959
    %v7292 = vunpack.c.l.b16 %v5960
    %v7293 = vunpack.c.h.b16 %v5960
    %v7294 = vunpack.c.l.b16 %v5961
    %v7295 = vunpack.c.h.b16 %v5961
    %v7296 = vunpack.c.l.b16 %v5962
    %v7297 = vunpack.c.h.b16 %v5962
    %v7298 = vunpack.c.l.b16 %v5963
    %v7299 = vunpack.c.h.b16 %v5963
    %v7300 = vunpack.c.l.b16 %v5964
    %v7301 = vunpack.c.h.b16 %v5964
    %v7302 = vunpack.c.l.b16 %v5965
    %v7303 = vunpack.c.h.b16 %v5965
    %v7304 = vunpack.c.l.b16 %v5966
    %v7305 = vunpack.c.h.b16 %v5966
    %v7306 = vunpack.c.l.b16 %v5967
    %v7307 = vunpack.c.h.b16 %v5967
    %v7308 = vunpack.c.l.b16 %v5968
    %v7309 = vunpack.c.h.b16 %v5968
    %v7310 = vunpack.c.l.b16 %v5969
    %v7311 = vunpack.c.h.b16 %v5969
    %v7312 = vunpack.c.l.b16 %v5970
    %v7313 = vunpack.c.h.b16 %v5970
    %v7314 = vunpack.c.l.b16 %v5971
    %v7315 = vunpack.c.h.b16 %v5971
    %v7316 = vunpack.c.l.b16 %v5972
    %v7317 = vunpack.c.h.b16 %v5972
    %v7318 = vunpack.c.l.b16 %v5973
    %v7319 = vunpack.c.h.b16 %v5973
    %v7320 = vunpack.c.l.b16 %v5974
    %v7321 = vunpack.c.h.b16 %v5974
    %v7322 = vunpack.c.l.b16 %v5975
    %v7323 = vunpack.c.h.b16 %v5975
    %v7324 = vunpack.c.l.b16 %v5976
    %v7325 = vunpack.c.h.b16 %v5976
    %v7326 = vunpack.c.l.b16 %v5977
    %v7327 = vunpack.c.h.b16 %v5977
    %v7328 = vunpack.c.l.b16 %v5978
    %v7329 = vunpack.c.h.b16 %v5978
    %v7330 = vunpack.c.l.b16 %v5979
    %v7331 = vunpack.c.h.b16 %v5979
    %v7332 = vunpack.c.l.b16 %v5980
    %v7333 = vunpack.c.h.b16 %v5980
    %v7334 = vunpack.c.l.b16 %v5981
    %v7335 = vunpack.c.h.b16 %v5981
    %v7336 = vunpack.c.l.b16 %v5982
    %v7337 = vunpack.c.h.b16 %v5982
    %v7338 = vunpack.c.l.b16 %v5983
    %v7339 = vunpack.c.h.b16 %v5983
    %v7340 = vunpack.c.l.b16 %v5984
    %v7341 = vunpack.c.h.b16 %v5984
    %v7342 = vunpack.c.l.b16 %v5985
    %v7343 = vunpack.c.h.b16 %v5985
    %v7344 = vunpack.c.l.b16 %v5986
    %v7345 = vunpack.c.h.b16 %v5986
    %v7346 = vunpack.c.l.b16 %v5987
    %v7347 = vunpack.c.h.b16 %v5987
    %v7348 = vunpack.c.l.b16 %v5988
    %v7349 = vunpack.c.h.b16 %v5988
    %v7350 = vunpack.c.l.b16 %v5989
    %v7351 = vunpack.c.h.b16 %v5989
    %v7352 = vunpack.c.l.b16 %v5990
    %v7353 = vunpack.c.h.b16 %v5990
    %v7354 = vunpack.c.l.b16 %v5991
    %v7355 = vunpack.c.h.b16 %v5991
    %v7356 = vunpack.c.l.b16 %v5992
    %v7357 = vunpack.c.h.b16 %v5992
    %v7358 = vunpack.c.l.b16 %v5993
    %v7359 = vunpack.c.h.b16 %v5993
    %v7360 = vunpack.c.l.b16 %v5994
    %v7361 = vunpack.c.h.b16 %v5994
    %v7362 = vunpack.c.l.b16 %v5995
    %v7363 = vunpack.c.h.b16 %v5995
    %v7364 = vunpack.c.l.b16 %v5996
    %v7365 = vunpack.c.h.b16 %v5996
    %v7366 = vunpack.c.l.b16 %v5997
    %v7367 = vunpack.c.h.b16 %v5997
    %v7368 = vunpack.c.l.b16 %v5998
    %v7369 = vunpack.c.h.b16 %v5998
    %v7370 = vunpack.c.l.b16 %v5999
    %v7371 = vunpack.c.h.b16 %v5999
    %v7372 = vunpack.c.l.b16 %v6000
    %v7373 = vunpack.c.h.b16 %v6000
    %v7374 = vunpack.c.l.b16 %v6001
    %v7375 = vunpack.c.h.b16 %v6001
    %v7376 = vunpack.c.l.b16 %v6002
    %v7377 = vunpack.c.h.b16 %v6002
    %v7378 = vunpack.c.l.b16 %v6003
    %v7379 = vunpack.c.h.b16 %v6003
    %v7380 = vunpack.c.l.b16 %v6004
    %v7381 = vunpack.c.h.b16 %v6004
    %v7382 = vunpack.c.l.b16 %v6005
    %v7383 = vunpack.c.h.b16 %v6005
    %v7384 = vunpack.c.l.b16 %v6006
    %v7385 = vunpack.c.h.b16 %v6006
    %v7386 = vunpack.c.l.b16 %v6007
    %v7387 = vunpack.c.h.b16 %v6007
    %v7388 = vunpack.c.l.b16 %v6008
    %v7389 = vunpack.c.h.b16 %v6008
    %v7390 = vunpack.c.l.b16 %v6009
    %v7391 = vunpack.c.h.b16 %v6009
    %v7392 = vunpack.c.l.b16 %v6010
    %v7393 = vunpack.c.h.b16 %v6010
    %v7394 = vunpack.c.l.b16 %v6011
    %v7395 = vunpack.c.h.b16 %v6011
    %v7396 = vunpack.c.l.b16 %v6012
    %v7397 = vunpack.c.h.b16 %v6012
    %v7398 = vunpack.c.l.b16 %v6013
    %v7399 = vunpack.c.h.b16 %v6013
    %v7400 = vunpack.c.l.b16 %v6014
    %v7401 = vunpack.c.h.b16 %v6014
    %v7402 = vunpack.c.l.b16 %v6015
    %v7403 = vunpack.c.h.b16 %v6015
    %v7404 = vunpack.c.l.b16 %v6016
    %v7405 = vunpack.c.h.b16 %v6016
    %v7406 = vunpack.c.l.b16 %v6017
    %v7407 = vunpack.c.h.b16 %v6017
    %v7408 = vunpack.c.l.b16 %v6018
    %v7409 = vunpack.c.h.b16 %v6018
    %v7410 = vunpack.c.l.b16 %v6019
    %v7411 = vunpack.c.h.b16 %v6019
    %v7412 = vunpack.c.l.b16 %v6020
    %v7413 = vunpack.c.h.b16 %v6020
    %v7414 = vunpack.c.l.b16 %v6021
    %v7415 = vunpack.c.h.b16 %v6021
    %v7416 = vunpack.c.l.b16 %v6022
    %v7417 = vunpack.c.h.b16 %v6022
    %v7418 = vunpack.c.l.b16 %v6023
    %v7419 = vunpack.c.h.b16 %v6023
    %v7420 = vunpack.c.l.b16 %v6024
    %v7421 = vunpack.c.h.b16 %v6024
    %v7422 = vunpack.c.l.b16 %v6025
    %v7423 = vunpack.c.h.b16 %v6025
    %v7424 = vunpack.c.l.b16 %v6026
    %v7425 = vunpack.c.h.b16 %v6026
    %v7426 = vunpack.c.l.b16 %v6027
    %v7427 = vunpack.c.h.b16 %v6027
    %v7428 = vunpack.c.l.b16 %v6028
    %v7429 = vunpack.c.h.b16 %v6028
    %v7430 = vunpack.c.l.b16 %v6029
    %v7431 = vunpack.c.h.b16 %v6029
    %v7432 = vunpack.c.l.b16 %v6030
    %v7433 = vunpack.c.h.b16 %v6030
    %v7434 = vunpack.c.l.b16 %v6031
    %v7435 = vunpack.c.h.b16 %v6031
    %v7436 = vunpack.c.l.b16 %v6032
    %v7437 = vunpack.c.h.b16 %v6032
    %v7438 = vunpack.c.l.b16 %v6033
    %v7439 = vunpack.c.h.b16 %v6033
    %v7440 = vunpack.c.l.b16 %v6034
    %v7441 = vunpack.c.h.b16 %v6034
    %v7442 = vunpack.c.l.b16 %v6035
    %v7443 = vunpack.c.h.b16 %v6035
    %v7444 = vunpack.c.l.b16 %v6036
    %v7445 = vunpack.c.h.b16 %v6036
    %v7446 = vunpack.c.l.b16 %v6037
    %v7447 = vunpack.c.h.b16 %v6037
    %v7448 = vunpack.c.l.b16 %v6038
    %v7449 = vunpack.c.h.b16 %v6038
    %v7450 = vunpack.c.l.b16 %v6039
    %v7451 = vunpack.c.h.b16 %v6039
    %v7452 = vunpack.c.l.b16 %v6040
    %v7453 = vunpack.c.h.b16 %v6040
    %v7454 = vunpack.c.l.b16 %v6041
    %v7455 = vunpack.c.h.b16 %v6041
    %v7456 = vunpack.c.l.b16 %v6042
    %v7457 = vunpack.c.h.b16 %v6042
    %v7458 = vunpack.c.l.b16 %v6043
    %v7459 = vunpack.c.h.b16 %v6043
    %v7460 = vunpack.c.l.b16 %v6044
    %v7461 = vunpack.c.h.b16 %v6044
    %v7462 = vunpack.c.l.b16 %v6045
    %v7463 = vunpack.c.h.b16 %v6045
    %v7464 = vunpack.c.l.b16 %v6046
    %v7465 = vunpack.c.h.b16 %v6046
    %v7466 = vunpack.c.l.b16 %v6047
    %v7467 = vunpack.c.h.b16 %v6047
    %v7468 = vunpack.c.l.b16 %v6048
    %v7469 = vunpack.c.h.b16 %v6048
    %v7470 = vunpack.c.l.b16 %v6049
    %v7471 = vunpack.c.h.b16 %v6049
    %v7472 = vunpack.c.l.b16 %v6050
    %v7473 = vunpack.c.h.b16 %v6050
    %v7474 = vunpack.c.l.b16 %v6051
    %v7475 = vunpack.c.h.b16 %v6051
    %v7476 = vunpack.c.l.b16 %v6052
    %v7477 = vunpack.c.h.b16 %v6052
    %v7478 = vunpack.c.l.b16 %v6053
    %v7479 = vunpack.c.h.b16 %v6053
    %v7480 = vunpack.c.l.b16 %v6054
    %v7481 = vunpack.c.h.b16 %v6054
    %v7482 = vunpack.c.l.b16 %v6055
    %v7483 = vunpack.c.h.b16 %v6055
    %v7484 = vunpack.c.l.b16 %v6056
    %v7485 = vunpack.c.h.b16 %v6056
    %v7486 = vunpack.c.l.b16 %v6057
    %v7487 = vunpack.c.h.b16 %v6057
    %v7488 = vunpack.c.l.b16 %v6058
    %v7489 = vunpack.c.h.b16 %v6058
    %v7490 = vunpack.c.l.b16 %v6059
    %v7491 = vunpack.c.h.b16 %v6059
    %v7492 = vunpack.c.l.b16 %v6060
    %v7493 = vunpack.c.h.b16 %v6060
    %v7494 = vunpack.c.l.b16 %v6061
    %v7495 = vunpack.c.h.b16 %v6061
    %v7496 = vunpack.c.l.b16 %v6062
    %v7497 = vunpack.c.h.b16 %v6062
    %v7498 = vunpack.c.l.b16 %v6063
    %v7499 = vunpack.c.h.b16 %v6063
    %v7500 = vunpack.c.l.b16 %v6064
    %v7501 = vunpack.c.h.b16 %v6064
    %v7502 = vunpack.c.l.b16 %v6065
    %v7503 = vunpack.c.h.b16 %v6065
    %v7504 = vunpack.c.l.b16 %v6066
    %v7505 = vunpack.c.h.b16 %v6066
    %v7506 = vunpack.c.l.b16 %v6067
    %v7507 = vunpack.c.h.b16 %v6067
    %v7508 = vunpack.c.l.b16 %v6068
    %v7509 = vunpack.c.h.b16 %v6068
    %v7510 = vunpack.c.l.b16 %v6069
    %v7511 = vunpack.c.h.b16 %v6069
    %v7512 = vunpack.c.l.b16 %v6070
    %v7513 = vunpack.c.h.b16 %v6070
    %v7514 = vunpack.c.l.b16 %v6071
    %v7515 = vunpack.c.h.b16 %v6071
    %v7516 = vunpack.c.l.b16 %v6072
    %v7517 = vunpack.c.h.b16 %v6072
    %v7518 = vunpack.c.l.b16 %v6073
    %v7519 = vunpack.c.h.b16 %v6073
    %v7520 = vunpack.c.l.b16 %v6074
    %v7521 = vunpack.c.h.b16 %v6074
    %v7522 = vunpack.c.l.b16 %v6075
    %v7523 = vunpack.c.h.b16 %v6075
    %v7524 = vunpack.c.l.b16 %v6076
    %v7525 = vunpack.c.h.b16 %v6076
    %v7526 = vunpack.c.l.b16 %v6077
    %v7527 = vunpack.c.h.b16 %v6077
    %v7528 = vunpack.c.l.b16 %v6078
    %v7529 = vunpack.c.h.b16 %v6078
    %v7530 = vunpack.c.l.b16 %v6079
    %v7531 = vunpack.c.h.b16 %v6079
    %v7532 = vunpack.c.l.b16 %v6080
    %v7533 = vunpack.c.h.b16 %v6080
    %v7534 = vunpack.c.l.b16 %v6081
    %v7535 = vunpack.c.h.b16 %v6081
    %v7536 = vunpack.c.l.b16 %v6082
    %v7537 = vunpack.c.h.b16 %v6082
    %v7538 = vunpack.c.l.b16 %v6083
    %v7539 = vunpack.c.h.b16 %v6083
    %v7540 = vunpack.c.l.b16 %v6084
    %v7541 = vunpack.c.h.b16 %v6084
    %v7542 = vunpack.c.l.b16 %v6085
    %v7543 = vunpack.c.h.b16 %v6085
    %v7544 = vunpack.c.l.b16 %v6086
    %v7545 = vunpack.c.h.b16 %v6086
    %v7546 = vunpack.c.l.b16 %v6087
    %v7547 = vunpack.c.h.b16 %v6087
    %v7548 = vunpack.c.l.b16 %v6088
    %v7549 = vunpack.c.h.b16 %v6088
    %v7550 = vunpack.c.l.b16 %v6089
    %v7551 = vunpack.c.h.b16 %v6089
    %v7552 = vunpack.c.l.b16 %v6090
    %v7553 = vunpack.c.h.b16 %v6090
    %v7554 = vunpack.c.l.b16 %v6091
    %v7555 = vunpack.c.h.b16 %v6091
    %v7556 = vunpack.c.l.b16 %v6092
    %v7557 = vunpack.c.h.b16 %v6092
    %v7558 = vunpack.c.l.b16 %v6093
    %v7559 = vunpack.c.h.b16 %v6093
    %v7560 = vunpack.c.l.b16 %v6094
    %v7561 = vunpack.c.h.b16 %v6094
    %v7562 = vunpack.c.l.b16 %v6095
    %v7563 = vunpack.c.h.b16 %v6095
    %v7564 = vunpack.c.l.b16 %v6096
    %v7565 = vunpack.c.h.b16 %v6096
    %v7566 = vunpack.c.l.b16 %v6097
    %v7567 = vunpack.c.h.b16 %v6097
    %v7568 = vunpack.c.l.b16 %v6098
    %v7569 = vunpack.c.h.b16 %v6098
    %v7570 = vunpack.c.l.b16 %v6099
    %v7571 = vunpack.c.h.b16 %v6099
    %v7572 = vunpack.c.l.b16 %v6100
    %v7573 = vunpack.c.h.b16 %v6100
    %v7574 = vunpack.c.l.b16 %v6101
    %v7575 = vunpack.c.h.b16 %v6101
    %v7576 = vunpack.c.l.b16 %v6102
    %v7577 = vunpack.c.h.b16 %v6102
    %v7578 = vunpack.c.l.b16 %v6103
    %v7579 = vunpack.c.h.b16 %v6103
    %v7580 = vunpack.c.l.b16 %v6104
    %v7581 = vunpack.c.h.b16 %v6104
    %v7582 = vunpack.c.l.b16 %v6105
    %v7583 = vunpack.c.h.b16 %v6105
    %v7584 = vunpack.c.l.b16 %v6106
    %v7585 = vunpack.c.h.b16 %v6106
    %v7586 = vunpack.c.l.b16 %v6107
    %v7587 = vunpack.c.h.b16 %v6107
    %v7588 = vunpack.c.l.b16 %v6108
    %v7589 = vunpack.c.h.b16 %v6108
    %v7590 = vunpack.c.l.b16 %v6109
    %v7591 = vunpack.c.h.b16 %v6109
    %v7592 = vunpack.c.l.b16 %v6110
    %v7593 = vunpack.c.h.b16 %v6110
    %v7594 = vunpack.c.l.b16 %v6111
    %v7595 = vunpack.c.h.b16 %v6111
    %v7596 = vunpack.c.l.b16 %v6112
    %v7597 = vunpack.c.h.b16 %v6112
    %v7598 = vunpack.c.l.b16 %v6113
    %v7599 = vunpack.c.h.b16 %v6113
    %v7600 = vunpack.c.l.b16 %v6114
    %v7601 = vunpack.c.h.b16 %v6114
    %v7602 = vunpack.c.l.b16 %v6115
    %v7603 = vunpack.c.h.b16 %v6115
    %v7604 = vunpack.c.l.b16 %v6116
    %v7605 = vunpack.c.h.b16 %v6116
    %v7606 = vunpack.c.l.b16 %v6117
    %v7607 = vunpack.c.h.b16 %v6117
    %v7608 = vunpack.c.l.b16 %v6118
    %v7609 = vunpack.c.h.b16 %v6118
    %v7610 = vunpack.c.l.b16 %v6119
    %v7611 = vunpack.c.h.b16 %v6119
    %v7612 = vunpack.c.l.b16 %v6120
    %v7613 = vunpack.c.h.b16 %v6120
    %v7614 = vunpack.c.l.b16 %v6121
    %v7615 = vunpack.c.h.b16 %v6121
    %v7616 = vunpack.c.l.b16 %v6122
    %v7617 = vunpack.c.h.b16 %v6122
    %v7618 = vunpack.c.l.b16 %v6123
    %v7619 = vunpack.c.h.b16 %v6123
    %v7620 = vunpack.c.l.b16 %v6124
    %v7621 = vunpack.c.h.b16 %v6124
    %v7622 = vunpack.c.l.b16 %v6125
    %v7623 = vunpack.c.h.b16 %v6125
    %v7624 = vunpack.c.l.b16 %v6126
    %v7625 = vunpack.c.h.b16 %v6126
    %v7626 = vunpack.c.l.b16 %v6127
    %v7627 = vunpack.c.h.b16 %v6127
    %v7628 = vunpack.c.l.b16 %v6128
    %v7629 = vunpack.c.h.b16 %v6128
    %v7630 = vunpack.c.l.b16 %v6129
    %v7631 = vunpack.c.h.b16 %v6129
    %v7632 = vunpack.c.l.b16 %v6130
    %v7633 = vunpack.c.h.b16 %v6130
    %v7634 = vunpack.c.l.b16 %v6131
    %v7635 = vunpack.c.h.b16 %v6131
    %v7636 = vunpack.c.l.b16 %v6132
    %v7637 = vunpack.c.h.b16 %v6132
    %v7638 = vunpack.c.l.b16 %v6133
    %v7639 = vunpack.c.h.b16 %v6133
    %v7640 = vunpack.c.l.b16 %v6134
    %v7641 = vunpack.c.h.b16 %v6134
    %v7642 = vunpack.c.l.b16 %v6135
    %v7643 = vunpack.c.h.b16 %v6135
    %v7644 = vunpack.c.l.b16 %v6136
    %v7645 = vunpack.c.h.b16 %v6136
    %v7646 = vunpack.c.l.b16 %v6137
    %v7647 = vunpack.c.h.b16 %v6137
    %v7648 = vunpack.c.l.b16 %v6138
    %v7649 = vunpack.c.h.b16 %v6138
    %v7650 = vunpack.c.l.b16 %v6139
    %v7651 = vunpack.c.h.b16 %v6139
    %v7652 = vunpack.c.l.b16 %v6140
    %v7653 = vunpack.c.h.b16 %v6140
    %v7654 = vunpack.c.l.b16 %v6141
    %v7655 = vunpack.c.h.b16 %v6141
    %v7656 = vunpack.c.l.b16 %v6142
    %v7657 = vunpack.c.h.b16 %v6142
    %v7658 = vunpack.c.l.b16 %v6143
    %v7659 = vunpack.c.h.b16 %v6143
    %v7660 = vunpack.c.l.b16 %v6144
    %v7661 = vunpack.c.h.b16 %v6144
    %v7662 = vunpack.c.l.b16 %v6145
    %v7663 = vunpack.c.h.b16 %v6145
    %v7664 = vunpack.c.l.b16 %v6146
    %v7665 = vunpack.c.h.b16 %v6146
    %v7666 = vunpack.c.l.b16 %v6147
    %v7667 = vunpack.c.h.b16 %v6147
    %v7668 = vunpack.c.l.b16 %v6148
    %v7669 = vunpack.c.h.b16 %v6148
    %v7670 = vunpack.c.l.b16 %v6149
    %v7671 = vunpack.c.h.b16 %v6149
    %v7672 = vunpack.c.l.b16 %v6150
    %v7673 = vunpack.c.h.b16 %v6150
    %v7674 = vunpack.c.l.b16 %v6151
    %v7675 = vunpack.c.h.b16 %v6151
    %v7676 = vunpack.c.l.b16 %v6152
    %v7677 = vunpack.c.h.b16 %v6152
    %v7678 = vunpack.c.l.b16 %v6153
    %v7679 = vunpack.c.h.b16 %v6153
    %v7680 = vunpack.c.l.b16 %v6154
    %v7681 = vunpack.c.h.b16 %v6154
    %v7682 = vunpack.c.l.b16 %v6155
    %v7683 = vunpack.c.h.b16 %v6155
    %v7684 = vunpack.c.l.b16 %v6156
    %v7685 = vunpack.c.h.b16 %v6156
    %v7686 = vunpack.c.l.b16 %v6157
    %v7687 = vunpack.c.h.b16 %v6157
    %v7688 = vunpack.c.l.b16 %v6158
    %v7689 = vunpack.c.h.b16 %v6158
    %v7690 = vunpack.c.l.b16 %v6159
    %v7691 = vunpack.c.h.b16 %v6159
    %v7692 = vunpack.c.l.b16 %v6160
    %v7693 = vunpack.c.h.b16 %v6160
    %v7694 = vunpack.c.l.b16 %v6161
    %v7695 = vunpack.c.h.b16 %v6161
    %v7696 = vunpack.c.l.b16 %v6162
    %v7697 = vunpack.c.h.b16 %v6162
    %v7698 = vunpack.c.l.b16 %v6163
    %v7699 = vunpack.c.h.b16 %v6163
    %v7700 = vunpack.c.l.b16 %v6164
    %v7701 = vunpack.c.h.b16 %v6164
    %v7702 = vunpack.c.l.b16 %v6165
    %v7703 = vunpack.c.h.b16 %v6165
    %v7704 = vunpack.c.l.b16 %v6166
    %v7705 = vunpack.c.h.b16 %v6166
    %v7706 = vunpack.c.l.b16 %v6167
    %v7707 = vunpack.c.h.b16 %v6167
    %v7708 = vunpack.c.l.b16 %v6168
    %v7709 = vunpack.c.h.b16 %v6168
    %v7710 = vunpack.c.l.b16 %v6169
    %v7711 = vunpack.c.h.b16 %v6169
    %v7712 = vunpack.c.l.b16 %v6170
    %v7713 = vunpack.c.h.b16 %v6170
    %v7714 = vunpack.c.l.b16 %v6171
    %v7715 = vunpack.c.h.b16 %v6171
    %v7716 = vunpack.c.l.b16 %v6172
    %v7717 = vunpack.c.h.b16 %v6172
    %v7718 = vunpack.c.l.b16 %v6173
    %v7719 = vunpack.c.h.b16 %v6173
    %v7720 = vpack.c.b16 %v6700, %v6696
    %v7721 = vpack.c.b16 %v6701, %v6697
    %v7722 = vpack.c.b16 %v6702, %v6698
    %v7723 = vpack.c.b16 %v6703, %v6699
    %v7724 = vpack.c.b16 %v6708, %v6704
    %v7725 = vpack.c.b16 %v6709, %v6705
    %v7726 = vpack.c.b16 %v6710, %v6706
    %v7727 = vpack.c.b16 %v6711, %v6707
    %v7728 = vpack.c.b16 %v6716, %v6712
    %v7729 = vpack.c.b16 %v6717, %v6713
    %v7730 = vpack.c.b16 %v6718, %v6714
    %v7731 = vpack.c.b16 %v6719, %v6715
    %v7732 = vpack.c.b16 %v6724, %v6720
    %v7733 = vpack.c.b16 %v6725, %v6721
    %v7734 = vpack.c.b16 %v6726, %v6722
    %v7735 = vpack.c.b16 %v6727, %v6723
    %v7736 = vpack.c.b16 %v6732, %v6728
    %v7737 = vpack.c.b16 %v6733, %v6729
    %v7738 = vpack.c.b16 %v6734, %v6730
    %v7739 = vpack.c.b16 %v6735, %v6731
    %v7740 = vpack.c.b16 %v6740, %v6736
    %v7741 = vpack.c.b16 %v6741, %v6737
    %v7742 = vpack.c.b16 %v6742, %v6738
    %v7743 = vpack.c.b16 %v6743, %v6739
    %v7744 = vpack.c.b16 %v6748, %v6744
    %v7745 = vpack.c.b16 %v6749, %v6745
    %v7746 = vpack.c.b16 %v6750, %v6746
    %v7747 = vpack.c.b16 %v6751, %v6747
    %v7748 = vpack.c.b16 %v6756, %v6752
    %v7749 = vpack.c.b16 %v6757, %v6753
    %v7750 = vpack.c.b16 %v6758, %v6754
    %v7751 = vpack.c.b16 %v6759, %v6755
    %v7752 = vpack.c.b16 %v6764, %v6760
    %v7753 = vpack.c.b16 %v6765, %v6761
    %v7754 = vpack.c.b16 %v6766, %v6762
    %v7755 = vpack.c.b16 %v6767, %v6763
    %v7756 = vpack.c.b16 %v6772, %v6768
    %v7757 = vpack.c.b16 %v6773, %v6769
    %v7758 = vpack.c.b16 %v6774, %v6770
    %v7759 = vpack.c.b16 %v6775, %v6771
    %v7760 = vpack.c.b16 %v6780, %v6776
    %v7761 = vpack.c.b16 %v6781, %v6777
    %v7762 = vpack.c.b16 %v6782, %v6778
    %v7763 = vpack.c.b16 %v6783, %v6779
    %v7764 = vpack.c.b16 %v6788, %v6784
    %v7765 = vpack.c.b16 %v6789, %v6785
    %v7766 = vpack.c.b16 %v6790, %v6786
    %v7767 = vpack.c.b16 %v6791, %v6787
    %v7768 = vpack.c.b16 %v6796, %v6792
    %v7769 = vpack.c.b16 %v6797, %v6793
    %v7770 = vpack.c.b16 %v6798, %v6794
    %v7771 = vpack.c.b16 %v6799, %v6795
    %v7772 = vpack.c.b16 %v6804, %v6800
    %v7773 = vpack.c.b16 %v6805, %v6801
    %v7774 = vpack.c.b16 %v6806, %v6802
    %v7775 = vpack.c.b16 %v6807, %v6803
    %v7776 = vpack.c.b16 %v6812, %v6808
    %v7777 = vpack.c.b16 %v6813, %v6809
    %v7778 = vpack.c.b16 %v6814, %v6810
    %v7779 = vpack.c.b16 %v6815, %v6811
    %v7780 = vpack.c.b16 %v6820, %v6816
    %v7781 = vpack.c.b16 %v6821, %v6817
    %v7782 = vpack.c.b16 %v6822, %v6818
    %v7783 = vpack.c.b16 %v6823, %v6819
    %v7784 = vpack.c.b16 %v6828, %v6824
    %v7785 = vpack.c.b16 %v6829, %v6825
    %v7786 = vpack.c.b16 %v6830, %v6826
    %v7787 = vpack.c.b16 %v6831, %v6827
    %v7788 = vpack.c.b16 %v6836, %v6832
    %v7789 = vpack.c.b16 %v6837, %v6833
    %v7790 = vpack.c.b16 %v6838, %v6834
    %v7791 = vpack.c.b16 %v6839, %v6835
    %v7792 = vpack.c.b16 %v6844, %v6840
    %v7793 = vpack.c.b16 %v6845, %v6841
    %v7794 = vpack.c.b16 %v6846, %v6842
    %v7795 = vpack.c.b16 %v6847, %v6843
    %v7796 = vpack.c.b16 %v6852, %v6848
    %v7797 = vpack.c.b16 %v6853, %v6849
    %v7798 = vpack.c.b16 %v6854, %v6850
    %v7799 = vpack.c.b16 %v6855, %v6851
    %v7800 = vpack.c.b16 %v6860, %v6856
    %v7801 = vpack.c.b16 %v6861, %v6857
    %v7802 = vpack.c.b16 %v6862, %v6858
    %v7803 = vpack.c.b16 %v6863, %v6859
    %v7804 = vpack.c.b16 %v6868, %v6864
    %v7805 = vpack.c.b16 %v6869, %v6865
    %v7806 = vpack.c.b16 %v6870, %v6866
    %v7807 = vpack.c.b16 %v6871, %v6867
    %v7808 = vpack.c.b16 %v6876, %v6872
    %v7809 = vpack.c.b16 %v6877, %v6873
    %v7810 = vpack.c.b16 %v6878, %v6874
    %v7811 = vpack.c.b16 %v6879, %v6875
    %v7812 = vpack.c.b16 %v6884, %v6880
    %v7813 = vpack.c.b16 %v6885, %v6881
    %v7814 = vpack.c.b16 %v6886, %v6882
    %v7815 = vpack.c.b16 %v6887, %v6883
    %v7816 = vpack.c.b16 %v6892, %v6888
    %v7817 = vpack.c.b16 %v6893, %v6889
    %v7818 = vpack.c.b16 %v6894, %v6890
    %v7819 = vpack.c.b16 %v6895, %v6891
    %v7820 = vpack.c.b16 %v6900, %v6896
    %v7821 = vpack.c.b16 %v6901, %v6897
    %v7822 = vpack.c.b16 %v6902, %v6898
    %v7823 = vpack.c.b16 %v6903, %v6899
    %v7824 = vpack.c.b16 %v6908, %v6904
    %v7825 = vpack.c.b16 %v6909, %v6905
    %v7826 = vpack.c.b16 %v6910, %v6906
    %v7827 = vpack.c.b16 %v6911, %v6907
    %v7828 = vpack.c.b16 %v6916, %v6912
    %v7829 = vpack.c.b16 %v6917, %v6913
    %v7830 = vpack.c.b16 %v6918, %v6914
    %v7831 = vpack.c.b16 %v6919, %v6915
    %v7832 = vpack.c.b16 %v6924, %v6920
    %v7833 = vpack.c.b16 %v6925, %v6921
    %v7834 = vpack.c.b16 %v6926, %v6922
    %v7835 = vpack.c.b16 %v6927, %v6923
    %v7836 = vpack.c.b16 %v6932, %v6928
    %v7837 = vpack.c.b16 %v6933, %v6929
    %v7838 = vpack.c.b16 %v6934, %v6930
    %v7839 = vpack.c.b16 %v6935, %v6931
    %v7840 = vpack.c.b16 %v6940, %v6936
    %v7841 = vpack.c.b16 %v6941, %v6937
    %v7842 = vpack.c.b16 %v6942, %v6938
    %v7843 = vpack.c.b16 %v6943, %v6939
    %v7844 = vpack.c.b16 %v6948, %v6944
    %v7845 = vpack.c.b16 %v6949, %v6945
    %v7846 = vpack.c.b16 %v6950, %v6946
    %v7847 = vpack.c.b16 %v6951, %v6947
    %v7848 = vpack.c.b16 %v6956, %v6952
    %v7849 = vpack.c.b16 %v6957, %v6953
    %v7850 = vpack.c.b16 %v6958, %v6954
    %v7851 = vpack.c.b16 %v6959, %v6955
    %v7852 = vpack.c.b16 %v6964, %v6960
    %v7853 = vpack.c.b16 %v6965, %v6961
    %v7854 = vpack.c.b16 %v6966, %v6962
    %v7855 = vpack.c.b16 %v6967, %v6963
    %v7856 = vpack.c.b16 %v6972, %v6968
    %v7857 = vpack.c.b16 %v6973, %v6969
    %v7858 = vpack.c.b16 %v6974, %v6970
    %v7859 = vpack.c.b16 %v6975, %v6971
    %v7860 = vpack.c.b16 %v6980, %v6976
    %v7861 = vpack.c.b16 %v6981, %v6977
    %v7862 = vpack.c.b16 %v6982, %v6978
    %v7863 = vpack.c.b16 %v6983, %v6979
    %v7864 = vpack.c.b16 %v6988, %v6984
    %v7865 = vpack.c.b16 %v6989, %v6985
    %v7866 = vpack.c.b16 %v6990, %v6986
    %v7867 = vpack.c.b16 %v6991, %v6987
    %v7868 = vpack.c.b16 %v6996, %v6992
    %v7869 = vpack.c.b16 %v6997, %v6993
    %v7870 = vpack.c.b16 %v6998, %v6994
    %v7871 = vpack.c.b16 %v6999, %v6995
    %v7872 = vpack.c.b16 %v7004, %v7000
    %v7873 = vpack.c.b16 %v7005, %v7001
    %v7874 = vpack.c.b16 %v7006, %v7002
    %v7875 = vpack.c.b16 %v7007, %v7003
    %v7876 = vpack.c.b16 %v7012, %v7008
    %v7877 = vpack.c.b16 %v7013, %v7009
    %v7878 = vpack.c.b16 %v7014, %v7010
    %v7879 = vpack.c.b16 %v7015, %v7011
    %v7880 = vpack.c.b16 %v7020, %v7016
    %v7881 = vpack.c.b16 %v7021, %v7017
    %v7882 = vpack.c.b16 %v7022, %v7018
    %v7883 = vpack.c.b16 %v7023, %v7019
    %v7884 = vpack.c.b16 %v7028, %v7024
    %v7885 = vpack.c.b16 %v7029, %v7025
    %v7886 = vpack.c.b16 %v7030, %v7026
    %v7887 = vpack.c.b16 %v7031, %v7027
    %v7888 = vpack.c.b16 %v7036, %v7032
    %v7889 = vpack.c.b16 %v7037, %v7033
    %v7890 = vpack.c.b16 %v7038, %v7034
    %v7891 = vpack.c.b16 %v7039, %v7035
    %v7892 = vpack.c.b16 %v7044, %v7040
    %v7893 = vpack.c.b16 %v7045, %v7041
    %v7894 = vpack.c.b16 %v7046, %v7042
    %v7895 = vpack.c.b16 %v7047, %v7043
    %v7896 = vpack.c.b16 %v7052, %v7048
    %v7897 = vpack.c.b16 %v7053, %v7049
    %v7898 = vpack.c.b16 %v7054, %v7050
    %v7899 = vpack.c.b16 %v7055, %v7051
    %v7900 = vpack.c.b16 %v7060, %v7056
    %v7901 = vpack.c.b16 %v7061, %v7057
    %v7902 = vpack.c.b16 %v7062, %v7058
    %v7903 = vpack.c.b16 %v7063, %v7059
    %v7904 = vpack.c.b16 %v7068, %v7064
    %v7905 = vpack.c.b16 %v7069, %v7065
    %v7906 = vpack.c.b16 %v7070, %v7066
    %v7907 = vpack.c.b16 %v7071, %v7067
    %v7908 = vpack.c.b16 %v7076, %v7072
    %v7909 = vpack.c.b16 %v7077, %v7073
    %v7910 = vpack.c.b16 %v7078, %v7074
    %v7911 = vpack.c.b16 %v7079, %v7075
    %v7912 = vpack.c.b16 %v7084, %v7080
    %v7913 = vpack.c.b16 %v7085, %v7081
    %v7914 = vpack.c.b16 %v7086, %v7082
    %v7915 = vpack.c.b16 %v7087, %v7083
    %v7916 = vpack.c.b16 %v7092, %v7088
    %v7917 = vpack.c.b16 %v7093, %v7089
    %v7918 = vpack.c.b16 %v7094, %v7090
    %v7919 = vpack.c.b16 %v7095, %v7091
    %v7920 = vpack.c.b16 %v7100, %v7096
    %v7921 = vpack.c.b16 %v7101, %v7097
    %v7922 = vpack.c.b16 %v7102, %v7098
    %v7923 = vpack.c.b16 %v7103, %v7099
    %v7924 = vpack.c.b16 %v7108, %v7104
    %v7925 = vpack.c.b16 %v7109, %v7105
    %v7926 = vpack.c.b16 %v7110, %v7106
    %v7927 = vpack.c.b16 %v7111, %v7107
    %v7928 = vpack.c.b16 %v7116, %v7112
    %v7929 = vpack.c.b16 %v7117, %v7113
    %v7930 = vpack.c.b16 %v7118, %v7114
    %v7931 = vpack.c.b16 %v7119, %v7115
    %v7932 = vpack.c.b16 %v7124, %v7120
    %v7933 = vpack.c.b16 %v7125, %v7121
    %v7934 = vpack.c.b16 %v7126, %v7122
    %v7935 = vpack.c.b16 %v7127, %v7123
    %v7936 = vpack.c.b16 %v7132, %v7128
    %v7937 = vpack.c.b16 %v7133, %v7129
    %v7938 = vpack.c.b16 %v7134, %v7130
    %v7939 = vpack.c.b16 %v7135, %v7131
    %v7940 = vpack.c.b16 %v7140, %v7136
    %v7941 = vpack.c.b16 %v7141, %v7137
    %v7942 = vpack.c.b16 %v7142, %v7138
    %v7943 = vpack.c.b16 %v7143, %v7139
    %v7944 = vpack.c.b16 %v7148, %v7144
    %v7945 = vpack.c.b16 %v7149, %v7145
    %v7946 = vpack.c.b16 %v7150, %v7146
    %v7947 = vpack.c.b16 %v7151, %v7147
    %v7948 = vpack.c.b16 %v7156, %v7152
    %v7949 = vpack.c.b16 %v7157, %v7153
    %v7950 = vpack.c.b16 %v7158, %v7154
    %v7951 = vpack.c.b16 %v7159, %v7155
    %v7952 = vpack.c.b16 %v7164, %v7160
    %v7953 = vpack.c.b16 %v7165, %v7161
    %v7954 = vpack.c.b16 %v7166, %v7162
    %v7955 = vpack.c.b16 %v7167, %v7163
    %v7956 = vpack.c.b16 %v7172, %v7168
    %v7957 = vpack.c.b16 %v7173, %v7169
    %v7958 = vpack.c.b16 %v7174, %v7170
    %v7959 = vpack.c.b16 %v7175, %v7171
    %v7960 = vpack.c.b16 %v7180, %v7176
    %v7961 = vpack.c.b16 %v7181, %v7177
    %v7962 = vpack.c.b16 %v7182, %v7178
    %v7963 = vpack.c.b16 %v7183, %v7179
    %v7964 = vpack.c.b16 %v7188, %v7184
    %v7965 = vpack.c.b16 %v7189, %v7185
    %v7966 = vpack.c.b16 %v7190, %v7186
    %v7967 = vpack.c.b16 %v7191, %v7187
    %v7968 = vpack.c.b16 %v7196, %v7192
    %v7969 = vpack.c.b16 %v7197, %v7193
    %v7970 = vpack.c.b16 %v7198, %v7194
    %v7971 = vpack.c.b16 %v7199, %v7195
    %v7972 = vpack.c.b16 %v7204, %v7200
    %v7973 = vpack.c.b16 %v7205, %v7201
    %v7974 = vpack.c.b16 %v7206, %v7202
    %v7975 = vpack.c.b16 %v7207, %v7203
    %v7976 = vpack.c.b16 %v7212, %v7208
    %v7977 = vpack.c.b16 %v7213, %v7209
    %v7978 = vpack.c.b16 %v7214, %v7210
    %v7979 = vpack.c.b16 %v7215, %v7211
    %v7980 = vpack.c.b16 %v7220, %v7216
    %v7981 = vpack.c.b16 %v7221, %v7217
    %v7982 = vpack.c.b16 %v7222, %v7218
    %v7983 = vpack.c.b16 %v7223, %v7219
    %v7984 = vpack.c.b16 %v7228, %v7224
    %v7985 = vpack.c.b16 %v7229, %v7225
    %v7986 = vpack.c.b16 %v7230, %v7226
    %v7987 = vpack.c.b16 %v7231, %v7227
    %v7988 = vpack.c.b16 %v7236, %v7232
    %v7989 = vpack.c.b16 %v7237, %v7233
    %v7990 = vpack.c.b16 %v7238, %v7234
    %v7991 = vpack.c.b16 %v7239, %v7235
    %v7992 = vpack.c.b16 %v7244, %v7240
    %v7993 = vpack.c.b16 %v7245, %v7241
    %v7994 = vpack.c.b16 %v7246, %v7242
    %v7995 = vpack.c.b16 %v7247, %v7243
    %v7996 = vpack.c.b16 %v7252, %v7248
    %v7997 = vpack.c.b16 %v7253, %v7249
    %v7998 = vpack.c.b16 %v7254, %v7250
    %v7999 = vpack.c.b16 %v7255, %v7251
    %v8000 = vpack.c.b16 %v7260, %v7256
    %v8001 = vpack.c.b16 %v7261, %v7257
    %v8002 = vpack.c.b16 %v7262, %v7258
    %v8003 = vpack.c.b16 %v7263, %v7259
    %v8004 = vpack.c.b16 %v7268, %v7264
    %v8005 = vpack.c.b16 %v7269, %v7265
    %v8006 = vpack.c.b16 %v7270, %v7266
    %v8007 = vpack.c.b16 %v7271, %v7267
    %v8008 = vpack.c.b16 %v7276, %v7272
    %v8009 = vpack.c.b16 %v7277, %v7273
    %v8010 = vpack.c.b16 %v7278, %v7274
    %v8011 = vpack.c.b16 %v7279, %v7275
    %v8012 = vpack.c.b16 %v7284, %v7280
    %v8013 = vpack.c.b16 %v7285, %v7281
    %v8014 = vpack.c.b16 %v7286, %v7282
    %v8015 = vpack.c.b16 %v7287, %v7283
    %v8016 = vpack.c.b16 %v7292, %v7288
    %v8017 = vpack.c.b16 %v7293, %v7289
    %v8018 = vpack.c.b16 %v7294, %v7290
    %v8019 = vpack.c.b16 %v7295, %v7291
    %v8020 = vpack.c.b16 %v7300, %v7296
    %v8021 = vpack.c.b16 %v7301, %v7297
    %v8022 = vpack.c.b16 %v7302, %v7298
    %v8023 = vpack.c.b16 %v7303, %v7299
    %v8024 = vpack.c.b16 %v7308, %v7304
    %v8025 = vpack.c.b16 %v7309, %v7305
    %v8026 = vpack.c.b16 %v7310, %v7306
    %v8027 = vpack.c.b16 %v7311, %v7307
    %v8028 = vpack.c.b16 %v7316, %v7312
    %v8029 = vpack.c.b16 %v7317, %v7313
    %v8030 = vpack.c.b16 %v7318, %v7314
    %v8031 = vpack.c.b16 %v7319, %v7315
    %v8032 = vpack.c.b16 %v7324, %v7320
    %v8033 = vpack.c.b16 %v7325, %v7321
    %v8034 = vpack.c.b16 %v7326, %v7322
    %v8035 = vpack.c.b16 %v7327, %v7323
    %v8036 = vpack.c.b16 %v7332, %v7328
    %v8037 = vpack.c.b16 %v7333, %v7329
    %v8038 = vpack.c.b16 %v7334, %v7330
    %v8039 = vpack.c.b16 %v7335, %v7331
    %v8040 = vpack.c.b16 %v7340, %v7336
    %v8041 = vpack.c.b16 %v7341, %v7337
    %v8042 = vpack.c.b16 %v7342, %v7338
    %v8043 = vpack.c.b16 %v7343, %v7339
    %v8044 = vpack.c.b16 %v7348, %v7344
    %v8045 = vpack.c.b16 %v7349, %v7345
    %v8046 = vpack.c.b16 %v7350, %v7346
    %v8047 = vpack.c.b16 %v7351, %v7347
    %v8048 = vpack.c.b16 %v7356, %v7352
    %v8049 = vpack.c.b16 %v7357, %v7353
    %v8050 = vpack.c.b16 %v7358, %v7354
    %v8051 = vpack.c.b16 %v7359, %v7355
    %v8052 = vpack.c.b16 %v7364, %v7360
    %v8053 = vpack.c.b16 %v7365, %v7361
    %v8054 = vpack.c.b16 %v7366, %v7362
    %v8055 = vpack.c.b16 %v7367, %v7363
    %v8056 = vpack.c.b16 %v7372, %v7368
    %v8057 = vpack.c.b16 %v7373, %v7369
    %v8058 = vpack.c.b16 %v7374, %v7370
    %v8059 = vpack.c.b16 %v7375, %v7371
    %v8060 = vpack.c.b16 %v7380, %v7376
    %v8061 = vpack.c.b16 %v7381, %v7377
    %v8062 = vpack.c.b16 %v7382, %v7378
    %v8063 = vpack.c.b16 %v7383, %v7379
    %v8064 = vpack.c.b16 %v7388, %v7384
    %v8065 = vpack.c.b16 %v7389, %v7385
    %v8066 = vpack.c.b16 %v7390, %v7386
    %v8067 = vpack.c.b16 %v7391, %v7387
    %v8068 = vpack.c.b16 %v7396, %v7392
    %v8069 = vpack.c.b16 %v7397, %v7393
    %v8070 = vpack.c.b16 %v7398, %v7394
    %v8071 = vpack.c.b16 %v7399, %v7395
    %v8072 = vpack.c.b16 %v7404, %v7400
    %v8073 = vpack.c.b16 %v7405, %v7401
    %v8074 = vpack.c.b16 %v7406, %v7402
    %v8075 = vpack.c.b16 %v7407, %v7403
    %v8076 = vpack.c.b16 %v7412, %v7408
    %v8077 = vpack.c.b16 %v7413, %v7409
    %v8078 = vpack.c.b16 %v7414, %v7410
    %v8079 = vpack.c.b16 %v7415, %v7411
    %v8080 = vpack.c.b16 %v7420, %v7416
    %v8081 = vpack.c.b16 %v7421, %v7417
    %v8082 = vpack.c.b16 %v7422, %v7418
    %v8083 = vpack.c.b16 %v7423, %v7419
    %v8084 = vpack.c.b16 %v7428, %v7424
    %v8085 = vpack.c.b16 %v7429, %v7425
    %v8086 = vpack.c.b16 %v7430, %v7426
    %v8087 = vpack.c.b16 %v7431, %v7427
    %v8088 = vpack.c.b16 %v7436, %v7432
    %v8089 = vpack.c.b16 %v7437, %v7433
    %v8090 = vpack.c.b16 %v7438, %v7434
    %v8091 = vpack.c.b16 %v7439, %v7435
    %v8092 = vpack.c.b16 %v7444, %v7440
    %v8093 = vpack.c.b16 %v7445, %v7441
    %v8094 = vpack.c.b16 %v7446, %v7442
    %v8095 = vpack.c.b16 %v7447, %v7443
    %v8096 = vpack.c.b16 %v7452, %v7448
    %v8097 = vpack.c.b16 %v7453, %v7449
    %v8098 = vpack.c.b16 %v7454, %v7450
    %v8099 = vpack.c.b16 %v7455, %v7451
    %v8100 = vpack.c.b16 %v7460, %v7456
    %v8101 = vpack.c.b16 %v7461, %v7457
    %v8102 = vpack.c.b16 %v7462, %v7458
    %v8103 = vpack.c.b16 %v7463, %v7459
    %v8104 = vpack.c.b16 %v7468, %v7464
    %v8105 = vpack.c.b16 %v7469, %v7465
    %v8106 = vpack.c.b16 %v7470, %v7466
    %v8107 = vpack.c.b16 %v7471, %v7467
    %v8108 = vpack.c.b16 %v7476, %v7472
    %v8109 = vpack.c.b16 %v7477, %v7473
    %v8110 = vpack.c.b16 %v7478, %v7474
    %v8111 = vpack.c.b16 %v7479, %v7475
    %v8112 = vpack.c.b16 %v7484, %v7480
    %v8113 = vpack.c.b16 %v7485, %v7481
    %v8114 = vpack.c.b16 %v7486, %v7482
    %v8115 = vpack.c.b16 %v7487, %v7483
    %v8116 = vpack.c.b16 %v7492, %v7488
    %v8117 = vpack.c.b16 %v7493, %v7489
    %v8118 = vpack.c.b16 %v7494, %v7490
    %v8119 = vpack.c.b16 %v7495, %v7491
    %v8120 = vpack.c.b16 %v7500, %v7496
    %v8121 = vpack.c.b16 %v7501, %v7497
    %v8122 = vpack.c.b16 %v7502, %v7498
    %v8123 = vpack.c.b16 %v7503, %v7499
    %v8124 = vpack.c.b16 %v7508, %v7504
    %v8125 = vpack.c.b16 %v7509, %v7505
    %v8126 = vpack.c.b16 %v7510, %v7506
    %v8127 = vpack.c.b16 %v7511, %v7507
    %v8128 = vpack.c.b16 %v7516, %v7512
    %v8129 = vpack.c.b16 %v7517, %v7513
    %v8130 = vpack.c.b16 %v7518, %v7514
    %v8131 = vpack.c.b16 %v7519, %v7515
    %v8132 = vpack.c.b16 %v7524, %v7520
    %v8133 = vpack.c.b16 %v7525, %v7521
    %v8134 = vpack.c.b16 %v7526, %v7522
    %v8135 = vpack.c.b16 %v7527, %v7523
    %v8136 = vpack.c.b16 %v7532, %v7528
    %v8137 = vpack.c.b16 %v7533, %v7529
    %v8138 = vpack.c.b16 %v7534, %v7530
    %v8139 = vpack.c.b16 %v7535, %v7531
    %v8140 = vpack.c.b16 %v7540, %v7536
    %v8141 = vpack.c.b16 %v7541, %v7537
    %v8142 = vpack.c.b16 %v7542, %v7538
    %v8143 = vpack.c.b16 %v7543, %v7539
    %v8144 = vpack.c.b16 %v7548, %v7544
    %v8145 = vpack.c.b16 %v7549, %v7545
    %v8146 = vpack.c.b16 %v7550, %v7546
    %v8147 = vpack.c.b16 %v7551, %v7547
    %v8148 = vpack.c.b16 %v7556, %v7552
    %v8149 = vpack.c.b16 %v7557, %v7553
    %v8150 = vpack.c.b16 %v7558, %v7554
    %v8151 = vpack.c.b16 %v7559, %v7555
    %v8152 = vpack.c.b16 %v7564, %v7560
    %v8153 = vpack.c.b16 %v7565, %v7561
    %v8154 = vpack.c.b16 %v7566, %v7562
    %v8155 = vpack.c.b16 %v7567, %v7563
    %v8156 = vpack.c.b16 %v7572, %v7568
    %v8157 = vpack.c.b16 %v7573, %v7569
    %v8158 = vpack.c.b16 %v7574, %v7570
    %v8159 = vpack.c.b16 %v7575, %v7571
    %v8160 = vpack.c.b16 %v7580, %v7576
    %v8161 = vpack.c.b16 %v7581, %v7577
    %v8162 = vpack.c.b16 %v7582, %v7578
    %v8163 = vpack.c.b16 %v7583, %v7579
    %v8164 = vpack.c.b16 %v7588, %v7584
    %v8165 = vpack.c.b16 %v7589, %v7585
    %v8166 = vpack.c.b16 %v7590, %v7586
    %v8167 = vpack.c.b16 %v7591, %v7587
    %v8168 = vpack.c.b16 %v7596, %v7592
    %v8169 = vpack.c.b16 %v7597, %v7593
    %v8170 = vpack.c.b16 %v7598, %v7594
    %v8171 = vpack.c.b16 %v7599, %v7595
    %v8172 = vpack.c.b16 %v7604, %v7600
    %v8173 = vpack.c.b16 %v7605, %v7601
    %v8174 = vpack.c.b16 %v7606, %v7602
    %v8175 = vpack.c.b16 %v7607, %v7603
    %v8176 = vpack.c.b16 %v7612, %v7608
    %v8177 = vpack.c.b16 %v7613, %v7609
    %v8178 = vpack.c.b16 %v7614, %v7610
    %v8179 = vpack.c.b16 %v7615, %v7611
    %v8180 = vpack.c.b16 %v7620, %v7616
    %v8181 = vpack.c.b16 %v7621, %v7617
    %v8182 = vpack.c.b16 %v7622, %v7618
    %v8183 = vpack.c.b16 %v7623, %v7619
    %v8184 = vpack.c.b16 %v7628, %v7624
    %v8185 = vpack.c.b16 %v7629, %v7625
    %v8186 = vpack.c.b16 %v7630, %v7626
    %v8187 = vpack.c.b16 %v7631, %v7627
    %v8188 = vpack.c.b16 %v7636, %v7632
    %v8189 = vpack.c.b16 %v7637, %v7633
    %v8190 = vpack.c.b16 %v7638, %v7634
    %v8191 = vpack.c.b16 %v7639, %v7635
    %v8192 = vpack.c.b16 %v7644, %v7640
    %v8193 = vpack.c.b16 %v7645, %v7641
    %v8194 = vpack.c.b16 %v7646, %v7642
    %v8195 = vpack.c.b16 %v7647, %v7643
    %v8196 = vpack.c.b16 %v7652, %v7648
    %v8197 = vpack.c.b16 %v7653, %v7649
    %v8198 = vpack.c.b16 %v7654, %v7650
    %v8199 = vpack.c.b16 %v7655, %v7651
    %v8200 = vpack.c.b16 %v7660, %v7656
    %v8201 = vpack.c.b16 %v7661, %v7657
    %v8202 = vpack.c.b16 %v7662, %v7658
    %v8203 = vpack.c.b16 %v7663, %v7659
    %v8204 = vpack.c.b16 %v7668, %v7664
    %v8205 = vpack.c.b16 %v7669, %v7665
    %v8206 = vpack.c.b16 %v7670, %v7666
    %v8207 = vpack.c.b16 %v7671, %v7667
    %v8208 = vpack.c.b16 %v7676, %v7672
    %v8209 = vpack.c.b16 %v7677, %v7673
    %v8210 = vpack.c.b16 %v7678, %v7674
    %v8211 = vpack.c.b16 %v7679, %v7675
    %v8212 = vpack.c.b16 %v7684, %v7680
    %v8213 = vpack.c.b16 %v7685, %v7681
    %v8214 = vpack.c.b16 %v7686, %v7682
    %v8215 = vpack.c.b16 %v7687, %v7683
    %v8216 = vpack.c.b16 %v7692, %v7688
    %v8217 = vpack.c.b16 %v7693, %v7689
    %v8218 = vpack.c.b16 %v7694, %v7690
    %v8219 = vpack.c.b16 %v7695, %v7691
    %v8220 = vpack.c.b16 %v7700, %v7696
    %v8221 = vpack.c.b16 %v7701, %v7697
    %v8222 = vpack.c.b16 %v7702, %v7698
    %v8223 = vpack.c.b16 %v7703, %v7699
    %v8224 = vpack.c.b16 %v7708, %v7704
    %v8225 = vpack.c.b16 %v7709, %v7705
    %v8226 = vpack.c.b16 %v7710, %v7706
    %v8227 = vpack.c.b16 %v7711, %v7707
    %v8228 = vpack.c.b16 %v7716, %v7712
    %v8229 = vpack.c.b16 %v7717, %v7713
    %v8230 = vpack.c.b16 %v7718, %v7714
    %v8231 = vpack.c.b16 %v7719, %v7715
    %8744 = vmatpush.bf16.msra.mxu0 %v7748
    %8745 = vmatpush.bf16.msra.mxu0 %v7744
    %8746 = vmatpush.bf16.msra.mxu0 %v7740
    %8747 = vmatpush.bf16.msra.mxu0 %v7736
    %8748 = vmatpush.bf16.msra.mxu0 %v7732
    %8749 = vmatpush.bf16.msra.mxu0 %v7728
    %8750 = vmatpush.bf16.msra.mxu0 %v7724
    %8751 = vmatpush.bf16.msra.mxu0 %v7720
    %8752 = vmatmul.bf16.gmra.mxu0 %v5646
    %v8753 = vpop.f32.mrf.mxu0
    %v8754 = vadd.f32 %v6176, %v8753
    %v8755 = vpop.f32.mrf.mxu0
    %8756 = vdwg.mxu0
    %8757 = vmatpush.bf16.msra.mxu0 %v7780
    %8758 = vmatpush.bf16.msra.mxu0 %v7776
    %8759 = vmatpush.bf16.msra.mxu0 %v7772
    %8760 = vmatpush.bf16.msra.mxu0 %v7768
    %8761 = vmatpush.bf16.msra.mxu0 %v7764
    %8762 = vmatpush.bf16.msra.mxu0 %v7760
    %8763 = vmatpush.bf16.msra.mxu0 %v7756
    %8764 = vmatpush.bf16.msra.mxu0 %v7752
    %8765 = vmatmul.bf16.gmra.mxu0 %v5647
    %v8766 = vpop.f32.mrf.mxu0
    %v8767 = vadd.f32 %v8754, %v8766
    %v8768 = vpop.f32.mrf.mxu0
    %8769 = vdwg.mxu0
    %8770 = vmatpush.bf16.msra.mxu0 %v7812
    %8771 = vmatpush.bf16.msra.mxu0 %v7808
    %8772 = vmatpush.bf16.msra.mxu0 %v7804
    %8773 = vmatpush.bf16.msra.mxu0 %v7800
    %8774 = vmatpush.bf16.msra.mxu0 %v7796
    %8775 = vmatpush.bf16.msra.mxu0 %v7792
    %8776 = vmatpush.bf16.msra.mxu0 %v7788
    %8777 = vmatpush.bf16.msra.mxu0 %v7784
    %8778 = vmatmul.bf16.gmra.mxu0 %v5648
    %v8779 = vpop.f32.mrf.mxu0
    %v8780 = vadd.f32 %v8767, %v8779
    %v8781 = vpop.f32.mrf.mxu0
    %8782 = vdwg.mxu0
    %8783 = vmatpush.bf16.msra.mxu0 %v7844
    %8784 = vmatpush.bf16.msra.mxu0 %v7840
    %8785 = vmatpush.bf16.msra.mxu0 %v7836
    %8786 = vmatpush.bf16.msra.mxu0 %v7832
    %8787 = vmatpush.bf16.msra.mxu0 %v7828
    %8788 = vmatpush.bf16.msra.mxu0 %v7824
    %8789 = vmatpush.bf16.msra.mxu0 %v7820
    %8790 = vmatpush.bf16.msra.mxu0 %v7816
    %8791 = vmatmul.bf16.gmra.mxu0 %v5649
    %v8792 = vpop.f32.mrf.mxu0
    %v8793 = vadd.f32 %v8780, %v8792
    %v8794 = vpop.f32.mrf.mxu0
    %8795 = vdwg.mxu0
    %8796 = vmatpush.bf16.msra.mxu0 %v7876
    %8797 = vmatpush.bf16.msra.mxu0 %v7872
    %8798 = vmatpush.bf16.msra.mxu0 %v7868
    %8799 = vmatpush.bf16.msra.mxu0 %v7864
    %8800 = vmatpush.bf16.msra.mxu0 %v7860
    %8801 = vmatpush.bf16.msra.mxu0 %v7856
    %8802 = vmatpush.bf16.msra.mxu0 %v7852
    %8803 = vmatpush.bf16.msra.mxu0 %v7848
    %8804 = vmatmul.bf16.gmra.mxu0 %v5650
    %v8805 = vpop.f32.mrf.mxu0
    %v8806 = vadd.f32 %v8793, %v8805
    %v8807 = vpop.f32.mrf.mxu0
    %8808 = vdwg.mxu0
    %8809 = vmatpush.bf16.msra.mxu0 %v7908
    %8810 = vmatpush.bf16.msra.mxu0 %v7904
    %8811 = vmatpush.bf16.msra.mxu0 %v7900
    %8812 = vmatpush.bf16.msra.mxu0 %v7896
    %8813 = vmatpush.bf16.msra.mxu0 %v7892
    %8814 = vmatpush.bf16.msra.mxu0 %v7888
    %8815 = vmatpush.bf16.msra.mxu0 %v7884
    %8816 = vmatpush.bf16.msra.mxu0 %v7880
    %8817 = vmatmul.bf16.gmra.mxu0 %v5651
    %v8818 = vpop.f32.mrf.mxu0
    %v8819 = vadd.f32 %v8806, %v8818
    %v8820 = vpop.f32.mrf.mxu0
    %8821 = vdwg.mxu0
    %8822 = vmatpush.bf16.msra.mxu0 %v7940
    %8823 = vmatpush.bf16.msra.mxu0 %v7936
    %8824 = vmatpush.bf16.msra.mxu0 %v7932
    %8825 = vmatpush.bf16.msra.mxu0 %v7928
    %8826 = vmatpush.bf16.msra.mxu0 %v7924
    %8827 = vmatpush.bf16.msra.mxu0 %v7920
    %8828 = vmatpush.bf16.msra.mxu0 %v7916
    %8829 = vmatpush.bf16.msra.mxu0 %v7912
    %8830 = vmatmul.bf16.gmra.mxu0 %v5652
    %v8831 = vpop.f32.mrf.mxu0
    %v8832 = vadd.f32 %v8819, %v8831
    %v8833 = vpop.f32.mrf.mxu0
    %8834 = vdwg.mxu0
    %8835 = vmatpush.bf16.msra.mxu0 %v7972
    %8836 = vmatpush.bf16.msra.mxu0 %v7968
    %8837 = vmatpush.bf16.msra.mxu0 %v7964
    %8838 = vmatpush.bf16.msra.mxu0 %v7960
    %8839 = vmatpush.bf16.msra.mxu0 %v7956
    %8840 = vmatpush.bf16.msra.mxu0 %v7952
    %8841 = vmatpush.bf16.msra.mxu0 %v7948
    %8842 = vmatpush.bf16.msra.mxu0 %v7944
    %8843 = vmatmul.bf16.gmra.mxu0 %v5653
    %v8844 = vpop.f32.mrf.mxu0
    %v8845 = vadd.f32 %v8832, %v8844
    %v8846 = vpop.f32.mrf.mxu0
    %8847 = vdwg.mxu0
    %8848 = vmatpush.bf16.msra.mxu0 %v8004
    %8849 = vmatpush.bf16.msra.mxu0 %v8000
    %8850 = vmatpush.bf16.msra.mxu0 %v7996
    %8851 = vmatpush.bf16.msra.mxu0 %v7992
    %8852 = vmatpush.bf16.msra.mxu0 %v7988
    %8853 = vmatpush.bf16.msra.mxu0 %v7984
    %8854 = vmatpush.bf16.msra.mxu0 %v7980
    %8855 = vmatpush.bf16.msra.mxu0 %v7976
    %8856 = vmatmul.bf16.gmra.mxu0 %v5654
    %v8857 = vpop.f32.mrf.mxu0
    %v8858 = vadd.f32 %v8845, %v8857
    %v8859 = vpop.f32.mrf.mxu0
    %8860 = vdwg.mxu0
    %8861 = vmatpush.bf16.msra.mxu0 %v8036
    %8862 = vmatpush.bf16.msra.mxu0 %v8032
    %8863 = vmatpush.bf16.msra.mxu0 %v8028
    %8864 = vmatpush.bf16.msra.mxu0 %v8024
    %8865 = vmatpush.bf16.msra.mxu0 %v8020
    %8866 = vmatpush.bf16.msra.mxu0 %v8016
    %8867 = vmatpush.bf16.msra.mxu0 %v8012
    %8868 = vmatpush.bf16.msra.mxu0 %v8008
    %8869 = vmatmul.bf16.gmra.mxu0 %v5655
    %v8870 = vpop.f32.mrf.mxu0
    %v8871 = vadd.f32 %v8858, %v8870
    %v8872 = vpop.f32.mrf.mxu0
    %8873 = vdwg.mxu0
    %8874 = vmatpush.bf16.msra.mxu0 %v8068
    %8875 = vmatpush.bf16.msra.mxu0 %v8064
    %8876 = vmatpush.bf16.msra.mxu0 %v8060
    %8877 = vmatpush.bf16.msra.mxu0 %v8056
    %8878 = vmatpush.bf16.msra.mxu0 %v8052
    %8879 = vmatpush.bf16.msra.mxu0 %v8048
    %8880 = vmatpush.bf16.msra.mxu0 %v8044
    %8881 = vmatpush.bf16.msra.mxu0 %v8040
    %8882 = vmatmul.bf16.gmra.mxu0 %v5656
    %v8883 = vpop.f32.mrf.mxu0
    %v8884 = vadd.f32 %v8871, %v8883
    %v8885 = vpop.f32.mrf.mxu0
    %8886 = vdwg.mxu0
    %8887 = vmatpush.bf16.msra.mxu0 %v8100
    %8888 = vmatpush.bf16.msra.mxu0 %v8096
    %8889 = vmatpush.bf16.msra.mxu0 %v8092
    %8890 = vmatpush.bf16.msra.mxu0 %v8088
    %8891 = vmatpush.bf16.msra.mxu0 %v8084
    %8892 = vmatpush.bf16.msra.mxu0 %v8080
    %8893 = vmatpush.bf16.msra.mxu0 %v8076
    %8894 = vmatpush.bf16.msra.mxu0 %v8072
    %8895 = vmatmul.bf16.gmra.mxu0 %v5657
    %v8896 = vpop.f32.mrf.mxu0
    %v8897 = vadd.f32 %v8884, %v8896
    %v8898 = vpop.f32.mrf.mxu0
    %8899 = vdwg.mxu0
    %8900 = vmatpush.bf16.msra.mxu0 %v8132
    %8901 = vmatpush.bf16.msra.mxu0 %v8128
    %8902 = vmatpush.bf16.msra.mxu0 %v8124
    %8903 = vmatpush.bf16.msra.mxu0 %v8120
    %8904 = vmatpush.bf16.msra.mxu0 %v8116
    %8905 = vmatpush.bf16.msra.mxu0 %v8112
    %8906 = vmatpush.bf16.msra.mxu0 %v8108
    %8907 = vmatpush.bf16.msra.mxu0 %v8104
    %8908 = vmatmul.bf16.gmra.mxu0 %v5658
    %v8909 = vpop.f32.mrf.mxu0
    %v8910 = vadd.f32 %v8897, %v8909
    %v8911 = vpop.f32.mrf.mxu0
    %8912 = vdwg.mxu0
    %8913 = vmatpush.bf16.msra.mxu0 %v8164
    %8914 = vmatpush.bf16.msra.mxu0 %v8160
    %8915 = vmatpush.bf16.msra.mxu0 %v8156
    %8916 = vmatpush.bf16.msra.mxu0 %v8152
    %8917 = vmatpush.bf16.msra.mxu0 %v8148
    %8918 = vmatpush.bf16.msra.mxu0 %v8144
    %8919 = vmatpush.bf16.msra.mxu0 %v8140
    %8920 = vmatpush.bf16.msra.mxu0 %v8136
    %8921 = vmatmul.bf16.gmra.mxu0 %v5659
    %v8922 = vpop.f32.mrf.mxu0
    %v8923 = vadd.f32 %v8910, %v8922
    %v8924 = vpop.f32.mrf.mxu0
    %8925 = vdwg.mxu0
    %8926 = vmatpush.bf16.msra.mxu0 %v8196
    %8927 = vmatpush.bf16.msra.mxu0 %v8192
    %8928 = vmatpush.bf16.msra.mxu0 %v8188
    %8929 = vmatpush.bf16.msra.mxu0 %v8184
    %8930 = vmatpush.bf16.msra.mxu0 %v8180
    %8931 = vmatpush.bf16.msra.mxu0 %v8176
    %8932 = vmatpush.bf16.msra.mxu0 %v8172
    %8933 = vmatpush.bf16.msra.mxu0 %v8168
    %8934 = vmatmul.bf16.gmra.mxu0 %v5660
    %v8935 = vpop.f32.mrf.mxu0
    %v8936 = vadd.f32 %v8923, %v8935
    %v8937 = vpop.f32.mrf.mxu0
    %8938 = vdwg.mxu0
    %8939 = vmatpush.bf16.msra.mxu0 %v8228
    %8940 = vmatpush.bf16.msra.mxu0 %v8224
    %8941 = vmatpush.bf16.msra.mxu0 %v8220
    %8942 = vmatpush.bf16.msra.mxu0 %v8216
    %8943 = vmatpush.bf16.msra.mxu0 %v8212
    %8944 = vmatpush.bf16.msra.mxu0 %v8208
    %8945 = vmatpush.bf16.msra.mxu0 %v8204
    %8946 = vmatpush.bf16.msra.mxu0 %v8200
    %8947 = vmatmul.bf16.gmra.mxu0 %v5661
    %v8948 = vpop.f32.mrf.mxu0
    %v8949 = vadd.f32 %v8936, %v8948
    %v8950 = vpop.f32.mrf.mxu0
    %8951 = vdwg.mxu0
    %8952 = vmatpush.bf16.msra.mxu0 %v7749
    %8953 = vmatpush.bf16.msra.mxu0 %v7745
    %8954 = vmatpush.bf16.msra.mxu0 %v7741
    %8955 = vmatpush.bf16.msra.mxu0 %v7737
    %8956 = vmatpush.bf16.msra.mxu0 %v7733
    %8957 = vmatpush.bf16.msra.mxu0 %v7729
    %8958 = vmatpush.bf16.msra.mxu0 %v7725
    %8959 = vmatpush.bf16.msra.mxu0 %v7721
    %8960 = vmatmul.bf16.gmra.mxu0 %v5646
    %v8961 = vpop.f32.mrf.mxu0
    %v8962 = vadd.f32 %v6177, %v8961
    %v8963 = vpop.f32.mrf.mxu0
    %8964 = vdwg.mxu0
    %8965 = vmatpush.bf16.msra.mxu0 %v7781
    %8966 = vmatpush.bf16.msra.mxu0 %v7777
    %8967 = vmatpush.bf16.msra.mxu0 %v7773
    %8968 = vmatpush.bf16.msra.mxu0 %v7769
    %8969 = vmatpush.bf16.msra.mxu0 %v7765
    %8970 = vmatpush.bf16.msra.mxu0 %v7761
    %8971 = vmatpush.bf16.msra.mxu0 %v7757
    %8972 = vmatpush.bf16.msra.mxu0 %v7753
    %8973 = vmatmul.bf16.gmra.mxu0 %v5647
    %v8974 = vpop.f32.mrf.mxu0
    %v8975 = vadd.f32 %v8962, %v8974
    %v8976 = vpop.f32.mrf.mxu0
    %8977 = vdwg.mxu0
    %8978 = vmatpush.bf16.msra.mxu0 %v7813
    %8979 = vmatpush.bf16.msra.mxu0 %v7809
    %8980 = vmatpush.bf16.msra.mxu0 %v7805
    %8981 = vmatpush.bf16.msra.mxu0 %v7801
    %8982 = vmatpush.bf16.msra.mxu0 %v7797
    %8983 = vmatpush.bf16.msra.mxu0 %v7793
    %8984 = vmatpush.bf16.msra.mxu0 %v7789
    %8985 = vmatpush.bf16.msra.mxu0 %v7785
    %8986 = vmatmul.bf16.gmra.mxu0 %v5648
    %v8987 = vpop.f32.mrf.mxu0
    %v8988 = vadd.f32 %v8975, %v8987
    %v8989 = vpop.f32.mrf.mxu0
    %8990 = vdwg.mxu0
    %8991 = vmatpush.bf16.msra.mxu0 %v7845
    %8992 = vmatpush.bf16.msra.mxu0 %v7841
    %8993 = vmatpush.bf16.msra.mxu0 %v7837
    %8994 = vmatpush.bf16.msra.mxu0 %v7833
    %8995 = vmatpush.bf16.msra.mxu0 %v7829
    %8996 = vmatpush.bf16.msra.mxu0 %v7825
    %8997 = vmatpush.bf16.msra.mxu0 %v7821
    %8998 = vmatpush.bf16.msra.mxu0 %v7817
    %8999 = vmatmul.bf16.gmra.mxu0 %v5649
    %v9000 = vpop.f32.mrf.mxu0
    %v9001 = vadd.f32 %v8988, %v9000
    %v9002 = vpop.f32.mrf.mxu0
    %9003 = vdwg.mxu0
    %9004 = vmatpush.bf16.msra.mxu0 %v7877
    %9005 = vmatpush.bf16.msra.mxu0 %v7873
    %9006 = vmatpush.bf16.msra.mxu0 %v7869
    %9007 = vmatpush.bf16.msra.mxu0 %v7865
    %9008 = vmatpush.bf16.msra.mxu0 %v7861
    %9009 = vmatpush.bf16.msra.mxu0 %v7857
    %9010 = vmatpush.bf16.msra.mxu0 %v7853
    %9011 = vmatpush.bf16.msra.mxu0 %v7849
    %9012 = vmatmul.bf16.gmra.mxu0 %v5650
    %v9013 = vpop.f32.mrf.mxu0
    %v9014 = vadd.f32 %v9001, %v9013
    %v9015 = vpop.f32.mrf.mxu0
    %9016 = vdwg.mxu0
    %9017 = vmatpush.bf16.msra.mxu0 %v7909
    %9018 = vmatpush.bf16.msra.mxu0 %v7905
    %9019 = vmatpush.bf16.msra.mxu0 %v7901
    %9020 = vmatpush.bf16.msra.mxu0 %v7897
    %9021 = vmatpush.bf16.msra.mxu0 %v7893
    %9022 = vmatpush.bf16.msra.mxu0 %v7889
    %9023 = vmatpush.bf16.msra.mxu0 %v7885
    %9024 = vmatpush.bf16.msra.mxu0 %v7881
    %9025 = vmatmul.bf16.gmra.mxu0 %v5651
    %v9026 = vpop.f32.mrf.mxu0
    %v9027 = vadd.f32 %v9014, %v9026
    %v9028 = vpop.f32.mrf.mxu0
    %9029 = vdwg.mxu0
    %9030 = vmatpush.bf16.msra.mxu0 %v7941
    %9031 = vmatpush.bf16.msra.mxu0 %v7937
    %9032 = vmatpush.bf16.msra.mxu0 %v7933
    %9033 = vmatpush.bf16.msra.mxu0 %v7929
    %9034 = vmatpush.bf16.msra.mxu0 %v7925
    %9035 = vmatpush.bf16.msra.mxu0 %v7921
    %9036 = vmatpush.bf16.msra.mxu0 %v7917
    %9037 = vmatpush.bf16.msra.mxu0 %v7913
    %9038 = vmatmul.bf16.gmra.mxu0 %v5652
    %v9039 = vpop.f32.mrf.mxu0
    %v9040 = vadd.f32 %v9027, %v9039
    %v9041 = vpop.f32.mrf.mxu0
    %9042 = vdwg.mxu0
    %9043 = vmatpush.bf16.msra.mxu0 %v7973
    %9044 = vmatpush.bf16.msra.mxu0 %v7969
    %9045 = vmatpush.bf16.msra.mxu0 %v7965
    %9046 = vmatpush.bf16.msra.mxu0 %v7961
    %9047 = vmatpush.bf16.msra.mxu0 %v7957
    %9048 = vmatpush.bf16.msra.mxu0 %v7953
    %9049 = vmatpush.bf16.msra.mxu0 %v7949
    %9050 = vmatpush.bf16.msra.mxu0 %v7945
    %9051 = vmatmul.bf16.gmra.mxu0 %v5653
    %v9052 = vpop.f32.mrf.mxu0
    %v9053 = vadd.f32 %v9040, %v9052
    %v9054 = vpop.f32.mrf.mxu0
    %9055 = vdwg.mxu0
    %9056 = vmatpush.bf16.msra.mxu0 %v8005
    %9057 = vmatpush.bf16.msra.mxu0 %v8001
    %9058 = vmatpush.bf16.msra.mxu0 %v7997
    %9059 = vmatpush.bf16.msra.mxu0 %v7993
    %9060 = vmatpush.bf16.msra.mxu0 %v7989
    %9061 = vmatpush.bf16.msra.mxu0 %v7985
    %9062 = vmatpush.bf16.msra.mxu0 %v7981
    %9063 = vmatpush.bf16.msra.mxu0 %v7977
    %9064 = vmatmul.bf16.gmra.mxu0 %v5654
    %v9065 = vpop.f32.mrf.mxu0
    %v9066 = vadd.f32 %v9053, %v9065
    %v9067 = vpop.f32.mrf.mxu0
    %9068 = vdwg.mxu0
    %9069 = vmatpush.bf16.msra.mxu0 %v8037
    %9070 = vmatpush.bf16.msra.mxu0 %v8033
    %9071 = vmatpush.bf16.msra.mxu0 %v8029
    %9072 = vmatpush.bf16.msra.mxu0 %v8025
    %9073 = vmatpush.bf16.msra.mxu0 %v8021
    %9074 = vmatpush.bf16.msra.mxu0 %v8017
    %9075 = vmatpush.bf16.msra.mxu0 %v8013
    %9076 = vmatpush.bf16.msra.mxu0 %v8009
    %9077 = vmatmul.bf16.gmra.mxu0 %v5655
    %v9078 = vpop.f32.mrf.mxu0
    %v9079 = vadd.f32 %v9066, %v9078
    %v9080 = vpop.f32.mrf.mxu0
    %9081 = vdwg.mxu0
    %9082 = vmatpush.bf16.msra.mxu0 %v8069
    %9083 = vmatpush.bf16.msra.mxu0 %v8065
    %9084 = vmatpush.bf16.msra.mxu0 %v8061
    %9085 = vmatpush.bf16.msra.mxu0 %v8057
    %9086 = vmatpush.bf16.msra.mxu0 %v8053
    %9087 = vmatpush.bf16.msra.mxu0 %v8049
    %9088 = vmatpush.bf16.msra.mxu0 %v8045
    %9089 = vmatpush.bf16.msra.mxu0 %v8041
    %9090 = vmatmul.bf16.gmra.mxu0 %v5656
    %v9091 = vpop.f32.mrf.mxu0
    %v9092 = vadd.f32 %v9079, %v9091
    %v9093 = vpop.f32.mrf.mxu0
    %9094 = vdwg.mxu0
    %9095 = vmatpush.bf16.msra.mxu0 %v8101
    %9096 = vmatpush.bf16.msra.mxu0 %v8097
    %9097 = vmatpush.bf16.msra.mxu0 %v8093
    %9098 = vmatpush.bf16.msra.mxu0 %v8089
    %9099 = vmatpush.bf16.msra.mxu0 %v8085
    %9100 = vmatpush.bf16.msra.mxu0 %v8081
    %9101 = vmatpush.bf16.msra.mxu0 %v8077
    %9102 = vmatpush.bf16.msra.mxu0 %v8073
    %9103 = vmatmul.bf16.gmra.mxu0 %v5657
    %v9104 = vpop.f32.mrf.mxu0
    %v9105 = vadd.f32 %v9092, %v9104
    %v9106 = vpop.f32.mrf.mxu0
    %9107 = vdwg.mxu0
    %9108 = vmatpush.bf16.msra.mxu0 %v8133
    %9109 = vmatpush.bf16.msra.mxu0 %v8129
    %9110 = vmatpush.bf16.msra.mxu0 %v8125
    %9111 = vmatpush.bf16.msra.mxu0 %v8121
    %9112 = vmatpush.bf16.msra.mxu0 %v8117
    %9113 = vmatpush.bf16.msra.mxu0 %v8113
    %9114 = vmatpush.bf16.msra.mxu0 %v8109
    %9115 = vmatpush.bf16.msra.mxu0 %v8105
    %9116 = vmatmul.bf16.gmra.mxu0 %v5658
    %v9117 = vpop.f32.mrf.mxu0
    %v9118 = vadd.f32 %v9105, %v9117
    %v9119 = vpop.f32.mrf.mxu0
    %9120 = vdwg.mxu0
    %9121 = vmatpush.bf16.msra.mxu0 %v8165
    %9122 = vmatpush.bf16.msra.mxu0 %v8161
    %9123 = vmatpush.bf16.msra.mxu0 %v8157
    %9124 = vmatpush.bf16.msra.mxu0 %v8153
    %9125 = vmatpush.bf16.msra.mxu0 %v8149
    %9126 = vmatpush.bf16.msra.mxu0 %v8145
    %9127 = vmatpush.bf16.msra.mxu0 %v8141
    %9128 = vmatpush.bf16.msra.mxu0 %v8137
    %9129 = vmatmul.bf16.gmra.mxu0 %v5659
    %v9130 = vpop.f32.mrf.mxu0
    %v9131 = vadd.f32 %v9118, %v9130
    %v9132 = vpop.f32.mrf.mxu0
    %9133 = vdwg.mxu0
    %9134 = vmatpush.bf16.msra.mxu0 %v8197
    %9135 = vmatpush.bf16.msra.mxu0 %v8193
    %9136 = vmatpush.bf16.msra.mxu0 %v8189
    %9137 = vmatpush.bf16.msra.mxu0 %v8185
    %9138 = vmatpush.bf16.msra.mxu0 %v8181
    %9139 = vmatpush.bf16.msra.mxu0 %v8177
    %9140 = vmatpush.bf16.msra.mxu0 %v8173
    %9141 = vmatpush.bf16.msra.mxu0 %v8169
    %9142 = vmatmul.bf16.gmra.mxu0 %v5660
    %v9143 = vpop.f32.mrf.mxu0
    %v9144 = vadd.f32 %v9131, %v9143
    %v9145 = vpop.f32.mrf.mxu0
    %9146 = vdwg.mxu0
    %9147 = vmatpush.bf16.msra.mxu0 %v8229
    %9148 = vmatpush.bf16.msra.mxu0 %v8225
    %9149 = vmatpush.bf16.msra.mxu0 %v8221
    %9150 = vmatpush.bf16.msra.mxu0 %v8217
    %9151 = vmatpush.bf16.msra.mxu0 %v8213
    %9152 = vmatpush.bf16.msra.mxu0 %v8209
    %9153 = vmatpush.bf16.msra.mxu0 %v8205
    %9154 = vmatpush.bf16.msra.mxu0 %v8201
    %9155 = vmatmul.bf16.gmra.mxu0 %v5661
    %v9156 = vpop.f32.mrf.mxu0
    %v9157 = vadd.f32 %v9144, %v9156
    %v9158 = vpop.f32.mrf.mxu0
    %9159 = vdwg.mxu0
    %9160 = vmatpush.bf16.msra.mxu0 %v7750
    %9161 = vmatpush.bf16.msra.mxu0 %v7746
    %9162 = vmatpush.bf16.msra.mxu0 %v7742
    %9163 = vmatpush.bf16.msra.mxu0 %v7738
    %9164 = vmatpush.bf16.msra.mxu0 %v7734
    %9165 = vmatpush.bf16.msra.mxu0 %v7730
    %9166 = vmatpush.bf16.msra.mxu0 %v7726
    %9167 = vmatpush.bf16.msra.mxu0 %v7722
    %9168 = vmatmul.bf16.gmra.mxu0 %v5646
    %v9169 = vpop.f32.mrf.mxu0
    %v9170 = vadd.f32 %v6178, %v9169
    %v9171 = vpop.f32.mrf.mxu0
    %9172 = vdwg.mxu0
    %9173 = vmatpush.bf16.msra.mxu0 %v7782
    %9174 = vmatpush.bf16.msra.mxu0 %v7778
    %9175 = vmatpush.bf16.msra.mxu0 %v7774
    %9176 = vmatpush.bf16.msra.mxu0 %v7770
    %9177 = vmatpush.bf16.msra.mxu0 %v7766
    %9178 = vmatpush.bf16.msra.mxu0 %v7762
    %9179 = vmatpush.bf16.msra.mxu0 %v7758
    %9180 = vmatpush.bf16.msra.mxu0 %v7754
    %9181 = vmatmul.bf16.gmra.mxu0 %v5647
    %v9182 = vpop.f32.mrf.mxu0
    %v9183 = vadd.f32 %v9170, %v9182
    %v9184 = vpop.f32.mrf.mxu0
    %9185 = vdwg.mxu0
    %9186 = vmatpush.bf16.msra.mxu0 %v7814
    %9187 = vmatpush.bf16.msra.mxu0 %v7810
    %9188 = vmatpush.bf16.msra.mxu0 %v7806
    %9189 = vmatpush.bf16.msra.mxu0 %v7802
    %9190 = vmatpush.bf16.msra.mxu0 %v7798
    %9191 = vmatpush.bf16.msra.mxu0 %v7794
    %9192 = vmatpush.bf16.msra.mxu0 %v7790
    %9193 = vmatpush.bf16.msra.mxu0 %v7786
    %9194 = vmatmul.bf16.gmra.mxu0 %v5648
    %v9195 = vpop.f32.mrf.mxu0
    %v9196 = vadd.f32 %v9183, %v9195
    %v9197 = vpop.f32.mrf.mxu0
    %9198 = vdwg.mxu0
    %9199 = vmatpush.bf16.msra.mxu0 %v7846
    %9200 = vmatpush.bf16.msra.mxu0 %v7842
    %9201 = vmatpush.bf16.msra.mxu0 %v7838
    %9202 = vmatpush.bf16.msra.mxu0 %v7834
    %9203 = vmatpush.bf16.msra.mxu0 %v7830
    %9204 = vmatpush.bf16.msra.mxu0 %v7826
    %9205 = vmatpush.bf16.msra.mxu0 %v7822
    %9206 = vmatpush.bf16.msra.mxu0 %v7818
    %9207 = vmatmul.bf16.gmra.mxu0 %v5649
    %v9208 = vpop.f32.mrf.mxu0
    %v9209 = vadd.f32 %v9196, %v9208
    %v9210 = vpop.f32.mrf.mxu0
    %9211 = vdwg.mxu0
    %9212 = vmatpush.bf16.msra.mxu0 %v7878
    %9213 = vmatpush.bf16.msra.mxu0 %v7874
    %9214 = vmatpush.bf16.msra.mxu0 %v7870
    %9215 = vmatpush.bf16.msra.mxu0 %v7866
    %9216 = vmatpush.bf16.msra.mxu0 %v7862
    %9217 = vmatpush.bf16.msra.mxu0 %v7858
    %9218 = vmatpush.bf16.msra.mxu0 %v7854
    %9219 = vmatpush.bf16.msra.mxu0 %v7850
    %9220 = vmatmul.bf16.gmra.mxu0 %v5650
    %v9221 = vpop.f32.mrf.mxu0
    %v9222 = vadd.f32 %v9209, %v9221
    %v9223 = vpop.f32.mrf.mxu0
    %9224 = vdwg.mxu0
    %9225 = vmatpush.bf16.msra.mxu0 %v7910
    %9226 = vmatpush.bf16.msra.mxu0 %v7906
    %9227 = vmatpush.bf16.msra.mxu0 %v7902
    %9228 = vmatpush.bf16.msra.mxu0 %v7898
    %9229 = vmatpush.bf16.msra.mxu0 %v7894
    %9230 = vmatpush.bf16.msra.mxu0 %v7890
    %9231 = vmatpush.bf16.msra.mxu0 %v7886
    %9232 = vmatpush.bf16.msra.mxu0 %v7882
    %9233 = vmatmul.bf16.gmra.mxu0 %v5651
    %v9234 = vpop.f32.mrf.mxu0
    %v9235 = vadd.f32 %v9222, %v9234
    %v9236 = vpop.f32.mrf.mxu0
    %9237 = vdwg.mxu0
    %9238 = vmatpush.bf16.msra.mxu0 %v7942
    %9239 = vmatpush.bf16.msra.mxu0 %v7938
    %9240 = vmatpush.bf16.msra.mxu0 %v7934
    %9241 = vmatpush.bf16.msra.mxu0 %v7930
    %9242 = vmatpush.bf16.msra.mxu0 %v7926
    %9243 = vmatpush.bf16.msra.mxu0 %v7922
    %9244 = vmatpush.bf16.msra.mxu0 %v7918
    %9245 = vmatpush.bf16.msra.mxu0 %v7914
    %9246 = vmatmul.bf16.gmra.mxu0 %v5652
    %v9247 = vpop.f32.mrf.mxu0
    %v9248 = vadd.f32 %v9235, %v9247
    %v9249 = vpop.f32.mrf.mxu0
    %9250 = vdwg.mxu0
    %9251 = vmatpush.bf16.msra.mxu0 %v7974
    %9252 = vmatpush.bf16.msra.mxu0 %v7970
    %9253 = vmatpush.bf16.msra.mxu0 %v7966
    %9254 = vmatpush.bf16.msra.mxu0 %v7962
    %9255 = vmatpush.bf16.msra.mxu0 %v7958
    %9256 = vmatpush.bf16.msra.mxu0 %v7954
    %9257 = vmatpush.bf16.msra.mxu0 %v7950
    %9258 = vmatpush.bf16.msra.mxu0 %v7946
    %9259 = vmatmul.bf16.gmra.mxu0 %v5653
    %v9260 = vpop.f32.mrf.mxu0
    %v9261 = vadd.f32 %v9248, %v9260
    %v9262 = vpop.f32.mrf.mxu0
    %9263 = vdwg.mxu0
    %9264 = vmatpush.bf16.msra.mxu0 %v8006
    %9265 = vmatpush.bf16.msra.mxu0 %v8002
    %9266 = vmatpush.bf16.msra.mxu0 %v7998
    %9267 = vmatpush.bf16.msra.mxu0 %v7994
    %9268 = vmatpush.bf16.msra.mxu0 %v7990
    %9269 = vmatpush.bf16.msra.mxu0 %v7986
    %9270 = vmatpush.bf16.msra.mxu0 %v7982
    %9271 = vmatpush.bf16.msra.mxu0 %v7978
    %9272 = vmatmul.bf16.gmra.mxu0 %v5654
    %v9273 = vpop.f32.mrf.mxu0
    %v9274 = vadd.f32 %v9261, %v9273
    %v9275 = vpop.f32.mrf.mxu0
    %9276 = vdwg.mxu0
    %9277 = vmatpush.bf16.msra.mxu0 %v8038
    %9278 = vmatpush.bf16.msra.mxu0 %v8034
    %9279 = vmatpush.bf16.msra.mxu0 %v8030
    %9280 = vmatpush.bf16.msra.mxu0 %v8026
    %9281 = vmatpush.bf16.msra.mxu0 %v8022
    %9282 = vmatpush.bf16.msra.mxu0 %v8018
    %9283 = vmatpush.bf16.msra.mxu0 %v8014
    %9284 = vmatpush.bf16.msra.mxu0 %v8010
    %9285 = vmatmul.bf16.gmra.mxu0 %v5655
    %v9286 = vpop.f32.mrf.mxu0
    %v9287 = vadd.f32 %v9274, %v9286
    %v9288 = vpop.f32.mrf.mxu0
    %9289 = vdwg.mxu0
    %9290 = vmatpush.bf16.msra.mxu0 %v8070
    %9291 = vmatpush.bf16.msra.mxu0 %v8066
    %9292 = vmatpush.bf16.msra.mxu0 %v8062
    %9293 = vmatpush.bf16.msra.mxu0 %v8058
    %9294 = vmatpush.bf16.msra.mxu0 %v8054
    %9295 = vmatpush.bf16.msra.mxu0 %v8050
    %9296 = vmatpush.bf16.msra.mxu0 %v8046
    %9297 = vmatpush.bf16.msra.mxu0 %v8042
    %9298 = vmatmul.bf16.gmra.mxu0 %v5656
    %v9299 = vpop.f32.mrf.mxu0
    %v9300 = vadd.f32 %v9287, %v9299
    %v9301 = vpop.f32.mrf.mxu0
    %9302 = vdwg.mxu0
    %9303 = vmatpush.bf16.msra.mxu0 %v8102
    %9304 = vmatpush.bf16.msra.mxu0 %v8098
    %9305 = vmatpush.bf16.msra.mxu0 %v8094
    %9306 = vmatpush.bf16.msra.mxu0 %v8090
    %9307 = vmatpush.bf16.msra.mxu0 %v8086
    %9308 = vmatpush.bf16.msra.mxu0 %v8082
    %9309 = vmatpush.bf16.msra.mxu0 %v8078
    %9310 = vmatpush.bf16.msra.mxu0 %v8074
    %9311 = vmatmul.bf16.gmra.mxu0 %v5657
    %v9312 = vpop.f32.mrf.mxu0
    %v9313 = vadd.f32 %v9300, %v9312
    %v9314 = vpop.f32.mrf.mxu0
    %9315 = vdwg.mxu0
    %9316 = vmatpush.bf16.msra.mxu0 %v8134
    %9317 = vmatpush.bf16.msra.mxu0 %v8130
    %9318 = vmatpush.bf16.msra.mxu0 %v8126
    %9319 = vmatpush.bf16.msra.mxu0 %v8122
    %9320 = vmatpush.bf16.msra.mxu0 %v8118
    %9321 = vmatpush.bf16.msra.mxu0 %v8114
    %9322 = vmatpush.bf16.msra.mxu0 %v8110
    %9323 = vmatpush.bf16.msra.mxu0 %v8106
    %9324 = vmatmul.bf16.gmra.mxu0 %v5658
    %v9325 = vpop.f32.mrf.mxu0
    %v9326 = vadd.f32 %v9313, %v9325
    %v9327 = vpop.f32.mrf.mxu0
    %9328 = vdwg.mxu0
    %9329 = vmatpush.bf16.msra.mxu0 %v8166
    %9330 = vmatpush.bf16.msra.mxu0 %v8162
    %9331 = vmatpush.bf16.msra.mxu0 %v8158
    %9332 = vmatpush.bf16.msra.mxu0 %v8154
    %9333 = vmatpush.bf16.msra.mxu0 %v8150
    %9334 = vmatpush.bf16.msra.mxu0 %v8146
    %9335 = vmatpush.bf16.msra.mxu0 %v8142
    %9336 = vmatpush.bf16.msra.mxu0 %v8138
    %9337 = vmatmul.bf16.gmra.mxu0 %v5659
    %v9338 = vpop.f32.mrf.mxu0
    %v9339 = vadd.f32 %v9326, %v9338
    %v9340 = vpop.f32.mrf.mxu0
    %9341 = vdwg.mxu0
    %9342 = vmatpush.bf16.msra.mxu0 %v8198
    %9343 = vmatpush.bf16.msra.mxu0 %v8194
    %9344 = vmatpush.bf16.msra.mxu0 %v8190
    %9345 = vmatpush.bf16.msra.mxu0 %v8186
    %9346 = vmatpush.bf16.msra.mxu0 %v8182
    %9347 = vmatpush.bf16.msra.mxu0 %v8178
    %9348 = vmatpush.bf16.msra.mxu0 %v8174
    %9349 = vmatpush.bf16.msra.mxu0 %v8170
    %9350 = vmatmul.bf16.gmra.mxu0 %v5660
    %v9351 = vpop.f32.mrf.mxu0
    %v9352 = vadd.f32 %v9339, %v9351
    %v9353 = vpop.f32.mrf.mxu0
    %9354 = vdwg.mxu0
    %9355 = vmatpush.bf16.msra.mxu0 %v8230
    %9356 = vmatpush.bf16.msra.mxu0 %v8226
    %9357 = vmatpush.bf16.msra.mxu0 %v8222
    %9358 = vmatpush.bf16.msra.mxu0 %v8218
    %9359 = vmatpush.bf16.msra.mxu0 %v8214
    %9360 = vmatpush.bf16.msra.mxu0 %v8210
    %9361 = vmatpush.bf16.msra.mxu0 %v8206
    %9362 = vmatpush.bf16.msra.mxu0 %v8202
    %9363 = vmatmul.bf16.gmra.mxu0 %v5661
    %v9364 = vpop.f32.mrf.mxu0
    %v9365 = vadd.f32 %v9352, %v9364
    %v9366 = vpop.f32.mrf.mxu0
    %9367 = vdwg.mxu0
    %9368 = vmatpush.bf16.msra.mxu0 %v7751
    %9369 = vmatpush.bf16.msra.mxu0 %v7747
    %9370 = vmatpush.bf16.msra.mxu0 %v7743
    %9371 = vmatpush.bf16.msra.mxu0 %v7739
    %9372 = vmatpush.bf16.msra.mxu0 %v7735
    %9373 = vmatpush.bf16.msra.mxu0 %v7731
    %9374 = vmatpush.bf16.msra.mxu0 %v7727
    %9375 = vmatpush.bf16.msra.mxu0 %v7723
    %9376 = vmatmul.bf16.gmra.mxu0 %v5646
    %v9377 = vpop.f32.mrf.mxu0
    %v9378 = vadd.f32 %v6179, %v9377
    %v9379 = vpop.f32.mrf.mxu0
    %9380 = vdwg.mxu0
    %9381 = vmatpush.bf16.msra.mxu0 %v7783
    %9382 = vmatpush.bf16.msra.mxu0 %v7779
    %9383 = vmatpush.bf16.msra.mxu0 %v7775
    %9384 = vmatpush.bf16.msra.mxu0 %v7771
    %9385 = vmatpush.bf16.msra.mxu0 %v7767
    %9386 = vmatpush.bf16.msra.mxu0 %v7763
    %9387 = vmatpush.bf16.msra.mxu0 %v7759
    %9388 = vmatpush.bf16.msra.mxu0 %v7755
    %9389 = vmatmul.bf16.gmra.mxu0 %v5647
    %v9390 = vpop.f32.mrf.mxu0
    %v9391 = vadd.f32 %v9378, %v9390
    %v9392 = vpop.f32.mrf.mxu0
    %9393 = vdwg.mxu0
    %9394 = vmatpush.bf16.msra.mxu0 %v7815
    %9395 = vmatpush.bf16.msra.mxu0 %v7811
    %9396 = vmatpush.bf16.msra.mxu0 %v7807
    %9397 = vmatpush.bf16.msra.mxu0 %v7803
    %9398 = vmatpush.bf16.msra.mxu0 %v7799
    %9399 = vmatpush.bf16.msra.mxu0 %v7795
    %9400 = vmatpush.bf16.msra.mxu0 %v7791
    %9401 = vmatpush.bf16.msra.mxu0 %v7787
    %9402 = vmatmul.bf16.gmra.mxu0 %v5648
    %v9403 = vpop.f32.mrf.mxu0
    %v9404 = vadd.f32 %v9391, %v9403
    %v9405 = vpop.f32.mrf.mxu0
    %9406 = vdwg.mxu0
    %9407 = vmatpush.bf16.msra.mxu0 %v7847
    %9408 = vmatpush.bf16.msra.mxu0 %v7843
    %9409 = vmatpush.bf16.msra.mxu0 %v7839
    %9410 = vmatpush.bf16.msra.mxu0 %v7835
    %9411 = vmatpush.bf16.msra.mxu0 %v7831
    %9412 = vmatpush.bf16.msra.mxu0 %v7827
    %9413 = vmatpush.bf16.msra.mxu0 %v7823
    %9414 = vmatpush.bf16.msra.mxu0 %v7819
    %9415 = vmatmul.bf16.gmra.mxu0 %v5649
    %v9416 = vpop.f32.mrf.mxu0
    %v9417 = vadd.f32 %v9404, %v9416
    %v9418 = vpop.f32.mrf.mxu0
    %9419 = vdwg.mxu0
    %9420 = vmatpush.bf16.msra.mxu0 %v7879
    %9421 = vmatpush.bf16.msra.mxu0 %v7875
    %9422 = vmatpush.bf16.msra.mxu0 %v7871
    %9423 = vmatpush.bf16.msra.mxu0 %v7867
    %9424 = vmatpush.bf16.msra.mxu0 %v7863
    %9425 = vmatpush.bf16.msra.mxu0 %v7859
    %9426 = vmatpush.bf16.msra.mxu0 %v7855
    %9427 = vmatpush.bf16.msra.mxu0 %v7851
    %9428 = vmatmul.bf16.gmra.mxu0 %v5650
    %v9429 = vpop.f32.mrf.mxu0
    %v9430 = vadd.f32 %v9417, %v9429
    %v9431 = vpop.f32.mrf.mxu0
    %9432 = vdwg.mxu0
    %9433 = vmatpush.bf16.msra.mxu0 %v7911
    %9434 = vmatpush.bf16.msra.mxu0 %v7907
    %9435 = vmatpush.bf16.msra.mxu0 %v7903
    %9436 = vmatpush.bf16.msra.mxu0 %v7899
    %9437 = vmatpush.bf16.msra.mxu0 %v7895
    %9438 = vmatpush.bf16.msra.mxu0 %v7891
    %9439 = vmatpush.bf16.msra.mxu0 %v7887
    %9440 = vmatpush.bf16.msra.mxu0 %v7883
    %9441 = vmatmul.bf16.gmra.mxu0 %v5651
    %v9442 = vpop.f32.mrf.mxu0
    %v9443 = vadd.f32 %v9430, %v9442
    %v9444 = vpop.f32.mrf.mxu0
    %9445 = vdwg.mxu0
    %9446 = vmatpush.bf16.msra.mxu0 %v7943
    %9447 = vmatpush.bf16.msra.mxu0 %v7939
    %9448 = vmatpush.bf16.msra.mxu0 %v7935
    %9449 = vmatpush.bf16.msra.mxu0 %v7931
    %9450 = vmatpush.bf16.msra.mxu0 %v7927
    %9451 = vmatpush.bf16.msra.mxu0 %v7923
    %9452 = vmatpush.bf16.msra.mxu0 %v7919
    %9453 = vmatpush.bf16.msra.mxu0 %v7915
    %9454 = vmatmul.bf16.gmra.mxu0 %v5652
    %v9455 = vpop.f32.mrf.mxu0
    %v9456 = vadd.f32 %v9443, %v9455
    %v9457 = vpop.f32.mrf.mxu0
    %9458 = vdwg.mxu0
    %9459 = vmatpush.bf16.msra.mxu0 %v7975
    %9460 = vmatpush.bf16.msra.mxu0 %v7971
    %9461 = vmatpush.bf16.msra.mxu0 %v7967
    %9462 = vmatpush.bf16.msra.mxu0 %v7963
    %9463 = vmatpush.bf16.msra.mxu0 %v7959
    %9464 = vmatpush.bf16.msra.mxu0 %v7955
    %9465 = vmatpush.bf16.msra.mxu0 %v7951
    %9466 = vmatpush.bf16.msra.mxu0 %v7947
    %9467 = vmatmul.bf16.gmra.mxu0 %v5653
    %v9468 = vpop.f32.mrf.mxu0
    %v9469 = vadd.f32 %v9456, %v9468
    %v9470 = vpop.f32.mrf.mxu0
    %9471 = vdwg.mxu0
    %9472 = vmatpush.bf16.msra.mxu0 %v8007
    %9473 = vmatpush.bf16.msra.mxu0 %v8003
    %9474 = vmatpush.bf16.msra.mxu0 %v7999
    %9475 = vmatpush.bf16.msra.mxu0 %v7995
    %9476 = vmatpush.bf16.msra.mxu0 %v7991
    %9477 = vmatpush.bf16.msra.mxu0 %v7987
    %9478 = vmatpush.bf16.msra.mxu0 %v7983
    %9479 = vmatpush.bf16.msra.mxu0 %v7979
    %9480 = vmatmul.bf16.gmra.mxu0 %v5654
    %v9481 = vpop.f32.mrf.mxu0
    %v9482 = vadd.f32 %v9469, %v9481
    %v9483 = vpop.f32.mrf.mxu0
    %9484 = vdwg.mxu0
    %9485 = vmatpush.bf16.msra.mxu0 %v8039
    %9486 = vmatpush.bf16.msra.mxu0 %v8035
    %9487 = vmatpush.bf16.msra.mxu0 %v8031
    %9488 = vmatpush.bf16.msra.mxu0 %v8027
    %9489 = vmatpush.bf16.msra.mxu0 %v8023
    %9490 = vmatpush.bf16.msra.mxu0 %v8019
    %9491 = vmatpush.bf16.msra.mxu0 %v8015
    %9492 = vmatpush.bf16.msra.mxu0 %v8011
    %9493 = vmatmul.bf16.gmra.mxu0 %v5655
    %v9494 = vpop.f32.mrf.mxu0
    %v9495 = vadd.f32 %v9482, %v9494
    %v9496 = vpop.f32.mrf.mxu0
    %9497 = vdwg.mxu0
    %9498 = vmatpush.bf16.msra.mxu0 %v8071
    %9499 = vmatpush.bf16.msra.mxu0 %v8067
    %9500 = vmatpush.bf16.msra.mxu0 %v8063
    %9501 = vmatpush.bf16.msra.mxu0 %v8059
    %9502 = vmatpush.bf16.msra.mxu0 %v8055
    %9503 = vmatpush.bf16.msra.mxu0 %v8051
    %9504 = vmatpush.bf16.msra.mxu0 %v8047
    %9505 = vmatpush.bf16.msra.mxu0 %v8043
    %9506 = vmatmul.bf16.gmra.mxu0 %v5656
    %v9507 = vpop.f32.mrf.mxu0
    %v9508 = vadd.f32 %v9495, %v9507
    %v9509 = vpop.f32.mrf.mxu0
    %9510 = vdwg.mxu0
    %9511 = vmatpush.bf16.msra.mxu0 %v8103
    %9512 = vmatpush.bf16.msra.mxu0 %v8099
    %9513 = vmatpush.bf16.msra.mxu0 %v8095
    %9514 = vmatpush.bf16.msra.mxu0 %v8091
    %9515 = vmatpush.bf16.msra.mxu0 %v8087
    %9516 = vmatpush.bf16.msra.mxu0 %v8083
    %9517 = vmatpush.bf16.msra.mxu0 %v8079
    %9518 = vmatpush.bf16.msra.mxu0 %v8075
    %9519 = vmatmul.bf16.gmra.mxu0 %v5657
    %v9520 = vpop.f32.mrf.mxu0
    %v9521 = vadd.f32 %v9508, %v9520
    %v9522 = vpop.f32.mrf.mxu0
    %9523 = vdwg.mxu0
    %9524 = vmatpush.bf16.msra.mxu0 %v8135
    %9525 = vmatpush.bf16.msra.mxu0 %v8131
    %9526 = vmatpush.bf16.msra.mxu0 %v8127
    %9527 = vmatpush.bf16.msra.mxu0 %v8123
    %9528 = vmatpush.bf16.msra.mxu0 %v8119
    %9529 = vmatpush.bf16.msra.mxu0 %v8115
    %9530 = vmatpush.bf16.msra.mxu0 %v8111
    %9531 = vmatpush.bf16.msra.mxu0 %v8107
    %9532 = vmatmul.bf16.gmra.mxu0 %v5658
    %v9533 = vpop.f32.mrf.mxu0
    %v9534 = vadd.f32 %v9521, %v9533
    %v9535 = vpop.f32.mrf.mxu0
    %9536 = vdwg.mxu0
    %9537 = vmatpush.bf16.msra.mxu0 %v8167
    %9538 = vmatpush.bf16.msra.mxu0 %v8163
    %9539 = vmatpush.bf16.msra.mxu0 %v8159
    %9540 = vmatpush.bf16.msra.mxu0 %v8155
    %9541 = vmatpush.bf16.msra.mxu0 %v8151
    %9542 = vmatpush.bf16.msra.mxu0 %v8147
    %9543 = vmatpush.bf16.msra.mxu0 %v8143
    %9544 = vmatpush.bf16.msra.mxu0 %v8139
    %9545 = vmatmul.bf16.gmra.mxu0 %v5659
    %v9546 = vpop.f32.mrf.mxu0
    %v9547 = vadd.f32 %v9534, %v9546
    %v9548 = vpop.f32.mrf.mxu0
    %9549 = vdwg.mxu0
    %9550 = vmatpush.bf16.msra.mxu0 %v8199
    %9551 = vmatpush.bf16.msra.mxu0 %v8195
    %9552 = vmatpush.bf16.msra.mxu0 %v8191
    %9553 = vmatpush.bf16.msra.mxu0 %v8187
    %9554 = vmatpush.bf16.msra.mxu0 %v8183
    %9555 = vmatpush.bf16.msra.mxu0 %v8179
    %9556 = vmatpush.bf16.msra.mxu0 %v8175
    %9557 = vmatpush.bf16.msra.mxu0 %v8171
    %9558 = vmatmul.bf16.gmra.mxu0 %v5660
    %v9559 = vpop.f32.mrf.mxu0
    %v9560 = vadd.f32 %v9547, %v9559
    %v9561 = vpop.f32.mrf.mxu0
    %9562 = vdwg.mxu0
    %9563 = vmatpush.bf16.msra.mxu0 %v8231
    %9564 = vmatpush.bf16.msra.mxu0 %v8227
    %9565 = vmatpush.bf16.msra.mxu0 %v8223
    %9566 = vmatpush.bf16.msra.mxu0 %v8219
    %9567 = vmatpush.bf16.msra.mxu0 %v8215
    %9568 = vmatpush.bf16.msra.mxu0 %v8211
    %9569 = vmatpush.bf16.msra.mxu0 %v8207
    %9570 = vmatpush.bf16.msra.mxu0 %v8203
    %9571 = vmatmul.bf16.gmra.mxu0 %v5661
    %v9572 = vpop.f32.mrf.mxu0
    %v9573 = vadd.f32 %v9560, %v9572
    %v9574 = vpop.f32.mrf.mxu0
    %9575 = vdwg.mxu0
    %v9576 = vpack.c.bf16 %v9157, %v8949
    %v9577 = vpack.c.bf16 %v9573, %v9365
    %v9578 = vunpack.c.l.bf16 %v9576
    %v9579 = vunpack.c.h.bf16 %v9576
    %v9580 = vunpack.c.l.bf16 %v9577
    %v9581 = vunpack.c.h.bf16 %v9577
    %v9582 = vmax.f32 %v9578, 0.0
    %v9583 = vmax.f32 %v9579, 0.0
    %v9584 = vmax.f32 %v9580, 0.0
    %v9585 = vmax.f32 %v9581, 0.0
    %v9586 = vpack.c.bf16 %v9582, %v9582
    %v9587 = vpack.c.bf16 %v9583, %v9583
    %v9588 = vpack.c.bf16 %v9584, %v9584
    %v9589 = vpack.c.bf16 %v9585, %v9585
    %v9590 = vld [vmem:[#allocation20] sm:$0xf]
    %v9591 = vld [vmem:[#allocation20 + $0x4] sm:$0xf]
    %v9592 = vld [vmem:[#allocation20 + $0x8] sm:$0xf]
    %v9593 = vld [vmem:[#allocation20 + $0xc] sm:$0xf]
    %v9594 = vld [vmem:[#allocation20 + $0x10] sm:$0xf]
    %v9595 = vld [vmem:[#allocation20 + $0x14] sm:$0xf]
    %v9596 = vld [vmem:[#allocation20 + $0x18] sm:$0xf]
    %v9597 = vld [vmem:[#allocation20 + $0x1c] sm:$0xf]
    %v9598 = vld [vmem:[#allocation20 + $0x20] sm:$0xf]
    %v9599 = vld [vmem:[#allocation20 + $0x24] sm:$0xf]
    %v9600 = vld [vmem:[#allocation20 + $0x28] sm:$0xf]
    %v9601 = vld [vmem:[#allocation20 + $0x2c] sm:$0xf]
    %v9602 = vld [vmem:[#allocation20 + $0x30] sm:$0xf]
    %v9603 = vld [vmem:[#allocation20 + $0x34] sm:$0xf]
    %v9604 = vld [vmem:[#allocation20 + $0x38] sm:$0xf]
    %v9605 = vld [vmem:[#allocation20 + $0x3c] sm:$0xf]
    %v9606 = vld [vmem:[#allocation20 + $0x40] sm:$0xf]
    %v9607 = vld [vmem:[#allocation20 + $0x44] sm:$0xf]
    %v9608 = vld [vmem:[#allocation20 + $0x48] sm:$0xf]
    %v9609 = vld [vmem:[#allocation20 + $0x4c] sm:$0xf]
    %v9610 = vld [vmem:[#allocation20 + $0x50] sm:$0xf]
    %v9611 = vld [vmem:[#allocation20 + $0x54] sm:$0xf]
    %v9612 = vld [vmem:[#allocation20 + $0x58] sm:$0xf]
    %v9613 = vld [vmem:[#allocation20 + $0x5c] sm:$0xf]
    %v9614 = vld [vmem:[#allocation20 + $0x60] sm:$0xf]
    %v9615 = vld [vmem:[#allocation20 + $0x64] sm:$0xf]
    %v9616 = vld [vmem:[#allocation20 + $0x68] sm:$0xf]
    %v9617 = vld [vmem:[#allocation20 + $0x6c] sm:$0xf]
    %v9618 = vld [vmem:[#allocation20 + $0x70] sm:$0xf]
    %v9619 = vld [vmem:[#allocation20 + $0x74] sm:$0xf]
    %v9620 = vld [vmem:[#allocation20 + $0x78] sm:$0xf]
    %v9621 = vld [vmem:[#allocation20 + $0x7c] sm:$0xf]
    %v9622 = vld [vmem:[#allocation20 + $0x80] sm:$0xf]
    %v9623 = vld [vmem:[#allocation20 + $0x84] sm:$0xf]
    %v9624 = vld [vmem:[#allocation20 + $0x88] sm:$0xf]
    %v9625 = vld [vmem:[#allocation20 + $0x8c] sm:$0xf]
    %v9626 = vld [vmem:[#allocation20 + $0x90] sm:$0xf]
    %v9627 = vld [vmem:[#allocation20 + $0x94] sm:$0xf]
    %v9628 = vld [vmem:[#allocation20 + $0x98] sm:$0xf]
    %v9629 = vld [vmem:[#allocation20 + $0x9c] sm:$0xf]
    %v9630 = vld [vmem:[#allocation20 + $0xa0] sm:$0xf]
    %v9631 = vld [vmem:[#allocation20 + $0xa4] sm:$0xf]
    %v9632 = vld [vmem:[#allocation20 + $0xa8] sm:$0xf]
    %v9633 = vld [vmem:[#allocation20 + $0xac] sm:$0xf]
    %v9634 = vld [vmem:[#allocation20 + $0xb0] sm:$0xf]
    %v9635 = vld [vmem:[#allocation20 + $0xb4] sm:$0xf]
    %v9636 = vld [vmem:[#allocation20 + $0xb8] sm:$0xf]
    %v9637 = vld [vmem:[#allocation20 + $0xbc] sm:$0xf]
    %v9638 = vld [vmem:[#allocation20 + $0xc0] sm:$0xf]
    %v9639 = vld [vmem:[#allocation20 + $0xc4] sm:$0xf]
    %v9640 = vld [vmem:[#allocation20 + $0xc8] sm:$0xf]
    %v9641 = vld [vmem:[#allocation20 + $0xcc] sm:$0xf]
    %v9642 = vld [vmem:[#allocation20 + $0xd0] sm:$0xf]
    %v9643 = vld [vmem:[#allocation20 + $0xd4] sm:$0xf]
    %v9644 = vld [vmem:[#allocation20 + $0xd8] sm:$0xf]
    %v9645 = vld [vmem:[#allocation20 + $0xdc] sm:$0xf]
    %v9646 = vld [vmem:[#allocation20 + $0xe0] sm:$0xf]
    %v9647 = vld [vmem:[#allocation20 + $0xe4] sm:$0xf]
    %v9648 = vld [vmem:[#allocation20 + $0xe8] sm:$0xf]
    %v9649 = vld [vmem:[#allocation20 + $0xec] sm:$0xf]
    %v9650 = vld [vmem:[#allocation20 + $0xf0] sm:$0xf]
    %v9651 = vld [vmem:[#allocation20 + $0xf4] sm:$0xf]
    %v9652 = vld [vmem:[#allocation20 + $0xf8] sm:$0xf]
    %v9653 = vld [vmem:[#allocation20 + $0xfc] sm:$0xf]
    %v9654 = vld [vmem:[#allocation22] sm:$0x1]
    %v9656 = vperm.slane %v9654, 0
    %v9722 = vunpack.c.l.b16 %v9590
    %v9723 = vunpack.c.l.b16 %v9591
    %v9724 = vunpack.c.l.b16 %v9592
    %v9725 = vunpack.c.l.b16 %v9593
    %v9726 = vunpack.c.l.b16 %v9594
    %v9727 = vunpack.c.l.b16 %v9595
    %v9728 = vunpack.c.l.b16 %v9596
    %v9729 = vunpack.c.l.b16 %v9597
    %v9730 = vunpack.c.l.b16 %v9598
    %v9731 = vunpack.c.l.b16 %v9599
    %v9732 = vunpack.c.l.b16 %v9600
    %v9733 = vunpack.c.l.b16 %v9601
    %v9734 = vunpack.c.l.b16 %v9602
    %v9735 = vunpack.c.l.b16 %v9603
    %v9736 = vunpack.c.l.b16 %v9604
    %v9737 = vunpack.c.l.b16 %v9605
    %v9738 = vunpack.c.l.b16 %v9606
    %v9739 = vunpack.c.l.b16 %v9607
    %v9740 = vunpack.c.l.b16 %v9608
    %v9741 = vunpack.c.l.b16 %v9609
    %v9742 = vunpack.c.l.b16 %v9610
    %v9743 = vunpack.c.l.b16 %v9611
    %v9744 = vunpack.c.l.b16 %v9612
    %v9745 = vunpack.c.l.b16 %v9613
    %v9746 = vunpack.c.l.b16 %v9614
    %v9747 = vunpack.c.l.b16 %v9615
    %v9748 = vunpack.c.l.b16 %v9616
    %v9749 = vunpack.c.l.b16 %v9617
    %v9750 = vunpack.c.l.b16 %v9618
    %v9751 = vunpack.c.l.b16 %v9619
    %v9752 = vunpack.c.l.b16 %v9620
    %v9753 = vunpack.c.l.b16 %v9621
    %v9754 = vunpack.c.l.b16 %v9622
    %v9755 = vunpack.c.l.b16 %v9623
    %v9756 = vunpack.c.l.b16 %v9624
    %v9757 = vunpack.c.l.b16 %v9625
    %v9758 = vunpack.c.l.b16 %v9626
    %v9759 = vunpack.c.l.b16 %v9627
    %v9760 = vunpack.c.l.b16 %v9628
    %v9761 = vunpack.c.l.b16 %v9629
    %v9762 = vunpack.c.l.b16 %v9630
    %v9763 = vunpack.c.l.b16 %v9631
    %v9764 = vunpack.c.l.b16 %v9632
    %v9765 = vunpack.c.l.b16 %v9633
    %v9766 = vunpack.c.l.b16 %v9634
    %v9767 = vunpack.c.l.b16 %v9635
    %v9768 = vunpack.c.l.b16 %v9636
    %v9769 = vunpack.c.l.b16 %v9637
    %v9770 = vunpack.c.l.b16 %v9638
    %v9771 = vunpack.c.l.b16 %v9639
    %v9772 = vunpack.c.l.b16 %v9640
    %v9773 = vunpack.c.l.b16 %v9641
    %v9774 = vunpack.c.l.b16 %v9642
    %v9775 = vunpack.c.l.b16 %v9643
    %v9776 = vunpack.c.l.b16 %v9644
    %v9777 = vunpack.c.l.b16 %v9645
    %v9778 = vunpack.c.l.b16 %v9646
    %v9779 = vunpack.c.l.b16 %v9647
    %v9780 = vunpack.c.l.b16 %v9648
    %v9781 = vunpack.c.l.b16 %v9649
    %v9782 = vunpack.c.l.b16 %v9650
    %v9783 = vunpack.c.l.b16 %v9651
    %v9784 = vunpack.c.l.b16 %v9652
    %v9785 = vunpack.c.l.b16 %v9653
    %v9786 = vpack.c.b16 %v9723, %v9722
    %v9787 = vpack.c.b16 %v9725, %v9724
    %v9788 = vpack.c.b16 %v9727, %v9726
    %v9789 = vpack.c.b16 %v9729, %v9728
    %v9790 = vpack.c.b16 %v9731, %v9730
    %v9791 = vpack.c.b16 %v9733, %v9732
    %v9792 = vpack.c.b16 %v9735, %v9734
    %v9793 = vpack.c.b16 %v9737, %v9736
    %v9794 = vpack.c.b16 %v9739, %v9738
    %v9795 = vpack.c.b16 %v9741, %v9740
    %v9796 = vpack.c.b16 %v9743, %v9742
    %v9797 = vpack.c.b16 %v9745, %v9744
    %v9798 = vpack.c.b16 %v9747, %v9746
    %v9799 = vpack.c.b16 %v9749, %v9748
    %v9800 = vpack.c.b16 %v9751, %v9750
    %v9801 = vpack.c.b16 %v9753, %v9752
    %v9802 = vpack.c.b16 %v9755, %v9754
    %v9803 = vpack.c.b16 %v9757, %v9756
    %v9804 = vpack.c.b16 %v9759, %v9758
    %v9805 = vpack.c.b16 %v9761, %v9760
    %v9806 = vpack.c.b16 %v9763, %v9762
    %v9807 = vpack.c.b16 %v9765, %v9764
    %v9808 = vpack.c.b16 %v9767, %v9766
    %v9809 = vpack.c.b16 %v9769, %v9768
    %v9810 = vpack.c.b16 %v9771, %v9770
    %v9811 = vpack.c.b16 %v9773, %v9772
    %v9812 = vpack.c.b16 %v9775, %v9774
    %v9813 = vpack.c.b16 %v9777, %v9776
    %v9814 = vpack.c.b16 %v9779, %v9778
    %v9815 = vpack.c.b16 %v9781, %v9780
    %v9816 = vpack.c.b16 %v9783, %v9782
    %v9817 = vpack.c.b16 %v9785, %v9784
    %9850 = vmatpush.bf16.msra.mxu0 %v9793
    %9851 = vmatpush.bf16.msra.mxu0 %v9792
    %9852 = vmatpush.bf16.msra.mxu0 %v9791
    %9853 = vmatpush.bf16.msra.mxu0 %v9790
    %9854 = vmatpush.bf16.msra.mxu0 %v9789
    %9855 = vmatpush.bf16.msra.mxu0 %v9788
    %9856 = vmatpush.bf16.msra.mxu0 %v9787
    %9857 = vmatpush.bf16.msra.mxu0 %v9786
    %9858 = vmatmul.bf16.gmra.mxu0 %v9586
    %v9859 = vpop.f32.mrf.mxu0
    %v9860 = vadd.f32 %v9656, %v9859
    %v9861 = vpop.f32.mrf.mxu0
    %9862 = vdwg.mxu0
    %9863 = vmatpush.bf16.msra.mxu0 %v9801
    %9864 = vmatpush.bf16.msra.mxu0 %v9800
    %9865 = vmatpush.bf16.msra.mxu0 %v9799
    %9866 = vmatpush.bf16.msra.mxu0 %v9798
    %9867 = vmatpush.bf16.msra.mxu0 %v9797
    %9868 = vmatpush.bf16.msra.mxu0 %v9796
    %9869 = vmatpush.bf16.msra.mxu0 %v9795
    %9870 = vmatpush.bf16.msra.mxu0 %v9794
    %9871 = vmatmul.bf16.gmra.mxu0 %v9587
    %v9872 = vpop.f32.mrf.mxu0
    %v9873 = vadd.f32 %v9860, %v9872
    %v9874 = vpop.f32.mrf.mxu0
    %9875 = vdwg.mxu0
    %9876 = vmatpush.bf16.msra.mxu0 %v9809
    %9877 = vmatpush.bf16.msra.mxu0 %v9808
    %9878 = vmatpush.bf16.msra.mxu0 %v9807
    %9879 = vmatpush.bf16.msra.mxu0 %v9806
    %9880 = vmatpush.bf16.msra.mxu0 %v9805
    %9881 = vmatpush.bf16.msra.mxu0 %v9804
    %9882 = vmatpush.bf16.msra.mxu0 %v9803
    %9883 = vmatpush.bf16.msra.mxu0 %v9802
    %9884 = vmatmul.bf16.gmra.mxu0 %v9588
    %v9885 = vpop.f32.mrf.mxu0
    %v9886 = vadd.f32 %v9873, %v9885
    %v9887 = vpop.f32.mrf.mxu0
    %9888 = vdwg.mxu0
    %9889 = vmatpush.bf16.msra.mxu0 %v9817
    %9890 = vmatpush.bf16.msra.mxu0 %v9816
    %9891 = vmatpush.bf16.msra.mxu0 %v9815
    %9892 = vmatpush.bf16.msra.mxu0 %v9814
    %9893 = vmatpush.bf16.msra.mxu0 %v9813
    %9894 = vmatpush.bf16.msra.mxu0 %v9812
    %9895 = vmatpush.bf16.msra.mxu0 %v9811
    %9896 = vmatpush.bf16.msra.mxu0 %v9810
    %9897 = vmatmul.bf16.gmra.mxu0 %v9589
    %v9898 = vpop.f32.mrf.mxu0
    %v9899 = vadd.f32 %v9886, %v9898
    %v9900 = vpop.f32.mrf.mxu0
    %9901 = vdwg.mxu0
    %v9902 = vsub.f32 0.0, %v9899
    %v9903 = vmul.f32 %v9902, 1.442695
    %v9904 = vpow.pop %v9903
    %v9905 = vadd.f32 %v9904, 1.0
    %v9906 = vrcp.pop %v9905
    %9907 = vst [vmem:[#allocation23] sm:$0x3] %v9906
    // Predicated region
    $region110: #{tpu_custom_call.1} parent=1 // pred_check
      _
    $region111: #{tpu_custom_call.1} parent=1 // pred_check_branch
      %9909 = sbr.rel (0) target = $region113
    $region112: #{tpu_custom_call.1} parent=1 // pred_region
      %9911 = vsyncadd [#allocation4], 0
      %s9913 = sshll.u32 [#allocation23], 4
      %s9914 = int_to_ptr.vmem [resolvable:$true] %s9913
      %s9915 = sshll.u32 %s14, 4
      %s9916 = int_to_ptr.hbm [resolvable:$true] %s9915
      %9918 = dma.vmem_to_hbm [thread:$0]  %s9914, 32, %s9916, [#allocation4]
    $region113: #{tpu_custom_call.1} parent=1 // pred_fallthru
      _
    // Predicated region
    $region114: #{tpu_custom_call.1} parent=1 // pred_check
      _
    $region115: #{tpu_custom_call.1} parent=1 // pred_check_branch
      %9920 = sbr.rel (0) target = $region117
    $region116: #{tpu_custom_call.1} parent=1 // pred_region
      %9922 = dma.done [#allocation4], 32
    $region117: #{tpu_custom_call.1} parent=1 // pred_fallthru
      _
    %9923 = vsyncpa [#allocation3], 1
    %9924 = vsyncpa [#allocation6], 1
    %9925 = vsyncpa [#allocation9], 1
    %9926 = vsyncpa [#allocation12], 1
    %9927 = vsyncpa [#allocation15], 1
    %9928 = vsyncpa [#allocation18], 1
    %9929 = vsyncpa [#allocation21], 1
    %9930 = vsyncpa [#allocation4], 1

</llo_original>
